<compile_context>
chip_gen: v7x
topology: tpu7x:2x2x1
jax: 0.10.0
libtpu: 0.0.40
codegen_flags: <defaults>
</compile_context>

<pallas_src>
import functools

import jax
import jax.numpy as jnp
import numpy as np
from jax.experimental import pallas as pl
from jax.experimental.pallas import tpu as pltpu

EPS = 1e-5                        # PyTorch BatchNorm2d default
LANE = 128                        # TPU lane width; channel padding granularity
MAX_TILE_M = 512                  # sized for v7x (64 MiB VMEM)
VMEM_LIMIT = 48 * 1024 * 1024     # scoped-VMEM ceiling (< 64 MiB physical on v7x)
K_TILE_BUDGET = 24 * 1024 * 1024  # per-step footprint budget when picking TILE_K


# ----------------------------- small helpers ------------------------------- #

def _round_up(n, m):
    return (n + m - 1) // m * m


def _pick_tile_m(m):
    """Largest row tile <= MAX_TILE_M that divides M (multiple of 8)."""
    for t in (MAX_TILE_M, 256, 128, 64, 32, 16, 8):
        if t <= m and m % t == 0:
            return t
    return m


def _pick_tile_k(k, tile_m, co, ci_pad):
    """Whole contraction if it fits the VMEM budget, else tap-granular chunks."""
    taps_total = max(k // ci_pad, 1)
    for taps in (taps_total, 3, 1):
        if taps < 1 or taps > taps_total or taps_total % taps != 0:
            continue
        tk = taps * ci_pad
        footprint = 4 * (2 * tile_m * tk + 2 * tk * co + 2 * tile_m * co)
        if footprint <= K_TILE_BUDGET:
            return tk
    return ci_pad


def _pad_cols(a, c_pad):
    pad = c_pad - a.shape[-1]
    if pad == 0:
        return a
    widths = [(0, 0)] * (a.ndim - 1) + [(0, pad)]
    return jnp.pad(a, widths)


# ----------------------------- Pallas kernels ------------------------------ #

def _bn_relu_kernel(x_ref, s_ref, b_ref, o_ref):
    # y = relu(x * scale + bias), per-channel broadcast over the lane axis.
    o_ref[...] = jnp.maximum(x_ref[...] * s_ref[...] + b_ref[...], 0.0)


def bn_relu(x2d, scale, bias):
    """x2d: (M, Cpad); scale/bias: (1, Cpad).  Row-tiled, lane-dense."""
    m, c = x2d.shape
    tm = _pick_tile_m(m)
    return pl.pallas_call(
        _bn_relu_kernel,
        out_shape=jax.ShapeDtypeStruct((m, c), jnp.float32),
        grid_spec=pltpu.PrefetchScalarGridSpec(
            num_scalar_prefetch=0,
            grid=(m // tm,),
            in_specs=[pl.BlockSpec((tm, c), lambda i: (i, 0)),
                      pl.BlockSpec((1, c), lambda i: (0, 0)),
                      pl.BlockSpec((1, c), lambda i: (0, 0))],
            out_specs=pl.BlockSpec((tm, c), lambda i: (i, 0)),
        ),
        compiler_params=pltpu.CompilerParams(
            dimension_semantics=("parallel",),
            vmem_limit_bytes=VMEM_LIMIT),
    )(x2d, scale, bias)


def _gemm_kernel(*refs, has_residual, emit_stats):
    p_ref, w_ref, b_ref = refs[:3]
    idx = 3
    if has_residual:
        rs_ref, rb_ref, res_ref = refs[3:6]
        idx = 6
    if emit_stats:
        o_ref, sum_ref, ssq_ref, acc_ref = refs[idx:idx + 4]
    else:
        o_ref, acc_ref = refs[idx:idx + 2]

    k = pl.program_id(1)

    @pl.when(k == 0)
    def _init():
        acc_ref[...] = jnp.zeros_like(acc_ref)

    # One big MXU dot per (row-tile, K-tile); taps live in the contraction dim.
    acc_ref[...] += jnp.dot(p_ref[...], w_ref[...],
                            preferred_element_type=jnp.float32)

    @pl.when(k == pl.num_programs(1) - 1)
    def _epilogue():
        y = acc_ref[...] + b_ref[...]                         # conv bias
        if has_residual:
            y = y + res_ref[...] * rs_ref[...] + rb_ref[...]  # BN-affine residual
        o_ref[...] = y.astype(o_ref.dtype)
        if emit_stats:
            c = y.shape[1]
            s = jnp.sum(y, axis=0, keepdims=True)
            q = jnp.sum(y * y, axis=0, keepdims=True)
            sum_ref[...] = jnp.broadcast_to(s, (8, c))
            ssq_ref[...] = jnp.broadcast_to(q, (8, c))


def conv_gemm(patches, w, bias, *, residual=None, emit_stats=False, taps=1):
    """y = patches @ w + bias [+ res * rs + rb].

    patches: (M, K) with K = taps * Cin_pad; w: (K, Cout_pad);
    bias/rs/rb: (1, Cout_pad); res: (M, Cout_pad).
    If emit_stats: also returns per-tile partial (sum, sum-of-squares) slabs of
    shape (num_m_tiles * 8, Cout_pad) (each 8-row group is a broadcast copy).
    """
    m, k = patches.shape
    co = w.shape[1]
    tile_m = _pick_tile_m(m)
    tile_k = _pick_tile_k(k, tile_m, co, k // taps)
    nmt, nk = m // tile_m, k // tile_k

    in_specs = [
        pl.BlockSpec((tile_m, tile_k), lambda i, kk: (i, kk)),  # patch rows
        pl.BlockSpec((tile_k, co), lambda i, kk: (kk, 0)),      # weights
        pl.BlockSpec((1, co), lambda i, kk: (0, 0)),            # conv bias
    ]
    inputs = [patches, w, bias]
    if residual is not None:
        res, rs, rb = residual
        in_specs += [
            pl.BlockSpec((1, co), lambda i, kk: (0, 0)),        # residual BN scale
            pl.BlockSpec((1, co), lambda i, kk: (0, 0)),        # residual BN bias
            pl.BlockSpec((tile_m, co), lambda i, kk: (i, 0)),   # residual rows
        ]
        inputs += [rs, rb, res]

    main_spec = pl.BlockSpec((tile_m, co), lambda i, kk: (i, 0))
    if emit_stats:
        out_shape = (jax.ShapeDtypeStruct((m, co), jnp.float32),
                     jax.ShapeDtypeStruct((nmt * 8, co), jnp.float32),
                     jax.ShapeDtypeStruct((nmt * 8, co), jnp.float32))
        out_specs = (main_spec,
                     pl.BlockSpec((8, co), lambda i, kk: (i, 0)),
                     pl.BlockSpec((8, co), lambda i, kk: (i, 0)))
    else:
        out_shape = jax.ShapeDtypeStruct((m, co), jnp.float32)
        out_specs = main_spec

    kernel = functools.partial(_gemm_kernel,
                               has_residual=residual is not None,
                               emit_stats=emit_stats)
    return pl.pallas_call(
        kernel,
        out_shape=out_shape,
        grid_spec=pltpu.PrefetchScalarGridSpec(
            num_scalar_prefetch=0,
            grid=(nmt, nk),
            in_specs=in_specs,
            out_specs=out_specs,
            scratch_shapes=[pltpu.VMEM((tile_m, co), jnp.float32)],
        ),
        compiler_params=pltpu.CompilerParams(
            dimension_semantics=("parallel", "arbitrary"),
            vmem_limit_bytes=VMEM_LIMIT),
    )(*inputs)


# ------------------------------ JAX glue ----------------------------------- #

def _im2col_3x3(x_nhwc, stride):
    """3x3 conv, padding=1: -> (N*Ho*Wo, 9*C) with taps on the channel axis."""
    n, h, w, c = x_nhwc.shape
    ho = (h + 2 - 3) // stride + 1
    wo = (w + 2 - 3) // stride + 1
    xp = jnp.pad(x_nhwc, ((0, 0), (1, 1), (1, 1), (0, 0)))
    cols = []
    for dy in range(3):
        for dx in range(3):
            s = xp[:, dy:dy + (ho - 1) * stride + 1:stride,
                     dx:dx + (wo - 1) * stride + 1:stride, :]
            cols.append(s.reshape(n * ho * wo, c))
    return jnp.concatenate(cols, axis=-1), (n, ho, wo)


def _conv3x3_w_to_gemm(w_oihw, ci_pad, co_pad):
    """(Cout, Cin, 3, 3) -> (9*Cin_pad, Cout_pad), tap-major rows."""
    co, ci, kh, kw = w_oihw.shape
    w = jnp.transpose(w_oihw, (2, 3, 1, 0))                       # (kh, kw, Ci, Co)
    w = jnp.pad(w, ((0, 0), (0, 0), (0, ci_pad - ci), (0, co_pad - co)))
    return w.reshape(kh * kw * ci_pad, co_pad)


def _conv1x1_w_to_gemm(w_oihw, ci_pad, co_pad):
    co, ci = w_oihw.shape[:2]
    m = jnp.transpose(w_oihw[:, :, 0, 0], (1, 0))                 # (Ci, Co)
    return jnp.pad(m, ((0, ci_pad - ci), (0, co_pad - co)))


def _bn_scale_bias(gamma, beta, mean, var, c_pad):
    g = jnp.pad(gamma, (0, c_pad - gamma.shape[0]))
    b = jnp.pad(beta, (0, c_pad - beta.shape[0]))
    scale = g / jnp.sqrt(var + EPS)
    bias = b - mean * scale
    return scale[None, :], bias[None, :]


def _stats_from_partials(sum_p, ssq_p, n_rows):
    s = jnp.sum(sum_p[::8], axis=0)       # one representative row per tile
    q = jnp.sum(ssq_p[::8], axis=0)
    mean = s / n_rows
    var = jnp.maximum(q / n_rows - mean * mean, 0.0)
    return mean, var


def wide_basic_forward(x_nchw, params, stride):
    """out = conv2(relu(bn2(conv1(relu(bn1(x)))))) + shortcut(x)."""
    x = jnp.transpose(x_nchw, (0, 2, 3, 1)).astype(jnp.float32)   # NHWC
    n, h, w, cin = x.shape
    planes = params["conv1_w"].shape[0]
    ci_pad = _round_up(cin, LANE)
    co_pad = _round_up(planes, LANE)

    x_p = _pad_cols(x, ci_pad)
    x2d = x_p.reshape(n * h * w, ci_pad)

    # ---- relu(bn1(x)) ---- (training-mode batch stats on the input)
    m1 = jnp.mean(x2d, axis=0)
    v1 = jnp.mean((x2d - m1) ** 2, axis=0)
    s1, b1 = _bn_scale_bias(params["bn1_gamma"], params["bn1_beta"], m1, v1, ci_pad)
    a1 = bn_relu(x2d, s1, b1).reshape(n, h, w, ci_pad)

    # ---- conv1 (3x3, stride 1, pad 1, bias); emits BN2 partial stats ----
    p1, (_, h1, w1) = _im2col_3x3(a1, 1)
    wg1 = _conv3x3_w_to_gemm(params["conv1_w"], ci_pad, co_pad)   # note: do NOT
    bb1 = _pad_cols(params["conv1_b"][None, :], co_pad)           # shadow w1!
    out1, sum1, ssq1 = conv_gemm(p1, wg1, bb1, emit_stats=True, taps=9)
    rows1 = n * h1 * w1

    # ---- relu(bn2(out1)) ----
    m2, v2 = _stats_from_partials(sum1, ssq1, rows1)
    s2, b2 = _bn_scale_bias(params["bn2_gamma"], params["bn2_beta"], m2, v2, co_pad)
    a2 = bn_relu(out1, s2, b2).reshape(n, h1, w1, co_pad)

    # ---- conv2 (3x3, stride=stride, pad 1, bias) im2col ----
    p2, (_, ho, wo) = _im2col_3x3(a2, stride)
    wg2 = _conv3x3_w_to_gemm(params["conv2_w"], co_pad, co_pad)
    bb2 = _pad_cols(params["conv2_b"][None, :], co_pad)
    rows2 = n * ho * wo

    # ---- shortcut(x): BN(1x1 strided conv + bias), or identity ----
    if stride != 1 or cin != planes:
        xs = x_p[:, ::stride, ::stride, :].reshape(rows2, ci_pad)
        wgs = _conv1x1_w_to_gemm(params["sc_w"], ci_pad, co_pad)
        bsc = _pad_cols(params["sc_b"][None, :], co_pad)
        sc_raw, sums, ssqs = conv_gemm(xs, wgs, bsc, emit_stats=True, taps=1)
        msv, vsv = _stats_from_partials(sums, ssqs, rows2)
        rs, rb = _bn_scale_bias(params["bnsc_gamma"], params["bnsc_beta"],
                                msv, vsv, co_pad)
        res = sc_raw
    else:
        res = x2d                                   # ci_pad == co_pad here
        rs = jnp.ones((1, co_pad), jnp.float32)
        rb = jnp.zeros((1, co_pad), jnp.float32)

    # ---- out = conv2(a2) + bn_sc-affine(residual)  (no final ReLU) ----
    out = conv_gemm(p2, wg2, bb2, residual=(res, rs, rb), taps=9)

    out = out.reshape(n, ho, wo, co_pad)[..., :planes]
    return jnp.transpose(out, (0, 3, 1, 2))         # back to NCHW


# ----------------------- pure-JAX reference (for checking) ----------------- #

def reference_forward(x_nchw, params, stride):
    x = jnp.transpose(x_nchw, (0, 2, 3, 1)).astype(jnp.float32)

    def bn_train(y, gamma, beta):
        m = jnp.mean(y, axis=(0, 1, 2))
        v = jnp.mean((y - m) ** 2, axis=(0, 1, 2))
        return (y - m) / jnp.sqrt(v + EPS) * gamma + beta

    def conv(y, w_oihw, b, s, padding):
        w = jnp.transpose(w_oihw, (2, 3, 1, 0))     # HWIO
        out = jax.lax.conv_general_dilated(
            y, w, (s, s), padding,
            dimension_numbers=("NHWC", "HWIO", "NHWC"),
            precision=jax.lax.Precision.HIGHEST)
        return out + b

    planes = params["conv1_w"].shape[0]
    cin = x.shape[-1]
    out = conv(jax.nn.relu(bn_train(x, params["bn1_gamma"], params["bn1_beta"])),
               params["conv1_w"], params["conv1_b"], 1, [(1, 1), (1, 1)])
    out = conv(jax.nn.relu(bn_train(out, params["bn2_gamma"], params["bn2_beta"])),
               params["conv2_w"], params["conv2_b"], stride, [(1, 1), (1, 1)])
    if stride != 1 or cin != planes:
        sc = conv(x, params["sc_w"], params["sc_b"], stride, [(0, 0), (0, 0)])
        sc = bn_train(sc, params["bnsc_gamma"], params["bnsc_beta"])
    else:
        sc = x
    return jnp.transpose(out + sc, (0, 3, 1, 2))


# --------------------------------- main ------------------------------------ #

if __name__ == "__main__":
    key = jax.random.PRNGKey(0)
    in_planes, planes, stride = 4, 8, 2            # downsampling block
    N, H, W = 2, 16, 16
    ks = jax.random.split(key, 13)

    params = {
        "conv1_w": 0.1 * jax.random.normal(ks[0], (planes, in_planes, 3, 3), jnp.float32),
        "conv1_b": 0.1 * jax.random.normal(ks[1], (planes,), jnp.float32),
        "conv2_w": 0.1 * jax.random.normal(ks[2], (planes, planes, 3, 3), jnp.float32),
        "conv2_b": 0.1 * jax.random.normal(ks[3], (planes,), jnp.float32),
        "sc_w":    0.1 * jax.random.normal(ks[4], (planes, in_planes, 1, 1), jnp.float32),
        "sc_b":    0.1 * jax.random.normal(ks[5], (planes,), jnp.float32),
        "bn1_gamma": 1.0 + 0.1 * jax.random.normal(ks[6], (in_planes,), jnp.float32),
        "bn1_beta":        0.1 * jax.random.normal(ks[7], (in_planes,), jnp.float32),
        "bn2_gamma": 1.0 + 0.1 * jax.random.normal(ks[8], (planes,), jnp.float32),
        "bn2_beta":        0.1 * jax.random.normal(ks[9], (planes,), jnp.float32),
        "bnsc_gamma": 1.0 + 0.1 * jax.random.normal(ks[10], (planes,), jnp.float32),
        "bnsc_beta":        0.1 * jax.random.normal(ks[11], (planes,), jnp.float32),
    }
    x = jax.random.normal(ks[12], (N, in_planes, H, W), jnp.float32)

    fwd = jax.jit(lambda xx, pp: wide_basic_forward(xx, pp, stride))
    out = jax.block_until_ready(fwd(x, params))
    assert out.shape == (N, planes, H // stride, W // stride), out.shape

    ref = jax.block_until_ready(reference_forward(x, params, stride))
    np.testing.assert_allclose(np.asarray(out), np.asarray(ref),
                               rtol=1e-3, atol=1e-3)
    print("KERNEL_OK")
</pallas_src>

<mosaic_0001>
module attributes {stable_mosaic.version = 11 : i64} {
  func.func @_gemm_kernel(%arg0: i32, %arg1: i32, %arg2: memref<128x128xf32, #tpu.memory_space<vmem>>, %arg3: memref<128x128xf32, #tpu.memory_space<vmem>>, %arg4: memref<1x128xf32, #tpu.memory_space<vmem>>, %arg5: memref<128x128xf32, #tpu.memory_space<vmem>>, %arg6: memref<8x128xf32, #tpu.memory_space<vmem>>, %arg7: memref<8x128xf32, #tpu.memory_space<vmem>>, %arg8: memref<128x128xf32, #tpu.memory_space<vmem>>) attributes {dimension_semantics = [#tpu.dimension_semantics<parallel>, #tpu.dimension_semantics<arbitrary>], iteration_bounds = array<i64: 1, 1>, scalar_prefetch = 0 : i64, scratch_operands = 1 : i64, tpu.core_type = #tpu.core_type<tc>, window_params = [{transform_indices = @transform_0, window_bounds = array<i64: 128, 128>}, {transform_indices = @transform_1, window_bounds = array<i64: 128, 128>}, {pipeline_mode = #tpu.pipeline_mode<synchronous>, transform_indices = @transform_2, window_bounds = array<i64: 1, 128>}, {transform_indices = @transform_3, window_bounds = array<i64: 128, 128>}, {transform_indices = @transform_4, window_bounds = array<i64: 8, 128>}, {transform_indices = @transform_5, window_bounds = array<i64: 8, 128>}]} {
    %c0_i32 = arith.constant 0 : i32
    %0 = arith.cmpi eq, %arg1, %c0_i32 : i32
    %1 = arith.extui %0 : i1 to i32
    %c0_i32_0 = arith.constant 0 : i32
    %2 = arith.cmpi ne, %1, %c0_i32_0 : i32
    scf.if %2 {
      %cst_10 = arith.constant 0.000000e+00 : f32
      %12 = vector.broadcast %cst_10 : f32 to vector<128x128xf32>
      %c0_11 = arith.constant 0 : index
      %c0_12 = arith.constant 0 : index
      %13 = vector.load %arg8[%c0_11, %c0_12] : memref<128x128xf32, #tpu.memory_space<vmem>>, vector<128x128xf32>
      tpu.vector_store %arg8[%c0_11, %c0_12], %12 {strides = array<i32>} : memref<128x128xf32, #tpu.memory_space<vmem>>, vector<128x128xf32>,
    } else {
    }
    %c0 = arith.constant 0 : index
    %c0_1 = arith.constant 0 : index
    %3 = vector.load %arg8[%c0, %c0_1] : memref<128x128xf32, #tpu.memory_space<vmem>>, vector<128x128xf32>
    %c0_2 = arith.constant 0 : index
    %c0_3 = arith.constant 0 : index
    %4 = vector.load %arg2[%c0_2, %c0_3] : memref<128x128xf32, #tpu.memory_space<vmem>>, vector<128x128xf32>
    %c0_4 = arith.constant 0 : index
    %c0_5 = arith.constant 0 : index
    %5 = vector.load %arg3[%c0_4, %c0_5] : memref<128x128xf32, #tpu.memory_space<vmem>>, vector<128x128xf32>
    %cst = arith.constant dense<0.000000e+00> : vector<128x128xf32>
    %6 = tpu.matmul %4, %5, %cst {dimension_numbers = #tpu.dot_dimension_numbers<[1], [0], [0], [1], [0, 0, 1, 1], [], []>} : vector<128x128xf32>, vector<128x128xf32>, vector<128x128xf32> -> vector<128x128xf32>
    %7 = arith.addf %3, %6 : vector<128x128xf32>
    %c0_6 = arith.constant 0 : index
    %c0_7 = arith.constant 0 : index
    %8 = vector.load %arg8[%c0_6, %c0_7] : memref<128x128xf32, #tpu.memory_space<vmem>>, vector<128x128xf32>
    tpu.vector_store %arg8[%c0_6, %c0_7], %7 {strides = array<i32>} : memref<128x128xf32, #tpu.memory_space<vmem>>, vector<128x128xf32>,
    %c0_i32_8 = arith.constant 0 : i32
    %9 = arith.cmpi eq, %arg1, %c0_i32_8 : i32
    %10 = arith.extui %9 : i1 to i32
    %c0_i32_9 = arith.constant 0 : i32
    %11 = arith.cmpi ne, %10, %c0_i32_9 : i32
    scf.if %11 {
      %c0_10 = arith.constant 0 : index
      %c0_11 = arith.constant 0 : index
      %12 = vector.load %arg8[%c0_10, %c0_11] : memref<128x128xf32, #tpu.memory_space<vmem>>, vector<128x128xf32>
      %c0_12 = arith.constant 0 : index
      %c0_13 = arith.constant 0 : index
      %13 = vector.load %arg4[%c0_12, %c0_13] : memref<1x128xf32, #tpu.memory_space<vmem>>, vector<1x128xf32>
      %14 = vector.broadcast %13 : vector<1x128xf32> to vector<128x128xf32>
      %15 = arith.addf %12, %14 : vector<128x128xf32>
      %c0_14 = arith.constant 0 : index
      %c0_15 = arith.constant 0 : index
      %16 = vector.load %arg5[%c0_14, %c0_15] : memref<128x128xf32, #tpu.memory_space<vmem>>, vector<128x128xf32>
      tpu.vector_store %arg5[%c0_14, %c0_15], %15 {strides = array<i32>} : memref<128x128xf32, #tpu.memory_space<vmem>>, vector<128x128xf32>,
      %cst_16 = arith.constant dense<0.000000e+00> : vector<128xf32>
      %17 = vector.multi_reduction <add>, %15, %cst_16 [0] : vector<128x128xf32> to vector<128xf32>
      %18 = vector.shape_cast %17 : vector<128xf32> to vector<1x128xf32>
      %19 = arith.mulf %15, %15 : vector<128x128xf32>
      %cst_17 = arith.constant dense<0.000000e+00> : vector<128xf32>
      %20 = vector.multi_reduction <add>, %19, %cst_17 [0] : vector<128x128xf32> to vector<128xf32>
      %21 = vector.shape_cast %20 : vector<128xf32> to vector<1x128xf32>
      %22 = vector.shape_cast %18 : vector<1x128xf32> to vector<1x128xf32>
      %23 = vector.broadcast %22 : vector<1x128xf32> to vector<8x128xf32>
      %c0_18 = arith.constant 0 : index
      %c0_19 = arith.constant 0 : index
      %24 = vector.load %arg6[%c0_18, %c0_19] : memref<8x128xf32, #tpu.memory_space<vmem>>, vector<8x128xf32>
      tpu.vector_store %arg6[%c0_18, %c0_19], %23 {strides = array<i32>} : memref<8x128xf32, #tpu.memory_space<vmem>>, vector<8x128xf32>,
      %25 = vector.shape_cast %21 : vector<1x128xf32> to vector<1x128xf32>
      %26 = vector.broadcast %25 : vector<1x128xf32> to vector<8x128xf32>
      %c0_20 = arith.constant 0 : index
      %c0_21 = arith.constant 0 : index
      %27 = vector.load %arg7[%c0_20, %c0_21] : memref<8x128xf32, #tpu.memory_space<vmem>>, vector<8x128xf32>
      tpu.vector_store %arg7[%c0_20, %c0_21], %26 {strides = array<i32>} : memref<8x128xf32, #tpu.memory_space<vmem>>, vector<8x128xf32>,
    } else {
    }
    return
  }
  func.func @transform_0(%arg0: i32, %arg1: i32) -> (i32, i32) {
    %c0_i32 = arith.constant 0 : i32
    return %arg0, %arg1 : i32, i32
  }
  func.func @transform_1(%arg0: i32, %arg1: i32) -> (i32, i32) {
    %c0_i32 = arith.constant 0 : i32
    %c0_i32_0 = arith.constant 0 : i32
    return %arg1, %c0_i32 : i32, i32
  }
  func.func @transform_2(%arg0: i32, %arg1: i32) -> (i32, i32) {
    %c0_i32 = arith.constant 0 : i32
    %c0_i32_0 = arith.constant 0 : i32
    %c0_i32_1 = arith.constant 0 : i32
    return %c0_i32, %c0_i32_0 : i32, i32
  }
  func.func @transform_3(%arg0: i32, %arg1: i32) -> (i32, i32) {
    %c0_i32 = arith.constant 0 : i32
    %c0_i32_0 = arith.constant 0 : i32
    return %arg0, %c0_i32 : i32, i32
  }
  func.func @transform_4(%arg0: i32, %arg1: i32) -> (i32, i32) {
    %c0_i32 = arith.constant 0 : i32
    %c0_i32_0 = arith.constant 0 : i32
    return %arg0, %c0_i32 : i32, i32
  }
  func.func @transform_5(%arg0: i32, %arg1: i32) -> (i32, i32) {
    %c0_i32 = arith.constant 0 : i32
    %c0_i32_0 = arith.constant 0 : i32
    return %arg0, %c0_i32 : i32, i32
  }
}

module attributes {stable_mosaic.version = 11 : i64} {
  func.func @_bn_relu_kernel(%arg0: i32, %arg1: memref<512x128xf32, #tpu.memory_space<vmem>>, %arg2: memref<1x128xf32, #tpu.memory_space<vmem>>, %arg3: memref<1x128xf32, #tpu.memory_space<vmem>>, %arg4: memref<512x128xf32, #tpu.memory_space<vmem>>) attributes {dimension_semantics = [#tpu.dimension_semantics<parallel>], iteration_bounds = array<i64: 1>, scalar_prefetch = 0 : i64, scratch_operands = 0 : i64, tpu.core_type = #tpu.core_type<tc>, window_params = [{transform_indices = @transform_0, window_bounds = array<i64: 512, 128>}, {pipeline_mode = #tpu.pipeline_mode<synchronous>, transform_indices = @transform_1, window_bounds = array<i64: 1, 128>}, {pipeline_mode = #tpu.pipeline_mode<synchronous>, transform_indices = @transform_2, window_bounds = array<i64: 1, 128>}, {transform_indices = @transform_3, window_bounds = array<i64: 512, 128>}]} {
    %c0 = arith.constant 0 : index
    %c0_0 = arith.constant 0 : index
    %0 = vector.load %arg1[%c0, %c0_0] : memref<512x128xf32, #tpu.memory_space<vmem>>, vector<512x128xf32>
    %c0_1 = arith.constant 0 : index
    %c0_2 = arith.constant 0 : index
    %1 = vector.load %arg2[%c0_1, %c0_2] : memref<1x128xf32, #tpu.memory_space<vmem>>, vector<1x128xf32>
    %2 = vector.broadcast %1 : vector<1x128xf32> to vector<512x128xf32>
    %3 = arith.mulf %0, %2 : vector<512x128xf32>
    %c0_3 = arith.constant 0 : index
    %c0_4 = arith.constant 0 : index
    %4 = vector.load %arg3[%c0_3, %c0_4] : memref<1x128xf32, #tpu.memory_space<vmem>>, vector<1x128xf32>
    %5 = vector.broadcast %4 : vector<1x128xf32> to vector<512x128xf32>
    %6 = arith.addf %3, %5 : vector<512x128xf32>
    %cst = arith.constant 0.000000e+00 : f32
    %7 = vector.broadcast %cst : f32 to vector<512x128xf32>
    %8 = arith.maximumf %6, %7 : vector<512x128xf32>
    %c0_5 = arith.constant 0 : index
    %c0_6 = arith.constant 0 : index
    %9 = vector.load %arg4[%c0_5, %c0_6] : memref<512x128xf32, #tpu.memory_space<vmem>>, vector<512x128xf32>
    tpu.vector_store %arg4[%c0_5, %c0_6], %8 {strides = array<i32>} : memref<512x128xf32, #tpu.memory_space<vmem>>, vector<512x128xf32>,
    return
  }
  func.func @transform_0(%arg0: i32) -> (i32, i32) {
    %c0_i32 = arith.constant 0 : i32
    %c0_i32_0 = arith.constant 0 : i32
    return %arg0, %c0_i32 : i32, i32
  }
  func.func @transform_1(%arg0: i32) -> (i32, i32) {
    %c0_i32 = arith.constant 0 : i32
    %c0_i32_0 = arith.constant 0 : i32
    %c0_i32_1 = arith.constant 0 : i32
    return %c0_i32, %c0_i32_0 : i32, i32
  }
  func.func @transform_2(%arg0: i32) -> (i32, i32) {
    %c0_i32 = arith.constant 0 : i32
    %c0_i32_0 = arith.constant 0 : i32
    %c0_i32_1 = arith.constant 0 : i32
    return %c0_i32, %c0_i32_0 : i32, i32
  }
  func.func @transform_3(%arg0: i32) -> (i32, i32) {
    %c0_i32 = arith.constant 0 : i32
    %c0_i32_0 = arith.constant 0 : i32
    return %arg0, %c0_i32 : i32, i32
  }
}

module attributes {stable_mosaic.version = 11 : i64} {
  func.func @_gemm_kernel(%arg0: i32, %arg1: i32, %arg2: memref<512x1152xf32, #tpu.memory_space<vmem>>, %arg3: memref<1152x128xf32, #tpu.memory_space<vmem>>, %arg4: memref<1x128xf32, #tpu.memory_space<vmem>>, %arg5: memref<512x128xf32, #tpu.memory_space<vmem>>, %arg6: memref<8x128xf32, #tpu.memory_space<vmem>>, %arg7: memref<8x128xf32, #tpu.memory_space<vmem>>, %arg8: memref<512x128xf32, #tpu.memory_space<vmem>>) attributes {dimension_semantics = [#tpu.dimension_semantics<parallel>, #tpu.dimension_semantics<arbitrary>], iteration_bounds = array<i64: 1, 1>, scalar_prefetch = 0 : i64, scratch_operands = 1 : i64, tpu.core_type = #tpu.core_type<tc>, window_params = [{transform_indices = @transform_0, window_bounds = array<i64: 512, 1152>}, {transform_indices = @transform_1, window_bounds = array<i64: 1152, 128>}, {pipeline_mode = #tpu.pipeline_mode<synchronous>, transform_indices = @transform_2, window_bounds = array<i64: 1, 128>}, {transform_indices = @transform_3, window_bounds = array<i64: 512, 128>}, {transform_indices = @transform_4, window_bounds = array<i64: 8, 128>}, {transform_indices = @transform_5, window_bounds = array<i64: 8, 128>}]} {
    %c0_i32 = arith.constant 0 : i32
    %0 = arith.cmpi eq, %arg1, %c0_i32 : i32
    %1 = arith.extui %0 : i1 to i32
    %c0_i32_0 = arith.constant 0 : i32
    %2 = arith.cmpi ne, %1, %c0_i32_0 : i32
    scf.if %2 {
      %cst_10 = arith.constant 0.000000e+00 : f32
      %12 = vector.broadcast %cst_10 : f32 to vector<512x128xf32>
      %c0_11 = arith.constant 0 : index
      %c0_12 = arith.constant 0 : index
      %13 = vector.load %arg8[%c0_11, %c0_12] : memref<512x128xf32, #tpu.memory_space<vmem>>, vector<512x128xf32>
      tpu.vector_store %arg8[%c0_11, %c0_12], %12 {strides = array<i32>} : memref<512x128xf32, #tpu.memory_space<vmem>>, vector<512x128xf32>,
    } else {
    }
    %c0 = arith.constant 0 : index
    %c0_1 = arith.constant 0 : index
    %3 = vector.load %arg8[%c0, %c0_1] : memref<512x128xf32, #tpu.memory_space<vmem>>, vector<512x128xf32>
    %c0_2 = arith.constant 0 : index
    %c0_3 = arith.constant 0 : index
    %4 = vector.load %arg2[%c0_2, %c0_3] : memref<512x1152xf32, #tpu.memory_space<vmem>>, vector<512x1152xf32>
    %c0_4 = arith.constant 0 : index
    %c0_5 = arith.constant 0 : index
    %5 = vector.load %arg3[%c0_4, %c0_5] : memref<1152x128xf32, #tpu.memory_space<vmem>>, vector<1152x128xf32>
    %cst = arith.constant dense<0.000000e+00> : vector<512x128xf32>
    %6 = tpu.matmul %4, %5, %cst {dimension_numbers = #tpu.dot_dimension_numbers<[1], [0], [0], [1], [0, 0, 1, 1], [], []>} : vector<512x1152xf32>, vector<1152x128xf32>, vector<512x128xf32> -> vector<512x128xf32>
    %7 = arith.addf %3, %6 : vector<512x128xf32>
    %c0_6 = arith.constant 0 : index
    %c0_7 = arith.constant 0 : index
    %8 = vector.load %arg8[%c0_6, %c0_7] : memref<512x128xf32, #tpu.memory_space<vmem>>, vector<512x128xf32>
    tpu.vector_store %arg8[%c0_6, %c0_7], %7 {strides = array<i32>} : memref<512x128xf32, #tpu.memory_space<vmem>>, vector<512x128xf32>,
    %c0_i32_8 = arith.constant 0 : i32
    %9 = arith.cmpi eq, %arg1, %c0_i32_8 : i32
    %10 = arith.extui %9 : i1 to i32
    %c0_i32_9 = arith.constant 0 : i32
    %11 = arith.cmpi ne, %10, %c0_i32_9 : i32
    scf.if %11 {
      %c0_10 = arith.constant 0 : index
      %c0_11 = arith.constant 0 : index
      %12 = vector.load %arg8[%c0_10, %c0_11] : memref<512x128xf32, #tpu.memory_space<vmem>>, vector<512x128xf32>
      %c0_12 = arith.constant 0 : index
      %c0_13 = arith.constant 0 : index
      %13 = vector.load %arg4[%c0_12, %c0_13] : memref<1x128xf32, #tpu.memory_space<vmem>>, vector<1x128xf32>
      %14 = vector.broadcast %13 : vector<1x128xf32> to vector<512x128xf32>
      %15 = arith.addf %12, %14 : vector<512x128xf32>
      %c0_14 = arith.constant 0 : index
      %c0_15 = arith.constant 0 : index
      %16 = vector.load %arg5[%c0_14, %c0_15] : memref<512x128xf32, #tpu.memory_space<vmem>>, vector<512x128xf32>
      tpu.vector_store %arg5[%c0_14, %c0_15], %15 {strides = array<i32>} : memref<512x128xf32, #tpu.memory_space<vmem>>, vector<512x128xf32>,
      %cst_16 = arith.constant dense<0.000000e+00> : vector<128xf32>
      %17 = vector.multi_reduction <add>, %15, %cst_16 [0] : vector<512x128xf32> to vector<128xf32>
      %18 = vector.shape_cast %17 : vector<128xf32> to vector<1x128xf32>
      %19 = arith.mulf %15, %15 : vector<512x128xf32>
      %cst_17 = arith.constant dense<0.000000e+00> : vector<128xf32>
      %20 = vector.multi_reduction <add>, %19, %cst_17 [0] : vector<512x128xf32> to vector<128xf32>
      %21 = vector.shape_cast %20 : vector<128xf32> to vector<1x128xf32>
      %22 = vector.shape_cast %18 : vector<1x128xf32> to vector<1x128xf32>
      %23 = vector.broadcast %22 : vector<1x128xf32> to vector<8x128xf32>
      %c0_18 = arith.constant 0 : index
      %c0_19 = arith.constant 0 : index
      %24 = vector.load %arg6[%c0_18, %c0_19] : memref<8x128xf32, #tpu.memory_space<vmem>>, vector<8x128xf32>
      tpu.vector_store %arg6[%c0_18, %c0_19], %23 {strides = array<i32>} : memref<8x128xf32, #tpu.memory_space<vmem>>, vector<8x128xf32>,
      %25 = vector.shape_cast %21 : vector<1x128xf32> to vector<1x128xf32>
      %26 = vector.broadcast %25 : vector<1x128xf32> to vector<8x128xf32>
      %c0_20 = arith.constant 0 : index
      %c0_21 = arith.constant 0 : index
      %27 = vector.load %arg7[%c0_20, %c0_21] : memref<8x128xf32, #tpu.memory_space<vmem>>, vector<8x128xf32>
      tpu.vector_store %arg7[%c0_20, %c0_21], %26 {strides = array<i32>} : memref<8x128xf32, #tpu.memory_space<vmem>>, vector<8x128xf32>,
    } else {
    }
    return
  }
  func.func @transform_0(%arg0: i32, %arg1: i32) -> (i32, i32) {
    %c0_i32 = arith.constant 0 : i32
    return %arg0, %arg1 : i32, i32
  }
  func.func @transform_1(%arg0: i32, %arg1: i32) -> (i32, i32) {
    %c0_i32 = arith.constant 0 : i32
    %c0_i32_0 = arith.constant 0 : i32
    return %arg1, %c0_i32 : i32, i32
  }
  func.func @transform_2(%arg0: i32, %arg1: i32) -> (i32, i32) {
    %c0_i32 = arith.constant 0 : i32
    %c0_i32_0 = arith.constant 0 : i32
    %c0_i32_1 = arith.constant 0 : i32
    return %c0_i32, %c0_i32_0 : i32, i32
  }
  func.func @transform_3(%arg0: i32, %arg1: i32) -> (i32, i32) {
    %c0_i32 = arith.constant 0 : i32
    %c0_i32_0 = arith.constant 0 : i32
    return %arg0, %c0_i32 : i32, i32
  }
  func.func @transform_4(%arg0: i32, %arg1: i32) -> (i32, i32) {
    %c0_i32 = arith.constant 0 : i32
    %c0_i32_0 = arith.constant 0 : i32
    return %arg0, %c0_i32 : i32, i32
  }
  func.func @transform_5(%arg0: i32, %arg1: i32) -> (i32, i32) {
    %c0_i32 = arith.constant 0 : i32
    %c0_i32_0 = arith.constant 0 : i32
    return %arg0, %c0_i32 : i32, i32
  }
}

module attributes {stable_mosaic.version = 11 : i64} {
  func.func @_gemm_kernel(%arg0: i32, %arg1: i32, %arg2: memref<128x1152xf32, #tpu.memory_space<vmem>>, %arg3: memref<1152x128xf32, #tpu.memory_space<vmem>>, %arg4: memref<1x128xf32, #tpu.memory_space<vmem>>, %arg5: memref<1x128xf32, #tpu.memory_space<vmem>>, %arg6: memref<1x128xf32, #tpu.memory_space<vmem>>, %arg7: memref<128x128xf32, #tpu.memory_space<vmem>>, %arg8: memref<128x128xf32, #tpu.memory_space<vmem>>, %arg9: memref<128x128xf32, #tpu.memory_space<vmem>>) attributes {dimension_semantics = [#tpu.dimension_semantics<parallel>, #tpu.dimension_semantics<arbitrary>], iteration_bounds = array<i64: 1, 1>, scalar_prefetch = 0 : i64, scratch_operands = 1 : i64, tpu.core_type = #tpu.core_type<tc>, window_params = [{transform_indices = @transform_0, window_bounds = array<i64: 128, 1152>}, {transform_indices = @transform_1, window_bounds = array<i64: 1152, 128>}, {pipeline_mode = #tpu.pipeline_mode<synchronous>, transform_indices = @transform_2, window_bounds = array<i64: 1, 128>}, {pipeline_mode = #tpu.pipeline_mode<synchronous>, transform_indices = @transform_3, window_bounds = array<i64: 1, 128>}, {pipeline_mode = #tpu.pipeline_mode<synchronous>, transform_indices = @transform_4, window_bounds = array<i64: 1, 128>}, {transform_indices = @transform_5, window_bounds = array<i64: 128, 128>}, {transform_indices = @transform_6, window_bounds = array<i64: 128, 128>}]} {
    %c0_i32 = arith.constant 0 : i32
    %0 = arith.cmpi eq, %arg1, %c0_i32 : i32
    %1 = arith.extui %0 : i1 to i32
    %c0_i32_0 = arith.constant 0 : i32
    %2 = arith.cmpi ne, %1, %c0_i32_0 : i32
    scf.if %2 {
      %cst_10 = arith.constant 0.000000e+00 : f32
      %12 = vector.broadcast %cst_10 : f32 to vector<128x128xf32>
      %c0_11 = arith.constant 0 : index
      %c0_12 = arith.constant 0 : index
      %13 = vector.load %arg9[%c0_11, %c0_12] : memref<128x128xf32, #tpu.memory_space<vmem>>, vector<128x128xf32>
      tpu.vector_store %arg9[%c0_11, %c0_12], %12 {strides = array<i32>} : memref<128x128xf32, #tpu.memory_space<vmem>>, vector<128x128xf32>,
    } else {
    }
    %c0 = arith.constant 0 : index
    %c0_1 = arith.constant 0 : index
    %3 = vector.load %arg9[%c0, %c0_1] : memref<128x128xf32, #tpu.memory_space<vmem>>, vector<128x128xf32>
    %c0_2 = arith.constant 0 : index
    %c0_3 = arith.constant 0 : index
    %4 = vector.load %arg2[%c0_2, %c0_3] : memref<128x1152xf32, #tpu.memory_space<vmem>>, vector<128x1152xf32>
    %c0_4 = arith.constant 0 : index
    %c0_5 = arith.constant 0 : index
    %5 = vector.load %arg3[%c0_4, %c0_5] : memref<1152x128xf32, #tpu.memory_space<vmem>>, vector<1152x128xf32>
    %cst = arith.constant dense<0.000000e+00> : vector<128x128xf32>
    %6 = tpu.matmul %4, %5, %cst {dimension_numbers = #tpu.dot_dimension_numbers<[1], [0], [0], [1], [0, 0, 1, 1], [], []>} : vector<128x1152xf32>, vector<1152x128xf32>, vector<128x128xf32> -> vector<128x128xf32>
    %7 = arith.addf %3, %6 : vector<128x128xf32>
    %c0_6 = arith.constant 0 : index
    %c0_7 = arith.constant 0 : index
    %8 = vector.load %arg9[%c0_6, %c0_7] : memref<128x128xf32, #tpu.memory_space<vmem>>, vector<128x128xf32>
    tpu.vector_store %arg9[%c0_6, %c0_7], %7 {strides = array<i32>} : memref<128x128xf32, #tpu.memory_space<vmem>>, vector<128x128xf32>,
    %c0_i32_8 = arith.constant 0 : i32
    %9 = arith.cmpi eq, %arg1, %c0_i32_8 : i32
    %10 = arith.extui %9 : i1 to i32
    %c0_i32_9 = arith.constant 0 : i32
    %11 = arith.cmpi ne, %10, %c0_i32_9 : i32
    scf.if %11 {
      %c0_10 = arith.constant 0 : index
      %c0_11 = arith.constant 0 : index
      %12 = vector.load %arg9[%c0_10, %c0_11] : memref<128x128xf32, #tpu.memory_space<vmem>>, vector<128x128xf32>
      %c0_12 = arith.constant 0 : index
      %c0_13 = arith.constant 0 : index
      %13 = vector.load %arg4[%c0_12, %c0_13] : memref<1x128xf32, #tpu.memory_space<vmem>>, vector<1x128xf32>
      %14 = vector.broadcast %13 : vector<1x128xf32> to vector<128x128xf32>
      %15 = arith.addf %12, %14 : vector<128x128xf32>
      %c0_14 = arith.constant 0 : index
      %c0_15 = arith.constant 0 : index
      %16 = vector.load %arg7[%c0_14, %c0_15] : memref<128x128xf32, #tpu.memory_space<vmem>>, vector<128x128xf32>
      %c0_16 = arith.constant 0 : index
      %c0_17 = arith.constant 0 : index
      %17 = vector.load %arg5[%c0_16, %c0_17] : memref<1x128xf32, #tpu.memory_space<vmem>>, vector<1x128xf32>
      %18 = vector.broadcast %17 : vector<1x128xf32> to vector<128x128xf32>
      %19 = arith.mulf %16, %18 : vector<128x128xf32>
      %20 = arith.addf %15, %19 : vector<128x128xf32>
      %c0_18 = arith.constant 0 : index
      %c0_19 = arith.constant 0 : index
      %21 = vector.load %arg6[%c0_18, %c0_19] : memref<1x128xf32, #tpu.memory_space<vmem>>, vector<1x128xf32>
      %22 = vector.broadcast %21 : vector<1x128xf32> to vector<128x128xf32>
      %23 = arith.addf %20, %22 : vector<128x128xf32>
      %c0_20 = arith.constant 0 : index
      %c0_21 = arith.constant 0 : index
      %24 = vector.load %arg8[%c0_20, %c0_21] : memref<128x128xf32, #tpu.memory_space<vmem>>, vector<128x128xf32>
      tpu.vector_store %arg8[%c0_20, %c0_21], %23 {strides = array<i32>} : memref<128x128xf32, #tpu.memory_space<vmem>>, vector<128x128xf32>,
    } else {
    }
    return
  }
  func.func @transform_0(%arg0: i32, %arg1: i32) -> (i32, i32) {
    %c0_i32 = arith.constant 0 : i32
    return %arg0, %arg1 : i32, i32
  }
  func.func @transform_1(%arg0: i32, %arg1: i32) -> (i32, i32) {
    %c0_i32 = arith.constant 0 : i32
    %c0_i32_0 = arith.constant 0 : i32
    return %arg1, %c0_i32 : i32, i32
  }
  func.func @transform_2(%arg0: i32, %arg1: i32) -> (i32, i32) {
    %c0_i32 = arith.constant 0 : i32
    %c0_i32_0 = arith.constant 0 : i32
    %c0_i32_1 = arith.constant 0 : i32
    return %c0_i32, %c0_i32_0 : i32, i32
  }
  func.func @transform_3(%arg0: i32, %arg1: i32) -> (i32, i32) {
    %c0_i32 = arith.constant 0 : i32
    %c0_i32_0 = arith.constant 0 : i32
    %c0_i32_1 = arith.constant 0 : i32
    return %c0_i32, %c0_i32_0 : i32, i32
  }
  func.func @transform_4(%arg0: i32, %arg1: i32) -> (i32, i32) {
    %c0_i32 = arith.constant 0 : i32
    %c0_i32_0 = arith.constant 0 : i32
    %c0_i32_1 = arith.constant 0 : i32
    return %c0_i32, %c0_i32_0 : i32, i32
  }
  func.func @transform_5(%arg0: i32, %arg1: i32) -> (i32, i32) {
    %c0_i32 = arith.constant 0 : i32
    %c0_i32_0 = arith.constant 0 : i32
    return %arg0, %c0_i32 : i32, i32
  }
  func.func @transform_6(%arg0: i32, %arg1: i32) -> (i32, i32) {
    %c0_i32 = arith.constant 0 : i32
    %c0_i32_0 = arith.constant 0 : i32
    return %arg0, %c0_i32 : i32, i32
  }
}

</mosaic_0001>

<llo_original>
// kernel: _lambda_.8
$region0: #{_lambda_.8}
  #allocation0 [shape = 'u32[]', space=smem, size = 0x4, offset = 0x4, fixed_abs, tag = 'smem constant byte address 0x4 - core index']
  #allocation1 [shape = 'u32[144,128]{1,0:T(1,128)}', space=vmem, size = 0x12000, scoped, tag = 'internal scratch']
  #allocation2 [shape = 'f32[128,128]{1,0:T(8,128)}', space=vmem, size = 0x10000, scoped, tag = 'scratch operand']
  %s0 = inlined_call_operand.vmem [shape: f32[128,128], index: 0, kind: input, shape index: {}]
  %s1 = inlined_call_operand.vmem [shape: f32[128,128], index: 1, kind: input, shape index: {}]
  %s2 = inlined_call_operand.vmem [shape: f32[1,128], index: 2, kind: input, shape index: {}]
  %s3 = inlined_call_operand.vmem [shape: f32[128,128], index: 3, kind: output, shape index: {0}]
  %s4 = inlined_call_operand.vmem [shape: f32[8,128], index: 4, kind: output, shape index: {1}]
  %s5 = inlined_call_operand.vmem [shape: f32[8,128], index: 5, kind: output, shape index: {2}]
  %6 = xla_tuple %s3, %s4, %s5
  %s7 = sld [smem:[#allocation0]]
  $region46: #{_lambda_.8} parent=0
    _
  %s9 = ssub.s32 1, %s7
  %s10 = scalar_select 0, %s9, %s7
  // Predicated region
  $region2: #{_lambda_.8} parent=0 // pred_check
    _
  $region3: #{_lambda_.8} parent=0 // pred_check_branch
    %12 = sbr.rel (0) target = $region5
  $region4: #{_lambda_.8} parent=0 // pred_region
    _
  $region5: #{_lambda_.8} parent=0 // pred_fallthru
    _
  // Predicated region
  $region6: #{_lambda_.8} parent=0 // pred_check
    _
  $region7: #{_lambda_.8} parent=0 // pred_check_branch
    %14 = sbr.rel (0) target = $region9
  $region8: #{_lambda_.8} parent=0 // pred_region
    _
  $region9: #{_lambda_.8} parent=0 // pred_fallthru
    _
  // Predicated region
  $region10: #{_lambda_.8} parent=0 // pred_check
    _
  $region11: #{_lambda_.8} parent=0 // pred_check_branch
    %16 = sbr.rel (0) target = $region13
  $region12: #{_lambda_.8} parent=0 // pred_region
    _
  $region13: #{_lambda_.8} parent=0 // pred_fallthru
    _
  %p17 = scmp.eq.s32.totalorder 0, 0
  // Predicated region
  $region14: #{_lambda_.8} parent=0 // pred_check
    %p18 = pneg %p17
  $region15: #{_lambda_.8} parent=0 // pred_check_branch
    %20 = sbr.rel (%p18) target = $region17
  $region16: #{_lambda_.8} parent=0 // pred_region
    %21 = vst [vmem:[#allocation2] sm:$0xff] 0.0
    %22 = vst [vmem:[#allocation2 + $0x8] sm:$0xff] 0.0
    %23 = vst [vmem:[#allocation2 + $0x10] sm:$0xff] 0.0
    %24 = vst [vmem:[#allocation2 + $0x18] sm:$0xff] 0.0
    %25 = vst [vmem:[#allocation2 + $0x20] sm:$0xff] 0.0
    %26 = vst [vmem:[#allocation2 + $0x28] sm:$0xff] 0.0
    %27 = vst [vmem:[#allocation2 + $0x30] sm:$0xff] 0.0
    %28 = vst [vmem:[#allocation2 + $0x38] sm:$0xff] 0.0
    %29 = vst [vmem:[#allocation2 + $0x40] sm:$0xff] 0.0
    %30 = vst [vmem:[#allocation2 + $0x48] sm:$0xff] 0.0
    %31 = vst [vmem:[#allocation2 + $0x50] sm:$0xff] 0.0
    %32 = vst [vmem:[#allocation2 + $0x58] sm:$0xff] 0.0
    %33 = vst [vmem:[#allocation2 + $0x60] sm:$0xff] 0.0
    %34 = vst [vmem:[#allocation2 + $0x68] sm:$0xff] 0.0
    %35 = vst [vmem:[#allocation2 + $0x70] sm:$0xff] 0.0
    %36 = vst [vmem:[#allocation2 + $0x78] sm:$0xff] 0.0
  $region17: #{_lambda_.8} parent=0 // pred_fallthru
    _
  %v37 = vld [vmem:[#allocation2] sm:$0xff]
  %v38 = vld [vmem:[#allocation2 + $0x8] sm:$0xff]
  %v39 = vld [vmem:[#allocation2 + $0x10] sm:$0xff]
  %v40 = vld [vmem:[#allocation2 + $0x18] sm:$0xff]
  %v41 = vld [vmem:[#allocation2 + $0x20] sm:$0xff]
  %v42 = vld [vmem:[#allocation2 + $0x28] sm:$0xff]
  %v43 = vld [vmem:[#allocation2 + $0x30] sm:$0xff]
  %v44 = vld [vmem:[#allocation2 + $0x38] sm:$0xff]
  %v45 = vld [vmem:[#allocation2 + $0x40] sm:$0xff]
  %v46 = vld [vmem:[#allocation2 + $0x48] sm:$0xff]
  %v47 = vld [vmem:[#allocation2 + $0x50] sm:$0xff]
  %v48 = vld [vmem:[#allocation2 + $0x58] sm:$0xff]
  %v49 = vld [vmem:[#allocation2 + $0x60] sm:$0xff]
  %v50 = vld [vmem:[#allocation2 + $0x68] sm:$0xff]
  %v51 = vld [vmem:[#allocation2 + $0x70] sm:$0xff]
  %v52 = vld [vmem:[#allocation2 + $0x78] sm:$0xff]
  %v53 = vld [vmem:[%s0] sm:$0xff]
  %v54 = vld [vmem:[%s0 + $0x8] sm:$0xff]
  %v55 = vld [vmem:[%s0 + $0x10] sm:$0xff]
  %v56 = vld [vmem:[%s0 + $0x18] sm:$0xff]
  %v57 = vld [vmem:[%s0 + $0x20] sm:$0xff]
  %v58 = vld [vmem:[%s0 + $0x28] sm:$0xff]
  %v59 = vld [vmem:[%s0 + $0x30] sm:$0xff]
  %v60 = vld [vmem:[%s0 + $0x38] sm:$0xff]
  %v61 = vld [vmem:[%s0 + $0x40] sm:$0xff]
  %v62 = vld [vmem:[%s0 + $0x48] sm:$0xff]
  %v63 = vld [vmem:[%s0 + $0x50] sm:$0xff]
  %v64 = vld [vmem:[%s0 + $0x58] sm:$0xff]
  %v65 = vld [vmem:[%s0 + $0x60] sm:$0xff]
  %v66 = vld [vmem:[%s0 + $0x68] sm:$0xff]
  %v67 = vld [vmem:[%s0 + $0x70] sm:$0xff]
  %v68 = vld [vmem:[%s0 + $0x78] sm:$0xff]
  %v69 = vld [vmem:[%s1] sm:$0xff]
  %v70 = vld [vmem:[%s1 + $0x8] sm:$0xff]
  %v71 = vld [vmem:[%s1 + $0x10] sm:$0xff]
  %v72 = vld [vmem:[%s1 + $0x18] sm:$0xff]
  %v73 = vld [vmem:[%s1 + $0x20] sm:$0xff]
  %v74 = vld [vmem:[%s1 + $0x28] sm:$0xff]
  %v75 = vld [vmem:[%s1 + $0x30] sm:$0xff]
  %v76 = vld [vmem:[%s1 + $0x38] sm:$0xff]
  %v77 = vld [vmem:[%s1 + $0x40] sm:$0xff]
  %v78 = vld [vmem:[%s1 + $0x48] sm:$0xff]
  %v79 = vld [vmem:[%s1 + $0x50] sm:$0xff]
  %v80 = vld [vmem:[%s1 + $0x58] sm:$0xff]
  %v81 = vld [vmem:[%s1 + $0x60] sm:$0xff]
  %v82 = vld [vmem:[%s1 + $0x68] sm:$0xff]
  %v83 = vld [vmem:[%s1 + $0x70] sm:$0xff]
  %v84 = vld [vmem:[%s1 + $0x78] sm:$0xff]
  %85 = vmatprep.subr.mxu0 0.0
  %86 = vmatpush1.msra.mxu0 %v69
  %87 = vmatprep.subr.mxu0 0.0
  %88 = vmatpush1.msra.mxu0 %v70
  %89 = vmatprep.subr.mxu0 0.0
  %90 = vmatpush1.msra.mxu0 %v71
  %91 = vmatprep.subr.mxu0 0.0
  %92 = vmatpush1.msra.mxu0 %v72
  %93 = vmatprep.subr.mxu0 0.0
  %94 = vmatpush1.msra.mxu0 %v73
  %95 = vmatprep.subr.mxu0 0.0
  %96 = vmatpush1.msra.mxu0 %v74
  %97 = vmatprep.subr.mxu0 0.0
  %98 = vmatpush1.msra.mxu0 %v75
  %99 = vmatprep.subr.mxu0 0.0
  %100 = vmatpush1.msra.mxu0 %v76
  %101 = vmatprep.subr.mxu0 0.0
  %102 = vmatpush1.msra.mxu0 %v77
  %103 = vmatprep.subr.mxu0 0.0
  %104 = vmatpush1.msra.mxu0 %v78
  %105 = vmatprep.subr.mxu0 0.0
  %106 = vmatpush1.msra.mxu0 %v79
  %107 = vmatprep.subr.mxu0 0.0
  %108 = vmatpush1.msra.mxu0 %v80
  %109 = vmatprep.subr.mxu0 0.0
  %110 = vmatpush1.msra.mxu0 %v81
  %111 = vmatprep.subr.mxu0 0.0
  %112 = vmatpush1.msra.mxu0 %v82
  %113 = vmatprep.subr.mxu0 0.0
  %114 = vmatpush1.msra.mxu0 %v83
  %115 = vmatprep.subr.mxu0 0.0
  %116 = vmatpush1.msra.mxu0 %v84
  %117 = vmatprep.subr.mxu0 0.0
  %118 = vmatpush1.msra.mxu0 0.0
  %119 = vmatprep.subr.mxu0 0.0
  %120 = vmatpush1.msra.mxu0 0.0
  %121 = vmatprep.subr.mxu0 0.0
  %122 = vmatpush1.msra.mxu0 0.0
  %123 = vmatprep.subr.mxu0 0.0
  %124 = vmatpush1.msra.mxu0 0.0
  %125 = vmatprep.subr.mxu0 0.0
  %126 = vmatpush1.msra.mxu0 0.0
  %127 = vmatprep.subr.mxu0 0.0
  %128 = vmatpush1.msra.mxu0 0.0
  %129 = vmatprep.subr.mxu0 0.0
  %130 = vmatpush1.msra.mxu0 0.0
  %131 = vmatprep.subr.mxu0 0.0
  %132 = vmatpush1.msra.mxu0 0.0
  %133 = vmatprep.subr.mxu0 0.0
  %134 = vmatpush1.msra.mxu0 0.0
  %135 = vmatprep.subr.mxu0 0.0
  %136 = vmatpush1.msra.mxu0 0.0
  %137 = vmatprep.subr.mxu0 0.0
  %138 = vmatpush1.msra.mxu0 0.0
  %139 = vmatprep.subr.mxu0 0.0
  %140 = vmatpush1.msra.mxu0 0.0
  %141 = vmatprep.subr.mxu0 0.0
  %142 = vmatpush1.msra.mxu0 0.0
  %143 = vmatprep.subr.mxu0 0.0
  %144 = vmatpush1.msra.mxu0 0.0
  %145 = vmatprep.subr.mxu0 0.0
  %146 = vmatpush1.msra.mxu0 0.0
  %147 = vmatprep.subr.mxu0 0.0
  %148 = vmatpush1.msra.mxu0 0.0
  %149 = vmatprep.mubr.f32.mxu0 0.0
  %150 = vmatmul.mubr.f32.gmra.mrb[0].mxu0 %v53
  %v151 = vpop.f32.mrb[0].mxu0
  %v152 = vadd.f32 0.0, %v151
  %v153 = vpop.f32.mrb[0].mxu0
  %154 = vmatprep.mubr.f32.mxu0 0.0
  %155 = vmatmul.mubr.f32.gmra.mrb[0].mxu0 %v54
  %v156 = vpop.f32.mrb[0].mxu0
  %v157 = vadd.f32 0.0, %v156
  %v158 = vpop.f32.mrb[0].mxu0
  %159 = vmatprep.mubr.f32.mxu0 0.0
  %160 = vmatmul.mubr.f32.gmra.mrb[0].mxu0 %v55
  %v161 = vpop.f32.mrb[0].mxu0
  %v162 = vadd.f32 0.0, %v161
  %v163 = vpop.f32.mrb[0].mxu0
  %164 = vmatprep.mubr.f32.mxu0 0.0
  %165 = vmatmul.mubr.f32.gmra.mrb[0].mxu0 %v56
  %v166 = vpop.f32.mrb[0].mxu0
  %v167 = vadd.f32 0.0, %v166
  %v168 = vpop.f32.mrb[0].mxu0
  %169 = vmatprep.mubr.f32.mxu0 0.0
  %170 = vmatmul.mubr.f32.gmra.mrb[0].mxu0 %v57
  %v171 = vpop.f32.mrb[0].mxu0
  %v172 = vadd.f32 0.0, %v171
  %v173 = vpop.f32.mrb[0].mxu0
  %174 = vmatprep.mubr.f32.mxu0 0.0
  %175 = vmatmul.mubr.f32.gmra.mrb[0].mxu0 %v58
  %v176 = vpop.f32.mrb[0].mxu0
  %v177 = vadd.f32 0.0, %v176
  %v178 = vpop.f32.mrb[0].mxu0
  %179 = vmatprep.mubr.f32.mxu0 0.0
  %180 = vmatmul.mubr.f32.gmra.mrb[0].mxu0 %v59
  %v181 = vpop.f32.mrb[0].mxu0
  %v182 = vadd.f32 0.0, %v181
  %v183 = vpop.f32.mrb[0].mxu0
  %184 = vmatprep.mubr.f32.mxu0 0.0
  %185 = vmatmul.mubr.f32.gmra.mrb[0].mxu0 %v60
  %v186 = vpop.f32.mrb[0].mxu0
  %v187 = vadd.f32 0.0, %v186
  %v188 = vpop.f32.mrb[0].mxu0
  %189 = vmatprep.mubr.f32.mxu0 0.0
  %190 = vmatmul.mubr.f32.gmra.mrb[0].mxu0 %v61
  %v191 = vpop.f32.mrb[0].mxu0
  %v192 = vadd.f32 0.0, %v191
  %v193 = vpop.f32.mrb[0].mxu0
  %194 = vmatprep.mubr.f32.mxu0 0.0
  %195 = vmatmul.mubr.f32.gmra.mrb[0].mxu0 %v62
  %v196 = vpop.f32.mrb[0].mxu0
  %v197 = vadd.f32 0.0, %v196
  %v198 = vpop.f32.mrb[0].mxu0
  %199 = vmatprep.mubr.f32.mxu0 0.0
  %200 = vmatmul.mubr.f32.gmra.mrb[0].mxu0 %v63
  %v201 = vpop.f32.mrb[0].mxu0
  %v202 = vadd.f32 0.0, %v201
  %v203 = vpop.f32.mrb[0].mxu0
  %204 = vmatprep.mubr.f32.mxu0 0.0
  %205 = vmatmul.mubr.f32.gmra.mrb[0].mxu0 %v64
  %v206 = vpop.f32.mrb[0].mxu0
  %v207 = vadd.f32 0.0, %v206
  %v208 = vpop.f32.mrb[0].mxu0
  %209 = vmatprep.mubr.f32.mxu0 0.0
  %210 = vmatmul.mubr.f32.gmra.mrb[0].mxu0 %v65
  %v211 = vpop.f32.mrb[0].mxu0
  %v212 = vadd.f32 0.0, %v211
  %v213 = vpop.f32.mrb[0].mxu0
  %214 = vmatprep.mubr.f32.mxu0 0.0
  %215 = vmatmul.mubr.f32.gmra.mrb[0].mxu0 %v66
  %v216 = vpop.f32.mrb[0].mxu0
  %v217 = vadd.f32 0.0, %v216
  %v218 = vpop.f32.mrb[0].mxu0
  %219 = vmatprep.mubr.f32.mxu0 0.0
  %220 = vmatmul.mubr.f32.gmra.mrb[0].mxu0 %v67
  %v221 = vpop.f32.mrb[0].mxu0
  %v222 = vadd.f32 0.0, %v221
  %v223 = vpop.f32.mrb[0].mxu0
  %224 = vmatprep.mubr.f32.mxu0 0.0
  %225 = vmatmul.mubr.f32.gmra.mrb[0].mxu0 %v68
  %v226 = vpop.f32.mrb[0].mxu0
  %v227 = vadd.f32 0.0, %v226
  %v228 = vpop.f32.mrb[0].mxu0
  %229 = vdwg.mxu0
  %v230 = vadd.f32 %v37, %v152
  %v231 = vadd.f32 %v38, %v157
  %v232 = vadd.f32 %v39, %v162
  %v233 = vadd.f32 %v40, %v167
  %v234 = vadd.f32 %v41, %v172
  %v235 = vadd.f32 %v42, %v177
  %v236 = vadd.f32 %v43, %v182
  %v237 = vadd.f32 %v44, %v187
  %v238 = vadd.f32 %v45, %v192
  %v239 = vadd.f32 %v46, %v197
  %v240 = vadd.f32 %v47, %v202
  %v241 = vadd.f32 %v48, %v207
  %v242 = vadd.f32 %v49, %v212
  %v243 = vadd.f32 %v50, %v217
  %v244 = vadd.f32 %v51, %v222
  %v245 = vadd.f32 %v52, %v227
  %246 = vst [vmem:[#allocation2] sm:$0xff] %v230
  %247 = vst [vmem:[#allocation2 + $0x8] sm:$0xff] %v231
  %248 = vst [vmem:[#allocation2 + $0x10] sm:$0xff] %v232
  %249 = vst [vmem:[#allocation2 + $0x18] sm:$0xff] %v233
  %250 = vst [vmem:[#allocation2 + $0x20] sm:$0xff] %v234
  %251 = vst [vmem:[#allocation2 + $0x28] sm:$0xff] %v235
  %252 = vst [vmem:[#allocation2 + $0x30] sm:$0xff] %v236
  %253 = vst [vmem:[#allocation2 + $0x38] sm:$0xff] %v237
  %254 = vst [vmem:[#allocation2 + $0x40] sm:$0xff] %v238
  %255 = vst [vmem:[#allocation2 + $0x48] sm:$0xff] %v239
  %256 = vst [vmem:[#allocation2 + $0x50] sm:$0xff] %v240
  %257 = vst [vmem:[#allocation2 + $0x58] sm:$0xff] %v241
  %258 = vst [vmem:[#allocation2 + $0x60] sm:$0xff] %v242
  %259 = vst [vmem:[#allocation2 + $0x68] sm:$0xff] %v243
  %260 = vst [vmem:[#allocation2 + $0x70] sm:$0xff] %v244
  %261 = vst [vmem:[#allocation2 + $0x78] sm:$0xff] %v245
  // Predicated region
  $region18: #{_lambda_.8} parent=0 // pred_check
    %p262 = pneg %p17
  $region19: #{_lambda_.8} parent=0 // pred_check_branch
    %264 = sbr.rel (%p262) target = $region21
  $region20: #{_lambda_.8} parent=0 // pred_region
    %v265 = vld [vmem:[#allocation2] sm:$0xff]
    %v266 = vld [vmem:[#allocation2 + $0x8] sm:$0xff]
    %v267 = vld [vmem:[#allocation2 + $0x10] sm:$0xff]
    %v268 = vld [vmem:[#allocation2 + $0x18] sm:$0xff]
    %v269 = vld [vmem:[#allocation2 + $0x20] sm:$0xff]
    %v270 = vld [vmem:[#allocation2 + $0x28] sm:$0xff]
    %v271 = vld [vmem:[#allocation2 + $0x30] sm:$0xff]
    %v272 = vld [vmem:[#allocation2 + $0x38] sm:$0xff]
    %v273 = vld [vmem:[#allocation2 + $0x40] sm:$0xff]
    %v274 = vld [vmem:[#allocation2 + $0x48] sm:$0xff]
    %v275 = vld [vmem:[#allocation2 + $0x50] sm:$0xff]
    %v276 = vld [vmem:[#allocation2 + $0x58] sm:$0xff]
    %v277 = vld [vmem:[#allocation2 + $0x60] sm:$0xff]
    %v278 = vld [vmem:[#allocation2 + $0x68] sm:$0xff]
    %v279 = vld [vmem:[#allocation2 + $0x70] sm:$0xff]
    %v280 = vld [vmem:[#allocation2 + $0x78] sm:$0xff]
    %v281 = vld [vmem:[%s2] sm:$0x1]
    %v283 = vlaneseq
    %v284 = vshrl.u32 %v283, 7
    %v285 = vsub.s32 0, %v284
    %v286 = vrot.slane %v281, %v285
    %v288 = vadd.f32 %v265, %v286
    %v289 = vadd.f32 %v266, %v286
    %v290 = vadd.f32 %v267, %v286
    %v291 = vadd.f32 %v268, %v286
    %v292 = vadd.f32 %v269, %v286
    %v293 = vadd.f32 %v270, %v286
    %v294 = vadd.f32 %v271, %v286
    %v295 = vadd.f32 %v272, %v286
    %v296 = vadd.f32 %v273, %v286
    %v297 = vadd.f32 %v274, %v286
    %v298 = vadd.f32 %v275, %v286
    %v299 = vadd.f32 %v276, %v286
    %v300 = vadd.f32 %v277, %v286
    %v301 = vadd.f32 %v278, %v286
    %v302 = vadd.f32 %v279, %v286
    %v303 = vadd.f32 %v280, %v286
    %304 = vst [vmem:[%s3] sm:$0xff] %v288
    %305 = vst [vmem:[%s3 + $0x8] sm:$0xff] %v289
    %306 = vst [vmem:[%s3 + $0x10] sm:$0xff] %v290
    %307 = vst [vmem:[%s3 + $0x18] sm:$0xff] %v291
    %308 = vst [vmem:[%s3 + $0x20] sm:$0xff] %v292
    %309 = vst [vmem:[%s3 + $0x28] sm:$0xff] %v293
    %310 = vst [vmem:[%s3 + $0x30] sm:$0xff] %v294
    %311 = vst [vmem:[%s3 + $0x38] sm:$0xff] %v295
    %312 = vst [vmem:[%s3 + $0x40] sm:$0xff] %v296
    %313 = vst [vmem:[%s3 + $0x48] sm:$0xff] %v297
    %314 = vst [vmem:[%s3 + $0x50] sm:$0xff] %v298
    %315 = vst [vmem:[%s3 + $0x58] sm:$0xff] %v299
    %316 = vst [vmem:[%s3 + $0x60] sm:$0xff] %v300
    %317 = vst [vmem:[%s3 + $0x68] sm:$0xff] %v301
    %318 = vst [vmem:[%s3 + $0x70] sm:$0xff] %v302
    %319 = vst [vmem:[%s3 + $0x78] sm:$0xff] %v303
    %v320 = vadd.f32 %v288, %v289
    %v321 = vadd.f32 %v320, %v290
    %v322 = vadd.f32 %v321, %v291
    %v323 = vadd.f32 %v322, %v292
    %v324 = vadd.f32 %v323, %v293
    %v325 = vadd.f32 %v324, %v294
    %v326 = vadd.f32 %v325, %v295
    %v327 = vadd.f32 %v326, %v296
    %v328 = vadd.f32 %v327, %v297
    %v329 = vadd.f32 %v328, %v298
    %v330 = vadd.f32 %v329, %v299
    %v331 = vadd.f32 %v330, %v300
    %v332 = vadd.f32 %v331, %v301
    %v333 = vadd.f32 %v332, %v302
    %v334 = vadd.f32 %v333, %v303
    %v335 = vrot.slane %v334, 4
    %v336 = vadd.f32 %v334, %v335
    %v337 = vrot.slane %v336, 2
    %v338 = vadd.f32 %v336, %v337
    %v339 = vrot.slane %v338, 1
    %v340 = vadd.f32 %v338, %v339
    %v341 = vmul.f32 %v288, %v288
    %v342 = vmul.f32 %v289, %v289
    %v343 = vmul.f32 %v290, %v290
    %v344 = vmul.f32 %v291, %v291
    %v345 = vmul.f32 %v292, %v292
    %v346 = vmul.f32 %v293, %v293
    %v347 = vmul.f32 %v294, %v294
    %v348 = vmul.f32 %v295, %v295
    %v349 = vmul.f32 %v296, %v296
    %v350 = vmul.f32 %v297, %v297
    %v351 = vmul.f32 %v298, %v298
    %v352 = vmul.f32 %v299, %v299
    %v353 = vmul.f32 %v300, %v300
    %v354 = vmul.f32 %v301, %v301
    %v355 = vmul.f32 %v302, %v302
    %v356 = vmul.f32 %v303, %v303
    %v357 = vadd.f32 %v341, %v342
    %v358 = vadd.f32 %v357, %v343
    %v359 = vadd.f32 %v358, %v344
    %v360 = vadd.f32 %v359, %v345
    %v361 = vadd.f32 %v360, %v346
    %v362 = vadd.f32 %v361, %v347
    %v363 = vadd.f32 %v362, %v348
    %v364 = vadd.f32 %v363, %v349
    %v365 = vadd.f32 %v364, %v350
    %v366 = vadd.f32 %v365, %v351
    %v367 = vadd.f32 %v366, %v352
    %v368 = vadd.f32 %v367, %v353
    %v369 = vadd.f32 %v368, %v354
    %v370 = vadd.f32 %v369, %v355
    %v371 = vadd.f32 %v370, %v356
    %v372 = vrot.slane %v371, 4
    %v373 = vadd.f32 %v371, %v372
    %v374 = vrot.slane %v373, 2
    %v375 = vadd.f32 %v373, %v374
    %v376 = vrot.slane %v375, 1
    %v377 = vadd.f32 %v375, %v376
    %378 = vst [vmem:[%s4] sm:$0xff] %v340
    %379 = vst [vmem:[%s5] sm:$0xff] %v377
  $region21: #{_lambda_.8} parent=0 // pred_fallthru
    _
  // Predicated region
  $region22: #{_lambda_.8} parent=0 // pred_check
    _
  $region23: #{_lambda_.8} parent=0 // pred_check_branch
    %381 = sbr.rel (0) target = $region25
  $region24: #{_lambda_.8} parent=0 // pred_region
    _
  $region25: #{_lambda_.8} parent=0 // pred_fallthru
    _
  // Predicated region
  $region26: #{_lambda_.8} parent=0 // pred_check
    _
  $region27: #{_lambda_.8} parent=0 // pred_check_branch
    %383 = sbr.rel (0) target = $region29
  $region28: #{_lambda_.8} parent=0 // pred_region
    _
  $region29: #{_lambda_.8} parent=0 // pred_fallthru
    _
  // Predicated region
  $region30: #{_lambda_.8} parent=0 // pred_check
    _
  $region31: #{_lambda_.8} parent=0 // pred_check_branch
    %385 = sbr.rel (0) target = $region33
  $region32: #{_lambda_.8} parent=0 // pred_region
    _
  $region33: #{_lambda_.8} parent=0 // pred_fallthru
    _
  // Predicated region
  $region34: #{_lambda_.8} parent=0 // pred_check
    _
  $region35: #{_lambda_.8} parent=0 // pred_check_branch
    %387 = sbr.rel (0) target = $region37
  $region36: #{_lambda_.8} parent=0 // pred_region
    _
  $region37: #{_lambda_.8} parent=0 // pred_fallthru
    _
  // Predicated region
  $region38: #{_lambda_.8} parent=0 // pred_check
    _
  $region39: #{_lambda_.8} parent=0 // pred_check_branch
    %389 = sbr.rel (0) target = $region41
  $region40: #{_lambda_.8} parent=0 // pred_region
    _
  $region41: #{_lambda_.8} parent=0 // pred_fallthru
    _
  // Predicated region
  $region42: #{_lambda_.8} parent=0 // pred_check
    _
  $region43: #{_lambda_.8} parent=0 // pred_check_branch
    %391 = sbr.rel (0) target = $region45
  $region44: #{_lambda_.8} parent=0 // pred_region
    _
  $region45: #{_lambda_.8} parent=0 // pred_fallthru
    _

// kernel: _lambda_.5
$region0: #{_lambda_.5}
  #allocation0 [shape = 'u32[]', space=smem, size = 0x4, offset = 0x4, fixed_abs, tag = 'smem constant byte address 0x4 - core index']
  #allocation1 [shape = 'u32[144,128]{1,0:T(1,128)}', space=vmem, size = 0x12000, scoped, tag = 'internal scratch']
  %s0 = inlined_call_operand.vmem [shape: f32[512,128], index: 0, kind: input, shape index: {}]
  %s1 = inlined_call_operand.vmem [shape: f32[1,128], index: 1, kind: input, shape index: {}]
  %s2 = inlined_call_operand.vmem [shape: f32[1,128], index: 2, kind: input, shape index: {}]
  %s3 = inlined_call_operand.vmem [shape: f32[512,128], index: 3, kind: output, shape index: {}]
  %s4 = sld [smem:[#allocation0]]
  $region22: #{_lambda_.5} parent=0
    _
  %s6 = ssub.s32 1, %s4
  %s7 = scalar_select 0, %s6, %s4
  // Predicated region
  $region2: #{_lambda_.5} parent=0 // pred_check
    _
  $region3: #{_lambda_.5} parent=0 // pred_check_branch
    %9 = sbr.rel (0) target = $region5
  $region4: #{_lambda_.5} parent=0 // pred_region
    _
  $region5: #{_lambda_.5} parent=0 // pred_fallthru
    _
  // Predicated region
  $region6: #{_lambda_.5} parent=0 // pred_check
    _
  $region7: #{_lambda_.5} parent=0 // pred_check_branch
    %11 = sbr.rel (0) target = $region9
  $region8: #{_lambda_.5} parent=0 // pred_region
    _
  $region9: #{_lambda_.5} parent=0 // pred_fallthru
    _
  // Predicated region
  $region10: #{_lambda_.5} parent=0 // pred_check
    _
  $region11: #{_lambda_.5} parent=0 // pred_check_branch
    %13 = sbr.rel (0) target = $region13
  $region12: #{_lambda_.5} parent=0 // pred_region
    _
  $region13: #{_lambda_.5} parent=0 // pred_fallthru
    _
  %v14 = vld [vmem:[%s0] sm:$0xff]
  %v15 = vld [vmem:[%s0 + $0x8] sm:$0xff]
  %v16 = vld [vmem:[%s0 + $0x10] sm:$0xff]
  %v17 = vld [vmem:[%s0 + $0x18] sm:$0xff]
  %v18 = vld [vmem:[%s0 + $0x20] sm:$0xff]
  %v19 = vld [vmem:[%s0 + $0x28] sm:$0xff]
  %v20 = vld [vmem:[%s0 + $0x30] sm:$0xff]
  %v21 = vld [vmem:[%s0 + $0x38] sm:$0xff]
  %v22 = vld [vmem:[%s0 + $0x40] sm:$0xff]
  %v23 = vld [vmem:[%s0 + $0x48] sm:$0xff]
  %v24 = vld [vmem:[%s0 + $0x50] sm:$0xff]
  %v25 = vld [vmem:[%s0 + $0x58] sm:$0xff]
  %v26 = vld [vmem:[%s0 + $0x60] sm:$0xff]
  %v27 = vld [vmem:[%s0 + $0x68] sm:$0xff]
  %v28 = vld [vmem:[%s0 + $0x70] sm:$0xff]
  %v29 = vld [vmem:[%s0 + $0x78] sm:$0xff]
  %v30 = vld [vmem:[%s0 + $0x80] sm:$0xff]
  %v31 = vld [vmem:[%s0 + $0x88] sm:$0xff]
  %v32 = vld [vmem:[%s0 + $0x90] sm:$0xff]
  %v33 = vld [vmem:[%s0 + $0x98] sm:$0xff]
  %v34 = vld [vmem:[%s0 + $0xa0] sm:$0xff]
  %v35 = vld [vmem:[%s0 + $0xa8] sm:$0xff]
  %v36 = vld [vmem:[%s0 + $0xb0] sm:$0xff]
  %v37 = vld [vmem:[%s0 + $0xb8] sm:$0xff]
  %v38 = vld [vmem:[%s0 + $0xc0] sm:$0xff]
  %v39 = vld [vmem:[%s0 + $0xc8] sm:$0xff]
  %v40 = vld [vmem:[%s0 + $0xd0] sm:$0xff]
  %v41 = vld [vmem:[%s0 + $0xd8] sm:$0xff]
  %v42 = vld [vmem:[%s0 + $0xe0] sm:$0xff]
  %v43 = vld [vmem:[%s0 + $0xe8] sm:$0xff]
  %v44 = vld [vmem:[%s0 + $0xf0] sm:$0xff]
  %v45 = vld [vmem:[%s0 + $0xf8] sm:$0xff]
  %v46 = vld [vmem:[%s0 + $0x100] sm:$0xff]
  %v47 = vld [vmem:[%s0 + $0x108] sm:$0xff]
  %v48 = vld [vmem:[%s0 + $0x110] sm:$0xff]
  %v49 = vld [vmem:[%s0 + $0x118] sm:$0xff]
  %v50 = vld [vmem:[%s0 + $0x120] sm:$0xff]
  %v51 = vld [vmem:[%s0 + $0x128] sm:$0xff]
  %v52 = vld [vmem:[%s0 + $0x130] sm:$0xff]
  %v53 = vld [vmem:[%s0 + $0x138] sm:$0xff]
  %v54 = vld [vmem:[%s0 + $0x140] sm:$0xff]
  %v55 = vld [vmem:[%s0 + $0x148] sm:$0xff]
  %v56 = vld [vmem:[%s0 + $0x150] sm:$0xff]
  %v57 = vld [vmem:[%s0 + $0x158] sm:$0xff]
  %v58 = vld [vmem:[%s0 + $0x160] sm:$0xff]
  %v59 = vld [vmem:[%s0 + $0x168] sm:$0xff]
  %v60 = vld [vmem:[%s0 + $0x170] sm:$0xff]
  %v61 = vld [vmem:[%s0 + $0x178] sm:$0xff]
  %v62 = vld [vmem:[%s0 + $0x180] sm:$0xff]
  %v63 = vld [vmem:[%s0 + $0x188] sm:$0xff]
  %v64 = vld [vmem:[%s0 + $0x190] sm:$0xff]
  %v65 = vld [vmem:[%s0 + $0x198] sm:$0xff]
  %v66 = vld [vmem:[%s0 + $0x1a0] sm:$0xff]
  %v67 = vld [vmem:[%s0 + $0x1a8] sm:$0xff]
  %v68 = vld [vmem:[%s0 + $0x1b0] sm:$0xff]
  %v69 = vld [vmem:[%s0 + $0x1b8] sm:$0xff]
  %v70 = vld [vmem:[%s0 + $0x1c0] sm:$0xff]
  %v71 = vld [vmem:[%s0 + $0x1c8] sm:$0xff]
  %v72 = vld [vmem:[%s0 + $0x1d0] sm:$0xff]
  %v73 = vld [vmem:[%s0 + $0x1d8] sm:$0xff]
  %v74 = vld [vmem:[%s0 + $0x1e0] sm:$0xff]
  %v75 = vld [vmem:[%s0 + $0x1e8] sm:$0xff]
  %v76 = vld [vmem:[%s0 + $0x1f0] sm:$0xff]
  %v77 = vld [vmem:[%s0 + $0x1f8] sm:$0xff]
  %v78 = vld [vmem:[%s1] sm:$0x1]
  %v80 = vlaneseq
  %v81 = vshrl.u32 %v80, 7
  %v82 = vsub.s32 0, %v81
  %v83 = vrot.slane %v78, %v82
  %v85 = vmul.f32 %v14, %v83
  %v86 = vmul.f32 %v15, %v83
  %v87 = vmul.f32 %v16, %v83
  %v88 = vmul.f32 %v17, %v83
  %v89 = vmul.f32 %v18, %v83
  %v90 = vmul.f32 %v19, %v83
  %v91 = vmul.f32 %v20, %v83
  %v92 = vmul.f32 %v21, %v83
  %v93 = vmul.f32 %v22, %v83
  %v94 = vmul.f32 %v23, %v83
  %v95 = vmul.f32 %v24, %v83
  %v96 = vmul.f32 %v25, %v83
  %v97 = vmul.f32 %v26, %v83
  %v98 = vmul.f32 %v27, %v83
  %v99 = vmul.f32 %v28, %v83
  %v100 = vmul.f32 %v29, %v83
  %v101 = vmul.f32 %v30, %v83
  %v102 = vmul.f32 %v31, %v83
  %v103 = vmul.f32 %v32, %v83
  %v104 = vmul.f32 %v33, %v83
  %v105 = vmul.f32 %v34, %v83
  %v106 = vmul.f32 %v35, %v83
  %v107 = vmul.f32 %v36, %v83
  %v108 = vmul.f32 %v37, %v83
  %v109 = vmul.f32 %v38, %v83
  %v110 = vmul.f32 %v39, %v83
  %v111 = vmul.f32 %v40, %v83
  %v112 = vmul.f32 %v41, %v83
  %v113 = vmul.f32 %v42, %v83
  %v114 = vmul.f32 %v43, %v83
  %v115 = vmul.f32 %v44, %v83
  %v116 = vmul.f32 %v45, %v83
  %v117 = vmul.f32 %v46, %v83
  %v118 = vmul.f32 %v47, %v83
  %v119 = vmul.f32 %v48, %v83
  %v120 = vmul.f32 %v49, %v83
  %v121 = vmul.f32 %v50, %v83
  %v122 = vmul.f32 %v51, %v83
  %v123 = vmul.f32 %v52, %v83
  %v124 = vmul.f32 %v53, %v83
  %v125 = vmul.f32 %v54, %v83
  %v126 = vmul.f32 %v55, %v83
  %v127 = vmul.f32 %v56, %v83
  %v128 = vmul.f32 %v57, %v83
  %v129 = vmul.f32 %v58, %v83
  %v130 = vmul.f32 %v59, %v83
  %v131 = vmul.f32 %v60, %v83
  %v132 = vmul.f32 %v61, %v83
  %v133 = vmul.f32 %v62, %v83
  %v134 = vmul.f32 %v63, %v83
  %v135 = vmul.f32 %v64, %v83
  %v136 = vmul.f32 %v65, %v83
  %v137 = vmul.f32 %v66, %v83
  %v138 = vmul.f32 %v67, %v83
  %v139 = vmul.f32 %v68, %v83
  %v140 = vmul.f32 %v69, %v83
  %v141 = vmul.f32 %v70, %v83
  %v142 = vmul.f32 %v71, %v83
  %v143 = vmul.f32 %v72, %v83
  %v144 = vmul.f32 %v73, %v83
  %v145 = vmul.f32 %v74, %v83
  %v146 = vmul.f32 %v75, %v83
  %v147 = vmul.f32 %v76, %v83
  %v148 = vmul.f32 %v77, %v83
  %v149 = vld [vmem:[%s2] sm:$0x1]
  %v151 = vlaneseq
  %v152 = vshrl.u32 %v151, 7
  %v153 = vsub.s32 0, %v152
  %v154 = vrot.slane %v149, %v153
  %v156 = vadd.f32 %v85, %v154
  %v157 = vadd.f32 %v86, %v154
  %v158 = vadd.f32 %v87, %v154
  %v159 = vadd.f32 %v88, %v154
  %v160 = vadd.f32 %v89, %v154
  %v161 = vadd.f32 %v90, %v154
  %v162 = vadd.f32 %v91, %v154
  %v163 = vadd.f32 %v92, %v154
  %v164 = vadd.f32 %v93, %v154
  %v165 = vadd.f32 %v94, %v154
  %v166 = vadd.f32 %v95, %v154
  %v167 = vadd.f32 %v96, %v154
  %v168 = vadd.f32 %v97, %v154
  %v169 = vadd.f32 %v98, %v154
  %v170 = vadd.f32 %v99, %v154
  %v171 = vadd.f32 %v100, %v154
  %v172 = vadd.f32 %v101, %v154
  %v173 = vadd.f32 %v102, %v154
  %v174 = vadd.f32 %v103, %v154
  %v175 = vadd.f32 %v104, %v154
  %v176 = vadd.f32 %v105, %v154
  %v177 = vadd.f32 %v106, %v154
  %v178 = vadd.f32 %v107, %v154
  %v179 = vadd.f32 %v108, %v154
  %v180 = vadd.f32 %v109, %v154
  %v181 = vadd.f32 %v110, %v154
  %v182 = vadd.f32 %v111, %v154
  %v183 = vadd.f32 %v112, %v154
  %v184 = vadd.f32 %v113, %v154
  %v185 = vadd.f32 %v114, %v154
  %v186 = vadd.f32 %v115, %v154
  %v187 = vadd.f32 %v116, %v154
  %v188 = vadd.f32 %v117, %v154
  %v189 = vadd.f32 %v118, %v154
  %v190 = vadd.f32 %v119, %v154
  %v191 = vadd.f32 %v120, %v154
  %v192 = vadd.f32 %v121, %v154
  %v193 = vadd.f32 %v122, %v154
  %v194 = vadd.f32 %v123, %v154
  %v195 = vadd.f32 %v124, %v154
  %v196 = vadd.f32 %v125, %v154
  %v197 = vadd.f32 %v126, %v154
  %v198 = vadd.f32 %v127, %v154
  %v199 = vadd.f32 %v128, %v154
  %v200 = vadd.f32 %v129, %v154
  %v201 = vadd.f32 %v130, %v154
  %v202 = vadd.f32 %v131, %v154
  %v203 = vadd.f32 %v132, %v154
  %v204 = vadd.f32 %v133, %v154
  %v205 = vadd.f32 %v134, %v154
  %v206 = vadd.f32 %v135, %v154
  %v207 = vadd.f32 %v136, %v154
  %v208 = vadd.f32 %v137, %v154
  %v209 = vadd.f32 %v138, %v154
  %v210 = vadd.f32 %v139, %v154
  %v211 = vadd.f32 %v140, %v154
  %v212 = vadd.f32 %v141, %v154
  %v213 = vadd.f32 %v142, %v154
  %v214 = vadd.f32 %v143, %v154
  %v215 = vadd.f32 %v144, %v154
  %v216 = vadd.f32 %v145, %v154
  %v217 = vadd.f32 %v146, %v154
  %v218 = vadd.f32 %v147, %v154
  %v219 = vadd.f32 %v148, %v154
  %v220 = vmax.f32 %v156, 0.0
  %v221 = vmax.f32 %v157, 0.0
  %v222 = vmax.f32 %v158, 0.0
  %v223 = vmax.f32 %v159, 0.0
  %v224 = vmax.f32 %v160, 0.0
  %v225 = vmax.f32 %v161, 0.0
  %v226 = vmax.f32 %v162, 0.0
  %v227 = vmax.f32 %v163, 0.0
  %v228 = vmax.f32 %v164, 0.0
  %v229 = vmax.f32 %v165, 0.0
  %v230 = vmax.f32 %v166, 0.0
  %v231 = vmax.f32 %v167, 0.0
  %v232 = vmax.f32 %v168, 0.0
  %v233 = vmax.f32 %v169, 0.0
  %v234 = vmax.f32 %v170, 0.0
  %v235 = vmax.f32 %v171, 0.0
  %v236 = vmax.f32 %v172, 0.0
  %v237 = vmax.f32 %v173, 0.0
  %v238 = vmax.f32 %v174, 0.0
  %v239 = vmax.f32 %v175, 0.0
  %v240 = vmax.f32 %v176, 0.0
  %v241 = vmax.f32 %v177, 0.0
  %v242 = vmax.f32 %v178, 0.0
  %v243 = vmax.f32 %v179, 0.0
  %v244 = vmax.f32 %v180, 0.0
  %v245 = vmax.f32 %v181, 0.0
  %v246 = vmax.f32 %v182, 0.0
  %v247 = vmax.f32 %v183, 0.0
  %v248 = vmax.f32 %v184, 0.0
  %v249 = vmax.f32 %v185, 0.0
  %v250 = vmax.f32 %v186, 0.0
  %v251 = vmax.f32 %v187, 0.0
  %v252 = vmax.f32 %v188, 0.0
  %v253 = vmax.f32 %v189, 0.0
  %v254 = vmax.f32 %v190, 0.0
  %v255 = vmax.f32 %v191, 0.0
  %v256 = vmax.f32 %v192, 0.0
  %v257 = vmax.f32 %v193, 0.0
  %v258 = vmax.f32 %v194, 0.0
  %v259 = vmax.f32 %v195, 0.0
  %v260 = vmax.f32 %v196, 0.0
  %v261 = vmax.f32 %v197, 0.0
  %v262 = vmax.f32 %v198, 0.0
  %v263 = vmax.f32 %v199, 0.0
  %v264 = vmax.f32 %v200, 0.0
  %v265 = vmax.f32 %v201, 0.0
  %v266 = vmax.f32 %v202, 0.0
  %v267 = vmax.f32 %v203, 0.0
  %v268 = vmax.f32 %v204, 0.0
  %v269 = vmax.f32 %v205, 0.0
  %v270 = vmax.f32 %v206, 0.0
  %v271 = vmax.f32 %v207, 0.0
  %v272 = vmax.f32 %v208, 0.0
  %v273 = vmax.f32 %v209, 0.0
  %v274 = vmax.f32 %v210, 0.0
  %v275 = vmax.f32 %v211, 0.0
  %v276 = vmax.f32 %v212, 0.0
  %v277 = vmax.f32 %v213, 0.0
  %v278 = vmax.f32 %v214, 0.0
  %v279 = vmax.f32 %v215, 0.0
  %v280 = vmax.f32 %v216, 0.0
  %v281 = vmax.f32 %v217, 0.0
  %v282 = vmax.f32 %v218, 0.0
  %v283 = vmax.f32 %v219, 0.0
  %284 = vst [vmem:[%s3] sm:$0xff] %v220
  %285 = vst [vmem:[%s3 + $0x8] sm:$0xff] %v221
  %286 = vst [vmem:[%s3 + $0x10] sm:$0xff] %v222
  %287 = vst [vmem:[%s3 + $0x18] sm:$0xff] %v223
  %288 = vst [vmem:[%s3 + $0x20] sm:$0xff] %v224
  %289 = vst [vmem:[%s3 + $0x28] sm:$0xff] %v225
  %290 = vst [vmem:[%s3 + $0x30] sm:$0xff] %v226
  %291 = vst [vmem:[%s3 + $0x38] sm:$0xff] %v227
  %292 = vst [vmem:[%s3 + $0x40] sm:$0xff] %v228
  %293 = vst [vmem:[%s3 + $0x48] sm:$0xff] %v229
  %294 = vst [vmem:[%s3 + $0x50] sm:$0xff] %v230
  %295 = vst [vmem:[%s3 + $0x58] sm:$0xff] %v231
  %296 = vst [vmem:[%s3 + $0x60] sm:$0xff] %v232
  %297 = vst [vmem:[%s3 + $0x68] sm:$0xff] %v233
  %298 = vst [vmem:[%s3 + $0x70] sm:$0xff] %v234
  %299 = vst [vmem:[%s3 + $0x78] sm:$0xff] %v235
  %300 = vst [vmem:[%s3 + $0x80] sm:$0xff] %v236
  %301 = vst [vmem:[%s3 + $0x88] sm:$0xff] %v237
  %302 = vst [vmem:[%s3 + $0x90] sm:$0xff] %v238
  %303 = vst [vmem:[%s3 + $0x98] sm:$0xff] %v239
  %304 = vst [vmem:[%s3 + $0xa0] sm:$0xff] %v240
  %305 = vst [vmem:[%s3 + $0xa8] sm:$0xff] %v241
  %306 = vst [vmem:[%s3 + $0xb0] sm:$0xff] %v242
  %307 = vst [vmem:[%s3 + $0xb8] sm:$0xff] %v243
  %308 = vst [vmem:[%s3 + $0xc0] sm:$0xff] %v244
  %309 = vst [vmem:[%s3 + $0xc8] sm:$0xff] %v245
  %310 = vst [vmem:[%s3 + $0xd0] sm:$0xff] %v246
  %311 = vst [vmem:[%s3 + $0xd8] sm:$0xff] %v247
  %312 = vst [vmem:[%s3 + $0xe0] sm:$0xff] %v248
  %313 = vst [vmem:[%s3 + $0xe8] sm:$0xff] %v249
  %314 = vst [vmem:[%s3 + $0xf0] sm:$0xff] %v250
  %315 = vst [vmem:[%s3 + $0xf8] sm:$0xff] %v251
  %316 = vst [vmem:[%s3 + $0x100] sm:$0xff] %v252
  %317 = vst [vmem:[%s3 + $0x108] sm:$0xff] %v253
  %318 = vst [vmem:[%s3 + $0x110] sm:$0xff] %v254
  %319 = vst [vmem:[%s3 + $0x118] sm:$0xff] %v255
  %320 = vst [vmem:[%s3 + $0x120] sm:$0xff] %v256
  %321 = vst [vmem:[%s3 + $0x128] sm:$0xff] %v257
  %322 = vst [vmem:[%s3 + $0x130] sm:$0xff] %v258
  %323 = vst [vmem:[%s3 + $0x138] sm:$0xff] %v259
  %324 = vst [vmem:[%s3 + $0x140] sm:$0xff] %v260
  %325 = vst [vmem:[%s3 + $0x148] sm:$0xff] %v261
  %326 = vst [vmem:[%s3 + $0x150] sm:$0xff] %v262
  %327 = vst [vmem:[%s3 + $0x158] sm:$0xff] %v263
  %328 = vst [vmem:[%s3 + $0x160] sm:$0xff] %v264
  %329 = vst [vmem:[%s3 + $0x168] sm:$0xff] %v265
  %330 = vst [vmem:[%s3 + $0x170] sm:$0xff] %v266
  %331 = vst [vmem:[%s3 + $0x178] sm:$0xff] %v267
  %332 = vst [vmem:[%s3 + $0x180] sm:$0xff] %v268
  %333 = vst [vmem:[%s3 + $0x188] sm:$0xff] %v269
  %334 = vst [vmem:[%s3 + $0x190] sm:$0xff] %v270
  %335 = vst [vmem:[%s3 + $0x198] sm:$0xff] %v271
  %336 = vst [vmem:[%s3 + $0x1a0] sm:$0xff] %v272
  %337 = vst [vmem:[%s3 + $0x1a8] sm:$0xff] %v273
  %338 = vst [vmem:[%s3 + $0x1b0] sm:$0xff] %v274
  %339 = vst [vmem:[%s3 + $0x1b8] sm:$0xff] %v275
  %340 = vst [vmem:[%s3 + $0x1c0] sm:$0xff] %v276
  %341 = vst [vmem:[%s3 + $0x1c8] sm:$0xff] %v277
  %342 = vst [vmem:[%s3 + $0x1d0] sm:$0xff] %v278
  %343 = vst [vmem:[%s3 + $0x1d8] sm:$0xff] %v279
  %344 = vst [vmem:[%s3 + $0x1e0] sm:$0xff] %v280
  %345 = vst [vmem:[%s3 + $0x1e8] sm:$0xff] %v281
  %346 = vst [vmem:[%s3 + $0x1f0] sm:$0xff] %v282
  %347 = vst [vmem:[%s3 + $0x1f8] sm:$0xff] %v283
  // Predicated region
  $region14: #{_lambda_.5} parent=0 // pred_check
    _
  $region15: #{_lambda_.5} parent=0 // pred_check_branch
    %349 = sbr.rel (0) target = $region17
  $region16: #{_lambda_.5} parent=0 // pred_region
    _
  $region17: #{_lambda_.5} parent=0 // pred_fallthru
    _
  // Predicated region
  $region18: #{_lambda_.5} parent=0 // pred_check
    _
  $region19: #{_lambda_.5} parent=0 // pred_check_branch
    %351 = sbr.rel (0) target = $region21
  $region20: #{_lambda_.5} parent=0 // pred_region
    _
  $region21: #{_lambda_.5} parent=0 // pred_fallthru
    _

// kernel: _lambda_.9
$region0: #{_lambda_.9}
  #allocation0 [shape = 'u32[]', space=smem, size = 0x4, offset = 0x4, fixed_abs, tag = 'smem constant byte address 0x4 - core index']
  #allocation1 [shape = 'u32[144,128]{1,0:T(1,128)}', space=vmem, size = 0x12000, scoped, tag = 'internal scratch']
  #allocation2 [shape = 'f32[128,128]{1,0:T(8,128)}', space=vmem, size = 0x10000, scoped, tag = 'scratch operand']
  %s0 = inlined_call_operand.vmem [shape: f32[128,1152], index: 0, kind: input, shape index: {}]
  %s1 = inlined_call_operand.vmem [shape: f32[1152,128], index: 1, kind: input, shape index: {}]
  %s2 = inlined_call_operand.vmem [shape: f32[1,128], index: 2, kind: input, shape index: {}]
  %s3 = inlined_call_operand.vmem [shape: f32[1,128], index: 3, kind: input, shape index: {}]
  %s4 = inlined_call_operand.vmem [shape: f32[1,128], index: 4, kind: input, shape index: {}]
  %s5 = inlined_call_operand.vmem [shape: f32[128,128], index: 5, kind: input, shape index: {}]
  %s6 = inlined_call_operand.vmem [shape: f32[128,128], index: 6, kind: output, shape index: {}]
  %s7 = sld [smem:[#allocation0]]
  $region42: #{_lambda_.9} parent=0
    _
  %s9 = ssub.s32 1, %s7
  %s10 = scalar_select 0, %s9, %s7
  // Predicated region
  $region2: #{_lambda_.9} parent=0 // pred_check
    _
  $region3: #{_lambda_.9} parent=0 // pred_check_branch
    %12 = sbr.rel (0) target = $region5
  $region4: #{_lambda_.9} parent=0 // pred_region
    _
  $region5: #{_lambda_.9} parent=0 // pred_fallthru
    _
  // Predicated region
  $region6: #{_lambda_.9} parent=0 // pred_check
    _
  $region7: #{_lambda_.9} parent=0 // pred_check_branch
    %14 = sbr.rel (0) target = $region9
  $region8: #{_lambda_.9} parent=0 // pred_region
    _
  $region9: #{_lambda_.9} parent=0 // pred_fallthru
    _
  // Predicated region
  $region10: #{_lambda_.9} parent=0 // pred_check
    _
  $region11: #{_lambda_.9} parent=0 // pred_check_branch
    %16 = sbr.rel (0) target = $region13
  $region12: #{_lambda_.9} parent=0 // pred_region
    _
  $region13: #{_lambda_.9} parent=0 // pred_fallthru
    _
  // Predicated region
  $region14: #{_lambda_.9} parent=0 // pred_check
    _
  $region15: #{_lambda_.9} parent=0 // pred_check_branch
    %18 = sbr.rel (0) target = $region17
  $region16: #{_lambda_.9} parent=0 // pred_region
    _
  $region17: #{_lambda_.9} parent=0 // pred_fallthru
    _
  // Predicated region
  $region18: #{_lambda_.9} parent=0 // pred_check
    _
  $region19: #{_lambda_.9} parent=0 // pred_check_branch
    %20 = sbr.rel (0) target = $region21
  $region20: #{_lambda_.9} parent=0 // pred_region
    _
  $region21: #{_lambda_.9} parent=0 // pred_fallthru
    _
  // Predicated region
  $region22: #{_lambda_.9} parent=0 // pred_check
    _
  $region23: #{_lambda_.9} parent=0 // pred_check_branch
    %22 = sbr.rel (0) target = $region25
  $region24: #{_lambda_.9} parent=0 // pred_region
    _
  $region25: #{_lambda_.9} parent=0 // pred_fallthru
    _
  %p23 = scmp.eq.s32.totalorder 0, 0
  // Predicated region
  $region26: #{_lambda_.9} parent=0 // pred_check
    %p24 = pneg %p23
  $region27: #{_lambda_.9} parent=0 // pred_check_branch
    %26 = sbr.rel (%p24) target = $region29
  $region28: #{_lambda_.9} parent=0 // pred_region
    %27 = vst [vmem:[#allocation2] sm:$0xff] 0.0
    %28 = vst [vmem:[#allocation2 + $0x8] sm:$0xff] 0.0
    %29 = vst [vmem:[#allocation2 + $0x10] sm:$0xff] 0.0
    %30 = vst [vmem:[#allocation2 + $0x18] sm:$0xff] 0.0
    %31 = vst [vmem:[#allocation2 + $0x20] sm:$0xff] 0.0
    %32 = vst [vmem:[#allocation2 + $0x28] sm:$0xff] 0.0
    %33 = vst [vmem:[#allocation2 + $0x30] sm:$0xff] 0.0
    %34 = vst [vmem:[#allocation2 + $0x38] sm:$0xff] 0.0
    %35 = vst [vmem:[#allocation2 + $0x40] sm:$0xff] 0.0
    %36 = vst [vmem:[#allocation2 + $0x48] sm:$0xff] 0.0
    %37 = vst [vmem:[#allocation2 + $0x50] sm:$0xff] 0.0
    %38 = vst [vmem:[#allocation2 + $0x58] sm:$0xff] 0.0
    %39 = vst [vmem:[#allocation2 + $0x60] sm:$0xff] 0.0
    %40 = vst [vmem:[#allocation2 + $0x68] sm:$0xff] 0.0
    %41 = vst [vmem:[#allocation2 + $0x70] sm:$0xff] 0.0
    %42 = vst [vmem:[#allocation2 + $0x78] sm:$0xff] 0.0
  $region29: #{_lambda_.9} parent=0 // pred_fallthru
    _
  %v43 = vld [vmem:[#allocation2] sm:$0xff]
  %v44 = vld [vmem:[#allocation2 + $0x8] sm:$0xff]
  %v45 = vld [vmem:[#allocation2 + $0x10] sm:$0xff]
  %v46 = vld [vmem:[#allocation2 + $0x18] sm:$0xff]
  %v47 = vld [vmem:[#allocation2 + $0x20] sm:$0xff]
  %v48 = vld [vmem:[#allocation2 + $0x28] sm:$0xff]
  %v49 = vld [vmem:[#allocation2 + $0x30] sm:$0xff]
  %v50 = vld [vmem:[#allocation2 + $0x38] sm:$0xff]
  %v51 = vld [vmem:[#allocation2 + $0x40] sm:$0xff]
  %v52 = vld [vmem:[#allocation2 + $0x48] sm:$0xff]
  %v53 = vld [vmem:[#allocation2 + $0x50] sm:$0xff]
  %v54 = vld [vmem:[#allocation2 + $0x58] sm:$0xff]
  %v55 = vld [vmem:[#allocation2 + $0x60] sm:$0xff]
  %v56 = vld [vmem:[#allocation2 + $0x68] sm:$0xff]
  %v57 = vld [vmem:[#allocation2 + $0x70] sm:$0xff]
  %v58 = vld [vmem:[#allocation2 + $0x78] sm:$0xff]
  %v59 = vld [vmem:[%s0] sm:$0xff]
  %v60 = vld [vmem:[%s0 + $0x8] sm:$0xff]
  %v61 = vld [vmem:[%s0 + $0x10] sm:$0xff]
  %v62 = vld [vmem:[%s0 + $0x18] sm:$0xff]
  %v63 = vld [vmem:[%s0 + $0x20] sm:$0xff]
  %v64 = vld [vmem:[%s0 + $0x28] sm:$0xff]
  %v65 = vld [vmem:[%s0 + $0x30] sm:$0xff]
  %v66 = vld [vmem:[%s0 + $0x38] sm:$0xff]
  %v67 = vld [vmem:[%s0 + $0x40] sm:$0xff]
  %v68 = vld [vmem:[%s0 + $0x48] sm:$0xff]
  %v69 = vld [vmem:[%s0 + $0x50] sm:$0xff]
  %v70 = vld [vmem:[%s0 + $0x58] sm:$0xff]
  %v71 = vld [vmem:[%s0 + $0x60] sm:$0xff]
  %v72 = vld [vmem:[%s0 + $0x68] sm:$0xff]
  %v73 = vld [vmem:[%s0 + $0x70] sm:$0xff]
  %v74 = vld [vmem:[%s0 + $0x78] sm:$0xff]
  %v75 = vld [vmem:[%s0 + $0x80] sm:$0xff]
  %v76 = vld [vmem:[%s0 + $0x88] sm:$0xff]
  %v77 = vld [vmem:[%s0 + $0x90] sm:$0xff]
  %v78 = vld [vmem:[%s0 + $0x98] sm:$0xff]
  %v79 = vld [vmem:[%s0 + $0xa0] sm:$0xff]
  %v80 = vld [vmem:[%s0 + $0xa8] sm:$0xff]
  %v81 = vld [vmem:[%s0 + $0xb0] sm:$0xff]
  %v82 = vld [vmem:[%s0 + $0xb8] sm:$0xff]
  %v83 = vld [vmem:[%s0 + $0xc0] sm:$0xff]
  %v84 = vld [vmem:[%s0 + $0xc8] sm:$0xff]
  %v85 = vld [vmem:[%s0 + $0xd0] sm:$0xff]
  %v86 = vld [vmem:[%s0 + $0xd8] sm:$0xff]
  %v87 = vld [vmem:[%s0 + $0xe0] sm:$0xff]
  %v88 = vld [vmem:[%s0 + $0xe8] sm:$0xff]
  %v89 = vld [vmem:[%s0 + $0xf0] sm:$0xff]
  %v90 = vld [vmem:[%s0 + $0xf8] sm:$0xff]
  %v91 = vld [vmem:[%s0 + $0x100] sm:$0xff]
  %v92 = vld [vmem:[%s0 + $0x108] sm:$0xff]
  %v93 = vld [vmem:[%s0 + $0x110] sm:$0xff]
  %v94 = vld [vmem:[%s0 + $0x118] sm:$0xff]
  %v95 = vld [vmem:[%s0 + $0x120] sm:$0xff]
  %v96 = vld [vmem:[%s0 + $0x128] sm:$0xff]
  %v97 = vld [vmem:[%s0 + $0x130] sm:$0xff]
  %v98 = vld [vmem:[%s0 + $0x138] sm:$0xff]
  %v99 = vld [vmem:[%s0 + $0x140] sm:$0xff]
  %v100 = vld [vmem:[%s0 + $0x148] sm:$0xff]
  %v101 = vld [vmem:[%s0 + $0x150] sm:$0xff]
  %v102 = vld [vmem:[%s0 + $0x158] sm:$0xff]
  %v103 = vld [vmem:[%s0 + $0x160] sm:$0xff]
  %v104 = vld [vmem:[%s0 + $0x168] sm:$0xff]
  %v105 = vld [vmem:[%s0 + $0x170] sm:$0xff]
  %v106 = vld [vmem:[%s0 + $0x178] sm:$0xff]
  %v107 = vld [vmem:[%s0 + $0x180] sm:$0xff]
  %v108 = vld [vmem:[%s0 + $0x188] sm:$0xff]
  %v109 = vld [vmem:[%s0 + $0x190] sm:$0xff]
  %v110 = vld [vmem:[%s0 + $0x198] sm:$0xff]
  %v111 = vld [vmem:[%s0 + $0x1a0] sm:$0xff]
  %v112 = vld [vmem:[%s0 + $0x1a8] sm:$0xff]
  %v113 = vld [vmem:[%s0 + $0x1b0] sm:$0xff]
  %v114 = vld [vmem:[%s0 + $0x1b8] sm:$0xff]
  %v115 = vld [vmem:[%s0 + $0x1c0] sm:$0xff]
  %v116 = vld [vmem:[%s0 + $0x1c8] sm:$0xff]
  %v117 = vld [vmem:[%s0 + $0x1d0] sm:$0xff]
  %v118 = vld [vmem:[%s0 + $0x1d8] sm:$0xff]
  %v119 = vld [vmem:[%s0 + $0x1e0] sm:$0xff]
  %v120 = vld [vmem:[%s0 + $0x1e8] sm:$0xff]
  %v121 = vld [vmem:[%s0 + $0x1f0] sm:$0xff]
  %v122 = vld [vmem:[%s0 + $0x1f8] sm:$0xff]
  %v123 = vld [vmem:[%s0 + $0x200] sm:$0xff]
  %v124 = vld [vmem:[%s0 + $0x208] sm:$0xff]
  %v125 = vld [vmem:[%s0 + $0x210] sm:$0xff]
  %v126 = vld [vmem:[%s0 + $0x218] sm:$0xff]
  %v127 = vld [vmem:[%s0 + $0x220] sm:$0xff]
  %v128 = vld [vmem:[%s0 + $0x228] sm:$0xff]
  %v129 = vld [vmem:[%s0 + $0x230] sm:$0xff]
  %v130 = vld [vmem:[%s0 + $0x238] sm:$0xff]
  %v131 = vld [vmem:[%s0 + $0x240] sm:$0xff]
  %v132 = vld [vmem:[%s0 + $0x248] sm:$0xff]
  %v133 = vld [vmem:[%s0 + $0x250] sm:$0xff]
  %v134 = vld [vmem:[%s0 + $0x258] sm:$0xff]
  %v135 = vld [vmem:[%s0 + $0x260] sm:$0xff]
  %v136 = vld [vmem:[%s0 + $0x268] sm:$0xff]
  %v137 = vld [vmem:[%s0 + $0x270] sm:$0xff]
  %v138 = vld [vmem:[%s0 + $0x278] sm:$0xff]
  %v139 = vld [vmem:[%s0 + $0x280] sm:$0xff]
  %v140 = vld [vmem:[%s0 + $0x288] sm:$0xff]
  %v141 = vld [vmem:[%s0 + $0x290] sm:$0xff]
  %v142 = vld [vmem:[%s0 + $0x298] sm:$0xff]
  %v143 = vld [vmem:[%s0 + $0x2a0] sm:$0xff]
  %v144 = vld [vmem:[%s0 + $0x2a8] sm:$0xff]
  %v145 = vld [vmem:[%s0 + $0x2b0] sm:$0xff]
  %v146 = vld [vmem:[%s0 + $0x2b8] sm:$0xff]
  %v147 = vld [vmem:[%s0 + $0x2c0] sm:$0xff]
  %v148 = vld [vmem:[%s0 + $0x2c8] sm:$0xff]
  %v149 = vld [vmem:[%s0 + $0x2d0] sm:$0xff]
  %v150 = vld [vmem:[%s0 + $0x2d8] sm:$0xff]
  %v151 = vld [vmem:[%s0 + $0x2e0] sm:$0xff]
  %v152 = vld [vmem:[%s0 + $0x2e8] sm:$0xff]
  %v153 = vld [vmem:[%s0 + $0x2f0] sm:$0xff]
  %v154 = vld [vmem:[%s0 + $0x2f8] sm:$0xff]
  %v155 = vld [vmem:[%s0 + $0x300] sm:$0xff]
  %v156 = vld [vmem:[%s0 + $0x308] sm:$0xff]
  %v157 = vld [vmem:[%s0 + $0x310] sm:$0xff]
  %v158 = vld [vmem:[%s0 + $0x318] sm:$0xff]
  %v159 = vld [vmem:[%s0 + $0x320] sm:$0xff]
  %v160 = vld [vmem:[%s0 + $0x328] sm:$0xff]
  %v161 = vld [vmem:[%s0 + $0x330] sm:$0xff]
  %v162 = vld [vmem:[%s0 + $0x338] sm:$0xff]
  %v163 = vld [vmem:[%s0 + $0x340] sm:$0xff]
  %v164 = vld [vmem:[%s0 + $0x348] sm:$0xff]
  %v165 = vld [vmem:[%s0 + $0x350] sm:$0xff]
  %v166 = vld [vmem:[%s0 + $0x358] sm:$0xff]
  %v167 = vld [vmem:[%s0 + $0x360] sm:$0xff]
  %v168 = vld [vmem:[%s0 + $0x368] sm:$0xff]
  %v169 = vld [vmem:[%s0 + $0x370] sm:$0xff]
  %v170 = vld [vmem:[%s0 + $0x378] sm:$0xff]
  %v171 = vld [vmem:[%s0 + $0x380] sm:$0xff]
  %v172 = vld [vmem:[%s0 + $0x388] sm:$0xff]
  %v173 = vld [vmem:[%s0 + $0x390] sm:$0xff]
  %v174 = vld [vmem:[%s0 + $0x398] sm:$0xff]
  %v175 = vld [vmem:[%s0 + $0x3a0] sm:$0xff]
  %v176 = vld [vmem:[%s0 + $0x3a8] sm:$0xff]
  %v177 = vld [vmem:[%s0 + $0x3b0] sm:$0xff]
  %v178 = vld [vmem:[%s0 + $0x3b8] sm:$0xff]
  %v179 = vld [vmem:[%s0 + $0x3c0] sm:$0xff]
  %v180 = vld [vmem:[%s0 + $0x3c8] sm:$0xff]
  %v181 = vld [vmem:[%s0 + $0x3d0] sm:$0xff]
  %v182 = vld [vmem:[%s0 + $0x3d8] sm:$0xff]
  %v183 = vld [vmem:[%s0 + $0x3e0] sm:$0xff]
  %v184 = vld [vmem:[%s0 + $0x3e8] sm:$0xff]
  %v185 = vld [vmem:[%s0 + $0x3f0] sm:$0xff]
  %v186 = vld [vmem:[%s0 + $0x3f8] sm:$0xff]
  %v187 = vld [vmem:[%s0 + $0x400] sm:$0xff]
  %v188 = vld [vmem:[%s0 + $0x408] sm:$0xff]
  %v189 = vld [vmem:[%s0 + $0x410] sm:$0xff]
  %v190 = vld [vmem:[%s0 + $0x418] sm:$0xff]
  %v191 = vld [vmem:[%s0 + $0x420] sm:$0xff]
  %v192 = vld [vmem:[%s0 + $0x428] sm:$0xff]
  %v193 = vld [vmem:[%s0 + $0x430] sm:$0xff]
  %v194 = vld [vmem:[%s0 + $0x438] sm:$0xff]
  %v195 = vld [vmem:[%s0 + $0x440] sm:$0xff]
  %v196 = vld [vmem:[%s0 + $0x448] sm:$0xff]
  %v197 = vld [vmem:[%s0 + $0x450] sm:$0xff]
  %v198 = vld [vmem:[%s0 + $0x458] sm:$0xff]
  %v199 = vld [vmem:[%s0 + $0x460] sm:$0xff]
  %v200 = vld [vmem:[%s0 + $0x468] sm:$0xff]
  %v201 = vld [vmem:[%s0 + $0x470] sm:$0xff]
  %v202 = vld [vmem:[%s0 + $0x478] sm:$0xff]
  %v203 = vld [vmem:[%s1] sm:$0xff]
  %v204 = vld [vmem:[%s1 + $0x8] sm:$0xff]
  %v205 = vld [vmem:[%s1 + $0x10] sm:$0xff]
  %v206 = vld [vmem:[%s1 + $0x18] sm:$0xff]
  %v207 = vld [vmem:[%s1 + $0x20] sm:$0xff]
  %v208 = vld [vmem:[%s1 + $0x28] sm:$0xff]
  %v209 = vld [vmem:[%s1 + $0x30] sm:$0xff]
  %v210 = vld [vmem:[%s1 + $0x38] sm:$0xff]
  %v211 = vld [vmem:[%s1 + $0x40] sm:$0xff]
  %v212 = vld [vmem:[%s1 + $0x48] sm:$0xff]
  %v213 = vld [vmem:[%s1 + $0x50] sm:$0xff]
  %v214 = vld [vmem:[%s1 + $0x58] sm:$0xff]
  %v215 = vld [vmem:[%s1 + $0x60] sm:$0xff]
  %v216 = vld [vmem:[%s1 + $0x68] sm:$0xff]
  %v217 = vld [vmem:[%s1 + $0x70] sm:$0xff]
  %v218 = vld [vmem:[%s1 + $0x78] sm:$0xff]
  %v219 = vld [vmem:[%s1 + $0x80] sm:$0xff]
  %v220 = vld [vmem:[%s1 + $0x88] sm:$0xff]
  %v221 = vld [vmem:[%s1 + $0x90] sm:$0xff]
  %v222 = vld [vmem:[%s1 + $0x98] sm:$0xff]
  %v223 = vld [vmem:[%s1 + $0xa0] sm:$0xff]
  %v224 = vld [vmem:[%s1 + $0xa8] sm:$0xff]
  %v225 = vld [vmem:[%s1 + $0xb0] sm:$0xff]
  %v226 = vld [vmem:[%s1 + $0xb8] sm:$0xff]
  %v227 = vld [vmem:[%s1 + $0xc0] sm:$0xff]
  %v228 = vld [vmem:[%s1 + $0xc8] sm:$0xff]
  %v229 = vld [vmem:[%s1 + $0xd0] sm:$0xff]
  %v230 = vld [vmem:[%s1 + $0xd8] sm:$0xff]
  %v231 = vld [vmem:[%s1 + $0xe0] sm:$0xff]
  %v232 = vld [vmem:[%s1 + $0xe8] sm:$0xff]
  %v233 = vld [vmem:[%s1 + $0xf0] sm:$0xff]
  %v234 = vld [vmem:[%s1 + $0xf8] sm:$0xff]
  %v235 = vld [vmem:[%s1 + $0x100] sm:$0xff]
  %v236 = vld [vmem:[%s1 + $0x108] sm:$0xff]
  %v237 = vld [vmem:[%s1 + $0x110] sm:$0xff]
  %v238 = vld [vmem:[%s1 + $0x118] sm:$0xff]
  %v239 = vld [vmem:[%s1 + $0x120] sm:$0xff]
  %v240 = vld [vmem:[%s1 + $0x128] sm:$0xff]
  %v241 = vld [vmem:[%s1 + $0x130] sm:$0xff]
  %v242 = vld [vmem:[%s1 + $0x138] sm:$0xff]
  %v243 = vld [vmem:[%s1 + $0x140] sm:$0xff]
  %v244 = vld [vmem:[%s1 + $0x148] sm:$0xff]
  %v245 = vld [vmem:[%s1 + $0x150] sm:$0xff]
  %v246 = vld [vmem:[%s1 + $0x158] sm:$0xff]
  %v247 = vld [vmem:[%s1 + $0x160] sm:$0xff]
  %v248 = vld [vmem:[%s1 + $0x168] sm:$0xff]
  %v249 = vld [vmem:[%s1 + $0x170] sm:$0xff]
  %v250 = vld [vmem:[%s1 + $0x178] sm:$0xff]
  %v251 = vld [vmem:[%s1 + $0x180] sm:$0xff]
  %v252 = vld [vmem:[%s1 + $0x188] sm:$0xff]
  %v253 = vld [vmem:[%s1 + $0x190] sm:$0xff]
  %v254 = vld [vmem:[%s1 + $0x198] sm:$0xff]
  %v255 = vld [vmem:[%s1 + $0x1a0] sm:$0xff]
  %v256 = vld [vmem:[%s1 + $0x1a8] sm:$0xff]
  %v257 = vld [vmem:[%s1 + $0x1b0] sm:$0xff]
  %v258 = vld [vmem:[%s1 + $0x1b8] sm:$0xff]
  %v259 = vld [vmem:[%s1 + $0x1c0] sm:$0xff]
  %v260 = vld [vmem:[%s1 + $0x1c8] sm:$0xff]
  %v261 = vld [vmem:[%s1 + $0x1d0] sm:$0xff]
  %v262 = vld [vmem:[%s1 + $0x1d8] sm:$0xff]
  %v263 = vld [vmem:[%s1 + $0x1e0] sm:$0xff]
  %v264 = vld [vmem:[%s1 + $0x1e8] sm:$0xff]
  %v265 = vld [vmem:[%s1 + $0x1f0] sm:$0xff]
  %v266 = vld [vmem:[%s1 + $0x1f8] sm:$0xff]
  %v267 = vld [vmem:[%s1 + $0x200] sm:$0xff]
  %v268 = vld [vmem:[%s1 + $0x208] sm:$0xff]
  %v269 = vld [vmem:[%s1 + $0x210] sm:$0xff]
  %v270 = vld [vmem:[%s1 + $0x218] sm:$0xff]
  %v271 = vld [vmem:[%s1 + $0x220] sm:$0xff]
  %v272 = vld [vmem:[%s1 + $0x228] sm:$0xff]
  %v273 = vld [vmem:[%s1 + $0x230] sm:$0xff]
  %v274 = vld [vmem:[%s1 + $0x238] sm:$0xff]
  %v275 = vld [vmem:[%s1 + $0x240] sm:$0xff]
  %v276 = vld [vmem:[%s1 + $0x248] sm:$0xff]
  %v277 = vld [vmem:[%s1 + $0x250] sm:$0xff]
  %v278 = vld [vmem:[%s1 + $0x258] sm:$0xff]
  %v279 = vld [vmem:[%s1 + $0x260] sm:$0xff]
  %v280 = vld [vmem:[%s1 + $0x268] sm:$0xff]
  %v281 = vld [vmem:[%s1 + $0x270] sm:$0xff]
  %v282 = vld [vmem:[%s1 + $0x278] sm:$0xff]
  %v283 = vld [vmem:[%s1 + $0x280] sm:$0xff]
  %v284 = vld [vmem:[%s1 + $0x288] sm:$0xff]
  %v285 = vld [vmem:[%s1 + $0x290] sm:$0xff]
  %v286 = vld [vmem:[%s1 + $0x298] sm:$0xff]
  %v287 = vld [vmem:[%s1 + $0x2a0] sm:$0xff]
  %v288 = vld [vmem:[%s1 + $0x2a8] sm:$0xff]
  %v289 = vld [vmem:[%s1 + $0x2b0] sm:$0xff]
  %v290 = vld [vmem:[%s1 + $0x2b8] sm:$0xff]
  %v291 = vld [vmem:[%s1 + $0x2c0] sm:$0xff]
  %v292 = vld [vmem:[%s1 + $0x2c8] sm:$0xff]
  %v293 = vld [vmem:[%s1 + $0x2d0] sm:$0xff]
  %v294 = vld [vmem:[%s1 + $0x2d8] sm:$0xff]
  %v295 = vld [vmem:[%s1 + $0x2e0] sm:$0xff]
  %v296 = vld [vmem:[%s1 + $0x2e8] sm:$0xff]
  %v297 = vld [vmem:[%s1 + $0x2f0] sm:$0xff]
  %v298 = vld [vmem:[%s1 + $0x2f8] sm:$0xff]
  %v299 = vld [vmem:[%s1 + $0x300] sm:$0xff]
  %v300 = vld [vmem:[%s1 + $0x308] sm:$0xff]
  %v301 = vld [vmem:[%s1 + $0x310] sm:$0xff]
  %v302 = vld [vmem:[%s1 + $0x318] sm:$0xff]
  %v303 = vld [vmem:[%s1 + $0x320] sm:$0xff]
  %v304 = vld [vmem:[%s1 + $0x328] sm:$0xff]
  %v305 = vld [vmem:[%s1 + $0x330] sm:$0xff]
  %v306 = vld [vmem:[%s1 + $0x338] sm:$0xff]
  %v307 = vld [vmem:[%s1 + $0x340] sm:$0xff]
  %v308 = vld [vmem:[%s1 + $0x348] sm:$0xff]
  %v309 = vld [vmem:[%s1 + $0x350] sm:$0xff]
  %v310 = vld [vmem:[%s1 + $0x358] sm:$0xff]
  %v311 = vld [vmem:[%s1 + $0x360] sm:$0xff]
  %v312 = vld [vmem:[%s1 + $0x368] sm:$0xff]
  %v313 = vld [vmem:[%s1 + $0x370] sm:$0xff]
  %v314 = vld [vmem:[%s1 + $0x378] sm:$0xff]
  %v315 = vld [vmem:[%s1 + $0x380] sm:$0xff]
  %v316 = vld [vmem:[%s1 + $0x388] sm:$0xff]
  %v317 = vld [vmem:[%s1 + $0x390] sm:$0xff]
  %v318 = vld [vmem:[%s1 + $0x398] sm:$0xff]
  %v319 = vld [vmem:[%s1 + $0x3a0] sm:$0xff]
  %v320 = vld [vmem:[%s1 + $0x3a8] sm:$0xff]
  %v321 = vld [vmem:[%s1 + $0x3b0] sm:$0xff]
  %v322 = vld [vmem:[%s1 + $0x3b8] sm:$0xff]
  %v323 = vld [vmem:[%s1 + $0x3c0] sm:$0xff]
  %v324 = vld [vmem:[%s1 + $0x3c8] sm:$0xff]
  %v325 = vld [vmem:[%s1 + $0x3d0] sm:$0xff]
  %v326 = vld [vmem:[%s1 + $0x3d8] sm:$0xff]
  %v327 = vld [vmem:[%s1 + $0x3e0] sm:$0xff]
  %v328 = vld [vmem:[%s1 + $0x3e8] sm:$0xff]
  %v329 = vld [vmem:[%s1 + $0x3f0] sm:$0xff]
  %v330 = vld [vmem:[%s1 + $0x3f8] sm:$0xff]
  %v331 = vld [vmem:[%s1 + $0x400] sm:$0xff]
  %v332 = vld [vmem:[%s1 + $0x408] sm:$0xff]
  %v333 = vld [vmem:[%s1 + $0x410] sm:$0xff]
  %v334 = vld [vmem:[%s1 + $0x418] sm:$0xff]
  %v335 = vld [vmem:[%s1 + $0x420] sm:$0xff]
  %v336 = vld [vmem:[%s1 + $0x428] sm:$0xff]
  %v337 = vld [vmem:[%s1 + $0x430] sm:$0xff]
  %v338 = vld [vmem:[%s1 + $0x438] sm:$0xff]
  %v339 = vld [vmem:[%s1 + $0x440] sm:$0xff]
  %v340 = vld [vmem:[%s1 + $0x448] sm:$0xff]
  %v341 = vld [vmem:[%s1 + $0x450] sm:$0xff]
  %v342 = vld [vmem:[%s1 + $0x458] sm:$0xff]
  %v343 = vld [vmem:[%s1 + $0x460] sm:$0xff]
  %v344 = vld [vmem:[%s1 + $0x468] sm:$0xff]
  %v345 = vld [vmem:[%s1 + $0x470] sm:$0xff]
  %v346 = vld [vmem:[%s1 + $0x478] sm:$0xff]
  %347 = vmatprep.subr.mxu0 0.0
  %348 = vmatpush1.msra.mxu0 %v203
  %349 = vmatprep.subr.mxu0 0.0
  %350 = vmatpush1.msra.mxu0 %v204
  %351 = vmatprep.subr.mxu0 0.0
  %352 = vmatpush1.msra.mxu0 %v205
  %353 = vmatprep.subr.mxu0 0.0
  %354 = vmatpush1.msra.mxu0 %v206
  %355 = vmatprep.subr.mxu0 0.0
  %356 = vmatpush1.msra.mxu0 %v207
  %357 = vmatprep.subr.mxu0 0.0
  %358 = vmatpush1.msra.mxu0 %v208
  %359 = vmatprep.subr.mxu0 0.0
  %360 = vmatpush1.msra.mxu0 %v209
  %361 = vmatprep.subr.mxu0 0.0
  %362 = vmatpush1.msra.mxu0 %v210
  %363 = vmatprep.subr.mxu0 0.0
  %364 = vmatpush1.msra.mxu0 %v211
  %365 = vmatprep.subr.mxu0 0.0
  %366 = vmatpush1.msra.mxu0 %v212
  %367 = vmatprep.subr.mxu0 0.0
  %368 = vmatpush1.msra.mxu0 %v213
  %369 = vmatprep.subr.mxu0 0.0
  %370 = vmatpush1.msra.mxu0 %v214
  %371 = vmatprep.subr.mxu0 0.0
  %372 = vmatpush1.msra.mxu0 %v215
  %373 = vmatprep.subr.mxu0 0.0
  %374 = vmatpush1.msra.mxu0 %v216
  %375 = vmatprep.subr.mxu0 0.0
  %376 = vmatpush1.msra.mxu0 %v217
  %377 = vmatprep.subr.mxu0 0.0
  %378 = vmatpush1.msra.mxu0 %v218
  %379 = vmatprep.subr.mxu0 0.0
  %380 = vmatpush1.msra.mxu0 %v219
  %381 = vmatprep.subr.mxu0 0.0
  %382 = vmatpush1.msra.mxu0 %v220
  %383 = vmatprep.subr.mxu0 0.0
  %384 = vmatpush1.msra.mxu0 %v221
  %385 = vmatprep.subr.mxu0 0.0
  %386 = vmatpush1.msra.mxu0 %v222
  %387 = vmatprep.subr.mxu0 0.0
  %388 = vmatpush1.msra.mxu0 %v223
  %389 = vmatprep.subr.mxu0 0.0
  %390 = vmatpush1.msra.mxu0 %v224
  %391 = vmatprep.subr.mxu0 0.0
  %392 = vmatpush1.msra.mxu0 %v225
  %393 = vmatprep.subr.mxu0 0.0
  %394 = vmatpush1.msra.mxu0 %v226
  %395 = vmatprep.subr.mxu0 0.0
  %396 = vmatpush1.msra.mxu0 %v227
  %397 = vmatprep.subr.mxu0 0.0
  %398 = vmatpush1.msra.mxu0 %v228
  %399 = vmatprep.subr.mxu0 0.0
  %400 = vmatpush1.msra.mxu0 %v229
  %401 = vmatprep.subr.mxu0 0.0
  %402 = vmatpush1.msra.mxu0 %v230
  %403 = vmatprep.subr.mxu0 0.0
  %404 = vmatpush1.msra.mxu0 %v231
  %405 = vmatprep.subr.mxu0 0.0
  %406 = vmatpush1.msra.mxu0 %v232
  %407 = vmatprep.subr.mxu0 0.0
  %408 = vmatpush1.msra.mxu0 %v233
  %409 = vmatprep.subr.mxu0 0.0
  %410 = vmatpush1.msra.mxu0 %v234
  %411 = vmatprep.mubr.f32.mxu0 %v60
  %412 = vmatmul.mubr.f32.gmra.mrb[0].mxu0 %v59
  %v413 = vpop.f32.mrb[0].mxu0
  %v414 = vadd.f32 0.0, %v413
  %v415 = vpop.f32.mrb[0].mxu0
  %416 = vmatprep.mubr.f32.mxu0 %v69
  %417 = vmatmul.mubr.f32.gmra.mrb[0].mxu0 %v68
  %v418 = vpop.f32.mrb[0].mxu0
  %v419 = vadd.f32 0.0, %v418
  %v420 = vpop.f32.mrb[0].mxu0
  %421 = vmatprep.mubr.f32.mxu0 %v78
  %422 = vmatmul.mubr.f32.gmra.mrb[0].mxu0 %v77
  %v423 = vpop.f32.mrb[0].mxu0
  %v424 = vadd.f32 0.0, %v423
  %v425 = vpop.f32.mrb[0].mxu0
  %426 = vmatprep.mubr.f32.mxu0 %v87
  %427 = vmatmul.mubr.f32.gmra.mrb[0].mxu0 %v86
  %v428 = vpop.f32.mrb[0].mxu0
  %v429 = vadd.f32 0.0, %v428
  %v430 = vpop.f32.mrb[0].mxu0
  %431 = vmatprep.mubr.f32.mxu0 %v96
  %432 = vmatmul.mubr.f32.gmra.mrb[0].mxu0 %v95
  %v433 = vpop.f32.mrb[0].mxu0
  %v434 = vadd.f32 0.0, %v433
  %v435 = vpop.f32.mrb[0].mxu0
  %436 = vmatprep.mubr.f32.mxu0 %v105
  %437 = vmatmul.mubr.f32.gmra.mrb[0].mxu0 %v104
  %v438 = vpop.f32.mrb[0].mxu0
  %v439 = vadd.f32 0.0, %v438
  %v440 = vpop.f32.mrb[0].mxu0
  %441 = vmatprep.mubr.f32.mxu0 %v114
  %442 = vmatmul.mubr.f32.gmra.mrb[0].mxu0 %v113
  %v443 = vpop.f32.mrb[0].mxu0
  %v444 = vadd.f32 0.0, %v443
  %v445 = vpop.f32.mrb[0].mxu0
  %446 = vmatprep.mubr.f32.mxu0 %v123
  %447 = vmatmul.mubr.f32.gmra.mrb[0].mxu0 %v122
  %v448 = vpop.f32.mrb[0].mxu0
  %v449 = vadd.f32 0.0, %v448
  %v450 = vpop.f32.mrb[0].mxu0
  %451 = vmatprep.mubr.f32.mxu0 %v132
  %452 = vmatmul.mubr.f32.gmra.mrb[0].mxu0 %v131
  %v453 = vpop.f32.mrb[0].mxu0
  %v454 = vadd.f32 0.0, %v453
  %v455 = vpop.f32.mrb[0].mxu0
  %456 = vmatprep.mubr.f32.mxu0 %v141
  %457 = vmatmul.mubr.f32.gmra.mrb[0].mxu0 %v140
  %v458 = vpop.f32.mrb[0].mxu0
  %v459 = vadd.f32 0.0, %v458
  %v460 = vpop.f32.mrb[0].mxu0
  %461 = vmatprep.mubr.f32.mxu0 %v150
  %462 = vmatmul.mubr.f32.gmra.mrb[0].mxu0 %v149
  %v463 = vpop.f32.mrb[0].mxu0
  %v464 = vadd.f32 0.0, %v463
  %v465 = vpop.f32.mrb[0].mxu0
  %466 = vmatprep.mubr.f32.mxu0 %v159
  %467 = vmatmul.mubr.f32.gmra.mrb[0].mxu0 %v158
  %v468 = vpop.f32.mrb[0].mxu0
  %v469 = vadd.f32 0.0, %v468
  %v470 = vpop.f32.mrb[0].mxu0
  %471 = vmatprep.mubr.f32.mxu0 %v168
  %472 = vmatmul.mubr.f32.gmra.mrb[0].mxu0 %v167
  %v473 = vpop.f32.mrb[0].mxu0
  %v474 = vadd.f32 0.0, %v473
  %v475 = vpop.f32.mrb[0].mxu0
  %476 = vmatprep.mubr.f32.mxu0 %v177
  %477 = vmatmul.mubr.f32.gmra.mrb[0].mxu0 %v176
  %v478 = vpop.f32.mrb[0].mxu0
  %v479 = vadd.f32 0.0, %v478
  %v480 = vpop.f32.mrb[0].mxu0
  %481 = vmatprep.mubr.f32.mxu0 %v186
  %482 = vmatmul.mubr.f32.gmra.mrb[0].mxu0 %v185
  %v483 = vpop.f32.mrb[0].mxu0
  %v484 = vadd.f32 0.0, %v483
  %v485 = vpop.f32.mrb[0].mxu0
  %486 = vmatprep.mubr.f32.mxu0 %v195
  %487 = vmatmul.mubr.f32.gmra.mrb[0].mxu0 %v194
  %v488 = vpop.f32.mrb[0].mxu0
  %v489 = vadd.f32 0.0, %v488
  %v490 = vpop.f32.mrb[0].mxu0
  %491 = vdwg.mxu0
  %492 = vmatprep.subr.mxu0 0.0
  %493 = vmatpush1.msra.mxu0 %v235
  %494 = vmatprep.subr.mxu0 0.0
  %495 = vmatpush1.msra.mxu0 %v236
  %496 = vmatprep.subr.mxu0 0.0
  %497 = vmatpush1.msra.mxu0 %v237
  %498 = vmatprep.subr.mxu0 0.0
  %499 = vmatpush1.msra.mxu0 %v238
  %500 = vmatprep.subr.mxu0 0.0
  %501 = vmatpush1.msra.mxu0 %v239
  %502 = vmatprep.subr.mxu0 0.0
  %503 = vmatpush1.msra.mxu0 %v240
  %504 = vmatprep.subr.mxu0 0.0
  %505 = vmatpush1.msra.mxu0 %v241
  %506 = vmatprep.subr.mxu0 0.0
  %507 = vmatpush1.msra.mxu0 %v242
  %508 = vmatprep.subr.mxu0 0.0
  %509 = vmatpush1.msra.mxu0 %v243
  %510 = vmatprep.subr.mxu0 0.0
  %511 = vmatpush1.msra.mxu0 %v244
  %512 = vmatprep.subr.mxu0 0.0
  %513 = vmatpush1.msra.mxu0 %v245
  %514 = vmatprep.subr.mxu0 0.0
  %515 = vmatpush1.msra.mxu0 %v246
  %516 = vmatprep.subr.mxu0 0.0
  %517 = vmatpush1.msra.mxu0 %v247
  %518 = vmatprep.subr.mxu0 0.0
  %519 = vmatpush1.msra.mxu0 %v248
  %520 = vmatprep.subr.mxu0 0.0
  %521 = vmatpush1.msra.mxu0 %v249
  %522 = vmatprep.subr.mxu0 0.0
  %523 = vmatpush1.msra.mxu0 %v250
  %524 = vmatprep.subr.mxu0 0.0
  %525 = vmatpush1.msra.mxu0 %v251
  %526 = vmatprep.subr.mxu0 0.0
  %527 = vmatpush1.msra.mxu0 %v252
  %528 = vmatprep.subr.mxu0 0.0
  %529 = vmatpush1.msra.mxu0 %v253
  %530 = vmatprep.subr.mxu0 0.0
  %531 = vmatpush1.msra.mxu0 %v254
  %532 = vmatprep.subr.mxu0 0.0
  %533 = vmatpush1.msra.mxu0 %v255
  %534 = vmatprep.subr.mxu0 0.0
  %535 = vmatpush1.msra.mxu0 %v256
  %536 = vmatprep.subr.mxu0 0.0
  %537 = vmatpush1.msra.mxu0 %v257
  %538 = vmatprep.subr.mxu0 0.0
  %539 = vmatpush1.msra.mxu0 %v258
  %540 = vmatprep.subr.mxu0 0.0
  %541 = vmatpush1.msra.mxu0 %v259
  %542 = vmatprep.subr.mxu0 0.0
  %543 = vmatpush1.msra.mxu0 %v260
  %544 = vmatprep.subr.mxu0 0.0
  %545 = vmatpush1.msra.mxu0 %v261
  %546 = vmatprep.subr.mxu0 0.0
  %547 = vmatpush1.msra.mxu0 %v262
  %548 = vmatprep.subr.mxu0 0.0
  %549 = vmatpush1.msra.mxu0 %v263
  %550 = vmatprep.subr.mxu0 0.0
  %551 = vmatpush1.msra.mxu0 %v264
  %552 = vmatprep.subr.mxu0 0.0
  %553 = vmatpush1.msra.mxu0 %v265
  %554 = vmatprep.subr.mxu0 0.0
  %555 = vmatpush1.msra.mxu0 %v266
  %556 = vmatprep.mubr.f32.mxu0 %v62
  %557 = vmatmul.mubr.f32.gmra.mrb[0].mxu0 %v61
  %v558 = vpop.f32.mrb[0].mxu0
  %v559 = vadd.f32 %v414, %v558
  %v560 = vpop.f32.mrb[0].mxu0
  %561 = vmatprep.mubr.f32.mxu0 %v71
  %562 = vmatmul.mubr.f32.gmra.mrb[0].mxu0 %v70
  %v563 = vpop.f32.mrb[0].mxu0
  %v564 = vadd.f32 %v419, %v563
  %v565 = vpop.f32.mrb[0].mxu0
  %566 = vmatprep.mubr.f32.mxu0 %v80
  %567 = vmatmul.mubr.f32.gmra.mrb[0].mxu0 %v79
  %v568 = vpop.f32.mrb[0].mxu0
  %v569 = vadd.f32 %v424, %v568
  %v570 = vpop.f32.mrb[0].mxu0
  %571 = vmatprep.mubr.f32.mxu0 %v89
  %572 = vmatmul.mubr.f32.gmra.mrb[0].mxu0 %v88
  %v573 = vpop.f32.mrb[0].mxu0
  %v574 = vadd.f32 %v429, %v573
  %v575 = vpop.f32.mrb[0].mxu0
  %576 = vmatprep.mubr.f32.mxu0 %v98
  %577 = vmatmul.mubr.f32.gmra.mrb[0].mxu0 %v97
  %v578 = vpop.f32.mrb[0].mxu0
  %v579 = vadd.f32 %v434, %v578
  %v580 = vpop.f32.mrb[0].mxu0
  %581 = vmatprep.mubr.f32.mxu0 %v107
  %582 = vmatmul.mubr.f32.gmra.mrb[0].mxu0 %v106
  %v583 = vpop.f32.mrb[0].mxu0
  %v584 = vadd.f32 %v439, %v583
  %v585 = vpop.f32.mrb[0].mxu0
  %586 = vmatprep.mubr.f32.mxu0 %v116
  %587 = vmatmul.mubr.f32.gmra.mrb[0].mxu0 %v115
  %v588 = vpop.f32.mrb[0].mxu0
  %v589 = vadd.f32 %v444, %v588
  %v590 = vpop.f32.mrb[0].mxu0
  %591 = vmatprep.mubr.f32.mxu0 %v125
  %592 = vmatmul.mubr.f32.gmra.mrb[0].mxu0 %v124
  %v593 = vpop.f32.mrb[0].mxu0
  %v594 = vadd.f32 %v449, %v593
  %v595 = vpop.f32.mrb[0].mxu0
  %596 = vmatprep.mubr.f32.mxu0 %v134
  %597 = vmatmul.mubr.f32.gmra.mrb[0].mxu0 %v133
  %v598 = vpop.f32.mrb[0].mxu0
  %v599 = vadd.f32 %v454, %v598
  %v600 = vpop.f32.mrb[0].mxu0
  %601 = vmatprep.mubr.f32.mxu0 %v143
  %602 = vmatmul.mubr.f32.gmra.mrb[0].mxu0 %v142
  %v603 = vpop.f32.mrb[0].mxu0
  %v604 = vadd.f32 %v459, %v603
  %v605 = vpop.f32.mrb[0].mxu0
  %606 = vmatprep.mubr.f32.mxu0 %v152
  %607 = vmatmul.mubr.f32.gmra.mrb[0].mxu0 %v151
  %v608 = vpop.f32.mrb[0].mxu0
  %v609 = vadd.f32 %v464, %v608
  %v610 = vpop.f32.mrb[0].mxu0
  %611 = vmatprep.mubr.f32.mxu0 %v161
  %612 = vmatmul.mubr.f32.gmra.mrb[0].mxu0 %v160
  %v613 = vpop.f32.mrb[0].mxu0
  %v614 = vadd.f32 %v469, %v613
  %v615 = vpop.f32.mrb[0].mxu0
  %616 = vmatprep.mubr.f32.mxu0 %v170
  %617 = vmatmul.mubr.f32.gmra.mrb[0].mxu0 %v169
  %v618 = vpop.f32.mrb[0].mxu0
  %v619 = vadd.f32 %v474, %v618
  %v620 = vpop.f32.mrb[0].mxu0
  %621 = vmatprep.mubr.f32.mxu0 %v179
  %622 = vmatmul.mubr.f32.gmra.mrb[0].mxu0 %v178
  %v623 = vpop.f32.mrb[0].mxu0
  %v624 = vadd.f32 %v479, %v623
  %v625 = vpop.f32.mrb[0].mxu0
  %626 = vmatprep.mubr.f32.mxu0 %v188
  %627 = vmatmul.mubr.f32.gmra.mrb[0].mxu0 %v187
  %v628 = vpop.f32.mrb[0].mxu0
  %v629 = vadd.f32 %v484, %v628
  %v630 = vpop.f32.mrb[0].mxu0
  %631 = vmatprep.mubr.f32.mxu0 %v197
  %632 = vmatmul.mubr.f32.gmra.mrb[0].mxu0 %v196
  %v633 = vpop.f32.mrb[0].mxu0
  %v634 = vadd.f32 %v489, %v633
  %v635 = vpop.f32.mrb[0].mxu0
  %636 = vdwg.mxu0
  %637 = vmatprep.subr.mxu0 0.0
  %638 = vmatpush1.msra.mxu0 %v267
  %639 = vmatprep.subr.mxu0 0.0
  %640 = vmatpush1.msra.mxu0 %v268
  %641 = vmatprep.subr.mxu0 0.0
  %642 = vmatpush1.msra.mxu0 %v269
  %643 = vmatprep.subr.mxu0 0.0
  %644 = vmatpush1.msra.mxu0 %v270
  %645 = vmatprep.subr.mxu0 0.0
  %646 = vmatpush1.msra.mxu0 %v271
  %647 = vmatprep.subr.mxu0 0.0
  %648 = vmatpush1.msra.mxu0 %v272
  %649 = vmatprep.subr.mxu0 0.0
  %650 = vmatpush1.msra.mxu0 %v273
  %651 = vmatprep.subr.mxu0 0.0
  %652 = vmatpush1.msra.mxu0 %v274
  %653 = vmatprep.subr.mxu0 0.0
  %654 = vmatpush1.msra.mxu0 %v275
  %655 = vmatprep.subr.mxu0 0.0
  %656 = vmatpush1.msra.mxu0 %v276
  %657 = vmatprep.subr.mxu0 0.0
  %658 = vmatpush1.msra.mxu0 %v277
  %659 = vmatprep.subr.mxu0 0.0
  %660 = vmatpush1.msra.mxu0 %v278
  %661 = vmatprep.subr.mxu0 0.0
  %662 = vmatpush1.msra.mxu0 %v279
  %663 = vmatprep.subr.mxu0 0.0
  %664 = vmatpush1.msra.mxu0 %v280
  %665 = vmatprep.subr.mxu0 0.0
  %666 = vmatpush1.msra.mxu0 %v281
  %667 = vmatprep.subr.mxu0 0.0
  %668 = vmatpush1.msra.mxu0 %v282
  %669 = vmatprep.subr.mxu0 0.0
  %670 = vmatpush1.msra.mxu0 %v283
  %671 = vmatprep.subr.mxu0 0.0
  %672 = vmatpush1.msra.mxu0 %v284
  %673 = vmatprep.subr.mxu0 0.0
  %674 = vmatpush1.msra.mxu0 %v285
  %675 = vmatprep.subr.mxu0 0.0
  %676 = vmatpush1.msra.mxu0 %v286
  %677 = vmatprep.subr.mxu0 0.0
  %678 = vmatpush1.msra.mxu0 %v287
  %679 = vmatprep.subr.mxu0 0.0
  %680 = vmatpush1.msra.mxu0 %v288
  %681 = vmatprep.subr.mxu0 0.0
  %682 = vmatpush1.msra.mxu0 %v289
  %683 = vmatprep.subr.mxu0 0.0
  %684 = vmatpush1.msra.mxu0 %v290
  %685 = vmatprep.subr.mxu0 0.0
  %686 = vmatpush1.msra.mxu0 %v291
  %687 = vmatprep.subr.mxu0 0.0
  %688 = vmatpush1.msra.mxu0 %v292
  %689 = vmatprep.subr.mxu0 0.0
  %690 = vmatpush1.msra.mxu0 %v293
  %691 = vmatprep.subr.mxu0 0.0
  %692 = vmatpush1.msra.mxu0 %v294
  %693 = vmatprep.subr.mxu0 0.0
  %694 = vmatpush1.msra.mxu0 %v295
  %695 = vmatprep.subr.mxu0 0.0
  %696 = vmatpush1.msra.mxu0 %v296
  %697 = vmatprep.subr.mxu0 0.0
  %698 = vmatpush1.msra.mxu0 %v297
  %699 = vmatprep.subr.mxu0 0.0
  %700 = vmatpush1.msra.mxu0 %v298
  %701 = vmatprep.mubr.f32.mxu0 %v64
  %702 = vmatmul.mubr.f32.gmra.mrb[0].mxu0 %v63
  %v703 = vpop.f32.mrb[0].mxu0
  %v704 = vadd.f32 %v559, %v703
  %v705 = vpop.f32.mrb[0].mxu0
  %706 = vmatprep.mubr.f32.mxu0 %v73
  %707 = vmatmul.mubr.f32.gmra.mrb[0].mxu0 %v72
  %v708 = vpop.f32.mrb[0].mxu0
  %v709 = vadd.f32 %v564, %v708
  %v710 = vpop.f32.mrb[0].mxu0
  %711 = vmatprep.mubr.f32.mxu0 %v82
  %712 = vmatmul.mubr.f32.gmra.mrb[0].mxu0 %v81
  %v713 = vpop.f32.mrb[0].mxu0
  %v714 = vadd.f32 %v569, %v713
  %v715 = vpop.f32.mrb[0].mxu0
  %716 = vmatprep.mubr.f32.mxu0 %v91
  %717 = vmatmul.mubr.f32.gmra.mrb[0].mxu0 %v90
  %v718 = vpop.f32.mrb[0].mxu0
  %v719 = vadd.f32 %v574, %v718
  %v720 = vpop.f32.mrb[0].mxu0
  %721 = vmatprep.mubr.f32.mxu0 %v100
  %722 = vmatmul.mubr.f32.gmra.mrb[0].mxu0 %v99
  %v723 = vpop.f32.mrb[0].mxu0
  %v724 = vadd.f32 %v579, %v723
  %v725 = vpop.f32.mrb[0].mxu0
  %726 = vmatprep.mubr.f32.mxu0 %v109
  %727 = vmatmul.mubr.f32.gmra.mrb[0].mxu0 %v108
  %v728 = vpop.f32.mrb[0].mxu0
  %v729 = vadd.f32 %v584, %v728
  %v730 = vpop.f32.mrb[0].mxu0
  %731 = vmatprep.mubr.f32.mxu0 %v118
  %732 = vmatmul.mubr.f32.gmra.mrb[0].mxu0 %v117
  %v733 = vpop.f32.mrb[0].mxu0
  %v734 = vadd.f32 %v589, %v733
  %v735 = vpop.f32.mrb[0].mxu0
  %736 = vmatprep.mubr.f32.mxu0 %v127
  %737 = vmatmul.mubr.f32.gmra.mrb[0].mxu0 %v126
  %v738 = vpop.f32.mrb[0].mxu0
  %v739 = vadd.f32 %v594, %v738
  %v740 = vpop.f32.mrb[0].mxu0
  %741 = vmatprep.mubr.f32.mxu0 %v136
  %742 = vmatmul.mubr.f32.gmra.mrb[0].mxu0 %v135
  %v743 = vpop.f32.mrb[0].mxu0
  %v744 = vadd.f32 %v599, %v743
  %v745 = vpop.f32.mrb[0].mxu0
  %746 = vmatprep.mubr.f32.mxu0 %v145
  %747 = vmatmul.mubr.f32.gmra.mrb[0].mxu0 %v144
  %v748 = vpop.f32.mrb[0].mxu0
  %v749 = vadd.f32 %v604, %v748
  %v750 = vpop.f32.mrb[0].mxu0
  %751 = vmatprep.mubr.f32.mxu0 %v154
  %752 = vmatmul.mubr.f32.gmra.mrb[0].mxu0 %v153
  %v753 = vpop.f32.mrb[0].mxu0
  %v754 = vadd.f32 %v609, %v753
  %v755 = vpop.f32.mrb[0].mxu0
  %756 = vmatprep.mubr.f32.mxu0 %v163
  %757 = vmatmul.mubr.f32.gmra.mrb[0].mxu0 %v162
  %v758 = vpop.f32.mrb[0].mxu0
  %v759 = vadd.f32 %v614, %v758
  %v760 = vpop.f32.mrb[0].mxu0
  %761 = vmatprep.mubr.f32.mxu0 %v172
  %762 = vmatmul.mubr.f32.gmra.mrb[0].mxu0 %v171
  %v763 = vpop.f32.mrb[0].mxu0
  %v764 = vadd.f32 %v619, %v763
  %v765 = vpop.f32.mrb[0].mxu0
  %766 = vmatprep.mubr.f32.mxu0 %v181
  %767 = vmatmul.mubr.f32.gmra.mrb[0].mxu0 %v180
  %v768 = vpop.f32.mrb[0].mxu0
  %v769 = vadd.f32 %v624, %v768
  %v770 = vpop.f32.mrb[0].mxu0
  %771 = vmatprep.mubr.f32.mxu0 %v190
  %772 = vmatmul.mubr.f32.gmra.mrb[0].mxu0 %v189
  %v773 = vpop.f32.mrb[0].mxu0
  %v774 = vadd.f32 %v629, %v773
  %v775 = vpop.f32.mrb[0].mxu0
  %776 = vmatprep.mubr.f32.mxu0 %v199
  %777 = vmatmul.mubr.f32.gmra.mrb[0].mxu0 %v198
  %v778 = vpop.f32.mrb[0].mxu0
  %v779 = vadd.f32 %v634, %v778
  %v780 = vpop.f32.mrb[0].mxu0
  %781 = vdwg.mxu0
  %782 = vmatprep.subr.mxu0 0.0
  %783 = vmatpush1.msra.mxu0 %v299
  %784 = vmatprep.subr.mxu0 0.0
  %785 = vmatpush1.msra.mxu0 %v300
  %786 = vmatprep.subr.mxu0 0.0
  %787 = vmatpush1.msra.mxu0 %v301
  %788 = vmatprep.subr.mxu0 0.0
  %789 = vmatpush1.msra.mxu0 %v302
  %790 = vmatprep.subr.mxu0 0.0
  %791 = vmatpush1.msra.mxu0 %v303
  %792 = vmatprep.subr.mxu0 0.0
  %793 = vmatpush1.msra.mxu0 %v304
  %794 = vmatprep.subr.mxu0 0.0
  %795 = vmatpush1.msra.mxu0 %v305
  %796 = vmatprep.subr.mxu0 0.0
  %797 = vmatpush1.msra.mxu0 %v306
  %798 = vmatprep.subr.mxu0 0.0
  %799 = vmatpush1.msra.mxu0 %v307
  %800 = vmatprep.subr.mxu0 0.0
  %801 = vmatpush1.msra.mxu0 %v308
  %802 = vmatprep.subr.mxu0 0.0
  %803 = vmatpush1.msra.mxu0 %v309
  %804 = vmatprep.subr.mxu0 0.0
  %805 = vmatpush1.msra.mxu0 %v310
  %806 = vmatprep.subr.mxu0 0.0
  %807 = vmatpush1.msra.mxu0 %v311
  %808 = vmatprep.subr.mxu0 0.0
  %809 = vmatpush1.msra.mxu0 %v312
  %810 = vmatprep.subr.mxu0 0.0
  %811 = vmatpush1.msra.mxu0 %v313
  %812 = vmatprep.subr.mxu0 0.0
  %813 = vmatpush1.msra.mxu0 %v314
  %814 = vmatprep.subr.mxu0 0.0
  %815 = vmatpush1.msra.mxu0 %v315
  %816 = vmatprep.subr.mxu0 0.0
  %817 = vmatpush1.msra.mxu0 %v316
  %818 = vmatprep.subr.mxu0 0.0
  %819 = vmatpush1.msra.mxu0 %v317
  %820 = vmatprep.subr.mxu0 0.0
  %821 = vmatpush1.msra.mxu0 %v318
  %822 = vmatprep.subr.mxu0 0.0
  %823 = vmatpush1.msra.mxu0 %v319
  %824 = vmatprep.subr.mxu0 0.0
  %825 = vmatpush1.msra.mxu0 %v320
  %826 = vmatprep.subr.mxu0 0.0
  %827 = vmatpush1.msra.mxu0 %v321
  %828 = vmatprep.subr.mxu0 0.0
  %829 = vmatpush1.msra.mxu0 %v322
  %830 = vmatprep.subr.mxu0 0.0
  %831 = vmatpush1.msra.mxu0 %v323
  %832 = vmatprep.subr.mxu0 0.0
  %833 = vmatpush1.msra.mxu0 %v324
  %834 = vmatprep.subr.mxu0 0.0
  %835 = vmatpush1.msra.mxu0 %v325
  %836 = vmatprep.subr.mxu0 0.0
  %837 = vmatpush1.msra.mxu0 %v326
  %838 = vmatprep.subr.mxu0 0.0
  %839 = vmatpush1.msra.mxu0 %v327
  %840 = vmatprep.subr.mxu0 0.0
  %841 = vmatpush1.msra.mxu0 %v328
  %842 = vmatprep.subr.mxu0 0.0
  %843 = vmatpush1.msra.mxu0 %v329
  %844 = vmatprep.subr.mxu0 0.0
  %845 = vmatpush1.msra.mxu0 %v330
  %846 = vmatprep.mubr.f32.mxu0 %v66
  %847 = vmatmul.mubr.f32.gmra.mrb[0].mxu0 %v65
  %v848 = vpop.f32.mrb[0].mxu0
  %v849 = vadd.f32 %v704, %v848
  %v850 = vpop.f32.mrb[0].mxu0
  %851 = vmatprep.mubr.f32.mxu0 %v75
  %852 = vmatmul.mubr.f32.gmra.mrb[0].mxu0 %v74
  %v853 = vpop.f32.mrb[0].mxu0
  %v854 = vadd.f32 %v709, %v853
  %v855 = vpop.f32.mrb[0].mxu0
  %856 = vmatprep.mubr.f32.mxu0 %v84
  %857 = vmatmul.mubr.f32.gmra.mrb[0].mxu0 %v83
  %v858 = vpop.f32.mrb[0].mxu0
  %v859 = vadd.f32 %v714, %v858
  %v860 = vpop.f32.mrb[0].mxu0
  %861 = vmatprep.mubr.f32.mxu0 %v93
  %862 = vmatmul.mubr.f32.gmra.mrb[0].mxu0 %v92
  %v863 = vpop.f32.mrb[0].mxu0
  %v864 = vadd.f32 %v719, %v863
  %v865 = vpop.f32.mrb[0].mxu0
  %866 = vmatprep.mubr.f32.mxu0 %v102
  %867 = vmatmul.mubr.f32.gmra.mrb[0].mxu0 %v101
  %v868 = vpop.f32.mrb[0].mxu0
  %v869 = vadd.f32 %v724, %v868
  %v870 = vpop.f32.mrb[0].mxu0
  %871 = vmatprep.mubr.f32.mxu0 %v111
  %872 = vmatmul.mubr.f32.gmra.mrb[0].mxu0 %v110
  %v873 = vpop.f32.mrb[0].mxu0
  %v874 = vadd.f32 %v729, %v873
  %v875 = vpop.f32.mrb[0].mxu0
  %876 = vmatprep.mubr.f32.mxu0 %v120
  %877 = vmatmul.mubr.f32.gmra.mrb[0].mxu0 %v119
  %v878 = vpop.f32.mrb[0].mxu0
  %v879 = vadd.f32 %v734, %v878
  %v880 = vpop.f32.mrb[0].mxu0
  %881 = vmatprep.mubr.f32.mxu0 %v129
  %882 = vmatmul.mubr.f32.gmra.mrb[0].mxu0 %v128
  %v883 = vpop.f32.mrb[0].mxu0
  %v884 = vadd.f32 %v739, %v883
  %v885 = vpop.f32.mrb[0].mxu0
  %886 = vmatprep.mubr.f32.mxu0 %v138
  %887 = vmatmul.mubr.f32.gmra.mrb[0].mxu0 %v137
  %v888 = vpop.f32.mrb[0].mxu0
  %v889 = vadd.f32 %v744, %v888
  %v890 = vpop.f32.mrb[0].mxu0
  %891 = vmatprep.mubr.f32.mxu0 %v147
  %892 = vmatmul.mubr.f32.gmra.mrb[0].mxu0 %v146
  %v893 = vpop.f32.mrb[0].mxu0
  %v894 = vadd.f32 %v749, %v893
  %v895 = vpop.f32.mrb[0].mxu0
  %896 = vmatprep.mubr.f32.mxu0 %v156
  %897 = vmatmul.mubr.f32.gmra.mrb[0].mxu0 %v155
  %v898 = vpop.f32.mrb[0].mxu0
  %v899 = vadd.f32 %v754, %v898
  %v900 = vpop.f32.mrb[0].mxu0
  %901 = vmatprep.mubr.f32.mxu0 %v165
  %902 = vmatmul.mubr.f32.gmra.mrb[0].mxu0 %v164
  %v903 = vpop.f32.mrb[0].mxu0
  %v904 = vadd.f32 %v759, %v903
  %v905 = vpop.f32.mrb[0].mxu0
  %906 = vmatprep.mubr.f32.mxu0 %v174
  %907 = vmatmul.mubr.f32.gmra.mrb[0].mxu0 %v173
  %v908 = vpop.f32.mrb[0].mxu0
  %v909 = vadd.f32 %v764, %v908
  %v910 = vpop.f32.mrb[0].mxu0
  %911 = vmatprep.mubr.f32.mxu0 %v183
  %912 = vmatmul.mubr.f32.gmra.mrb[0].mxu0 %v182
  %v913 = vpop.f32.mrb[0].mxu0
  %v914 = vadd.f32 %v769, %v913
  %v915 = vpop.f32.mrb[0].mxu0
  %916 = vmatprep.mubr.f32.mxu0 %v192
  %917 = vmatmul.mubr.f32.gmra.mrb[0].mxu0 %v191
  %v918 = vpop.f32.mrb[0].mxu0
  %v919 = vadd.f32 %v774, %v918
  %v920 = vpop.f32.mrb[0].mxu0
  %921 = vmatprep.mubr.f32.mxu0 %v201
  %922 = vmatmul.mubr.f32.gmra.mrb[0].mxu0 %v200
  %v923 = vpop.f32.mrb[0].mxu0
  %v924 = vadd.f32 %v779, %v923
  %v925 = vpop.f32.mrb[0].mxu0
  %926 = vdwg.mxu0
  %927 = vmatprep.subr.mxu0 0.0
  %928 = vmatpush1.msra.mxu0 %v331
  %929 = vmatprep.subr.mxu0 0.0
  %930 = vmatpush1.msra.mxu0 %v332
  %931 = vmatprep.subr.mxu0 0.0
  %932 = vmatpush1.msra.mxu0 %v333
  %933 = vmatprep.subr.mxu0 0.0
  %934 = vmatpush1.msra.mxu0 %v334
  %935 = vmatprep.subr.mxu0 0.0
  %936 = vmatpush1.msra.mxu0 %v335
  %937 = vmatprep.subr.mxu0 0.0
  %938 = vmatpush1.msra.mxu0 %v336
  %939 = vmatprep.subr.mxu0 0.0
  %940 = vmatpush1.msra.mxu0 %v337
  %941 = vmatprep.subr.mxu0 0.0
  %942 = vmatpush1.msra.mxu0 %v338
  %943 = vmatprep.subr.mxu0 0.0
  %944 = vmatpush1.msra.mxu0 %v339
  %945 = vmatprep.subr.mxu0 0.0
  %946 = vmatpush1.msra.mxu0 %v340
  %947 = vmatprep.subr.mxu0 0.0
  %948 = vmatpush1.msra.mxu0 %v341
  %949 = vmatprep.subr.mxu0 0.0
  %950 = vmatpush1.msra.mxu0 %v342
  %951 = vmatprep.subr.mxu0 0.0
  %952 = vmatpush1.msra.mxu0 %v343
  %953 = vmatprep.subr.mxu0 0.0
  %954 = vmatpush1.msra.mxu0 %v344
  %955 = vmatprep.subr.mxu0 0.0
  %956 = vmatpush1.msra.mxu0 %v345
  %957 = vmatprep.subr.mxu0 0.0
  %958 = vmatpush1.msra.mxu0 %v346
  %959 = vmatprep.subr.mxu0 0.0
  %960 = vmatpush1.msra.mxu0 0.0
  %961 = vmatprep.subr.mxu0 0.0
  %962 = vmatpush1.msra.mxu0 0.0
  %963 = vmatprep.subr.mxu0 0.0
  %964 = vmatpush1.msra.mxu0 0.0
  %965 = vmatprep.subr.mxu0 0.0
  %966 = vmatpush1.msra.mxu0 0.0
  %967 = vmatprep.subr.mxu0 0.0
  %968 = vmatpush1.msra.mxu0 0.0
  %969 = vmatprep.subr.mxu0 0.0
  %970 = vmatpush1.msra.mxu0 0.0
  %971 = vmatprep.subr.mxu0 0.0
  %972 = vmatpush1.msra.mxu0 0.0
  %973 = vmatprep.subr.mxu0 0.0
  %974 = vmatpush1.msra.mxu0 0.0
  %975 = vmatprep.subr.mxu0 0.0
  %976 = vmatpush1.msra.mxu0 0.0
  %977 = vmatprep.subr.mxu0 0.0
  %978 = vmatpush1.msra.mxu0 0.0
  %979 = vmatprep.subr.mxu0 0.0
  %980 = vmatpush1.msra.mxu0 0.0
  %981 = vmatprep.subr.mxu0 0.0
  %982 = vmatpush1.msra.mxu0 0.0
  %983 = vmatprep.subr.mxu0 0.0
  %984 = vmatpush1.msra.mxu0 0.0
  %985 = vmatprep.subr.mxu0 0.0
  %986 = vmatpush1.msra.mxu0 0.0
  %987 = vmatprep.subr.mxu0 0.0
  %988 = vmatpush1.msra.mxu0 0.0
  %989 = vmatprep.subr.mxu0 0.0
  %990 = vmatpush1.msra.mxu0 0.0
  %991 = vmatprep.mubr.f32.mxu0 0.0
  %992 = vmatmul.mubr.f32.gmra.mrb[0].mxu0 %v67
  %v993 = vpop.f32.mrb[0].mxu0
  %v994 = vadd.f32 %v849, %v993
  %v995 = vpop.f32.mrb[0].mxu0
  %996 = vmatprep.mubr.f32.mxu0 0.0
  %997 = vmatmul.mubr.f32.gmra.mrb[0].mxu0 %v76
  %v998 = vpop.f32.mrb[0].mxu0
  %v999 = vadd.f32 %v854, %v998
  %v1000 = vpop.f32.mrb[0].mxu0
  %1001 = vmatprep.mubr.f32.mxu0 0.0
  %1002 = vmatmul.mubr.f32.gmra.mrb[0].mxu0 %v85
  %v1003 = vpop.f32.mrb[0].mxu0
  %v1004 = vadd.f32 %v859, %v1003
  %v1005 = vpop.f32.mrb[0].mxu0
  %1006 = vmatprep.mubr.f32.mxu0 0.0
  %1007 = vmatmul.mubr.f32.gmra.mrb[0].mxu0 %v94
  %v1008 = vpop.f32.mrb[0].mxu0
  %v1009 = vadd.f32 %v864, %v1008
  %v1010 = vpop.f32.mrb[0].mxu0
  %1011 = vmatprep.mubr.f32.mxu0 0.0
  %1012 = vmatmul.mubr.f32.gmra.mrb[0].mxu0 %v103
  %v1013 = vpop.f32.mrb[0].mxu0
  %v1014 = vadd.f32 %v869, %v1013
  %v1015 = vpop.f32.mrb[0].mxu0
  %1016 = vmatprep.mubr.f32.mxu0 0.0
  %1017 = vmatmul.mubr.f32.gmra.mrb[0].mxu0 %v112
  %v1018 = vpop.f32.mrb[0].mxu0
  %v1019 = vadd.f32 %v874, %v1018
  %v1020 = vpop.f32.mrb[0].mxu0
  %1021 = vmatprep.mubr.f32.mxu0 0.0
  %1022 = vmatmul.mubr.f32.gmra.mrb[0].mxu0 %v121
  %v1023 = vpop.f32.mrb[0].mxu0
  %v1024 = vadd.f32 %v879, %v1023
  %v1025 = vpop.f32.mrb[0].mxu0
  %1026 = vmatprep.mubr.f32.mxu0 0.0
  %1027 = vmatmul.mubr.f32.gmra.mrb[0].mxu0 %v130
  %v1028 = vpop.f32.mrb[0].mxu0
  %v1029 = vadd.f32 %v884, %v1028
  %v1030 = vpop.f32.mrb[0].mxu0
  %1031 = vmatprep.mubr.f32.mxu0 0.0
  %1032 = vmatmul.mubr.f32.gmra.mrb[0].mxu0 %v139
  %v1033 = vpop.f32.mrb[0].mxu0
  %v1034 = vadd.f32 %v889, %v1033
  %v1035 = vpop.f32.mrb[0].mxu0
  %1036 = vmatprep.mubr.f32.mxu0 0.0
  %1037 = vmatmul.mubr.f32.gmra.mrb[0].mxu0 %v148
  %v1038 = vpop.f32.mrb[0].mxu0
  %v1039 = vadd.f32 %v894, %v1038
  %v1040 = vpop.f32.mrb[0].mxu0
  %1041 = vmatprep.mubr.f32.mxu0 0.0
  %1042 = vmatmul.mubr.f32.gmra.mrb[0].mxu0 %v157
  %v1043 = vpop.f32.mrb[0].mxu0
  %v1044 = vadd.f32 %v899, %v1043
  %v1045 = vpop.f32.mrb[0].mxu0
  %1046 = vmatprep.mubr.f32.mxu0 0.0
  %1047 = vmatmul.mubr.f32.gmra.mrb[0].mxu0 %v166
  %v1048 = vpop.f32.mrb[0].mxu0
  %v1049 = vadd.f32 %v904, %v1048
  %v1050 = vpop.f32.mrb[0].mxu0
  %1051 = vmatprep.mubr.f32.mxu0 0.0
  %1052 = vmatmul.mubr.f32.gmra.mrb[0].mxu0 %v175
  %v1053 = vpop.f32.mrb[0].mxu0
  %v1054 = vadd.f32 %v909, %v1053
  %v1055 = vpop.f32.mrb[0].mxu0
  %1056 = vmatprep.mubr.f32.mxu0 0.0
  %1057 = vmatmul.mubr.f32.gmra.mrb[0].mxu0 %v184
  %v1058 = vpop.f32.mrb[0].mxu0
  %v1059 = vadd.f32 %v914, %v1058
  %v1060 = vpop.f32.mrb[0].mxu0
  %1061 = vmatprep.mubr.f32.mxu0 0.0
  %1062 = vmatmul.mubr.f32.gmra.mrb[0].mxu0 %v193
  %v1063 = vpop.f32.mrb[0].mxu0
  %v1064 = vadd.f32 %v919, %v1063
  %v1065 = vpop.f32.mrb[0].mxu0
  %1066 = vmatprep.mubr.f32.mxu0 0.0
  %1067 = vmatmul.mubr.f32.gmra.mrb[0].mxu0 %v202
  %v1068 = vpop.f32.mrb[0].mxu0
  %v1069 = vadd.f32 %v924, %v1068
  %v1070 = vpop.f32.mrb[0].mxu0
  %1071 = vdwg.mxu0
  %v1072 = vadd.f32 %v43, %v994
  %v1073 = vadd.f32 %v44, %v999
  %v1074 = vadd.f32 %v45, %v1004
  %v1075 = vadd.f32 %v46, %v1009
  %v1076 = vadd.f32 %v47, %v1014
  %v1077 = vadd.f32 %v48, %v1019
  %v1078 = vadd.f32 %v49, %v1024
  %v1079 = vadd.f32 %v50, %v1029
  %v1080 = vadd.f32 %v51, %v1034
  %v1081 = vadd.f32 %v52, %v1039
  %v1082 = vadd.f32 %v53, %v1044
  %v1083 = vadd.f32 %v54, %v1049
  %v1084 = vadd.f32 %v55, %v1054
  %v1085 = vadd.f32 %v56, %v1059
  %v1086 = vadd.f32 %v57, %v1064
  %v1087 = vadd.f32 %v58, %v1069
  %1088 = vst [vmem:[#allocation2] sm:$0xff] %v1072
  %1089 = vst [vmem:[#allocation2 + $0x8] sm:$0xff] %v1073
  %1090 = vst [vmem:[#allocation2 + $0x10] sm:$0xff] %v1074
  %1091 = vst [vmem:[#allocation2 + $0x18] sm:$0xff] %v1075
  %1092 = vst [vmem:[#allocation2 + $0x20] sm:$0xff] %v1076
  %1093 = vst [vmem:[#allocation2 + $0x28] sm:$0xff] %v1077
  %1094 = vst [vmem:[#allocation2 + $0x30] sm:$0xff] %v1078
  %1095 = vst [vmem:[#allocation2 + $0x38] sm:$0xff] %v1079
  %1096 = vst [vmem:[#allocation2 + $0x40] sm:$0xff] %v1080
  %1097 = vst [vmem:[#allocation2 + $0x48] sm:$0xff] %v1081
  %1098 = vst [vmem:[#allocation2 + $0x50] sm:$0xff] %v1082
  %1099 = vst [vmem:[#allocation2 + $0x58] sm:$0xff] %v1083
  %1100 = vst [vmem:[#allocation2 + $0x60] sm:$0xff] %v1084
  %1101 = vst [vmem:[#allocation2 + $0x68] sm:$0xff] %v1085
  %1102 = vst [vmem:[#allocation2 + $0x70] sm:$0xff] %v1086
  %1103 = vst [vmem:[#allocation2 + $0x78] sm:$0xff] %v1087
  // Predicated region
  $region30: #{_lambda_.9} parent=0 // pred_check
    %p1104 = pneg %p23
  $region31: #{_lambda_.9} parent=0 // pred_check_branch
    %1106 = sbr.rel (%p1104) target = $region33
  $region32: #{_lambda_.9} parent=0 // pred_region
    %v1107 = vld [vmem:[#allocation2] sm:$0xff]
    %v1108 = vld [vmem:[#allocation2 + $0x8] sm:$0xff]
    %v1109 = vld [vmem:[#allocation2 + $0x10] sm:$0xff]
    %v1110 = vld [vmem:[#allocation2 + $0x18] sm:$0xff]
    %v1111 = vld [vmem:[#allocation2 + $0x20] sm:$0xff]
    %v1112 = vld [vmem:[#allocation2 + $0x28] sm:$0xff]
    %v1113 = vld [vmem:[#allocation2 + $0x30] sm:$0xff]
    %v1114 = vld [vmem:[#allocation2 + $0x38] sm:$0xff]
    %v1115 = vld [vmem:[#allocation2 + $0x40] sm:$0xff]
    %v1116 = vld [vmem:[#allocation2 + $0x48] sm:$0xff]
    %v1117 = vld [vmem:[#allocation2 + $0x50] sm:$0xff]
    %v1118 = vld [vmem:[#allocation2 + $0x58] sm:$0xff]
    %v1119 = vld [vmem:[#allocation2 + $0x60] sm:$0xff]
    %v1120 = vld [vmem:[#allocation2 + $0x68] sm:$0xff]
    %v1121 = vld [vmem:[#allocation2 + $0x70] sm:$0xff]
    %v1122 = vld [vmem:[#allocation2 + $0x78] sm:$0xff]
    %v1123 = vld [vmem:[%s2] sm:$0x1]
    %v1125 = vlaneseq
    %v1126 = vshrl.u32 %v1125, 7
    %v1127 = vsub.s32 0, %v1126
    %v1128 = vrot.slane %v1123, %v1127
    %v1130 = vadd.f32 %v1107, %v1128
    %v1131 = vadd.f32 %v1108, %v1128
    %v1132 = vadd.f32 %v1109, %v1128
    %v1133 = vadd.f32 %v1110, %v1128
    %v1134 = vadd.f32 %v1111, %v1128
    %v1135 = vadd.f32 %v1112, %v1128
    %v1136 = vadd.f32 %v1113, %v1128
    %v1137 = vadd.f32 %v1114, %v1128
    %v1138 = vadd.f32 %v1115, %v1128
    %v1139 = vadd.f32 %v1116, %v1128
    %v1140 = vadd.f32 %v1117, %v1128
    %v1141 = vadd.f32 %v1118, %v1128
    %v1142 = vadd.f32 %v1119, %v1128
    %v1143 = vadd.f32 %v1120, %v1128
    %v1144 = vadd.f32 %v1121, %v1128
    %v1145 = vadd.f32 %v1122, %v1128
    %v1146 = vld [vmem:[%s5] sm:$0xff]
    %v1147 = vld [vmem:[%s5 + $0x8] sm:$0xff]
    %v1148 = vld [vmem:[%s5 + $0x10] sm:$0xff]
    %v1149 = vld [vmem:[%s5 + $0x18] sm:$0xff]
    %v1150 = vld [vmem:[%s5 + $0x20] sm:$0xff]
    %v1151 = vld [vmem:[%s5 + $0x28] sm:$0xff]
    %v1152 = vld [vmem:[%s5 + $0x30] sm:$0xff]
    %v1153 = vld [vmem:[%s5 + $0x38] sm:$0xff]
    %v1154 = vld [vmem:[%s5 + $0x40] sm:$0xff]
    %v1155 = vld [vmem:[%s5 + $0x48] sm:$0xff]
    %v1156 = vld [vmem:[%s5 + $0x50] sm:$0xff]
    %v1157 = vld [vmem:[%s5 + $0x58] sm:$0xff]
    %v1158 = vld [vmem:[%s5 + $0x60] sm:$0xff]
    %v1159 = vld [vmem:[%s5 + $0x68] sm:$0xff]
    %v1160 = vld [vmem:[%s5 + $0x70] sm:$0xff]
    %v1161 = vld [vmem:[%s5 + $0x78] sm:$0xff]
    %v1162 = vld [vmem:[%s3] sm:$0x1]
    %v1164 = vlaneseq
    %v1165 = vshrl.u32 %v1164, 7
    %v1166 = vsub.s32 0, %v1165
    %v1167 = vrot.slane %v1162, %v1166
    %v1169 = vmul.f32 %v1146, %v1167
    %v1170 = vmul.f32 %v1147, %v1167
    %v1171 = vmul.f32 %v1148, %v1167
    %v1172 = vmul.f32 %v1149, %v1167
    %v1173 = vmul.f32 %v1150, %v1167
    %v1174 = vmul.f32 %v1151, %v1167
    %v1175 = vmul.f32 %v1152, %v1167
    %v1176 = vmul.f32 %v1153, %v1167
    %v1177 = vmul.f32 %v1154, %v1167
    %v1178 = vmul.f32 %v1155, %v1167
    %v1179 = vmul.f32 %v1156, %v1167
    %v1180 = vmul.f32 %v1157, %v1167
    %v1181 = vmul.f32 %v1158, %v1167
    %v1182 = vmul.f32 %v1159, %v1167
    %v1183 = vmul.f32 %v1160, %v1167
    %v1184 = vmul.f32 %v1161, %v1167
    %v1185 = vadd.f32 %v1130, %v1169
    %v1186 = vadd.f32 %v1131, %v1170
    %v1187 = vadd.f32 %v1132, %v1171
    %v1188 = vadd.f32 %v1133, %v1172
    %v1189 = vadd.f32 %v1134, %v1173
    %v1190 = vadd.f32 %v1135, %v1174
    %v1191 = vadd.f32 %v1136, %v1175
    %v1192 = vadd.f32 %v1137, %v1176
    %v1193 = vadd.f32 %v1138, %v1177
    %v1194 = vadd.f32 %v1139, %v1178
    %v1195 = vadd.f32 %v1140, %v1179
    %v1196 = vadd.f32 %v1141, %v1180
    %v1197 = vadd.f32 %v1142, %v1181
    %v1198 = vadd.f32 %v1143, %v1182
    %v1199 = vadd.f32 %v1144, %v1183
    %v1200 = vadd.f32 %v1145, %v1184
    %v1201 = vld [vmem:[%s4] sm:$0x1]
    %v1203 = vlaneseq
    %v1204 = vshrl.u32 %v1203, 7
    %v1205 = vsub.s32 0, %v1204
    %v1206 = vrot.slane %v1201, %v1205
    %v1208 = vadd.f32 %v1185, %v1206
    %v1209 = vadd.f32 %v1186, %v1206
    %v1210 = vadd.f32 %v1187, %v1206
    %v1211 = vadd.f32 %v1188, %v1206
    %v1212 = vadd.f32 %v1189, %v1206
    %v1213 = vadd.f32 %v1190, %v1206
    %v1214 = vadd.f32 %v1191, %v1206
    %v1215 = vadd.f32 %v1192, %v1206
    %v1216 = vadd.f32 %v1193, %v1206
    %v1217 = vadd.f32 %v1194, %v1206
    %v1218 = vadd.f32 %v1195, %v1206
    %v1219 = vadd.f32 %v1196, %v1206
    %v1220 = vadd.f32 %v1197, %v1206
    %v1221 = vadd.f32 %v1198, %v1206
    %v1222 = vadd.f32 %v1199, %v1206
    %v1223 = vadd.f32 %v1200, %v1206
    %1224 = vst [vmem:[%s6] sm:$0xff] %v1208
    %1225 = vst [vmem:[%s6 + $0x8] sm:$0xff] %v1209
    %1226 = vst [vmem:[%s6 + $0x10] sm:$0xff] %v1210
    %1227 = vst [vmem:[%s6 + $0x18] sm:$0xff] %v1211
    %1228 = vst [vmem:[%s6 + $0x20] sm:$0xff] %v1212
    %1229 = vst [vmem:[%s6 + $0x28] sm:$0xff] %v1213
    %1230 = vst [vmem:[%s6 + $0x30] sm:$0xff] %v1214
    %1231 = vst [vmem:[%s6 + $0x38] sm:$0xff] %v1215
    %1232 = vst [vmem:[%s6 + $0x40] sm:$0xff] %v1216
    %1233 = vst [vmem:[%s6 + $0x48] sm:$0xff] %v1217
    %1234 = vst [vmem:[%s6 + $0x50] sm:$0xff] %v1218
    %1235 = vst [vmem:[%s6 + $0x58] sm:$0xff] %v1219
    %1236 = vst [vmem:[%s6 + $0x60] sm:$0xff] %v1220
    %1237 = vst [vmem:[%s6 + $0x68] sm:$0xff] %v1221
    %1238 = vst [vmem:[%s6 + $0x70] sm:$0xff] %v1222
    %1239 = vst [vmem:[%s6 + $0x78] sm:$0xff] %v1223
  $region33: #{_lambda_.9} parent=0 // pred_fallthru
    _
  // Predicated region
  $region34: #{_lambda_.9} parent=0 // pred_check
    _
  $region35: #{_lambda_.9} parent=0 // pred_check_branch
    %1241 = sbr.rel (0) target = $region37
  $region36: #{_lambda_.9} parent=0 // pred_region
    _
  $region37: #{_lambda_.9} parent=0 // pred_fallthru
    _
  // Predicated region
  $region38: #{_lambda_.9} parent=0 // pred_check
    _
  $region39: #{_lambda_.9} parent=0 // pred_check_branch
    %1243 = sbr.rel (0) target = $region41
  $region40: #{_lambda_.9} parent=0 // pred_region
    _
  $region41: #{_lambda_.9} parent=0 // pred_fallthru
    _

// kernel: _lambda_.6
$region0: #{_lambda_.6}
  #allocation0 [shape = 'u32[]', space=smem, size = 0x4, offset = 0x4, fixed_abs, tag = 'smem constant byte address 0x4 - core index']
  #allocation1 [shape = 'u32[144,128]{1,0:T(1,128)}', space=vmem, size = 0x12000, scoped, tag = 'internal scratch']
  #allocation2 [shape = 'f32[512,128]{1,0:T(8,128)}', space=vmem, size = 0x40000, scoped, tag = 'scratch operand']
  %s0 = inlined_call_operand.vmem [shape: f32[512,1152], index: 0, kind: input, shape index: {}]
  %s1 = inlined_call_operand.vmem [shape: f32[1152,128], index: 1, kind: input, shape index: {}]
  %s2 = inlined_call_operand.vmem [shape: f32[1,128], index: 2, kind: input, shape index: {}]
  %s3 = inlined_call_operand.vmem [shape: f32[512,128], index: 3, kind: output, shape index: {0}]
  %s4 = inlined_call_operand.vmem [shape: f32[8,128], index: 4, kind: output, shape index: {1}]
  %s5 = inlined_call_operand.vmem [shape: f32[8,128], index: 5, kind: output, shape index: {2}]
  %6 = xla_tuple %s3, %s4, %s5
  %s7 = sld [smem:[#allocation0]]
  $region46: #{_lambda_.6} parent=0
    _
  %s9 = ssub.s32 1, %s7
  %s10 = scalar_select 0, %s9, %s7
  // Predicated region
  $region2: #{_lambda_.6} parent=0 // pred_check
    _
  $region3: #{_lambda_.6} parent=0 // pred_check_branch
    %12 = sbr.rel (0) target = $region5
  $region4: #{_lambda_.6} parent=0 // pred_region
    _
  $region5: #{_lambda_.6} parent=0 // pred_fallthru
    _
  // Predicated region
  $region6: #{_lambda_.6} parent=0 // pred_check
    _
  $region7: #{_lambda_.6} parent=0 // pred_check_branch
    %14 = sbr.rel (0) target = $region9
  $region8: #{_lambda_.6} parent=0 // pred_region
    _
  $region9: #{_lambda_.6} parent=0 // pred_fallthru
    _
  // Predicated region
  $region10: #{_lambda_.6} parent=0 // pred_check
    _
  $region11: #{_lambda_.6} parent=0 // pred_check_branch
    %16 = sbr.rel (0) target = $region13
  $region12: #{_lambda_.6} parent=0 // pred_region
    _
  $region13: #{_lambda_.6} parent=0 // pred_fallthru
    _
  %p17 = scmp.eq.s32.totalorder 0, 0
  // Predicated region
  $region14: #{_lambda_.6} parent=0 // pred_check
    %p18 = pneg %p17
  $region15: #{_lambda_.6} parent=0 // pred_check_branch
    %20 = sbr.rel (%p18) target = $region17
  $region16: #{_lambda_.6} parent=0 // pred_region
    %21 = vst [vmem:[#allocation2] sm:$0xff] 0.0
    %22 = vst [vmem:[#allocation2 + $0x8] sm:$0xff] 0.0
    %23 = vst [vmem:[#allocation2 + $0x10] sm:$0xff] 0.0
    %24 = vst [vmem:[#allocation2 + $0x18] sm:$0xff] 0.0
    %25 = vst [vmem:[#allocation2 + $0x20] sm:$0xff] 0.0
    %26 = vst [vmem:[#allocation2 + $0x28] sm:$0xff] 0.0
    %27 = vst [vmem:[#allocation2 + $0x30] sm:$0xff] 0.0
    %28 = vst [vmem:[#allocation2 + $0x38] sm:$0xff] 0.0
    %29 = vst [vmem:[#allocation2 + $0x40] sm:$0xff] 0.0
    %30 = vst [vmem:[#allocation2 + $0x48] sm:$0xff] 0.0
    %31 = vst [vmem:[#allocation2 + $0x50] sm:$0xff] 0.0
    %32 = vst [vmem:[#allocation2 + $0x58] sm:$0xff] 0.0
    %33 = vst [vmem:[#allocation2 + $0x60] sm:$0xff] 0.0
    %34 = vst [vmem:[#allocation2 + $0x68] sm:$0xff] 0.0
    %35 = vst [vmem:[#allocation2 + $0x70] sm:$0xff] 0.0
    %36 = vst [vmem:[#allocation2 + $0x78] sm:$0xff] 0.0
    %37 = vst [vmem:[#allocation2 + $0x80] sm:$0xff] 0.0
    %38 = vst [vmem:[#allocation2 + $0x88] sm:$0xff] 0.0
    %39 = vst [vmem:[#allocation2 + $0x90] sm:$0xff] 0.0
    %40 = vst [vmem:[#allocation2 + $0x98] sm:$0xff] 0.0
    %41 = vst [vmem:[#allocation2 + $0xa0] sm:$0xff] 0.0
    %42 = vst [vmem:[#allocation2 + $0xa8] sm:$0xff] 0.0
    %43 = vst [vmem:[#allocation2 + $0xb0] sm:$0xff] 0.0
    %44 = vst [vmem:[#allocation2 + $0xb8] sm:$0xff] 0.0
    %45 = vst [vmem:[#allocation2 + $0xc0] sm:$0xff] 0.0
    %46 = vst [vmem:[#allocation2 + $0xc8] sm:$0xff] 0.0
    %47 = vst [vmem:[#allocation2 + $0xd0] sm:$0xff] 0.0
    %48 = vst [vmem:[#allocation2 + $0xd8] sm:$0xff] 0.0
    %49 = vst [vmem:[#allocation2 + $0xe0] sm:$0xff] 0.0
    %50 = vst [vmem:[#allocation2 + $0xe8] sm:$0xff] 0.0
    %51 = vst [vmem:[#allocation2 + $0xf0] sm:$0xff] 0.0
    %52 = vst [vmem:[#allocation2 + $0xf8] sm:$0xff] 0.0
    %53 = vst [vmem:[#allocation2 + $0x100] sm:$0xff] 0.0
    %54 = vst [vmem:[#allocation2 + $0x108] sm:$0xff] 0.0
    %55 = vst [vmem:[#allocation2 + $0x110] sm:$0xff] 0.0
    %56 = vst [vmem:[#allocation2 + $0x118] sm:$0xff] 0.0
    %57 = vst [vmem:[#allocation2 + $0x120] sm:$0xff] 0.0
    %58 = vst [vmem:[#allocation2 + $0x128] sm:$0xff] 0.0
    %59 = vst [vmem:[#allocation2 + $0x130] sm:$0xff] 0.0
    %60 = vst [vmem:[#allocation2 + $0x138] sm:$0xff] 0.0
    %61 = vst [vmem:[#allocation2 + $0x140] sm:$0xff] 0.0
    %62 = vst [vmem:[#allocation2 + $0x148] sm:$0xff] 0.0
    %63 = vst [vmem:[#allocation2 + $0x150] sm:$0xff] 0.0
    %64 = vst [vmem:[#allocation2 + $0x158] sm:$0xff] 0.0
    %65 = vst [vmem:[#allocation2 + $0x160] sm:$0xff] 0.0
    %66 = vst [vmem:[#allocation2 + $0x168] sm:$0xff] 0.0
    %67 = vst [vmem:[#allocation2 + $0x170] sm:$0xff] 0.0
    %68 = vst [vmem:[#allocation2 + $0x178] sm:$0xff] 0.0
    %69 = vst [vmem:[#allocation2 + $0x180] sm:$0xff] 0.0
    %70 = vst [vmem:[#allocation2 + $0x188] sm:$0xff] 0.0
    %71 = vst [vmem:[#allocation2 + $0x190] sm:$0xff] 0.0
    %72 = vst [vmem:[#allocation2 + $0x198] sm:$0xff] 0.0
    %73 = vst [vmem:[#allocation2 + $0x1a0] sm:$0xff] 0.0
    %74 = vst [vmem:[#allocation2 + $0x1a8] sm:$0xff] 0.0
    %75 = vst [vmem:[#allocation2 + $0x1b0] sm:$0xff] 0.0
    %76 = vst [vmem:[#allocation2 + $0x1b8] sm:$0xff] 0.0
    %77 = vst [vmem:[#allocation2 + $0x1c0] sm:$0xff] 0.0
    %78 = vst [vmem:[#allocation2 + $0x1c8] sm:$0xff] 0.0
    %79 = vst [vmem:[#allocation2 + $0x1d0] sm:$0xff] 0.0
    %80 = vst [vmem:[#allocation2 + $0x1d8] sm:$0xff] 0.0
    %81 = vst [vmem:[#allocation2 + $0x1e0] sm:$0xff] 0.0
    %82 = vst [vmem:[#allocation2 + $0x1e8] sm:$0xff] 0.0
    %83 = vst [vmem:[#allocation2 + $0x1f0] sm:$0xff] 0.0
    %84 = vst [vmem:[#allocation2 + $0x1f8] sm:$0xff] 0.0
  $region17: #{_lambda_.6} parent=0 // pred_fallthru
    _
  %v85 = vld [vmem:[#allocation2] sm:$0xff]
  %v86 = vld [vmem:[#allocation2 + $0x8] sm:$0xff]
  %v87 = vld [vmem:[#allocation2 + $0x10] sm:$0xff]
  %v88 = vld [vmem:[#allocation2 + $0x18] sm:$0xff]
  %v89 = vld [vmem:[#allocation2 + $0x20] sm:$0xff]
  %v90 = vld [vmem:[#allocation2 + $0x28] sm:$0xff]
  %v91 = vld [vmem:[#allocation2 + $0x30] sm:$0xff]
  %v92 = vld [vmem:[#allocation2 + $0x38] sm:$0xff]
  %v93 = vld [vmem:[#allocation2 + $0x40] sm:$0xff]
  %v94 = vld [vmem:[#allocation2 + $0x48] sm:$0xff]
  %v95 = vld [vmem:[#allocation2 + $0x50] sm:$0xff]
  %v96 = vld [vmem:[#allocation2 + $0x58] sm:$0xff]
  %v97 = vld [vmem:[#allocation2 + $0x60] sm:$0xff]
  %v98 = vld [vmem:[#allocation2 + $0x68] sm:$0xff]
  %v99 = vld [vmem:[#allocation2 + $0x70] sm:$0xff]
  %v100 = vld [vmem:[#allocation2 + $0x78] sm:$0xff]
  %v101 = vld [vmem:[#allocation2 + $0x80] sm:$0xff]
  %v102 = vld [vmem:[#allocation2 + $0x88] sm:$0xff]
  %v103 = vld [vmem:[#allocation2 + $0x90] sm:$0xff]
  %v104 = vld [vmem:[#allocation2 + $0x98] sm:$0xff]
  %v105 = vld [vmem:[#allocation2 + $0xa0] sm:$0xff]
  %v106 = vld [vmem:[#allocation2 + $0xa8] sm:$0xff]
  %v107 = vld [vmem:[#allocation2 + $0xb0] sm:$0xff]
  %v108 = vld [vmem:[#allocation2 + $0xb8] sm:$0xff]
  %v109 = vld [vmem:[#allocation2 + $0xc0] sm:$0xff]
  %v110 = vld [vmem:[#allocation2 + $0xc8] sm:$0xff]
  %v111 = vld [vmem:[#allocation2 + $0xd0] sm:$0xff]
  %v112 = vld [vmem:[#allocation2 + $0xd8] sm:$0xff]
  %v113 = vld [vmem:[#allocation2 + $0xe0] sm:$0xff]
  %v114 = vld [vmem:[#allocation2 + $0xe8] sm:$0xff]
  %v115 = vld [vmem:[#allocation2 + $0xf0] sm:$0xff]
  %v116 = vld [vmem:[#allocation2 + $0xf8] sm:$0xff]
  %v117 = vld [vmem:[#allocation2 + $0x100] sm:$0xff]
  %v118 = vld [vmem:[#allocation2 + $0x108] sm:$0xff]
  %v119 = vld [vmem:[#allocation2 + $0x110] sm:$0xff]
  %v120 = vld [vmem:[#allocation2 + $0x118] sm:$0xff]
  %v121 = vld [vmem:[#allocation2 + $0x120] sm:$0xff]
  %v122 = vld [vmem:[#allocation2 + $0x128] sm:$0xff]
  %v123 = vld [vmem:[#allocation2 + $0x130] sm:$0xff]
  %v124 = vld [vmem:[#allocation2 + $0x138] sm:$0xff]
  %v125 = vld [vmem:[#allocation2 + $0x140] sm:$0xff]
  %v126 = vld [vmem:[#allocation2 + $0x148] sm:$0xff]
  %v127 = vld [vmem:[#allocation2 + $0x150] sm:$0xff]
  %v128 = vld [vmem:[#allocation2 + $0x158] sm:$0xff]
  %v129 = vld [vmem:[#allocation2 + $0x160] sm:$0xff]
  %v130 = vld [vmem:[#allocation2 + $0x168] sm:$0xff]
  %v131 = vld [vmem:[#allocation2 + $0x170] sm:$0xff]
  %v132 = vld [vmem:[#allocation2 + $0x178] sm:$0xff]
  %v133 = vld [vmem:[#allocation2 + $0x180] sm:$0xff]
  %v134 = vld [vmem:[#allocation2 + $0x188] sm:$0xff]
  %v135 = vld [vmem:[#allocation2 + $0x190] sm:$0xff]
  %v136 = vld [vmem:[#allocation2 + $0x198] sm:$0xff]
  %v137 = vld [vmem:[#allocation2 + $0x1a0] sm:$0xff]
  %v138 = vld [vmem:[#allocation2 + $0x1a8] sm:$0xff]
  %v139 = vld [vmem:[#allocation2 + $0x1b0] sm:$0xff]
  %v140 = vld [vmem:[#allocation2 + $0x1b8] sm:$0xff]
  %v141 = vld [vmem:[#allocation2 + $0x1c0] sm:$0xff]
  %v142 = vld [vmem:[#allocation2 + $0x1c8] sm:$0xff]
  %v143 = vld [vmem:[#allocation2 + $0x1d0] sm:$0xff]
  %v144 = vld [vmem:[#allocation2 + $0x1d8] sm:$0xff]
  %v145 = vld [vmem:[#allocation2 + $0x1e0] sm:$0xff]
  %v146 = vld [vmem:[#allocation2 + $0x1e8] sm:$0xff]
  %v147 = vld [vmem:[#allocation2 + $0x1f0] sm:$0xff]
  %v148 = vld [vmem:[#allocation2 + $0x1f8] sm:$0xff]
  %v149 = vld [vmem:[%s0] sm:$0xff]
  %v150 = vld [vmem:[%s0 + $0x8] sm:$0xff]
  %v151 = vld [vmem:[%s0 + $0x10] sm:$0xff]
  %v152 = vld [vmem:[%s0 + $0x18] sm:$0xff]
  %v153 = vld [vmem:[%s0 + $0x20] sm:$0xff]
  %v154 = vld [vmem:[%s0 + $0x28] sm:$0xff]
  %v155 = vld [vmem:[%s0 + $0x30] sm:$0xff]
  %v156 = vld [vmem:[%s0 + $0x38] sm:$0xff]
  %v157 = vld [vmem:[%s0 + $0x40] sm:$0xff]
  %v158 = vld [vmem:[%s0 + $0x48] sm:$0xff]
  %v159 = vld [vmem:[%s0 + $0x50] sm:$0xff]
  %v160 = vld [vmem:[%s0 + $0x58] sm:$0xff]
  %v161 = vld [vmem:[%s0 + $0x60] sm:$0xff]
  %v162 = vld [vmem:[%s0 + $0x68] sm:$0xff]
  %v163 = vld [vmem:[%s0 + $0x70] sm:$0xff]
  %v164 = vld [vmem:[%s0 + $0x78] sm:$0xff]
  %v165 = vld [vmem:[%s0 + $0x80] sm:$0xff]
  %v166 = vld [vmem:[%s0 + $0x88] sm:$0xff]
  %v167 = vld [vmem:[%s0 + $0x90] sm:$0xff]
  %v168 = vld [vmem:[%s0 + $0x98] sm:$0xff]
  %v169 = vld [vmem:[%s0 + $0xa0] sm:$0xff]
  %v170 = vld [vmem:[%s0 + $0xa8] sm:$0xff]
  %v171 = vld [vmem:[%s0 + $0xb0] sm:$0xff]
  %v172 = vld [vmem:[%s0 + $0xb8] sm:$0xff]
  %v173 = vld [vmem:[%s0 + $0xc0] sm:$0xff]
  %v174 = vld [vmem:[%s0 + $0xc8] sm:$0xff]
  %v175 = vld [vmem:[%s0 + $0xd0] sm:$0xff]
  %v176 = vld [vmem:[%s0 + $0xd8] sm:$0xff]
  %v177 = vld [vmem:[%s0 + $0xe0] sm:$0xff]
  %v178 = vld [vmem:[%s0 + $0xe8] sm:$0xff]
  %v179 = vld [vmem:[%s0 + $0xf0] sm:$0xff]
  %v180 = vld [vmem:[%s0 + $0xf8] sm:$0xff]
  %v181 = vld [vmem:[%s0 + $0x100] sm:$0xff]
  %v182 = vld [vmem:[%s0 + $0x108] sm:$0xff]
  %v183 = vld [vmem:[%s0 + $0x110] sm:$0xff]
  %v184 = vld [vmem:[%s0 + $0x118] sm:$0xff]
  %v185 = vld [vmem:[%s0 + $0x120] sm:$0xff]
  %v186 = vld [vmem:[%s0 + $0x128] sm:$0xff]
  %v187 = vld [vmem:[%s0 + $0x130] sm:$0xff]
  %v188 = vld [vmem:[%s0 + $0x138] sm:$0xff]
  %v189 = vld [vmem:[%s0 + $0x140] sm:$0xff]
  %v190 = vld [vmem:[%s0 + $0x148] sm:$0xff]
  %v191 = vld [vmem:[%s0 + $0x150] sm:$0xff]
  %v192 = vld [vmem:[%s0 + $0x158] sm:$0xff]
  %v193 = vld [vmem:[%s0 + $0x160] sm:$0xff]
  %v194 = vld [vmem:[%s0 + $0x168] sm:$0xff]
  %v195 = vld [vmem:[%s0 + $0x170] sm:$0xff]
  %v196 = vld [vmem:[%s0 + $0x178] sm:$0xff]
  %v197 = vld [vmem:[%s0 + $0x180] sm:$0xff]
  %v198 = vld [vmem:[%s0 + $0x188] sm:$0xff]
  %v199 = vld [vmem:[%s0 + $0x190] sm:$0xff]
  %v200 = vld [vmem:[%s0 + $0x198] sm:$0xff]
  %v201 = vld [vmem:[%s0 + $0x1a0] sm:$0xff]
  %v202 = vld [vmem:[%s0 + $0x1a8] sm:$0xff]
  %v203 = vld [vmem:[%s0 + $0x1b0] sm:$0xff]
  %v204 = vld [vmem:[%s0 + $0x1b8] sm:$0xff]
  %v205 = vld [vmem:[%s0 + $0x1c0] sm:$0xff]
  %v206 = vld [vmem:[%s0 + $0x1c8] sm:$0xff]
  %v207 = vld [vmem:[%s0 + $0x1d0] sm:$0xff]
  %v208 = vld [vmem:[%s0 + $0x1d8] sm:$0xff]
  %v209 = vld [vmem:[%s0 + $0x1e0] sm:$0xff]
  %v210 = vld [vmem:[%s0 + $0x1e8] sm:$0xff]
  %v211 = vld [vmem:[%s0 + $0x1f0] sm:$0xff]
  %v212 = vld [vmem:[%s0 + $0x1f8] sm:$0xff]
  %v213 = vld [vmem:[%s0 + $0x200] sm:$0xff]
  %v214 = vld [vmem:[%s0 + $0x208] sm:$0xff]
  %v215 = vld [vmem:[%s0 + $0x210] sm:$0xff]
  %v216 = vld [vmem:[%s0 + $0x218] sm:$0xff]
  %v217 = vld [vmem:[%s0 + $0x220] sm:$0xff]
  %v218 = vld [vmem:[%s0 + $0x228] sm:$0xff]
  %v219 = vld [vmem:[%s0 + $0x230] sm:$0xff]
  %v220 = vld [vmem:[%s0 + $0x238] sm:$0xff]
  %v221 = vld [vmem:[%s0 + $0x240] sm:$0xff]
  %v222 = vld [vmem:[%s0 + $0x248] sm:$0xff]
  %v223 = vld [vmem:[%s0 + $0x250] sm:$0xff]
  %v224 = vld [vmem:[%s0 + $0x258] sm:$0xff]
  %v225 = vld [vmem:[%s0 + $0x260] sm:$0xff]
  %v226 = vld [vmem:[%s0 + $0x268] sm:$0xff]
  %v227 = vld [vmem:[%s0 + $0x270] sm:$0xff]
  %v228 = vld [vmem:[%s0 + $0x278] sm:$0xff]
  %v229 = vld [vmem:[%s0 + $0x280] sm:$0xff]
  %v230 = vld [vmem:[%s0 + $0x288] sm:$0xff]
  %v231 = vld [vmem:[%s0 + $0x290] sm:$0xff]
  %v232 = vld [vmem:[%s0 + $0x298] sm:$0xff]
  %v233 = vld [vmem:[%s0 + $0x2a0] sm:$0xff]
  %v234 = vld [vmem:[%s0 + $0x2a8] sm:$0xff]
  %v235 = vld [vmem:[%s0 + $0x2b0] sm:$0xff]
  %v236 = vld [vmem:[%s0 + $0x2b8] sm:$0xff]
  %v237 = vld [vmem:[%s0 + $0x2c0] sm:$0xff]
  %v238 = vld [vmem:[%s0 + $0x2c8] sm:$0xff]
  %v239 = vld [vmem:[%s0 + $0x2d0] sm:$0xff]
  %v240 = vld [vmem:[%s0 + $0x2d8] sm:$0xff]
  %v241 = vld [vmem:[%s0 + $0x2e0] sm:$0xff]
  %v242 = vld [vmem:[%s0 + $0x2e8] sm:$0xff]
  %v243 = vld [vmem:[%s0 + $0x2f0] sm:$0xff]
  %v244 = vld [vmem:[%s0 + $0x2f8] sm:$0xff]
  %v245 = vld [vmem:[%s0 + $0x300] sm:$0xff]
  %v246 = vld [vmem:[%s0 + $0x308] sm:$0xff]
  %v247 = vld [vmem:[%s0 + $0x310] sm:$0xff]
  %v248 = vld [vmem:[%s0 + $0x318] sm:$0xff]
  %v249 = vld [vmem:[%s0 + $0x320] sm:$0xff]
  %v250 = vld [vmem:[%s0 + $0x328] sm:$0xff]
  %v251 = vld [vmem:[%s0 + $0x330] sm:$0xff]
  %v252 = vld [vmem:[%s0 + $0x338] sm:$0xff]
  %v253 = vld [vmem:[%s0 + $0x340] sm:$0xff]
  %v254 = vld [vmem:[%s0 + $0x348] sm:$0xff]
  %v255 = vld [vmem:[%s0 + $0x350] sm:$0xff]
  %v256 = vld [vmem:[%s0 + $0x358] sm:$0xff]
  %v257 = vld [vmem:[%s0 + $0x360] sm:$0xff]
  %v258 = vld [vmem:[%s0 + $0x368] sm:$0xff]
  %v259 = vld [vmem:[%s0 + $0x370] sm:$0xff]
  %v260 = vld [vmem:[%s0 + $0x378] sm:$0xff]
  %v261 = vld [vmem:[%s0 + $0x380] sm:$0xff]
  %v262 = vld [vmem:[%s0 + $0x388] sm:$0xff]
  %v263 = vld [vmem:[%s0 + $0x390] sm:$0xff]
  %v264 = vld [vmem:[%s0 + $0x398] sm:$0xff]
  %v265 = vld [vmem:[%s0 + $0x3a0] sm:$0xff]
  %v266 = vld [vmem:[%s0 + $0x3a8] sm:$0xff]
  %v267 = vld [vmem:[%s0 + $0x3b0] sm:$0xff]
  %v268 = vld [vmem:[%s0 + $0x3b8] sm:$0xff]
  %v269 = vld [vmem:[%s0 + $0x3c0] sm:$0xff]
  %v270 = vld [vmem:[%s0 + $0x3c8] sm:$0xff]
  %v271 = vld [vmem:[%s0 + $0x3d0] sm:$0xff]
  %v272 = vld [vmem:[%s0 + $0x3d8] sm:$0xff]
  %v273 = vld [vmem:[%s0 + $0x3e0] sm:$0xff]
  %v274 = vld [vmem:[%s0 + $0x3e8] sm:$0xff]
  %v275 = vld [vmem:[%s0 + $0x3f0] sm:$0xff]
  %v276 = vld [vmem:[%s0 + $0x3f8] sm:$0xff]
  %v277 = vld [vmem:[%s0 + $0x400] sm:$0xff]
  %v278 = vld [vmem:[%s0 + $0x408] sm:$0xff]
  %v279 = vld [vmem:[%s0 + $0x410] sm:$0xff]
  %v280 = vld [vmem:[%s0 + $0x418] sm:$0xff]
  %v281 = vld [vmem:[%s0 + $0x420] sm:$0xff]
  %v282 = vld [vmem:[%s0 + $0x428] sm:$0xff]
  %v283 = vld [vmem:[%s0 + $0x430] sm:$0xff]
  %v284 = vld [vmem:[%s0 + $0x438] sm:$0xff]
  %v285 = vld [vmem:[%s0 + $0x440] sm:$0xff]
  %v286 = vld [vmem:[%s0 + $0x448] sm:$0xff]
  %v287 = vld [vmem:[%s0 + $0x450] sm:$0xff]
  %v288 = vld [vmem:[%s0 + $0x458] sm:$0xff]
  %v289 = vld [vmem:[%s0 + $0x460] sm:$0xff]
  %v290 = vld [vmem:[%s0 + $0x468] sm:$0xff]
  %v291 = vld [vmem:[%s0 + $0x470] sm:$0xff]
  %v292 = vld [vmem:[%s0 + $0x478] sm:$0xff]
  %v293 = vld [vmem:[%s0 + $0x480] sm:$0xff]
  %v294 = vld [vmem:[%s0 + $0x488] sm:$0xff]
  %v295 = vld [vmem:[%s0 + $0x490] sm:$0xff]
  %v296 = vld [vmem:[%s0 + $0x498] sm:$0xff]
  %v297 = vld [vmem:[%s0 + $0x4a0] sm:$0xff]
  %v298 = vld [vmem:[%s0 + $0x4a8] sm:$0xff]
  %v299 = vld [vmem:[%s0 + $0x4b0] sm:$0xff]
  %v300 = vld [vmem:[%s0 + $0x4b8] sm:$0xff]
  %v301 = vld [vmem:[%s0 + $0x4c0] sm:$0xff]
  %v302 = vld [vmem:[%s0 + $0x4c8] sm:$0xff]
  %v303 = vld [vmem:[%s0 + $0x4d0] sm:$0xff]
  %v304 = vld [vmem:[%s0 + $0x4d8] sm:$0xff]
  %v305 = vld [vmem:[%s0 + $0x4e0] sm:$0xff]
  %v306 = vld [vmem:[%s0 + $0x4e8] sm:$0xff]
  %v307 = vld [vmem:[%s0 + $0x4f0] sm:$0xff]
  %v308 = vld [vmem:[%s0 + $0x4f8] sm:$0xff]
  %v309 = vld [vmem:[%s0 + $0x500] sm:$0xff]
  %v310 = vld [vmem:[%s0 + $0x508] sm:$0xff]
  %v311 = vld [vmem:[%s0 + $0x510] sm:$0xff]
  %v312 = vld [vmem:[%s0 + $0x518] sm:$0xff]
  %v313 = vld [vmem:[%s0 + $0x520] sm:$0xff]
  %v314 = vld [vmem:[%s0 + $0x528] sm:$0xff]
  %v315 = vld [vmem:[%s0 + $0x530] sm:$0xff]
  %v316 = vld [vmem:[%s0 + $0x538] sm:$0xff]
  %v317 = vld [vmem:[%s0 + $0x540] sm:$0xff]
  %v318 = vld [vmem:[%s0 + $0x548] sm:$0xff]
  %v319 = vld [vmem:[%s0 + $0x550] sm:$0xff]
  %v320 = vld [vmem:[%s0 + $0x558] sm:$0xff]
  %v321 = vld [vmem:[%s0 + $0x560] sm:$0xff]
  %v322 = vld [vmem:[%s0 + $0x568] sm:$0xff]
  %v323 = vld [vmem:[%s0 + $0x570] sm:$0xff]
  %v324 = vld [vmem:[%s0 + $0x578] sm:$0xff]
  %v325 = vld [vmem:[%s0 + $0x580] sm:$0xff]
  %v326 = vld [vmem:[%s0 + $0x588] sm:$0xff]
  %v327 = vld [vmem:[%s0 + $0x590] sm:$0xff]
  %v328 = vld [vmem:[%s0 + $0x598] sm:$0xff]
  %v329 = vld [vmem:[%s0 + $0x5a0] sm:$0xff]
  %v330 = vld [vmem:[%s0 + $0x5a8] sm:$0xff]
  %v331 = vld [vmem:[%s0 + $0x5b0] sm:$0xff]
  %v332 = vld [vmem:[%s0 + $0x5b8] sm:$0xff]
  %v333 = vld [vmem:[%s0 + $0x5c0] sm:$0xff]
  %v334 = vld [vmem:[%s0 + $0x5c8] sm:$0xff]
  %v335 = vld [vmem:[%s0 + $0x5d0] sm:$0xff]
  %v336 = vld [vmem:[%s0 + $0x5d8] sm:$0xff]
  %v337 = vld [vmem:[%s0 + $0x5e0] sm:$0xff]
  %v338 = vld [vmem:[%s0 + $0x5e8] sm:$0xff]
  %v339 = vld [vmem:[%s0 + $0x5f0] sm:$0xff]
  %v340 = vld [vmem:[%s0 + $0x5f8] sm:$0xff]
  %v341 = vld [vmem:[%s0 + $0x600] sm:$0xff]
  %v342 = vld [vmem:[%s0 + $0x608] sm:$0xff]
  %v343 = vld [vmem:[%s0 + $0x610] sm:$0xff]
  %v344 = vld [vmem:[%s0 + $0x618] sm:$0xff]
  %v345 = vld [vmem:[%s0 + $0x620] sm:$0xff]
  %v346 = vld [vmem:[%s0 + $0x628] sm:$0xff]
  %v347 = vld [vmem:[%s0 + $0x630] sm:$0xff]
  %v348 = vld [vmem:[%s0 + $0x638] sm:$0xff]
  %v349 = vld [vmem:[%s0 + $0x640] sm:$0xff]
  %v350 = vld [vmem:[%s0 + $0x648] sm:$0xff]
  %v351 = vld [vmem:[%s0 + $0x650] sm:$0xff]
  %v352 = vld [vmem:[%s0 + $0x658] sm:$0xff]
  %v353 = vld [vmem:[%s0 + $0x660] sm:$0xff]
  %v354 = vld [vmem:[%s0 + $0x668] sm:$0xff]
  %v355 = vld [vmem:[%s0 + $0x670] sm:$0xff]
  %v356 = vld [vmem:[%s0 + $0x678] sm:$0xff]
  %v357 = vld [vmem:[%s0 + $0x680] sm:$0xff]
  %v358 = vld [vmem:[%s0 + $0x688] sm:$0xff]
  %v359 = vld [vmem:[%s0 + $0x690] sm:$0xff]
  %v360 = vld [vmem:[%s0 + $0x698] sm:$0xff]
  %v361 = vld [vmem:[%s0 + $0x6a0] sm:$0xff]
  %v362 = vld [vmem:[%s0 + $0x6a8] sm:$0xff]
  %v363 = vld [vmem:[%s0 + $0x6b0] sm:$0xff]
  %v364 = vld [vmem:[%s0 + $0x6b8] sm:$0xff]
  %v365 = vld [vmem:[%s0 + $0x6c0] sm:$0xff]
  %v366 = vld [vmem:[%s0 + $0x6c8] sm:$0xff]
  %v367 = vld [vmem:[%s0 + $0x6d0] sm:$0xff]
  %v368 = vld [vmem:[%s0 + $0x6d8] sm:$0xff]
  %v369 = vld [vmem:[%s0 + $0x6e0] sm:$0xff]
  %v370 = vld [vmem:[%s0 + $0x6e8] sm:$0xff]
  %v371 = vld [vmem:[%s0 + $0x6f0] sm:$0xff]
  %v372 = vld [vmem:[%s0 + $0x6f8] sm:$0xff]
  %v373 = vld [vmem:[%s0 + $0x700] sm:$0xff]
  %v374 = vld [vmem:[%s0 + $0x708] sm:$0xff]
  %v375 = vld [vmem:[%s0 + $0x710] sm:$0xff]
  %v376 = vld [vmem:[%s0 + $0x718] sm:$0xff]
  %v377 = vld [vmem:[%s0 + $0x720] sm:$0xff]
  %v378 = vld [vmem:[%s0 + $0x728] sm:$0xff]
  %v379 = vld [vmem:[%s0 + $0x730] sm:$0xff]
  %v380 = vld [vmem:[%s0 + $0x738] sm:$0xff]
  %v381 = vld [vmem:[%s0 + $0x740] sm:$0xff]
  %v382 = vld [vmem:[%s0 + $0x748] sm:$0xff]
  %v383 = vld [vmem:[%s0 + $0x750] sm:$0xff]
  %v384 = vld [vmem:[%s0 + $0x758] sm:$0xff]
  %v385 = vld [vmem:[%s0 + $0x760] sm:$0xff]
  %v386 = vld [vmem:[%s0 + $0x768] sm:$0xff]
  %v387 = vld [vmem:[%s0 + $0x770] sm:$0xff]
  %v388 = vld [vmem:[%s0 + $0x778] sm:$0xff]
  %v389 = vld [vmem:[%s0 + $0x780] sm:$0xff]
  %v390 = vld [vmem:[%s0 + $0x788] sm:$0xff]
  %v391 = vld [vmem:[%s0 + $0x790] sm:$0xff]
  %v392 = vld [vmem:[%s0 + $0x798] sm:$0xff]
  %v393 = vld [vmem:[%s0 + $0x7a0] sm:$0xff]
  %v394 = vld [vmem:[%s0 + $0x7a8] sm:$0xff]
  %v395 = vld [vmem:[%s0 + $0x7b0] sm:$0xff]
  %v396 = vld [vmem:[%s0 + $0x7b8] sm:$0xff]
  %v397 = vld [vmem:[%s0 + $0x7c0] sm:$0xff]
  %v398 = vld [vmem:[%s0 + $0x7c8] sm:$0xff]
  %v399 = vld [vmem:[%s0 + $0x7d0] sm:$0xff]
  %v400 = vld [vmem:[%s0 + $0x7d8] sm:$0xff]
  %v401 = vld [vmem:[%s0 + $0x7e0] sm:$0xff]
  %v402 = vld [vmem:[%s0 + $0x7e8] sm:$0xff]
  %v403 = vld [vmem:[%s0 + $0x7f0] sm:$0xff]
  %v404 = vld [vmem:[%s0 + $0x7f8] sm:$0xff]
  %v405 = vld [vmem:[%s0 + $0x800] sm:$0xff]
  %v406 = vld [vmem:[%s0 + $0x808] sm:$0xff]
  %v407 = vld [vmem:[%s0 + $0x810] sm:$0xff]
  %v408 = vld [vmem:[%s0 + $0x818] sm:$0xff]
  %v409 = vld [vmem:[%s0 + $0x820] sm:$0xff]
  %v410 = vld [vmem:[%s0 + $0x828] sm:$0xff]
  %v411 = vld [vmem:[%s0 + $0x830] sm:$0xff]
  %v412 = vld [vmem:[%s0 + $0x838] sm:$0xff]
  %v413 = vld [vmem:[%s0 + $0x840] sm:$0xff]
  %v414 = vld [vmem:[%s0 + $0x848] sm:$0xff]
  %v415 = vld [vmem:[%s0 + $0x850] sm:$0xff]
  %v416 = vld [vmem:[%s0 + $0x858] sm:$0xff]
  %v417 = vld [vmem:[%s0 + $0x860] sm:$0xff]
  %v418 = vld [vmem:[%s0 + $0x868] sm:$0xff]
  %v419 = vld [vmem:[%s0 + $0x870] sm:$0xff]
  %v420 = vld [vmem:[%s0 + $0x878] sm:$0xff]
  %v421 = vld [vmem:[%s0 + $0x880] sm:$0xff]
  %v422 = vld [vmem:[%s0 + $0x888] sm:$0xff]
  %v423 = vld [vmem:[%s0 + $0x890] sm:$0xff]
  %v424 = vld [vmem:[%s0 + $0x898] sm:$0xff]
  %v425 = vld [vmem:[%s0 + $0x8a0] sm:$0xff]
  %v426 = vld [vmem:[%s0 + $0x8a8] sm:$0xff]
  %v427 = vld [vmem:[%s0 + $0x8b0] sm:$0xff]
  %v428 = vld [vmem:[%s0 + $0x8b8] sm:$0xff]
  %v429 = vld [vmem:[%s0 + $0x8c0] sm:$0xff]
  %v430 = vld [vmem:[%s0 + $0x8c8] sm:$0xff]
  %v431 = vld [vmem:[%s0 + $0x8d0] sm:$0xff]
  %v432 = vld [vmem:[%s0 + $0x8d8] sm:$0xff]
  %v433 = vld [vmem:[%s0 + $0x8e0] sm:$0xff]
  %v434 = vld [vmem:[%s0 + $0x8e8] sm:$0xff]
  %v435 = vld [vmem:[%s0 + $0x8f0] sm:$0xff]
  %v436 = vld [vmem:[%s0 + $0x8f8] sm:$0xff]
  %v437 = vld [vmem:[%s0 + $0x900] sm:$0xff]
  %v438 = vld [vmem:[%s0 + $0x908] sm:$0xff]
  %v439 = vld [vmem:[%s0 + $0x910] sm:$0xff]
  %v440 = vld [vmem:[%s0 + $0x918] sm:$0xff]
  %v441 = vld [vmem:[%s0 + $0x920] sm:$0xff]
  %v442 = vld [vmem:[%s0 + $0x928] sm:$0xff]
  %v443 = vld [vmem:[%s0 + $0x930] sm:$0xff]
  %v444 = vld [vmem:[%s0 + $0x938] sm:$0xff]
  %v445 = vld [vmem:[%s0 + $0x940] sm:$0xff]
  %v446 = vld [vmem:[%s0 + $0x948] sm:$0xff]
  %v447 = vld [vmem:[%s0 + $0x950] sm:$0xff]
  %v448 = vld [vmem:[%s0 + $0x958] sm:$0xff]
  %v449 = vld [vmem:[%s0 + $0x960] sm:$0xff]
  %v450 = vld [vmem:[%s0 + $0x968] sm:$0xff]
  %v451 = vld [vmem:[%s0 + $0x970] sm:$0xff]
  %v452 = vld [vmem:[%s0 + $0x978] sm:$0xff]
  %v453 = vld [vmem:[%s0 + $0x980] sm:$0xff]
  %v454 = vld [vmem:[%s0 + $0x988] sm:$0xff]
  %v455 = vld [vmem:[%s0 + $0x990] sm:$0xff]
  %v456 = vld [vmem:[%s0 + $0x998] sm:$0xff]
  %v457 = vld [vmem:[%s0 + $0x9a0] sm:$0xff]
  %v458 = vld [vmem:[%s0 + $0x9a8] sm:$0xff]
  %v459 = vld [vmem:[%s0 + $0x9b0] sm:$0xff]
  %v460 = vld [vmem:[%s0 + $0x9b8] sm:$0xff]
  %v461 = vld [vmem:[%s0 + $0x9c0] sm:$0xff]
  %v462 = vld [vmem:[%s0 + $0x9c8] sm:$0xff]
  %v463 = vld [vmem:[%s0 + $0x9d0] sm:$0xff]
  %v464 = vld [vmem:[%s0 + $0x9d8] sm:$0xff]
  %v465 = vld [vmem:[%s0 + $0x9e0] sm:$0xff]
  %v466 = vld [vmem:[%s0 + $0x9e8] sm:$0xff]
  %v467 = vld [vmem:[%s0 + $0x9f0] sm:$0xff]
  %v468 = vld [vmem:[%s0 + $0x9f8] sm:$0xff]
  %v469 = vld [vmem:[%s0 + $0xa00] sm:$0xff]
  %v470 = vld [vmem:[%s0 + $0xa08] sm:$0xff]
  %v471 = vld [vmem:[%s0 + $0xa10] sm:$0xff]
  %v472 = vld [vmem:[%s0 + $0xa18] sm:$0xff]
  %v473 = vld [vmem:[%s0 + $0xa20] sm:$0xff]
  %v474 = vld [vmem:[%s0 + $0xa28] sm:$0xff]
  %v475 = vld [vmem:[%s0 + $0xa30] sm:$0xff]
  %v476 = vld [vmem:[%s0 + $0xa38] sm:$0xff]
  %v477 = vld [vmem:[%s0 + $0xa40] sm:$0xff]
  %v478 = vld [vmem:[%s0 + $0xa48] sm:$0xff]
  %v479 = vld [vmem:[%s0 + $0xa50] sm:$0xff]
  %v480 = vld [vmem:[%s0 + $0xa58] sm:$0xff]
  %v481 = vld [vmem:[%s0 + $0xa60] sm:$0xff]
  %v482 = vld [vmem:[%s0 + $0xa68] sm:$0xff]
  %v483 = vld [vmem:[%s0 + $0xa70] sm:$0xff]
  %v484 = vld [vmem:[%s0 + $0xa78] sm:$0xff]
  %v485 = vld [vmem:[%s0 + $0xa80] sm:$0xff]
  %v486 = vld [vmem:[%s0 + $0xa88] sm:$0xff]
  %v487 = vld [vmem:[%s0 + $0xa90] sm:$0xff]
  %v488 = vld [vmem:[%s0 + $0xa98] sm:$0xff]
  %v489 = vld [vmem:[%s0 + $0xaa0] sm:$0xff]
  %v490 = vld [vmem:[%s0 + $0xaa8] sm:$0xff]
  %v491 = vld [vmem:[%s0 + $0xab0] sm:$0xff]
  %v492 = vld [vmem:[%s0 + $0xab8] sm:$0xff]
  %v493 = vld [vmem:[%s0 + $0xac0] sm:$0xff]
  %v494 = vld [vmem:[%s0 + $0xac8] sm:$0xff]
  %v495 = vld [vmem:[%s0 + $0xad0] sm:$0xff]
  %v496 = vld [vmem:[%s0 + $0xad8] sm:$0xff]
  %v497 = vld [vmem:[%s0 + $0xae0] sm:$0xff]
  %v498 = vld [vmem:[%s0 + $0xae8] sm:$0xff]
  %v499 = vld [vmem:[%s0 + $0xaf0] sm:$0xff]
  %v500 = vld [vmem:[%s0 + $0xaf8] sm:$0xff]
  %v501 = vld [vmem:[%s0 + $0xb00] sm:$0xff]
  %v502 = vld [vmem:[%s0 + $0xb08] sm:$0xff]
  %v503 = vld [vmem:[%s0 + $0xb10] sm:$0xff]
  %v504 = vld [vmem:[%s0 + $0xb18] sm:$0xff]
  %v505 = vld [vmem:[%s0 + $0xb20] sm:$0xff]
  %v506 = vld [vmem:[%s0 + $0xb28] sm:$0xff]
  %v507 = vld [vmem:[%s0 + $0xb30] sm:$0xff]
  %v508 = vld [vmem:[%s0 + $0xb38] sm:$0xff]
  %v509 = vld [vmem:[%s0 + $0xb40] sm:$0xff]
  %v510 = vld [vmem:[%s0 + $0xb48] sm:$0xff]
  %v511 = vld [vmem:[%s0 + $0xb50] sm:$0xff]
  %v512 = vld [vmem:[%s0 + $0xb58] sm:$0xff]
  %v513 = vld [vmem:[%s0 + $0xb60] sm:$0xff]
  %v514 = vld [vmem:[%s0 + $0xb68] sm:$0xff]
  %v515 = vld [vmem:[%s0 + $0xb70] sm:$0xff]
  %v516 = vld [vmem:[%s0 + $0xb78] sm:$0xff]
  %v517 = vld [vmem:[%s0 + $0xb80] sm:$0xff]
  %v518 = vld [vmem:[%s0 + $0xb88] sm:$0xff]
  %v519 = vld [vmem:[%s0 + $0xb90] sm:$0xff]
  %v520 = vld [vmem:[%s0 + $0xb98] sm:$0xff]
  %v521 = vld [vmem:[%s0 + $0xba0] sm:$0xff]
  %v522 = vld [vmem:[%s0 + $0xba8] sm:$0xff]
  %v523 = vld [vmem:[%s0 + $0xbb0] sm:$0xff]
  %v524 = vld [vmem:[%s0 + $0xbb8] sm:$0xff]
  %v525 = vld [vmem:[%s0 + $0xbc0] sm:$0xff]
  %v526 = vld [vmem:[%s0 + $0xbc8] sm:$0xff]
  %v527 = vld [vmem:[%s0 + $0xbd0] sm:$0xff]
  %v528 = vld [vmem:[%s0 + $0xbd8] sm:$0xff]
  %v529 = vld [vmem:[%s0 + $0xbe0] sm:$0xff]
  %v530 = vld [vmem:[%s0 + $0xbe8] sm:$0xff]
  %v531 = vld [vmem:[%s0 + $0xbf0] sm:$0xff]
  %v532 = vld [vmem:[%s0 + $0xbf8] sm:$0xff]
  %v533 = vld [vmem:[%s0 + $0xc00] sm:$0xff]
  %v534 = vld [vmem:[%s0 + $0xc08] sm:$0xff]
  %v535 = vld [vmem:[%s0 + $0xc10] sm:$0xff]
  %v536 = vld [vmem:[%s0 + $0xc18] sm:$0xff]
  %v537 = vld [vmem:[%s0 + $0xc20] sm:$0xff]
  %v538 = vld [vmem:[%s0 + $0xc28] sm:$0xff]
  %v539 = vld [vmem:[%s0 + $0xc30] sm:$0xff]
  %v540 = vld [vmem:[%s0 + $0xc38] sm:$0xff]
  %v541 = vld [vmem:[%s0 + $0xc40] sm:$0xff]
  %v542 = vld [vmem:[%s0 + $0xc48] sm:$0xff]
  %v543 = vld [vmem:[%s0 + $0xc50] sm:$0xff]
  %v544 = vld [vmem:[%s0 + $0xc58] sm:$0xff]
  %v545 = vld [vmem:[%s0 + $0xc60] sm:$0xff]
  %v546 = vld [vmem:[%s0 + $0xc68] sm:$0xff]
  %v547 = vld [vmem:[%s0 + $0xc70] sm:$0xff]
  %v548 = vld [vmem:[%s0 + $0xc78] sm:$0xff]
  %v549 = vld [vmem:[%s0 + $0xc80] sm:$0xff]
  %v550 = vld [vmem:[%s0 + $0xc88] sm:$0xff]
  %v551 = vld [vmem:[%s0 + $0xc90] sm:$0xff]
  %v552 = vld [vmem:[%s0 + $0xc98] sm:$0xff]
  %v553 = vld [vmem:[%s0 + $0xca0] sm:$0xff]
  %v554 = vld [vmem:[%s0 + $0xca8] sm:$0xff]
  %v555 = vld [vmem:[%s0 + $0xcb0] sm:$0xff]
  %v556 = vld [vmem:[%s0 + $0xcb8] sm:$0xff]
  %v557 = vld [vmem:[%s0 + $0xcc0] sm:$0xff]
  %v558 = vld [vmem:[%s0 + $0xcc8] sm:$0xff]
  %v559 = vld [vmem:[%s0 + $0xcd0] sm:$0xff]
  %v560 = vld [vmem:[%s0 + $0xcd8] sm:$0xff]
  %v561 = vld [vmem:[%s0 + $0xce0] sm:$0xff]
  %v562 = vld [vmem:[%s0 + $0xce8] sm:$0xff]
  %v563 = vld [vmem:[%s0 + $0xcf0] sm:$0xff]
  %v564 = vld [vmem:[%s0 + $0xcf8] sm:$0xff]
  %v565 = vld [vmem:[%s0 + $0xd00] sm:$0xff]
  %v566 = vld [vmem:[%s0 + $0xd08] sm:$0xff]
  %v567 = vld [vmem:[%s0 + $0xd10] sm:$0xff]
  %v568 = vld [vmem:[%s0 + $0xd18] sm:$0xff]
  %v569 = vld [vmem:[%s0 + $0xd20] sm:$0xff]
  %v570 = vld [vmem:[%s0 + $0xd28] sm:$0xff]
  %v571 = vld [vmem:[%s0 + $0xd30] sm:$0xff]
  %v572 = vld [vmem:[%s0 + $0xd38] sm:$0xff]
  %v573 = vld [vmem:[%s0 + $0xd40] sm:$0xff]
  %v574 = vld [vmem:[%s0 + $0xd48] sm:$0xff]
  %v575 = vld [vmem:[%s0 + $0xd50] sm:$0xff]
  %v576 = vld [vmem:[%s0 + $0xd58] sm:$0xff]
  %v577 = vld [vmem:[%s0 + $0xd60] sm:$0xff]
  %v578 = vld [vmem:[%s0 + $0xd68] sm:$0xff]
  %v579 = vld [vmem:[%s0 + $0xd70] sm:$0xff]
  %v580 = vld [vmem:[%s0 + $0xd78] sm:$0xff]
  %v581 = vld [vmem:[%s0 + $0xd80] sm:$0xff]
  %v582 = vld [vmem:[%s0 + $0xd88] sm:$0xff]
  %v583 = vld [vmem:[%s0 + $0xd90] sm:$0xff]
  %v584 = vld [vmem:[%s0 + $0xd98] sm:$0xff]
  %v585 = vld [vmem:[%s0 + $0xda0] sm:$0xff]
  %v586 = vld [vmem:[%s0 + $0xda8] sm:$0xff]
  %v587 = vld [vmem:[%s0 + $0xdb0] sm:$0xff]
  %v588 = vld [vmem:[%s0 + $0xdb8] sm:$0xff]
  %v589 = vld [vmem:[%s0 + $0xdc0] sm:$0xff]
  %v590 = vld [vmem:[%s0 + $0xdc8] sm:$0xff]
  %v591 = vld [vmem:[%s0 + $0xdd0] sm:$0xff]
  %v592 = vld [vmem:[%s0 + $0xdd8] sm:$0xff]
  %v593 = vld [vmem:[%s0 + $0xde0] sm:$0xff]
  %v594 = vld [vmem:[%s0 + $0xde8] sm:$0xff]
  %v595 = vld [vmem:[%s0 + $0xdf0] sm:$0xff]
  %v596 = vld [vmem:[%s0 + $0xdf8] sm:$0xff]
  %v597 = vld [vmem:[%s0 + $0xe00] sm:$0xff]
  %v598 = vld [vmem:[%s0 + $0xe08] sm:$0xff]
  %v599 = vld [vmem:[%s0 + $0xe10] sm:$0xff]
  %v600 = vld [vmem:[%s0 + $0xe18] sm:$0xff]
  %v601 = vld [vmem:[%s0 + $0xe20] sm:$0xff]
  %v602 = vld [vmem:[%s0 + $0xe28] sm:$0xff]
  %v603 = vld [vmem:[%s0 + $0xe30] sm:$0xff]
  %v604 = vld [vmem:[%s0 + $0xe38] sm:$0xff]
  %v605 = vld [vmem:[%s0 + $0xe40] sm:$0xff]
  %v606 = vld [vmem:[%s0 + $0xe48] sm:$0xff]
  %v607 = vld [vmem:[%s0 + $0xe50] sm:$0xff]
  %v608 = vld [vmem:[%s0 + $0xe58] sm:$0xff]
  %v609 = vld [vmem:[%s0 + $0xe60] sm:$0xff]
  %v610 = vld [vmem:[%s0 + $0xe68] sm:$0xff]
  %v611 = vld [vmem:[%s0 + $0xe70] sm:$0xff]
  %v612 = vld [vmem:[%s0 + $0xe78] sm:$0xff]
  %v613 = vld [vmem:[%s0 + $0xe80] sm:$0xff]
  %v614 = vld [vmem:[%s0 + $0xe88] sm:$0xff]
  %v615 = vld [vmem:[%s0 + $0xe90] sm:$0xff]
  %v616 = vld [vmem:[%s0 + $0xe98] sm:$0xff]
  %v617 = vld [vmem:[%s0 + $0xea0] sm:$0xff]
  %v618 = vld [vmem:[%s0 + $0xea8] sm:$0xff]
  %v619 = vld [vmem:[%s0 + $0xeb0] sm:$0xff]
  %v620 = vld [vmem:[%s0 + $0xeb8] sm:$0xff]
  %v621 = vld [vmem:[%s0 + $0xec0] sm:$0xff]
  %v622 = vld [vmem:[%s0 + $0xec8] sm:$0xff]
  %v623 = vld [vmem:[%s0 + $0xed0] sm:$0xff]
  %v624 = vld [vmem:[%s0 + $0xed8] sm:$0xff]
  %v625 = vld [vmem:[%s0 + $0xee0] sm:$0xff]
  %v626 = vld [vmem:[%s0 + $0xee8] sm:$0xff]
  %v627 = vld [vmem:[%s0 + $0xef0] sm:$0xff]
  %v628 = vld [vmem:[%s0 + $0xef8] sm:$0xff]
  %v629 = vld [vmem:[%s0 + $0xf00] sm:$0xff]
  %v630 = vld [vmem:[%s0 + $0xf08] sm:$0xff]
  %v631 = vld [vmem:[%s0 + $0xf10] sm:$0xff]
  %v632 = vld [vmem:[%s0 + $0xf18] sm:$0xff]
  %v633 = vld [vmem:[%s0 + $0xf20] sm:$0xff]
  %v634 = vld [vmem:[%s0 + $0xf28] sm:$0xff]
  %v635 = vld [vmem:[%s0 + $0xf30] sm:$0xff]
  %v636 = vld [vmem:[%s0 + $0xf38] sm:$0xff]
  %v637 = vld [vmem:[%s0 + $0xf40] sm:$0xff]
  %v638 = vld [vmem:[%s0 + $0xf48] sm:$0xff]
  %v639 = vld [vmem:[%s0 + $0xf50] sm:$0xff]
  %v640 = vld [vmem:[%s0 + $0xf58] sm:$0xff]
  %v641 = vld [vmem:[%s0 + $0xf60] sm:$0xff]
  %v642 = vld [vmem:[%s0 + $0xf68] sm:$0xff]
  %v643 = vld [vmem:[%s0 + $0xf70] sm:$0xff]
  %v644 = vld [vmem:[%s0 + $0xf78] sm:$0xff]
  %v645 = vld [vmem:[%s0 + $0xf80] sm:$0xff]
  %v646 = vld [vmem:[%s0 + $0xf88] sm:$0xff]
  %v647 = vld [vmem:[%s0 + $0xf90] sm:$0xff]
  %v648 = vld [vmem:[%s0 + $0xf98] sm:$0xff]
  %v649 = vld [vmem:[%s0 + $0xfa0] sm:$0xff]
  %v650 = vld [vmem:[%s0 + $0xfa8] sm:$0xff]
  %v651 = vld [vmem:[%s0 + $0xfb0] sm:$0xff]
  %v652 = vld [vmem:[%s0 + $0xfb8] sm:$0xff]
  %v653 = vld [vmem:[%s0 + $0xfc0] sm:$0xff]
  %v654 = vld [vmem:[%s0 + $0xfc8] sm:$0xff]
  %v655 = vld [vmem:[%s0 + $0xfd0] sm:$0xff]
  %v656 = vld [vmem:[%s0 + $0xfd8] sm:$0xff]
  %v657 = vld [vmem:[%s0 + $0xfe0] sm:$0xff]
  %v658 = vld [vmem:[%s0 + $0xfe8] sm:$0xff]
  %v659 = vld [vmem:[%s0 + $0xff0] sm:$0xff]
  %v660 = vld [vmem:[%s0 + $0xff8] sm:$0xff]
  %v661 = vld [vmem:[%s0 + $0x1000] sm:$0xff]
  %v662 = vld [vmem:[%s0 + $0x1008] sm:$0xff]
  %v663 = vld [vmem:[%s0 + $0x1010] sm:$0xff]
  %v664 = vld [vmem:[%s0 + $0x1018] sm:$0xff]
  %v665 = vld [vmem:[%s0 + $0x1020] sm:$0xff]
  %v666 = vld [vmem:[%s0 + $0x1028] sm:$0xff]
  %v667 = vld [vmem:[%s0 + $0x1030] sm:$0xff]
  %v668 = vld [vmem:[%s0 + $0x1038] sm:$0xff]
  %v669 = vld [vmem:[%s0 + $0x1040] sm:$0xff]
  %v670 = vld [vmem:[%s0 + $0x1048] sm:$0xff]
  %v671 = vld [vmem:[%s0 + $0x1050] sm:$0xff]
  %v672 = vld [vmem:[%s0 + $0x1058] sm:$0xff]
  %v673 = vld [vmem:[%s0 + $0x1060] sm:$0xff]
  %v674 = vld [vmem:[%s0 + $0x1068] sm:$0xff]
  %v675 = vld [vmem:[%s0 + $0x1070] sm:$0xff]
  %v676 = vld [vmem:[%s0 + $0x1078] sm:$0xff]
  %v677 = vld [vmem:[%s0 + $0x1080] sm:$0xff]
  %v678 = vld [vmem:[%s0 + $0x1088] sm:$0xff]
  %v679 = vld [vmem:[%s0 + $0x1090] sm:$0xff]
  %v680 = vld [vmem:[%s0 + $0x1098] sm:$0xff]
  %v681 = vld [vmem:[%s0 + $0x10a0] sm:$0xff]
  %v682 = vld [vmem:[%s0 + $0x10a8] sm:$0xff]
  %v683 = vld [vmem:[%s0 + $0x10b0] sm:$0xff]
  %v684 = vld [vmem:[%s0 + $0x10b8] sm:$0xff]
  %v685 = vld [vmem:[%s0 + $0x10c0] sm:$0xff]
  %v686 = vld [vmem:[%s0 + $0x10c8] sm:$0xff]
  %v687 = vld [vmem:[%s0 + $0x10d0] sm:$0xff]
  %v688 = vld [vmem:[%s0 + $0x10d8] sm:$0xff]
  %v689 = vld [vmem:[%s0 + $0x10e0] sm:$0xff]
  %v690 = vld [vmem:[%s0 + $0x10e8] sm:$0xff]
  %v691 = vld [vmem:[%s0 + $0x10f0] sm:$0xff]
  %v692 = vld [vmem:[%s0 + $0x10f8] sm:$0xff]
  %v693 = vld [vmem:[%s0 + $0x1100] sm:$0xff]
  %v694 = vld [vmem:[%s0 + $0x1108] sm:$0xff]
  %v695 = vld [vmem:[%s0 + $0x1110] sm:$0xff]
  %v696 = vld [vmem:[%s0 + $0x1118] sm:$0xff]
  %v697 = vld [vmem:[%s0 + $0x1120] sm:$0xff]
  %v698 = vld [vmem:[%s0 + $0x1128] sm:$0xff]
  %v699 = vld [vmem:[%s0 + $0x1130] sm:$0xff]
  %v700 = vld [vmem:[%s0 + $0x1138] sm:$0xff]
  %v701 = vld [vmem:[%s0 + $0x1140] sm:$0xff]
  %v702 = vld [vmem:[%s0 + $0x1148] sm:$0xff]
  %v703 = vld [vmem:[%s0 + $0x1150] sm:$0xff]
  %v704 = vld [vmem:[%s0 + $0x1158] sm:$0xff]
  %v705 = vld [vmem:[%s0 + $0x1160] sm:$0xff]
  %v706 = vld [vmem:[%s0 + $0x1168] sm:$0xff]
  %v707 = vld [vmem:[%s0 + $0x1170] sm:$0xff]
  %v708 = vld [vmem:[%s0 + $0x1178] sm:$0xff]
  %v709 = vld [vmem:[%s0 + $0x1180] sm:$0xff]
  %v710 = vld [vmem:[%s0 + $0x1188] sm:$0xff]
  %v711 = vld [vmem:[%s0 + $0x1190] sm:$0xff]
  %v712 = vld [vmem:[%s0 + $0x1198] sm:$0xff]
  %v713 = vld [vmem:[%s0 + $0x11a0] sm:$0xff]
  %v714 = vld [vmem:[%s0 + $0x11a8] sm:$0xff]
  %v715 = vld [vmem:[%s0 + $0x11b0] sm:$0xff]
  %v716 = vld [vmem:[%s0 + $0x11b8] sm:$0xff]
  %v717 = vld [vmem:[%s0 + $0x11c0] sm:$0xff]
  %v718 = vld [vmem:[%s0 + $0x11c8] sm:$0xff]
  %v719 = vld [vmem:[%s0 + $0x11d0] sm:$0xff]
  %v720 = vld [vmem:[%s0 + $0x11d8] sm:$0xff]
  %v721 = vld [vmem:[%s0 + $0x11e0] sm:$0xff]
  %v722 = vld [vmem:[%s0 + $0x11e8] sm:$0xff]
  %v723 = vld [vmem:[%s0 + $0x11f0] sm:$0xff]
  %v724 = vld [vmem:[%s0 + $0x11f8] sm:$0xff]
  %v725 = vld [vmem:[%s1] sm:$0xff]
  %v726 = vld [vmem:[%s1 + $0x8] sm:$0xff]
  %v727 = vld [vmem:[%s1 + $0x10] sm:$0xff]
  %v728 = vld [vmem:[%s1 + $0x18] sm:$0xff]
  %v729 = vld [vmem:[%s1 + $0x20] sm:$0xff]
  %v730 = vld [vmem:[%s1 + $0x28] sm:$0xff]
  %v731 = vld [vmem:[%s1 + $0x30] sm:$0xff]
  %v732 = vld [vmem:[%s1 + $0x38] sm:$0xff]
  %v733 = vld [vmem:[%s1 + $0x40] sm:$0xff]
  %v734 = vld [vmem:[%s1 + $0x48] sm:$0xff]
  %v735 = vld [vmem:[%s1 + $0x50] sm:$0xff]
  %v736 = vld [vmem:[%s1 + $0x58] sm:$0xff]
  %v737 = vld [vmem:[%s1 + $0x60] sm:$0xff]
  %v738 = vld [vmem:[%s1 + $0x68] sm:$0xff]
  %v739 = vld [vmem:[%s1 + $0x70] sm:$0xff]
  %v740 = vld [vmem:[%s1 + $0x78] sm:$0xff]
  %v741 = vld [vmem:[%s1 + $0x80] sm:$0xff]
  %v742 = vld [vmem:[%s1 + $0x88] sm:$0xff]
  %v743 = vld [vmem:[%s1 + $0x90] sm:$0xff]
  %v744 = vld [vmem:[%s1 + $0x98] sm:$0xff]
  %v745 = vld [vmem:[%s1 + $0xa0] sm:$0xff]
  %v746 = vld [vmem:[%s1 + $0xa8] sm:$0xff]
  %v747 = vld [vmem:[%s1 + $0xb0] sm:$0xff]
  %v748 = vld [vmem:[%s1 + $0xb8] sm:$0xff]
  %v749 = vld [vmem:[%s1 + $0xc0] sm:$0xff]
  %v750 = vld [vmem:[%s1 + $0xc8] sm:$0xff]
  %v751 = vld [vmem:[%s1 + $0xd0] sm:$0xff]
  %v752 = vld [vmem:[%s1 + $0xd8] sm:$0xff]
  %v753 = vld [vmem:[%s1 + $0xe0] sm:$0xff]
  %v754 = vld [vmem:[%s1 + $0xe8] sm:$0xff]
  %v755 = vld [vmem:[%s1 + $0xf0] sm:$0xff]
  %v756 = vld [vmem:[%s1 + $0xf8] sm:$0xff]
  %v757 = vld [vmem:[%s1 + $0x100] sm:$0xff]
  %v758 = vld [vmem:[%s1 + $0x108] sm:$0xff]
  %v759 = vld [vmem:[%s1 + $0x110] sm:$0xff]
  %v760 = vld [vmem:[%s1 + $0x118] sm:$0xff]
  %v761 = vld [vmem:[%s1 + $0x120] sm:$0xff]
  %v762 = vld [vmem:[%s1 + $0x128] sm:$0xff]
  %v763 = vld [vmem:[%s1 + $0x130] sm:$0xff]
  %v764 = vld [vmem:[%s1 + $0x138] sm:$0xff]
  %v765 = vld [vmem:[%s1 + $0x140] sm:$0xff]
  %v766 = vld [vmem:[%s1 + $0x148] sm:$0xff]
  %v767 = vld [vmem:[%s1 + $0x150] sm:$0xff]
  %v768 = vld [vmem:[%s1 + $0x158] sm:$0xff]
  %v769 = vld [vmem:[%s1 + $0x160] sm:$0xff]
  %v770 = vld [vmem:[%s1 + $0x168] sm:$0xff]
  %v771 = vld [vmem:[%s1 + $0x170] sm:$0xff]
  %v772 = vld [vmem:[%s1 + $0x178] sm:$0xff]
  %v773 = vld [vmem:[%s1 + $0x180] sm:$0xff]
  %v774 = vld [vmem:[%s1 + $0x188] sm:$0xff]
  %v775 = vld [vmem:[%s1 + $0x190] sm:$0xff]
  %v776 = vld [vmem:[%s1 + $0x198] sm:$0xff]
  %v777 = vld [vmem:[%s1 + $0x1a0] sm:$0xff]
  %v778 = vld [vmem:[%s1 + $0x1a8] sm:$0xff]
  %v779 = vld [vmem:[%s1 + $0x1b0] sm:$0xff]
  %v780 = vld [vmem:[%s1 + $0x1b8] sm:$0xff]
  %v781 = vld [vmem:[%s1 + $0x1c0] sm:$0xff]
  %v782 = vld [vmem:[%s1 + $0x1c8] sm:$0xff]
  %v783 = vld [vmem:[%s1 + $0x1d0] sm:$0xff]
  %v784 = vld [vmem:[%s1 + $0x1d8] sm:$0xff]
  %v785 = vld [vmem:[%s1 + $0x1e0] sm:$0xff]
  %v786 = vld [vmem:[%s1 + $0x1e8] sm:$0xff]
  %v787 = vld [vmem:[%s1 + $0x1f0] sm:$0xff]
  %v788 = vld [vmem:[%s1 + $0x1f8] sm:$0xff]
  %v789 = vld [vmem:[%s1 + $0x200] sm:$0xff]
  %v790 = vld [vmem:[%s1 + $0x208] sm:$0xff]
  %v791 = vld [vmem:[%s1 + $0x210] sm:$0xff]
  %v792 = vld [vmem:[%s1 + $0x218] sm:$0xff]
  %v793 = vld [vmem:[%s1 + $0x220] sm:$0xff]
  %v794 = vld [vmem:[%s1 + $0x228] sm:$0xff]
  %v795 = vld [vmem:[%s1 + $0x230] sm:$0xff]
  %v796 = vld [vmem:[%s1 + $0x238] sm:$0xff]
  %v797 = vld [vmem:[%s1 + $0x240] sm:$0xff]
  %v798 = vld [vmem:[%s1 + $0x248] sm:$0xff]
  %v799 = vld [vmem:[%s1 + $0x250] sm:$0xff]
  %v800 = vld [vmem:[%s1 + $0x258] sm:$0xff]
  %v801 = vld [vmem:[%s1 + $0x260] sm:$0xff]
  %v802 = vld [vmem:[%s1 + $0x268] sm:$0xff]
  %v803 = vld [vmem:[%s1 + $0x270] sm:$0xff]
  %v804 = vld [vmem:[%s1 + $0x278] sm:$0xff]
  %v805 = vld [vmem:[%s1 + $0x280] sm:$0xff]
  %v806 = vld [vmem:[%s1 + $0x288] sm:$0xff]
  %v807 = vld [vmem:[%s1 + $0x290] sm:$0xff]
  %v808 = vld [vmem:[%s1 + $0x298] sm:$0xff]
  %v809 = vld [vmem:[%s1 + $0x2a0] sm:$0xff]
  %v810 = vld [vmem:[%s1 + $0x2a8] sm:$0xff]
  %v811 = vld [vmem:[%s1 + $0x2b0] sm:$0xff]
  %v812 = vld [vmem:[%s1 + $0x2b8] sm:$0xff]
  %v813 = vld [vmem:[%s1 + $0x2c0] sm:$0xff]
  %v814 = vld [vmem:[%s1 + $0x2c8] sm:$0xff]
  %v815 = vld [vmem:[%s1 + $0x2d0] sm:$0xff]
  %v816 = vld [vmem:[%s1 + $0x2d8] sm:$0xff]
  %v817 = vld [vmem:[%s1 + $0x2e0] sm:$0xff]
  %v818 = vld [vmem:[%s1 + $0x2e8] sm:$0xff]
  %v819 = vld [vmem:[%s1 + $0x2f0] sm:$0xff]
  %v820 = vld [vmem:[%s1 + $0x2f8] sm:$0xff]
  %v821 = vld [vmem:[%s1 + $0x300] sm:$0xff]
  %v822 = vld [vmem:[%s1 + $0x308] sm:$0xff]
  %v823 = vld [vmem:[%s1 + $0x310] sm:$0xff]
  %v824 = vld [vmem:[%s1 + $0x318] sm:$0xff]
  %v825 = vld [vmem:[%s1 + $0x320] sm:$0xff]
  %v826 = vld [vmem:[%s1 + $0x328] sm:$0xff]
  %v827 = vld [vmem:[%s1 + $0x330] sm:$0xff]
  %v828 = vld [vmem:[%s1 + $0x338] sm:$0xff]
  %v829 = vld [vmem:[%s1 + $0x340] sm:$0xff]
  %v830 = vld [vmem:[%s1 + $0x348] sm:$0xff]
  %v831 = vld [vmem:[%s1 + $0x350] sm:$0xff]
  %v832 = vld [vmem:[%s1 + $0x358] sm:$0xff]
  %v833 = vld [vmem:[%s1 + $0x360] sm:$0xff]
  %v834 = vld [vmem:[%s1 + $0x368] sm:$0xff]
  %v835 = vld [vmem:[%s1 + $0x370] sm:$0xff]
  %v836 = vld [vmem:[%s1 + $0x378] sm:$0xff]
  %v837 = vld [vmem:[%s1 + $0x380] sm:$0xff]
  %v838 = vld [vmem:[%s1 + $0x388] sm:$0xff]
  %v839 = vld [vmem:[%s1 + $0x390] sm:$0xff]
  %v840 = vld [vmem:[%s1 + $0x398] sm:$0xff]
  %v841 = vld [vmem:[%s1 + $0x3a0] sm:$0xff]
  %v842 = vld [vmem:[%s1 + $0x3a8] sm:$0xff]
  %v843 = vld [vmem:[%s1 + $0x3b0] sm:$0xff]
  %v844 = vld [vmem:[%s1 + $0x3b8] sm:$0xff]
  %v845 = vld [vmem:[%s1 + $0x3c0] sm:$0xff]
  %v846 = vld [vmem:[%s1 + $0x3c8] sm:$0xff]
  %v847 = vld [vmem:[%s1 + $0x3d0] sm:$0xff]
  %v848 = vld [vmem:[%s1 + $0x3d8] sm:$0xff]
  %v849 = vld [vmem:[%s1 + $0x3e0] sm:$0xff]
  %v850 = vld [vmem:[%s1 + $0x3e8] sm:$0xff]
  %v851 = vld [vmem:[%s1 + $0x3f0] sm:$0xff]
  %v852 = vld [vmem:[%s1 + $0x3f8] sm:$0xff]
  %v853 = vld [vmem:[%s1 + $0x400] sm:$0xff]
  %v854 = vld [vmem:[%s1 + $0x408] sm:$0xff]
  %v855 = vld [vmem:[%s1 + $0x410] sm:$0xff]
  %v856 = vld [vmem:[%s1 + $0x418] sm:$0xff]
  %v857 = vld [vmem:[%s1 + $0x420] sm:$0xff]
  %v858 = vld [vmem:[%s1 + $0x428] sm:$0xff]
  %v859 = vld [vmem:[%s1 + $0x430] sm:$0xff]
  %v860 = vld [vmem:[%s1 + $0x438] sm:$0xff]
  %v861 = vld [vmem:[%s1 + $0x440] sm:$0xff]
  %v862 = vld [vmem:[%s1 + $0x448] sm:$0xff]
  %v863 = vld [vmem:[%s1 + $0x450] sm:$0xff]
  %v864 = vld [vmem:[%s1 + $0x458] sm:$0xff]
  %v865 = vld [vmem:[%s1 + $0x460] sm:$0xff]
  %v866 = vld [vmem:[%s1 + $0x468] sm:$0xff]
  %v867 = vld [vmem:[%s1 + $0x470] sm:$0xff]
  %v868 = vld [vmem:[%s1 + $0x478] sm:$0xff]
  %869 = vmatprep.subr.mxu0 0.0
  %870 = vmatpush1.msra.mxu0 %v725
  %871 = vmatprep.subr.mxu0 0.0
  %872 = vmatpush1.msra.mxu0 %v726
  %873 = vmatprep.subr.mxu0 0.0
  %874 = vmatpush1.msra.mxu0 %v727
  %875 = vmatprep.subr.mxu0 0.0
  %876 = vmatpush1.msra.mxu0 %v728
  %877 = vmatprep.subr.mxu0 0.0
  %878 = vmatpush1.msra.mxu0 %v729
  %879 = vmatprep.subr.mxu0 0.0
  %880 = vmatpush1.msra.mxu0 %v730
  %881 = vmatprep.subr.mxu0 0.0
  %882 = vmatpush1.msra.mxu0 %v731
  %883 = vmatprep.subr.mxu0 0.0
  %884 = vmatpush1.msra.mxu0 %v732
  %885 = vmatprep.subr.mxu0 0.0
  %886 = vmatpush1.msra.mxu0 %v733
  %887 = vmatprep.subr.mxu0 0.0
  %888 = vmatpush1.msra.mxu0 %v734
  %889 = vmatprep.subr.mxu0 0.0
  %890 = vmatpush1.msra.mxu0 %v735
  %891 = vmatprep.subr.mxu0 0.0
  %892 = vmatpush1.msra.mxu0 %v736
  %893 = vmatprep.subr.mxu0 0.0
  %894 = vmatpush1.msra.mxu0 %v737
  %895 = vmatprep.subr.mxu0 0.0
  %896 = vmatpush1.msra.mxu0 %v738
  %897 = vmatprep.subr.mxu0 0.0
  %898 = vmatpush1.msra.mxu0 %v739
  %899 = vmatprep.subr.mxu0 0.0
  %900 = vmatpush1.msra.mxu0 %v740
  %901 = vmatprep.subr.mxu0 0.0
  %902 = vmatpush1.msra.mxu0 %v741
  %903 = vmatprep.subr.mxu0 0.0
  %904 = vmatpush1.msra.mxu0 %v742
  %905 = vmatprep.subr.mxu0 0.0
  %906 = vmatpush1.msra.mxu0 %v743
  %907 = vmatprep.subr.mxu0 0.0
  %908 = vmatpush1.msra.mxu0 %v744
  %909 = vmatprep.subr.mxu0 0.0
  %910 = vmatpush1.msra.mxu0 %v745
  %911 = vmatprep.subr.mxu0 0.0
  %912 = vmatpush1.msra.mxu0 %v746
  %913 = vmatprep.subr.mxu0 0.0
  %914 = vmatpush1.msra.mxu0 %v747
  %915 = vmatprep.subr.mxu0 0.0
  %916 = vmatpush1.msra.mxu0 %v748
  %917 = vmatprep.subr.mxu0 0.0
  %918 = vmatpush1.msra.mxu0 %v749
  %919 = vmatprep.subr.mxu0 0.0
  %920 = vmatpush1.msra.mxu0 %v750
  %921 = vmatprep.subr.mxu0 0.0
  %922 = vmatpush1.msra.mxu0 %v751
  %923 = vmatprep.subr.mxu0 0.0
  %924 = vmatpush1.msra.mxu0 %v752
  %925 = vmatprep.subr.mxu0 0.0
  %926 = vmatpush1.msra.mxu0 %v753
  %927 = vmatprep.subr.mxu0 0.0
  %928 = vmatpush1.msra.mxu0 %v754
  %929 = vmatprep.subr.mxu0 0.0
  %930 = vmatpush1.msra.mxu0 %v755
  %931 = vmatprep.subr.mxu0 0.0
  %932 = vmatpush1.msra.mxu0 %v756
  %933 = vmatprep.mubr.f32.mxu0 %v150
  %934 = vmatmul.mubr.f32.gmra.mrb[0].mxu0 %v149
  %v935 = vpop.f32.mrb[0].mxu0
  %v936 = vadd.f32 0.0, %v935
  %v937 = vpop.f32.mrb[0].mxu0
  %938 = vmatprep.mubr.f32.mxu0 %v159
  %939 = vmatmul.mubr.f32.gmra.mrb[0].mxu0 %v158
  %v940 = vpop.f32.mrb[0].mxu0
  %v941 = vadd.f32 0.0, %v940
  %v942 = vpop.f32.mrb[0].mxu0
  %943 = vmatprep.mubr.f32.mxu0 %v168
  %944 = vmatmul.mubr.f32.gmra.mrb[0].mxu0 %v167
  %v945 = vpop.f32.mrb[0].mxu0
  %v946 = vadd.f32 0.0, %v945
  %v947 = vpop.f32.mrb[0].mxu0
  %948 = vmatprep.mubr.f32.mxu0 %v177
  %949 = vmatmul.mubr.f32.gmra.mrb[0].mxu0 %v176
  %v950 = vpop.f32.mrb[0].mxu0
  %v951 = vadd.f32 0.0, %v950
  %v952 = vpop.f32.mrb[0].mxu0
  %953 = vmatprep.mubr.f32.mxu0 %v186
  %954 = vmatmul.mubr.f32.gmra.mrb[0].mxu0 %v185
  %v955 = vpop.f32.mrb[0].mxu0
  %v956 = vadd.f32 0.0, %v955
  %v957 = vpop.f32.mrb[0].mxu0
  %958 = vmatprep.mubr.f32.mxu0 %v195
  %959 = vmatmul.mubr.f32.gmra.mrb[0].mxu0 %v194
  %v960 = vpop.f32.mrb[0].mxu0
  %v961 = vadd.f32 0.0, %v960
  %v962 = vpop.f32.mrb[0].mxu0
  %963 = vmatprep.mubr.f32.mxu0 %v204
  %964 = vmatmul.mubr.f32.gmra.mrb[0].mxu0 %v203
  %v965 = vpop.f32.mrb[0].mxu0
  %v966 = vadd.f32 0.0, %v965
  %v967 = vpop.f32.mrb[0].mxu0
  %968 = vmatprep.mubr.f32.mxu0 %v213
  %969 = vmatmul.mubr.f32.gmra.mrb[0].mxu0 %v212
  %v970 = vpop.f32.mrb[0].mxu0
  %v971 = vadd.f32 0.0, %v970
  %v972 = vpop.f32.mrb[0].mxu0
  %973 = vmatprep.mubr.f32.mxu0 %v222
  %974 = vmatmul.mubr.f32.gmra.mrb[0].mxu0 %v221
  %v975 = vpop.f32.mrb[0].mxu0
  %v976 = vadd.f32 0.0, %v975
  %v977 = vpop.f32.mrb[0].mxu0
  %978 = vmatprep.mubr.f32.mxu0 %v231
  %979 = vmatmul.mubr.f32.gmra.mrb[0].mxu0 %v230
  %v980 = vpop.f32.mrb[0].mxu0
  %v981 = vadd.f32 0.0, %v980
  %v982 = vpop.f32.mrb[0].mxu0
  %983 = vmatprep.mubr.f32.mxu0 %v240
  %984 = vmatmul.mubr.f32.gmra.mrb[0].mxu0 %v239
  %v985 = vpop.f32.mrb[0].mxu0
  %v986 = vadd.f32 0.0, %v985
  %v987 = vpop.f32.mrb[0].mxu0
  %988 = vmatprep.mubr.f32.mxu0 %v249
  %989 = vmatmul.mubr.f32.gmra.mrb[0].mxu0 %v248
  %v990 = vpop.f32.mrb[0].mxu0
  %v991 = vadd.f32 0.0, %v990
  %v992 = vpop.f32.mrb[0].mxu0
  %993 = vmatprep.mubr.f32.mxu0 %v258
  %994 = vmatmul.mubr.f32.gmra.mrb[0].mxu0 %v257
  %v995 = vpop.f32.mrb[0].mxu0
  %v996 = vadd.f32 0.0, %v995
  %v997 = vpop.f32.mrb[0].mxu0
  %998 = vmatprep.mubr.f32.mxu0 %v267
  %999 = vmatmul.mubr.f32.gmra.mrb[0].mxu0 %v266
  %v1000 = vpop.f32.mrb[0].mxu0
  %v1001 = vadd.f32 0.0, %v1000
  %v1002 = vpop.f32.mrb[0].mxu0
  %1003 = vmatprep.mubr.f32.mxu0 %v276
  %1004 = vmatmul.mubr.f32.gmra.mrb[0].mxu0 %v275
  %v1005 = vpop.f32.mrb[0].mxu0
  %v1006 = vadd.f32 0.0, %v1005
  %v1007 = vpop.f32.mrb[0].mxu0
  %1008 = vmatprep.mubr.f32.mxu0 %v285
  %1009 = vmatmul.mubr.f32.gmra.mrb[0].mxu0 %v284
  %v1010 = vpop.f32.mrb[0].mxu0
  %v1011 = vadd.f32 0.0, %v1010
  %v1012 = vpop.f32.mrb[0].mxu0
  %1013 = vmatprep.mubr.f32.mxu0 %v294
  %1014 = vmatmul.mubr.f32.gmra.mrb[0].mxu0 %v293
  %v1015 = vpop.f32.mrb[0].mxu0
  %v1016 = vadd.f32 0.0, %v1015
  %v1017 = vpop.f32.mrb[0].mxu0
  %1018 = vmatprep.mubr.f32.mxu0 %v303
  %1019 = vmatmul.mubr.f32.gmra.mrb[0].mxu0 %v302
  %v1020 = vpop.f32.mrb[0].mxu0
  %v1021 = vadd.f32 0.0, %v1020
  %v1022 = vpop.f32.mrb[0].mxu0
  %1023 = vmatprep.mubr.f32.mxu0 %v312
  %1024 = vmatmul.mubr.f32.gmra.mrb[0].mxu0 %v311
  %v1025 = vpop.f32.mrb[0].mxu0
  %v1026 = vadd.f32 0.0, %v1025
  %v1027 = vpop.f32.mrb[0].mxu0
  %1028 = vmatprep.mubr.f32.mxu0 %v321
  %1029 = vmatmul.mubr.f32.gmra.mrb[0].mxu0 %v320
  %v1030 = vpop.f32.mrb[0].mxu0
  %v1031 = vadd.f32 0.0, %v1030
  %v1032 = vpop.f32.mrb[0].mxu0
  %1033 = vmatprep.mubr.f32.mxu0 %v330
  %1034 = vmatmul.mubr.f32.gmra.mrb[0].mxu0 %v329
  %v1035 = vpop.f32.mrb[0].mxu0
  %v1036 = vadd.f32 0.0, %v1035
  %v1037 = vpop.f32.mrb[0].mxu0
  %1038 = vmatprep.mubr.f32.mxu0 %v339
  %1039 = vmatmul.mubr.f32.gmra.mrb[0].mxu0 %v338
  %v1040 = vpop.f32.mrb[0].mxu0
  %v1041 = vadd.f32 0.0, %v1040
  %v1042 = vpop.f32.mrb[0].mxu0
  %1043 = vmatprep.mubr.f32.mxu0 %v348
  %1044 = vmatmul.mubr.f32.gmra.mrb[0].mxu0 %v347
  %v1045 = vpop.f32.mrb[0].mxu0
  %v1046 = vadd.f32 0.0, %v1045
  %v1047 = vpop.f32.mrb[0].mxu0
  %1048 = vmatprep.mubr.f32.mxu0 %v357
  %1049 = vmatmul.mubr.f32.gmra.mrb[0].mxu0 %v356
  %v1050 = vpop.f32.mrb[0].mxu0
  %v1051 = vadd.f32 0.0, %v1050
  %v1052 = vpop.f32.mrb[0].mxu0
  %1053 = vmatprep.mubr.f32.mxu0 %v366
  %1054 = vmatmul.mubr.f32.gmra.mrb[0].mxu0 %v365
  %v1055 = vpop.f32.mrb[0].mxu0
  %v1056 = vadd.f32 0.0, %v1055
  %v1057 = vpop.f32.mrb[0].mxu0
  %1058 = vmatprep.mubr.f32.mxu0 %v375
  %1059 = vmatmul.mubr.f32.gmra.mrb[0].mxu0 %v374
  %v1060 = vpop.f32.mrb[0].mxu0
  %v1061 = vadd.f32 0.0, %v1060
  %v1062 = vpop.f32.mrb[0].mxu0
  %1063 = vmatprep.mubr.f32.mxu0 %v384
  %1064 = vmatmul.mubr.f32.gmra.mrb[0].mxu0 %v383
  %v1065 = vpop.f32.mrb[0].mxu0
  %v1066 = vadd.f32 0.0, %v1065
  %v1067 = vpop.f32.mrb[0].mxu0
  %1068 = vmatprep.mubr.f32.mxu0 %v393
  %1069 = vmatmul.mubr.f32.gmra.mrb[0].mxu0 %v392
  %v1070 = vpop.f32.mrb[0].mxu0
  %v1071 = vadd.f32 0.0, %v1070
  %v1072 = vpop.f32.mrb[0].mxu0
  %1073 = vmatprep.mubr.f32.mxu0 %v402
  %1074 = vmatmul.mubr.f32.gmra.mrb[0].mxu0 %v401
  %v1075 = vpop.f32.mrb[0].mxu0
  %v1076 = vadd.f32 0.0, %v1075
  %v1077 = vpop.f32.mrb[0].mxu0
  %1078 = vmatprep.mubr.f32.mxu0 %v411
  %1079 = vmatmul.mubr.f32.gmra.mrb[0].mxu0 %v410
  %v1080 = vpop.f32.mrb[0].mxu0
  %v1081 = vadd.f32 0.0, %v1080
  %v1082 = vpop.f32.mrb[0].mxu0
  %1083 = vmatprep.mubr.f32.mxu0 %v420
  %1084 = vmatmul.mubr.f32.gmra.mrb[0].mxu0 %v419
  %v1085 = vpop.f32.mrb[0].mxu0
  %v1086 = vadd.f32 0.0, %v1085
  %v1087 = vpop.f32.mrb[0].mxu0
  %1088 = vmatprep.mubr.f32.mxu0 %v429
  %1089 = vmatmul.mubr.f32.gmra.mrb[0].mxu0 %v428
  %v1090 = vpop.f32.mrb[0].mxu0
  %v1091 = vadd.f32 0.0, %v1090
  %v1092 = vpop.f32.mrb[0].mxu0
  %1093 = vmatprep.mubr.f32.mxu0 %v438
  %1094 = vmatmul.mubr.f32.gmra.mrb[0].mxu0 %v437
  %v1095 = vpop.f32.mrb[0].mxu0
  %v1096 = vadd.f32 0.0, %v1095
  %v1097 = vpop.f32.mrb[0].mxu0
  %1098 = vmatprep.mubr.f32.mxu0 %v447
  %1099 = vmatmul.mubr.f32.gmra.mrb[0].mxu0 %v446
  %v1100 = vpop.f32.mrb[0].mxu0
  %v1101 = vadd.f32 0.0, %v1100
  %v1102 = vpop.f32.mrb[0].mxu0
  %1103 = vmatprep.mubr.f32.mxu0 %v456
  %1104 = vmatmul.mubr.f32.gmra.mrb[0].mxu0 %v455
  %v1105 = vpop.f32.mrb[0].mxu0
  %v1106 = vadd.f32 0.0, %v1105
  %v1107 = vpop.f32.mrb[0].mxu0
  %1108 = vmatprep.mubr.f32.mxu0 %v465
  %1109 = vmatmul.mubr.f32.gmra.mrb[0].mxu0 %v464
  %v1110 = vpop.f32.mrb[0].mxu0
  %v1111 = vadd.f32 0.0, %v1110
  %v1112 = vpop.f32.mrb[0].mxu0
  %1113 = vmatprep.mubr.f32.mxu0 %v474
  %1114 = vmatmul.mubr.f32.gmra.mrb[0].mxu0 %v473
  %v1115 = vpop.f32.mrb[0].mxu0
  %v1116 = vadd.f32 0.0, %v1115
  %v1117 = vpop.f32.mrb[0].mxu0
  %1118 = vmatprep.mubr.f32.mxu0 %v483
  %1119 = vmatmul.mubr.f32.gmra.mrb[0].mxu0 %v482
  %v1120 = vpop.f32.mrb[0].mxu0
  %v1121 = vadd.f32 0.0, %v1120
  %v1122 = vpop.f32.mrb[0].mxu0
  %1123 = vmatprep.mubr.f32.mxu0 %v492
  %1124 = vmatmul.mubr.f32.gmra.mrb[0].mxu0 %v491
  %v1125 = vpop.f32.mrb[0].mxu0
  %v1126 = vadd.f32 0.0, %v1125
  %v1127 = vpop.f32.mrb[0].mxu0
  %1128 = vmatprep.mubr.f32.mxu0 %v501
  %1129 = vmatmul.mubr.f32.gmra.mrb[0].mxu0 %v500
  %v1130 = vpop.f32.mrb[0].mxu0
  %v1131 = vadd.f32 0.0, %v1130
  %v1132 = vpop.f32.mrb[0].mxu0
  %1133 = vmatprep.mubr.f32.mxu0 %v510
  %1134 = vmatmul.mubr.f32.gmra.mrb[0].mxu0 %v509
  %v1135 = vpop.f32.mrb[0].mxu0
  %v1136 = vadd.f32 0.0, %v1135
  %v1137 = vpop.f32.mrb[0].mxu0
  %1138 = vmatprep.mubr.f32.mxu0 %v519
  %1139 = vmatmul.mubr.f32.gmra.mrb[0].mxu0 %v518
  %v1140 = vpop.f32.mrb[0].mxu0
  %v1141 = vadd.f32 0.0, %v1140
  %v1142 = vpop.f32.mrb[0].mxu0
  %1143 = vmatprep.mubr.f32.mxu0 %v528
  %1144 = vmatmul.mubr.f32.gmra.mrb[0].mxu0 %v527
  %v1145 = vpop.f32.mrb[0].mxu0
  %v1146 = vadd.f32 0.0, %v1145
  %v1147 = vpop.f32.mrb[0].mxu0
  %1148 = vmatprep.mubr.f32.mxu0 %v537
  %1149 = vmatmul.mubr.f32.gmra.mrb[0].mxu0 %v536
  %v1150 = vpop.f32.mrb[0].mxu0
  %v1151 = vadd.f32 0.0, %v1150
  %v1152 = vpop.f32.mrb[0].mxu0
  %1153 = vmatprep.mubr.f32.mxu0 %v546
  %1154 = vmatmul.mubr.f32.gmra.mrb[0].mxu0 %v545
  %v1155 = vpop.f32.mrb[0].mxu0
  %v1156 = vadd.f32 0.0, %v1155
  %v1157 = vpop.f32.mrb[0].mxu0
  %1158 = vmatprep.mubr.f32.mxu0 %v555
  %1159 = vmatmul.mubr.f32.gmra.mrb[0].mxu0 %v554
  %v1160 = vpop.f32.mrb[0].mxu0
  %v1161 = vadd.f32 0.0, %v1160
  %v1162 = vpop.f32.mrb[0].mxu0
  %1163 = vmatprep.mubr.f32.mxu0 %v564
  %1164 = vmatmul.mubr.f32.gmra.mrb[0].mxu0 %v563
  %v1165 = vpop.f32.mrb[0].mxu0
  %v1166 = vadd.f32 0.0, %v1165
  %v1167 = vpop.f32.mrb[0].mxu0
  %1168 = vmatprep.mubr.f32.mxu0 %v573
  %1169 = vmatmul.mubr.f32.gmra.mrb[0].mxu0 %v572
  %v1170 = vpop.f32.mrb[0].mxu0
  %v1171 = vadd.f32 0.0, %v1170
  %v1172 = vpop.f32.mrb[0].mxu0
  %1173 = vmatprep.mubr.f32.mxu0 %v582
  %1174 = vmatmul.mubr.f32.gmra.mrb[0].mxu0 %v581
  %v1175 = vpop.f32.mrb[0].mxu0
  %v1176 = vadd.f32 0.0, %v1175
  %v1177 = vpop.f32.mrb[0].mxu0
  %1178 = vmatprep.mubr.f32.mxu0 %v591
  %1179 = vmatmul.mubr.f32.gmra.mrb[0].mxu0 %v590
  %v1180 = vpop.f32.mrb[0].mxu0
  %v1181 = vadd.f32 0.0, %v1180
  %v1182 = vpop.f32.mrb[0].mxu0
  %1183 = vmatprep.mubr.f32.mxu0 %v600
  %1184 = vmatmul.mubr.f32.gmra.mrb[0].mxu0 %v599
  %v1185 = vpop.f32.mrb[0].mxu0
  %v1186 = vadd.f32 0.0, %v1185
  %v1187 = vpop.f32.mrb[0].mxu0
  %1188 = vmatprep.mubr.f32.mxu0 %v609
  %1189 = vmatmul.mubr.f32.gmra.mrb[0].mxu0 %v608
  %v1190 = vpop.f32.mrb[0].mxu0
  %v1191 = vadd.f32 0.0, %v1190
  %v1192 = vpop.f32.mrb[0].mxu0
  %1193 = vmatprep.mubr.f32.mxu0 %v618
  %1194 = vmatmul.mubr.f32.gmra.mrb[0].mxu0 %v617
  %v1195 = vpop.f32.mrb[0].mxu0
  %v1196 = vadd.f32 0.0, %v1195
  %v1197 = vpop.f32.mrb[0].mxu0
  %1198 = vmatprep.mubr.f32.mxu0 %v627
  %1199 = vmatmul.mubr.f32.gmra.mrb[0].mxu0 %v626
  %v1200 = vpop.f32.mrb[0].mxu0
  %v1201 = vadd.f32 0.0, %v1200
  %v1202 = vpop.f32.mrb[0].mxu0
  %1203 = vmatprep.mubr.f32.mxu0 %v636
  %1204 = vmatmul.mubr.f32.gmra.mrb[0].mxu0 %v635
  %v1205 = vpop.f32.mrb[0].mxu0
  %v1206 = vadd.f32 0.0, %v1205
  %v1207 = vpop.f32.mrb[0].mxu0
  %1208 = vmatprep.mubr.f32.mxu0 %v645
  %1209 = vmatmul.mubr.f32.gmra.mrb[0].mxu0 %v644
  %v1210 = vpop.f32.mrb[0].mxu0
  %v1211 = vadd.f32 0.0, %v1210
  %v1212 = vpop.f32.mrb[0].mxu0
  %1213 = vmatprep.mubr.f32.mxu0 %v654
  %1214 = vmatmul.mubr.f32.gmra.mrb[0].mxu0 %v653
  %v1215 = vpop.f32.mrb[0].mxu0
  %v1216 = vadd.f32 0.0, %v1215
  %v1217 = vpop.f32.mrb[0].mxu0
  %1218 = vmatprep.mubr.f32.mxu0 %v663
  %1219 = vmatmul.mubr.f32.gmra.mrb[0].mxu0 %v662
  %v1220 = vpop.f32.mrb[0].mxu0
  %v1221 = vadd.f32 0.0, %v1220
  %v1222 = vpop.f32.mrb[0].mxu0
  %1223 = vmatprep.mubr.f32.mxu0 %v672
  %1224 = vmatmul.mubr.f32.gmra.mrb[0].mxu0 %v671
  %v1225 = vpop.f32.mrb[0].mxu0
  %v1226 = vadd.f32 0.0, %v1225
  %v1227 = vpop.f32.mrb[0].mxu0
  %1228 = vmatprep.mubr.f32.mxu0 %v681
  %1229 = vmatmul.mubr.f32.gmra.mrb[0].mxu0 %v680
  %v1230 = vpop.f32.mrb[0].mxu0
  %v1231 = vadd.f32 0.0, %v1230
  %v1232 = vpop.f32.mrb[0].mxu0
  %1233 = vmatprep.mubr.f32.mxu0 %v690
  %1234 = vmatmul.mubr.f32.gmra.mrb[0].mxu0 %v689
  %v1235 = vpop.f32.mrb[0].mxu0
  %v1236 = vadd.f32 0.0, %v1235
  %v1237 = vpop.f32.mrb[0].mxu0
  %1238 = vmatprep.mubr.f32.mxu0 %v699
  %1239 = vmatmul.mubr.f32.gmra.mrb[0].mxu0 %v698
  %v1240 = vpop.f32.mrb[0].mxu0
  %v1241 = vadd.f32 0.0, %v1240
  %v1242 = vpop.f32.mrb[0].mxu0
  %1243 = vmatprep.mubr.f32.mxu0 %v708
  %1244 = vmatmul.mubr.f32.gmra.mrb[0].mxu0 %v707
  %v1245 = vpop.f32.mrb[0].mxu0
  %v1246 = vadd.f32 0.0, %v1245
  %v1247 = vpop.f32.mrb[0].mxu0
  %1248 = vmatprep.mubr.f32.mxu0 %v717
  %1249 = vmatmul.mubr.f32.gmra.mrb[0].mxu0 %v716
  %v1250 = vpop.f32.mrb[0].mxu0
  %v1251 = vadd.f32 0.0, %v1250
  %v1252 = vpop.f32.mrb[0].mxu0
  %1253 = vdwg.mxu0
  %1254 = vmatprep.subr.mxu0 0.0
  %1255 = vmatpush1.msra.mxu0 %v757
  %1256 = vmatprep.subr.mxu0 0.0
  %1257 = vmatpush1.msra.mxu0 %v758
  %1258 = vmatprep.subr.mxu0 0.0
  %1259 = vmatpush1.msra.mxu0 %v759
  %1260 = vmatprep.subr.mxu0 0.0
  %1261 = vmatpush1.msra.mxu0 %v760
  %1262 = vmatprep.subr.mxu0 0.0
  %1263 = vmatpush1.msra.mxu0 %v761
  %1264 = vmatprep.subr.mxu0 0.0
  %1265 = vmatpush1.msra.mxu0 %v762
  %1266 = vmatprep.subr.mxu0 0.0
  %1267 = vmatpush1.msra.mxu0 %v763
  %1268 = vmatprep.subr.mxu0 0.0
  %1269 = vmatpush1.msra.mxu0 %v764
  %1270 = vmatprep.subr.mxu0 0.0
  %1271 = vmatpush1.msra.mxu0 %v765
  %1272 = vmatprep.subr.mxu0 0.0
  %1273 = vmatpush1.msra.mxu0 %v766
  %1274 = vmatprep.subr.mxu0 0.0
  %1275 = vmatpush1.msra.mxu0 %v767
  %1276 = vmatprep.subr.mxu0 0.0
  %1277 = vmatpush1.msra.mxu0 %v768
  %1278 = vmatprep.subr.mxu0 0.0
  %1279 = vmatpush1.msra.mxu0 %v769
  %1280 = vmatprep.subr.mxu0 0.0
  %1281 = vmatpush1.msra.mxu0 %v770
  %1282 = vmatprep.subr.mxu0 0.0
  %1283 = vmatpush1.msra.mxu0 %v771
  %1284 = vmatprep.subr.mxu0 0.0
  %1285 = vmatpush1.msra.mxu0 %v772
  %1286 = vmatprep.subr.mxu0 0.0
  %1287 = vmatpush1.msra.mxu0 %v773
  %1288 = vmatprep.subr.mxu0 0.0
  %1289 = vmatpush1.msra.mxu0 %v774
  %1290 = vmatprep.subr.mxu0 0.0
  %1291 = vmatpush1.msra.mxu0 %v775
  %1292 = vmatprep.subr.mxu0 0.0
  %1293 = vmatpush1.msra.mxu0 %v776
  %1294 = vmatprep.subr.mxu0 0.0
  %1295 = vmatpush1.msra.mxu0 %v777
  %1296 = vmatprep.subr.mxu0 0.0
  %1297 = vmatpush1.msra.mxu0 %v778
  %1298 = vmatprep.subr.mxu0 0.0
  %1299 = vmatpush1.msra.mxu0 %v779
  %1300 = vmatprep.subr.mxu0 0.0
  %1301 = vmatpush1.msra.mxu0 %v780
  %1302 = vmatprep.subr.mxu0 0.0
  %1303 = vmatpush1.msra.mxu0 %v781
  %1304 = vmatprep.subr.mxu0 0.0
  %1305 = vmatpush1.msra.mxu0 %v782
  %1306 = vmatprep.subr.mxu0 0.0
  %1307 = vmatpush1.msra.mxu0 %v783
  %1308 = vmatprep.subr.mxu0 0.0
  %1309 = vmatpush1.msra.mxu0 %v784
  %1310 = vmatprep.subr.mxu0 0.0
  %1311 = vmatpush1.msra.mxu0 %v785
  %1312 = vmatprep.subr.mxu0 0.0
  %1313 = vmatpush1.msra.mxu0 %v786
  %1314 = vmatprep.subr.mxu0 0.0
  %1315 = vmatpush1.msra.mxu0 %v787
  %1316 = vmatprep.subr.mxu0 0.0
  %1317 = vmatpush1.msra.mxu0 %v788
  %1318 = vmatprep.mubr.f32.mxu0 %v152
  %1319 = vmatmul.mubr.f32.gmra.mrb[0].mxu0 %v151
  %v1320 = vpop.f32.mrb[0].mxu0
  %v1321 = vadd.f32 %v936, %v1320
  %v1322 = vpop.f32.mrb[0].mxu0
  %1323 = vmatprep.mubr.f32.mxu0 %v161
  %1324 = vmatmul.mubr.f32.gmra.mrb[0].mxu0 %v160
  %v1325 = vpop.f32.mrb[0].mxu0
  %v1326 = vadd.f32 %v941, %v1325
  %v1327 = vpop.f32.mrb[0].mxu0
  %1328 = vmatprep.mubr.f32.mxu0 %v170
  %1329 = vmatmul.mubr.f32.gmra.mrb[0].mxu0 %v169
  %v1330 = vpop.f32.mrb[0].mxu0
  %v1331 = vadd.f32 %v946, %v1330
  %v1332 = vpop.f32.mrb[0].mxu0
  %1333 = vmatprep.mubr.f32.mxu0 %v179
  %1334 = vmatmul.mubr.f32.gmra.mrb[0].mxu0 %v178
  %v1335 = vpop.f32.mrb[0].mxu0
  %v1336 = vadd.f32 %v951, %v1335
  %v1337 = vpop.f32.mrb[0].mxu0
  %1338 = vmatprep.mubr.f32.mxu0 %v188
  %1339 = vmatmul.mubr.f32.gmra.mrb[0].mxu0 %v187
  %v1340 = vpop.f32.mrb[0].mxu0
  %v1341 = vadd.f32 %v956, %v1340
  %v1342 = vpop.f32.mrb[0].mxu0
  %1343 = vmatprep.mubr.f32.mxu0 %v197
  %1344 = vmatmul.mubr.f32.gmra.mrb[0].mxu0 %v196
  %v1345 = vpop.f32.mrb[0].mxu0
  %v1346 = vadd.f32 %v961, %v1345
  %v1347 = vpop.f32.mrb[0].mxu0
  %1348 = vmatprep.mubr.f32.mxu0 %v206
  %1349 = vmatmul.mubr.f32.gmra.mrb[0].mxu0 %v205
  %v1350 = vpop.f32.mrb[0].mxu0
  %v1351 = vadd.f32 %v966, %v1350
  %v1352 = vpop.f32.mrb[0].mxu0
  %1353 = vmatprep.mubr.f32.mxu0 %v215
  %1354 = vmatmul.mubr.f32.gmra.mrb[0].mxu0 %v214
  %v1355 = vpop.f32.mrb[0].mxu0
  %v1356 = vadd.f32 %v971, %v1355
  %v1357 = vpop.f32.mrb[0].mxu0
  %1358 = vmatprep.mubr.f32.mxu0 %v224
  %1359 = vmatmul.mubr.f32.gmra.mrb[0].mxu0 %v223
  %v1360 = vpop.f32.mrb[0].mxu0
  %v1361 = vadd.f32 %v976, %v1360
  %v1362 = vpop.f32.mrb[0].mxu0
  %1363 = vmatprep.mubr.f32.mxu0 %v233
  %1364 = vmatmul.mubr.f32.gmra.mrb[0].mxu0 %v232
  %v1365 = vpop.f32.mrb[0].mxu0
  %v1366 = vadd.f32 %v981, %v1365
  %v1367 = vpop.f32.mrb[0].mxu0
  %1368 = vmatprep.mubr.f32.mxu0 %v242
  %1369 = vmatmul.mubr.f32.gmra.mrb[0].mxu0 %v241
  %v1370 = vpop.f32.mrb[0].mxu0
  %v1371 = vadd.f32 %v986, %v1370
  %v1372 = vpop.f32.mrb[0].mxu0
  %1373 = vmatprep.mubr.f32.mxu0 %v251
  %1374 = vmatmul.mubr.f32.gmra.mrb[0].mxu0 %v250
  %v1375 = vpop.f32.mrb[0].mxu0
  %v1376 = vadd.f32 %v991, %v1375
  %v1377 = vpop.f32.mrb[0].mxu0
  %1378 = vmatprep.mubr.f32.mxu0 %v260
  %1379 = vmatmul.mubr.f32.gmra.mrb[0].mxu0 %v259
  %v1380 = vpop.f32.mrb[0].mxu0
  %v1381 = vadd.f32 %v996, %v1380
  %v1382 = vpop.f32.mrb[0].mxu0
  %1383 = vmatprep.mubr.f32.mxu0 %v269
  %1384 = vmatmul.mubr.f32.gmra.mrb[0].mxu0 %v268
  %v1385 = vpop.f32.mrb[0].mxu0
  %v1386 = vadd.f32 %v1001, %v1385
  %v1387 = vpop.f32.mrb[0].mxu0
  %1388 = vmatprep.mubr.f32.mxu0 %v278
  %1389 = vmatmul.mubr.f32.gmra.mrb[0].mxu0 %v277
  %v1390 = vpop.f32.mrb[0].mxu0
  %v1391 = vadd.f32 %v1006, %v1390
  %v1392 = vpop.f32.mrb[0].mxu0
  %1393 = vmatprep.mubr.f32.mxu0 %v287
  %1394 = vmatmul.mubr.f32.gmra.mrb[0].mxu0 %v286
  %v1395 = vpop.f32.mrb[0].mxu0
  %v1396 = vadd.f32 %v1011, %v1395
  %v1397 = vpop.f32.mrb[0].mxu0
  %1398 = vmatprep.mubr.f32.mxu0 %v296
  %1399 = vmatmul.mubr.f32.gmra.mrb[0].mxu0 %v295
  %v1400 = vpop.f32.mrb[0].mxu0
  %v1401 = vadd.f32 %v1016, %v1400
  %v1402 = vpop.f32.mrb[0].mxu0
  %1403 = vmatprep.mubr.f32.mxu0 %v305
  %1404 = vmatmul.mubr.f32.gmra.mrb[0].mxu0 %v304
  %v1405 = vpop.f32.mrb[0].mxu0
  %v1406 = vadd.f32 %v1021, %v1405
  %v1407 = vpop.f32.mrb[0].mxu0
  %1408 = vmatprep.mubr.f32.mxu0 %v314
  %1409 = vmatmul.mubr.f32.gmra.mrb[0].mxu0 %v313
  %v1410 = vpop.f32.mrb[0].mxu0
  %v1411 = vadd.f32 %v1026, %v1410
  %v1412 = vpop.f32.mrb[0].mxu0
  %1413 = vmatprep.mubr.f32.mxu0 %v323
  %1414 = vmatmul.mubr.f32.gmra.mrb[0].mxu0 %v322
  %v1415 = vpop.f32.mrb[0].mxu0
  %v1416 = vadd.f32 %v1031, %v1415
  %v1417 = vpop.f32.mrb[0].mxu0
  %1418 = vmatprep.mubr.f32.mxu0 %v332
  %1419 = vmatmul.mubr.f32.gmra.mrb[0].mxu0 %v331
  %v1420 = vpop.f32.mrb[0].mxu0
  %v1421 = vadd.f32 %v1036, %v1420
  %v1422 = vpop.f32.mrb[0].mxu0
  %1423 = vmatprep.mubr.f32.mxu0 %v341
  %1424 = vmatmul.mubr.f32.gmra.mrb[0].mxu0 %v340
  %v1425 = vpop.f32.mrb[0].mxu0
  %v1426 = vadd.f32 %v1041, %v1425
  %v1427 = vpop.f32.mrb[0].mxu0
  %1428 = vmatprep.mubr.f32.mxu0 %v350
  %1429 = vmatmul.mubr.f32.gmra.mrb[0].mxu0 %v349
  %v1430 = vpop.f32.mrb[0].mxu0
  %v1431 = vadd.f32 %v1046, %v1430
  %v1432 = vpop.f32.mrb[0].mxu0
  %1433 = vmatprep.mubr.f32.mxu0 %v359
  %1434 = vmatmul.mubr.f32.gmra.mrb[0].mxu0 %v358
  %v1435 = vpop.f32.mrb[0].mxu0
  %v1436 = vadd.f32 %v1051, %v1435
  %v1437 = vpop.f32.mrb[0].mxu0
  %1438 = vmatprep.mubr.f32.mxu0 %v368
  %1439 = vmatmul.mubr.f32.gmra.mrb[0].mxu0 %v367
  %v1440 = vpop.f32.mrb[0].mxu0
  %v1441 = vadd.f32 %v1056, %v1440
  %v1442 = vpop.f32.mrb[0].mxu0
  %1443 = vmatprep.mubr.f32.mxu0 %v377
  %1444 = vmatmul.mubr.f32.gmra.mrb[0].mxu0 %v376
  %v1445 = vpop.f32.mrb[0].mxu0
  %v1446 = vadd.f32 %v1061, %v1445
  %v1447 = vpop.f32.mrb[0].mxu0
  %1448 = vmatprep.mubr.f32.mxu0 %v386
  %1449 = vmatmul.mubr.f32.gmra.mrb[0].mxu0 %v385
  %v1450 = vpop.f32.mrb[0].mxu0
  %v1451 = vadd.f32 %v1066, %v1450
  %v1452 = vpop.f32.mrb[0].mxu0
  %1453 = vmatprep.mubr.f32.mxu0 %v395
  %1454 = vmatmul.mubr.f32.gmra.mrb[0].mxu0 %v394
  %v1455 = vpop.f32.mrb[0].mxu0
  %v1456 = vadd.f32 %v1071, %v1455
  %v1457 = vpop.f32.mrb[0].mxu0
  %1458 = vmatprep.mubr.f32.mxu0 %v404
  %1459 = vmatmul.mubr.f32.gmra.mrb[0].mxu0 %v403
  %v1460 = vpop.f32.mrb[0].mxu0
  %v1461 = vadd.f32 %v1076, %v1460
  %v1462 = vpop.f32.mrb[0].mxu0
  %1463 = vmatprep.mubr.f32.mxu0 %v413
  %1464 = vmatmul.mubr.f32.gmra.mrb[0].mxu0 %v412
  %v1465 = vpop.f32.mrb[0].mxu0
  %v1466 = vadd.f32 %v1081, %v1465
  %v1467 = vpop.f32.mrb[0].mxu0
  %1468 = vmatprep.mubr.f32.mxu0 %v422
  %1469 = vmatmul.mubr.f32.gmra.mrb[0].mxu0 %v421
  %v1470 = vpop.f32.mrb[0].mxu0
  %v1471 = vadd.f32 %v1086, %v1470
  %v1472 = vpop.f32.mrb[0].mxu0
  %1473 = vmatprep.mubr.f32.mxu0 %v431
  %1474 = vmatmul.mubr.f32.gmra.mrb[0].mxu0 %v430
  %v1475 = vpop.f32.mrb[0].mxu0
  %v1476 = vadd.f32 %v1091, %v1475
  %v1477 = vpop.f32.mrb[0].mxu0
  %1478 = vmatprep.mubr.f32.mxu0 %v440
  %1479 = vmatmul.mubr.f32.gmra.mrb[0].mxu0 %v439
  %v1480 = vpop.f32.mrb[0].mxu0
  %v1481 = vadd.f32 %v1096, %v1480
  %v1482 = vpop.f32.mrb[0].mxu0
  %1483 = vmatprep.mubr.f32.mxu0 %v449
  %1484 = vmatmul.mubr.f32.gmra.mrb[0].mxu0 %v448
  %v1485 = vpop.f32.mrb[0].mxu0
  %v1486 = vadd.f32 %v1101, %v1485
  %v1487 = vpop.f32.mrb[0].mxu0
  %1488 = vmatprep.mubr.f32.mxu0 %v458
  %1489 = vmatmul.mubr.f32.gmra.mrb[0].mxu0 %v457
  %v1490 = vpop.f32.mrb[0].mxu0
  %v1491 = vadd.f32 %v1106, %v1490
  %v1492 = vpop.f32.mrb[0].mxu0
  %1493 = vmatprep.mubr.f32.mxu0 %v467
  %1494 = vmatmul.mubr.f32.gmra.mrb[0].mxu0 %v466
  %v1495 = vpop.f32.mrb[0].mxu0
  %v1496 = vadd.f32 %v1111, %v1495
  %v1497 = vpop.f32.mrb[0].mxu0
  %1498 = vmatprep.mubr.f32.mxu0 %v476
  %1499 = vmatmul.mubr.f32.gmra.mrb[0].mxu0 %v475
  %v1500 = vpop.f32.mrb[0].mxu0
  %v1501 = vadd.f32 %v1116, %v1500
  %v1502 = vpop.f32.mrb[0].mxu0
  %1503 = vmatprep.mubr.f32.mxu0 %v485
  %1504 = vmatmul.mubr.f32.gmra.mrb[0].mxu0 %v484
  %v1505 = vpop.f32.mrb[0].mxu0
  %v1506 = vadd.f32 %v1121, %v1505
  %v1507 = vpop.f32.mrb[0].mxu0
  %1508 = vmatprep.mubr.f32.mxu0 %v494
  %1509 = vmatmul.mubr.f32.gmra.mrb[0].mxu0 %v493
  %v1510 = vpop.f32.mrb[0].mxu0
  %v1511 = vadd.f32 %v1126, %v1510
  %v1512 = vpop.f32.mrb[0].mxu0
  %1513 = vmatprep.mubr.f32.mxu0 %v503
  %1514 = vmatmul.mubr.f32.gmra.mrb[0].mxu0 %v502
  %v1515 = vpop.f32.mrb[0].mxu0
  %v1516 = vadd.f32 %v1131, %v1515
  %v1517 = vpop.f32.mrb[0].mxu0
  %1518 = vmatprep.mubr.f32.mxu0 %v512
  %1519 = vmatmul.mubr.f32.gmra.mrb[0].mxu0 %v511
  %v1520 = vpop.f32.mrb[0].mxu0
  %v1521 = vadd.f32 %v1136, %v1520
  %v1522 = vpop.f32.mrb[0].mxu0
  %1523 = vmatprep.mubr.f32.mxu0 %v521
  %1524 = vmatmul.mubr.f32.gmra.mrb[0].mxu0 %v520
  %v1525 = vpop.f32.mrb[0].mxu0
  %v1526 = vadd.f32 %v1141, %v1525
  %v1527 = vpop.f32.mrb[0].mxu0
  %1528 = vmatprep.mubr.f32.mxu0 %v530
  %1529 = vmatmul.mubr.f32.gmra.mrb[0].mxu0 %v529
  %v1530 = vpop.f32.mrb[0].mxu0
  %v1531 = vadd.f32 %v1146, %v1530
  %v1532 = vpop.f32.mrb[0].mxu0
  %1533 = vmatprep.mubr.f32.mxu0 %v539
  %1534 = vmatmul.mubr.f32.gmra.mrb[0].mxu0 %v538
  %v1535 = vpop.f32.mrb[0].mxu0
  %v1536 = vadd.f32 %v1151, %v1535
  %v1537 = vpop.f32.mrb[0].mxu0
  %1538 = vmatprep.mubr.f32.mxu0 %v548
  %1539 = vmatmul.mubr.f32.gmra.mrb[0].mxu0 %v547
  %v1540 = vpop.f32.mrb[0].mxu0
  %v1541 = vadd.f32 %v1156, %v1540
  %v1542 = vpop.f32.mrb[0].mxu0
  %1543 = vmatprep.mubr.f32.mxu0 %v557
  %1544 = vmatmul.mubr.f32.gmra.mrb[0].mxu0 %v556
  %v1545 = vpop.f32.mrb[0].mxu0
  %v1546 = vadd.f32 %v1161, %v1545
  %v1547 = vpop.f32.mrb[0].mxu0
  %1548 = vmatprep.mubr.f32.mxu0 %v566
  %1549 = vmatmul.mubr.f32.gmra.mrb[0].mxu0 %v565
  %v1550 = vpop.f32.mrb[0].mxu0
  %v1551 = vadd.f32 %v1166, %v1550
  %v1552 = vpop.f32.mrb[0].mxu0
  %1553 = vmatprep.mubr.f32.mxu0 %v575
  %1554 = vmatmul.mubr.f32.gmra.mrb[0].mxu0 %v574
  %v1555 = vpop.f32.mrb[0].mxu0
  %v1556 = vadd.f32 %v1171, %v1555
  %v1557 = vpop.f32.mrb[0].mxu0
  %1558 = vmatprep.mubr.f32.mxu0 %v584
  %1559 = vmatmul.mubr.f32.gmra.mrb[0].mxu0 %v583
  %v1560 = vpop.f32.mrb[0].mxu0
  %v1561 = vadd.f32 %v1176, %v1560
  %v1562 = vpop.f32.mrb[0].mxu0
  %1563 = vmatprep.mubr.f32.mxu0 %v593
  %1564 = vmatmul.mubr.f32.gmra.mrb[0].mxu0 %v592
  %v1565 = vpop.f32.mrb[0].mxu0
  %v1566 = vadd.f32 %v1181, %v1565
  %v1567 = vpop.f32.mrb[0].mxu0
  %1568 = vmatprep.mubr.f32.mxu0 %v602
  %1569 = vmatmul.mubr.f32.gmra.mrb[0].mxu0 %v601
  %v1570 = vpop.f32.mrb[0].mxu0
  %v1571 = vadd.f32 %v1186, %v1570
  %v1572 = vpop.f32.mrb[0].mxu0
  %1573 = vmatprep.mubr.f32.mxu0 %v611
  %1574 = vmatmul.mubr.f32.gmra.mrb[0].mxu0 %v610
  %v1575 = vpop.f32.mrb[0].mxu0
  %v1576 = vadd.f32 %v1191, %v1575
  %v1577 = vpop.f32.mrb[0].mxu0
  %1578 = vmatprep.mubr.f32.mxu0 %v620
  %1579 = vmatmul.mubr.f32.gmra.mrb[0].mxu0 %v619
  %v1580 = vpop.f32.mrb[0].mxu0
  %v1581 = vadd.f32 %v1196, %v1580
  %v1582 = vpop.f32.mrb[0].mxu0
  %1583 = vmatprep.mubr.f32.mxu0 %v629
  %1584 = vmatmul.mubr.f32.gmra.mrb[0].mxu0 %v628
  %v1585 = vpop.f32.mrb[0].mxu0
  %v1586 = vadd.f32 %v1201, %v1585
  %v1587 = vpop.f32.mrb[0].mxu0
  %1588 = vmatprep.mubr.f32.mxu0 %v638
  %1589 = vmatmul.mubr.f32.gmra.mrb[0].mxu0 %v637
  %v1590 = vpop.f32.mrb[0].mxu0
  %v1591 = vadd.f32 %v1206, %v1590
  %v1592 = vpop.f32.mrb[0].mxu0
  %1593 = vmatprep.mubr.f32.mxu0 %v647
  %1594 = vmatmul.mubr.f32.gmra.mrb[0].mxu0 %v646
  %v1595 = vpop.f32.mrb[0].mxu0
  %v1596 = vadd.f32 %v1211, %v1595
  %v1597 = vpop.f32.mrb[0].mxu0
  %1598 = vmatprep.mubr.f32.mxu0 %v656
  %1599 = vmatmul.mubr.f32.gmra.mrb[0].mxu0 %v655
  %v1600 = vpop.f32.mrb[0].mxu0
  %v1601 = vadd.f32 %v1216, %v1600
  %v1602 = vpop.f32.mrb[0].mxu0
  %1603 = vmatprep.mubr.f32.mxu0 %v665
  %1604 = vmatmul.mubr.f32.gmra.mrb[0].mxu0 %v664
  %v1605 = vpop.f32.mrb[0].mxu0
  %v1606 = vadd.f32 %v1221, %v1605
  %v1607 = vpop.f32.mrb[0].mxu0
  %1608 = vmatprep.mubr.f32.mxu0 %v674
  %1609 = vmatmul.mubr.f32.gmra.mrb[0].mxu0 %v673
  %v1610 = vpop.f32.mrb[0].mxu0
  %v1611 = vadd.f32 %v1226, %v1610
  %v1612 = vpop.f32.mrb[0].mxu0
  %1613 = vmatprep.mubr.f32.mxu0 %v683
  %1614 = vmatmul.mubr.f32.gmra.mrb[0].mxu0 %v682
  %v1615 = vpop.f32.mrb[0].mxu0
  %v1616 = vadd.f32 %v1231, %v1615
  %v1617 = vpop.f32.mrb[0].mxu0
  %1618 = vmatprep.mubr.f32.mxu0 %v692
  %1619 = vmatmul.mubr.f32.gmra.mrb[0].mxu0 %v691
  %v1620 = vpop.f32.mrb[0].mxu0
  %v1621 = vadd.f32 %v1236, %v1620
  %v1622 = vpop.f32.mrb[0].mxu0
  %1623 = vmatprep.mubr.f32.mxu0 %v701
  %1624 = vmatmul.mubr.f32.gmra.mrb[0].mxu0 %v700
  %v1625 = vpop.f32.mrb[0].mxu0
  %v1626 = vadd.f32 %v1241, %v1625
  %v1627 = vpop.f32.mrb[0].mxu0
  %1628 = vmatprep.mubr.f32.mxu0 %v710
  %1629 = vmatmul.mubr.f32.gmra.mrb[0].mxu0 %v709
  %v1630 = vpop.f32.mrb[0].mxu0
  %v1631 = vadd.f32 %v1246, %v1630
  %v1632 = vpop.f32.mrb[0].mxu0
  %1633 = vmatprep.mubr.f32.mxu0 %v719
  %1634 = vmatmul.mubr.f32.gmra.mrb[0].mxu0 %v718
  %v1635 = vpop.f32.mrb[0].mxu0
  %v1636 = vadd.f32 %v1251, %v1635
  %v1637 = vpop.f32.mrb[0].mxu0
  %1638 = vdwg.mxu0
  %1639 = vmatprep.subr.mxu0 0.0
  %1640 = vmatpush1.msra.mxu0 %v789
  %1641 = vmatprep.subr.mxu0 0.0
  %1642 = vmatpush1.msra.mxu0 %v790
  %1643 = vmatprep.subr.mxu0 0.0
  %1644 = vmatpush1.msra.mxu0 %v791
  %1645 = vmatprep.subr.mxu0 0.0
  %1646 = vmatpush1.msra.mxu0 %v792
  %1647 = vmatprep.subr.mxu0 0.0
  %1648 = vmatpush1.msra.mxu0 %v793
  %1649 = vmatprep.subr.mxu0 0.0
  %1650 = vmatpush1.msra.mxu0 %v794
  %1651 = vmatprep.subr.mxu0 0.0
  %1652 = vmatpush1.msra.mxu0 %v795
  %1653 = vmatprep.subr.mxu0 0.0
  %1654 = vmatpush1.msra.mxu0 %v796
  %1655 = vmatprep.subr.mxu0 0.0
  %1656 = vmatpush1.msra.mxu0 %v797
  %1657 = vmatprep.subr.mxu0 0.0
  %1658 = vmatpush1.msra.mxu0 %v798
  %1659 = vmatprep.subr.mxu0 0.0
  %1660 = vmatpush1.msra.mxu0 %v799
  %1661 = vmatprep.subr.mxu0 0.0
  %1662 = vmatpush1.msra.mxu0 %v800
  %1663 = vmatprep.subr.mxu0 0.0
  %1664 = vmatpush1.msra.mxu0 %v801
  %1665 = vmatprep.subr.mxu0 0.0
  %1666 = vmatpush1.msra.mxu0 %v802
  %1667 = vmatprep.subr.mxu0 0.0
  %1668 = vmatpush1.msra.mxu0 %v803
  %1669 = vmatprep.subr.mxu0 0.0
  %1670 = vmatpush1.msra.mxu0 %v804
  %1671 = vmatprep.subr.mxu0 0.0
  %1672 = vmatpush1.msra.mxu0 %v805
  %1673 = vmatprep.subr.mxu0 0.0
  %1674 = vmatpush1.msra.mxu0 %v806
  %1675 = vmatprep.subr.mxu0 0.0
  %1676 = vmatpush1.msra.mxu0 %v807
  %1677 = vmatprep.subr.mxu0 0.0
  %1678 = vmatpush1.msra.mxu0 %v808
  %1679 = vmatprep.subr.mxu0 0.0
  %1680 = vmatpush1.msra.mxu0 %v809
  %1681 = vmatprep.subr.mxu0 0.0
  %1682 = vmatpush1.msra.mxu0 %v810
  %1683 = vmatprep.subr.mxu0 0.0
  %1684 = vmatpush1.msra.mxu0 %v811
  %1685 = vmatprep.subr.mxu0 0.0
  %1686 = vmatpush1.msra.mxu0 %v812
  %1687 = vmatprep.subr.mxu0 0.0
  %1688 = vmatpush1.msra.mxu0 %v813
  %1689 = vmatprep.subr.mxu0 0.0
  %1690 = vmatpush1.msra.mxu0 %v814
  %1691 = vmatprep.subr.mxu0 0.0
  %1692 = vmatpush1.msra.mxu0 %v815
  %1693 = vmatprep.subr.mxu0 0.0
  %1694 = vmatpush1.msra.mxu0 %v816
  %1695 = vmatprep.subr.mxu0 0.0
  %1696 = vmatpush1.msra.mxu0 %v817
  %1697 = vmatprep.subr.mxu0 0.0
  %1698 = vmatpush1.msra.mxu0 %v818
  %1699 = vmatprep.subr.mxu0 0.0
  %1700 = vmatpush1.msra.mxu0 %v819
  %1701 = vmatprep.subr.mxu0 0.0
  %1702 = vmatpush1.msra.mxu0 %v820
  %1703 = vmatprep.mubr.f32.mxu0 %v154
  %1704 = vmatmul.mubr.f32.gmra.mrb[0].mxu0 %v153
  %v1705 = vpop.f32.mrb[0].mxu0
  %v1706 = vadd.f32 %v1321, %v1705
  %v1707 = vpop.f32.mrb[0].mxu0
  %1708 = vmatprep.mubr.f32.mxu0 %v163
  %1709 = vmatmul.mubr.f32.gmra.mrb[0].mxu0 %v162
  %v1710 = vpop.f32.mrb[0].mxu0
  %v1711 = vadd.f32 %v1326, %v1710
  %v1712 = vpop.f32.mrb[0].mxu0
  %1713 = vmatprep.mubr.f32.mxu0 %v172
  %1714 = vmatmul.mubr.f32.gmra.mrb[0].mxu0 %v171
  %v1715 = vpop.f32.mrb[0].mxu0
  %v1716 = vadd.f32 %v1331, %v1715
  %v1717 = vpop.f32.mrb[0].mxu0
  %1718 = vmatprep.mubr.f32.mxu0 %v181
  %1719 = vmatmul.mubr.f32.gmra.mrb[0].mxu0 %v180
  %v1720 = vpop.f32.mrb[0].mxu0
  %v1721 = vadd.f32 %v1336, %v1720
  %v1722 = vpop.f32.mrb[0].mxu0
  %1723 = vmatprep.mubr.f32.mxu0 %v190
  %1724 = vmatmul.mubr.f32.gmra.mrb[0].mxu0 %v189
  %v1725 = vpop.f32.mrb[0].mxu0
  %v1726 = vadd.f32 %v1341, %v1725
  %v1727 = vpop.f32.mrb[0].mxu0
  %1728 = vmatprep.mubr.f32.mxu0 %v199
  %1729 = vmatmul.mubr.f32.gmra.mrb[0].mxu0 %v198
  %v1730 = vpop.f32.mrb[0].mxu0
  %v1731 = vadd.f32 %v1346, %v1730
  %v1732 = vpop.f32.mrb[0].mxu0
  %1733 = vmatprep.mubr.f32.mxu0 %v208
  %1734 = vmatmul.mubr.f32.gmra.mrb[0].mxu0 %v207
  %v1735 = vpop.f32.mrb[0].mxu0
  %v1736 = vadd.f32 %v1351, %v1735
  %v1737 = vpop.f32.mrb[0].mxu0
  %1738 = vmatprep.mubr.f32.mxu0 %v217
  %1739 = vmatmul.mubr.f32.gmra.mrb[0].mxu0 %v216
  %v1740 = vpop.f32.mrb[0].mxu0
  %v1741 = vadd.f32 %v1356, %v1740
  %v1742 = vpop.f32.mrb[0].mxu0
  %1743 = vmatprep.mubr.f32.mxu0 %v226
  %1744 = vmatmul.mubr.f32.gmra.mrb[0].mxu0 %v225
  %v1745 = vpop.f32.mrb[0].mxu0
  %v1746 = vadd.f32 %v1361, %v1745
  %v1747 = vpop.f32.mrb[0].mxu0
  %1748 = vmatprep.mubr.f32.mxu0 %v235
  %1749 = vmatmul.mubr.f32.gmra.mrb[0].mxu0 %v234
  %v1750 = vpop.f32.mrb[0].mxu0
  %v1751 = vadd.f32 %v1366, %v1750
  %v1752 = vpop.f32.mrb[0].mxu0
  %1753 = vmatprep.mubr.f32.mxu0 %v244
  %1754 = vmatmul.mubr.f32.gmra.mrb[0].mxu0 %v243
  %v1755 = vpop.f32.mrb[0].mxu0
  %v1756 = vadd.f32 %v1371, %v1755
  %v1757 = vpop.f32.mrb[0].mxu0
  %1758 = vmatprep.mubr.f32.mxu0 %v253
  %1759 = vmatmul.mubr.f32.gmra.mrb[0].mxu0 %v252
  %v1760 = vpop.f32.mrb[0].mxu0
  %v1761 = vadd.f32 %v1376, %v1760
  %v1762 = vpop.f32.mrb[0].mxu0
  %1763 = vmatprep.mubr.f32.mxu0 %v262
  %1764 = vmatmul.mubr.f32.gmra.mrb[0].mxu0 %v261
  %v1765 = vpop.f32.mrb[0].mxu0
  %v1766 = vadd.f32 %v1381, %v1765
  %v1767 = vpop.f32.mrb[0].mxu0
  %1768 = vmatprep.mubr.f32.mxu0 %v271
  %1769 = vmatmul.mubr.f32.gmra.mrb[0].mxu0 %v270
  %v1770 = vpop.f32.mrb[0].mxu0
  %v1771 = vadd.f32 %v1386, %v1770
  %v1772 = vpop.f32.mrb[0].mxu0
  %1773 = vmatprep.mubr.f32.mxu0 %v280
  %1774 = vmatmul.mubr.f32.gmra.mrb[0].mxu0 %v279
  %v1775 = vpop.f32.mrb[0].mxu0
  %v1776 = vadd.f32 %v1391, %v1775
  %v1777 = vpop.f32.mrb[0].mxu0
  %1778 = vmatprep.mubr.f32.mxu0 %v289
  %1779 = vmatmul.mubr.f32.gmra.mrb[0].mxu0 %v288
  %v1780 = vpop.f32.mrb[0].mxu0
  %v1781 = vadd.f32 %v1396, %v1780
  %v1782 = vpop.f32.mrb[0].mxu0
  %1783 = vmatprep.mubr.f32.mxu0 %v298
  %1784 = vmatmul.mubr.f32.gmra.mrb[0].mxu0 %v297
  %v1785 = vpop.f32.mrb[0].mxu0
  %v1786 = vadd.f32 %v1401, %v1785
  %v1787 = vpop.f32.mrb[0].mxu0
  %1788 = vmatprep.mubr.f32.mxu0 %v307
  %1789 = vmatmul.mubr.f32.gmra.mrb[0].mxu0 %v306
  %v1790 = vpop.f32.mrb[0].mxu0
  %v1791 = vadd.f32 %v1406, %v1790
  %v1792 = vpop.f32.mrb[0].mxu0
  %1793 = vmatprep.mubr.f32.mxu0 %v316
  %1794 = vmatmul.mubr.f32.gmra.mrb[0].mxu0 %v315
  %v1795 = vpop.f32.mrb[0].mxu0
  %v1796 = vadd.f32 %v1411, %v1795
  %v1797 = vpop.f32.mrb[0].mxu0
  %1798 = vmatprep.mubr.f32.mxu0 %v325
  %1799 = vmatmul.mubr.f32.gmra.mrb[0].mxu0 %v324
  %v1800 = vpop.f32.mrb[0].mxu0
  %v1801 = vadd.f32 %v1416, %v1800
  %v1802 = vpop.f32.mrb[0].mxu0
  %1803 = vmatprep.mubr.f32.mxu0 %v334
  %1804 = vmatmul.mubr.f32.gmra.mrb[0].mxu0 %v333
  %v1805 = vpop.f32.mrb[0].mxu0
  %v1806 = vadd.f32 %v1421, %v1805
  %v1807 = vpop.f32.mrb[0].mxu0
  %1808 = vmatprep.mubr.f32.mxu0 %v343
  %1809 = vmatmul.mubr.f32.gmra.mrb[0].mxu0 %v342
  %v1810 = vpop.f32.mrb[0].mxu0
  %v1811 = vadd.f32 %v1426, %v1810
  %v1812 = vpop.f32.mrb[0].mxu0
  %1813 = vmatprep.mubr.f32.mxu0 %v352
  %1814 = vmatmul.mubr.f32.gmra.mrb[0].mxu0 %v351
  %v1815 = vpop.f32.mrb[0].mxu0
  %v1816 = vadd.f32 %v1431, %v1815
  %v1817 = vpop.f32.mrb[0].mxu0
  %1818 = vmatprep.mubr.f32.mxu0 %v361
  %1819 = vmatmul.mubr.f32.gmra.mrb[0].mxu0 %v360
  %v1820 = vpop.f32.mrb[0].mxu0
  %v1821 = vadd.f32 %v1436, %v1820
  %v1822 = vpop.f32.mrb[0].mxu0
  %1823 = vmatprep.mubr.f32.mxu0 %v370
  %1824 = vmatmul.mubr.f32.gmra.mrb[0].mxu0 %v369
  %v1825 = vpop.f32.mrb[0].mxu0
  %v1826 = vadd.f32 %v1441, %v1825
  %v1827 = vpop.f32.mrb[0].mxu0
  %1828 = vmatprep.mubr.f32.mxu0 %v379
  %1829 = vmatmul.mubr.f32.gmra.mrb[0].mxu0 %v378
  %v1830 = vpop.f32.mrb[0].mxu0
  %v1831 = vadd.f32 %v1446, %v1830
  %v1832 = vpop.f32.mrb[0].mxu0
  %1833 = vmatprep.mubr.f32.mxu0 %v388
  %1834 = vmatmul.mubr.f32.gmra.mrb[0].mxu0 %v387
  %v1835 = vpop.f32.mrb[0].mxu0
  %v1836 = vadd.f32 %v1451, %v1835
  %v1837 = vpop.f32.mrb[0].mxu0
  %1838 = vmatprep.mubr.f32.mxu0 %v397
  %1839 = vmatmul.mubr.f32.gmra.mrb[0].mxu0 %v396
  %v1840 = vpop.f32.mrb[0].mxu0
  %v1841 = vadd.f32 %v1456, %v1840
  %v1842 = vpop.f32.mrb[0].mxu0
  %1843 = vmatprep.mubr.f32.mxu0 %v406
  %1844 = vmatmul.mubr.f32.gmra.mrb[0].mxu0 %v405
  %v1845 = vpop.f32.mrb[0].mxu0
  %v1846 = vadd.f32 %v1461, %v1845
  %v1847 = vpop.f32.mrb[0].mxu0
  %1848 = vmatprep.mubr.f32.mxu0 %v415
  %1849 = vmatmul.mubr.f32.gmra.mrb[0].mxu0 %v414
  %v1850 = vpop.f32.mrb[0].mxu0
  %v1851 = vadd.f32 %v1466, %v1850
  %v1852 = vpop.f32.mrb[0].mxu0
  %1853 = vmatprep.mubr.f32.mxu0 %v424
  %1854 = vmatmul.mubr.f32.gmra.mrb[0].mxu0 %v423
  %v1855 = vpop.f32.mrb[0].mxu0
  %v1856 = vadd.f32 %v1471, %v1855
  %v1857 = vpop.f32.mrb[0].mxu0
  %1858 = vmatprep.mubr.f32.mxu0 %v433
  %1859 = vmatmul.mubr.f32.gmra.mrb[0].mxu0 %v432
  %v1860 = vpop.f32.mrb[0].mxu0
  %v1861 = vadd.f32 %v1476, %v1860
  %v1862 = vpop.f32.mrb[0].mxu0
  %1863 = vmatprep.mubr.f32.mxu0 %v442
  %1864 = vmatmul.mubr.f32.gmra.mrb[0].mxu0 %v441
  %v1865 = vpop.f32.mrb[0].mxu0
  %v1866 = vadd.f32 %v1481, %v1865
  %v1867 = vpop.f32.mrb[0].mxu0
  %1868 = vmatprep.mubr.f32.mxu0 %v451
  %1869 = vmatmul.mubr.f32.gmra.mrb[0].mxu0 %v450
  %v1870 = vpop.f32.mrb[0].mxu0
  %v1871 = vadd.f32 %v1486, %v1870
  %v1872 = vpop.f32.mrb[0].mxu0
  %1873 = vmatprep.mubr.f32.mxu0 %v460
  %1874 = vmatmul.mubr.f32.gmra.mrb[0].mxu0 %v459
  %v1875 = vpop.f32.mrb[0].mxu0
  %v1876 = vadd.f32 %v1491, %v1875
  %v1877 = vpop.f32.mrb[0].mxu0
  %1878 = vmatprep.mubr.f32.mxu0 %v469
  %1879 = vmatmul.mubr.f32.gmra.mrb[0].mxu0 %v468
  %v1880 = vpop.f32.mrb[0].mxu0
  %v1881 = vadd.f32 %v1496, %v1880
  %v1882 = vpop.f32.mrb[0].mxu0
  %1883 = vmatprep.mubr.f32.mxu0 %v478
  %1884 = vmatmul.mubr.f32.gmra.mrb[0].mxu0 %v477
  %v1885 = vpop.f32.mrb[0].mxu0
  %v1886 = vadd.f32 %v1501, %v1885
  %v1887 = vpop.f32.mrb[0].mxu0
  %1888 = vmatprep.mubr.f32.mxu0 %v487
  %1889 = vmatmul.mubr.f32.gmra.mrb[0].mxu0 %v486
  %v1890 = vpop.f32.mrb[0].mxu0
  %v1891 = vadd.f32 %v1506, %v1890
  %v1892 = vpop.f32.mrb[0].mxu0
  %1893 = vmatprep.mubr.f32.mxu0 %v496
  %1894 = vmatmul.mubr.f32.gmra.mrb[0].mxu0 %v495
  %v1895 = vpop.f32.mrb[0].mxu0
  %v1896 = vadd.f32 %v1511, %v1895
  %v1897 = vpop.f32.mrb[0].mxu0
  %1898 = vmatprep.mubr.f32.mxu0 %v505
  %1899 = vmatmul.mubr.f32.gmra.mrb[0].mxu0 %v504
  %v1900 = vpop.f32.mrb[0].mxu0
  %v1901 = vadd.f32 %v1516, %v1900
  %v1902 = vpop.f32.mrb[0].mxu0
  %1903 = vmatprep.mubr.f32.mxu0 %v514
  %1904 = vmatmul.mubr.f32.gmra.mrb[0].mxu0 %v513
  %v1905 = vpop.f32.mrb[0].mxu0
  %v1906 = vadd.f32 %v1521, %v1905
  %v1907 = vpop.f32.mrb[0].mxu0
  %1908 = vmatprep.mubr.f32.mxu0 %v523
  %1909 = vmatmul.mubr.f32.gmra.mrb[0].mxu0 %v522
  %v1910 = vpop.f32.mrb[0].mxu0
  %v1911 = vadd.f32 %v1526, %v1910
  %v1912 = vpop.f32.mrb[0].mxu0
  %1913 = vmatprep.mubr.f32.mxu0 %v532
  %1914 = vmatmul.mubr.f32.gmra.mrb[0].mxu0 %v531
  %v1915 = vpop.f32.mrb[0].mxu0
  %v1916 = vadd.f32 %v1531, %v1915
  %v1917 = vpop.f32.mrb[0].mxu0
  %1918 = vmatprep.mubr.f32.mxu0 %v541
  %1919 = vmatmul.mubr.f32.gmra.mrb[0].mxu0 %v540
  %v1920 = vpop.f32.mrb[0].mxu0
  %v1921 = vadd.f32 %v1536, %v1920
  %v1922 = vpop.f32.mrb[0].mxu0
  %1923 = vmatprep.mubr.f32.mxu0 %v550
  %1924 = vmatmul.mubr.f32.gmra.mrb[0].mxu0 %v549
  %v1925 = vpop.f32.mrb[0].mxu0
  %v1926 = vadd.f32 %v1541, %v1925
  %v1927 = vpop.f32.mrb[0].mxu0
  %1928 = vmatprep.mubr.f32.mxu0 %v559
  %1929 = vmatmul.mubr.f32.gmra.mrb[0].mxu0 %v558
  %v1930 = vpop.f32.mrb[0].mxu0
  %v1931 = vadd.f32 %v1546, %v1930
  %v1932 = vpop.f32.mrb[0].mxu0
  %1933 = vmatprep.mubr.f32.mxu0 %v568
  %1934 = vmatmul.mubr.f32.gmra.mrb[0].mxu0 %v567
  %v1935 = vpop.f32.mrb[0].mxu0
  %v1936 = vadd.f32 %v1551, %v1935
  %v1937 = vpop.f32.mrb[0].mxu0
  %1938 = vmatprep.mubr.f32.mxu0 %v577
  %1939 = vmatmul.mubr.f32.gmra.mrb[0].mxu0 %v576
  %v1940 = vpop.f32.mrb[0].mxu0
  %v1941 = vadd.f32 %v1556, %v1940
  %v1942 = vpop.f32.mrb[0].mxu0
  %1943 = vmatprep.mubr.f32.mxu0 %v586
  %1944 = vmatmul.mubr.f32.gmra.mrb[0].mxu0 %v585
  %v1945 = vpop.f32.mrb[0].mxu0
  %v1946 = vadd.f32 %v1561, %v1945
  %v1947 = vpop.f32.mrb[0].mxu0
  %1948 = vmatprep.mubr.f32.mxu0 %v595
  %1949 = vmatmul.mubr.f32.gmra.mrb[0].mxu0 %v594
  %v1950 = vpop.f32.mrb[0].mxu0
  %v1951 = vadd.f32 %v1566, %v1950
  %v1952 = vpop.f32.mrb[0].mxu0
  %1953 = vmatprep.mubr.f32.mxu0 %v604
  %1954 = vmatmul.mubr.f32.gmra.mrb[0].mxu0 %v603
  %v1955 = vpop.f32.mrb[0].mxu0
  %v1956 = vadd.f32 %v1571, %v1955
  %v1957 = vpop.f32.mrb[0].mxu0
  %1958 = vmatprep.mubr.f32.mxu0 %v613
  %1959 = vmatmul.mubr.f32.gmra.mrb[0].mxu0 %v612
  %v1960 = vpop.f32.mrb[0].mxu0
  %v1961 = vadd.f32 %v1576, %v1960
  %v1962 = vpop.f32.mrb[0].mxu0
  %1963 = vmatprep.mubr.f32.mxu0 %v622
  %1964 = vmatmul.mubr.f32.gmra.mrb[0].mxu0 %v621
  %v1965 = vpop.f32.mrb[0].mxu0
  %v1966 = vadd.f32 %v1581, %v1965
  %v1967 = vpop.f32.mrb[0].mxu0
  %1968 = vmatprep.mubr.f32.mxu0 %v631
  %1969 = vmatmul.mubr.f32.gmra.mrb[0].mxu0 %v630
  %v1970 = vpop.f32.mrb[0].mxu0
  %v1971 = vadd.f32 %v1586, %v1970
  %v1972 = vpop.f32.mrb[0].mxu0
  %1973 = vmatprep.mubr.f32.mxu0 %v640
  %1974 = vmatmul.mubr.f32.gmra.mrb[0].mxu0 %v639
  %v1975 = vpop.f32.mrb[0].mxu0
  %v1976 = vadd.f32 %v1591, %v1975
  %v1977 = vpop.f32.mrb[0].mxu0
  %1978 = vmatprep.mubr.f32.mxu0 %v649
  %1979 = vmatmul.mubr.f32.gmra.mrb[0].mxu0 %v648
  %v1980 = vpop.f32.mrb[0].mxu0
  %v1981 = vadd.f32 %v1596, %v1980
  %v1982 = vpop.f32.mrb[0].mxu0
  %1983 = vmatprep.mubr.f32.mxu0 %v658
  %1984 = vmatmul.mubr.f32.gmra.mrb[0].mxu0 %v657
  %v1985 = vpop.f32.mrb[0].mxu0
  %v1986 = vadd.f32 %v1601, %v1985
  %v1987 = vpop.f32.mrb[0].mxu0
  %1988 = vmatprep.mubr.f32.mxu0 %v667
  %1989 = vmatmul.mubr.f32.gmra.mrb[0].mxu0 %v666
  %v1990 = vpop.f32.mrb[0].mxu0
  %v1991 = vadd.f32 %v1606, %v1990
  %v1992 = vpop.f32.mrb[0].mxu0
  %1993 = vmatprep.mubr.f32.mxu0 %v676
  %1994 = vmatmul.mubr.f32.gmra.mrb[0].mxu0 %v675
  %v1995 = vpop.f32.mrb[0].mxu0
  %v1996 = vadd.f32 %v1611, %v1995
  %v1997 = vpop.f32.mrb[0].mxu0
  %1998 = vmatprep.mubr.f32.mxu0 %v685
  %1999 = vmatmul.mubr.f32.gmra.mrb[0].mxu0 %v684
  %v2000 = vpop.f32.mrb[0].mxu0
  %v2001 = vadd.f32 %v1616, %v2000
  %v2002 = vpop.f32.mrb[0].mxu0
  %2003 = vmatprep.mubr.f32.mxu0 %v694
  %2004 = vmatmul.mubr.f32.gmra.mrb[0].mxu0 %v693
  %v2005 = vpop.f32.mrb[0].mxu0
  %v2006 = vadd.f32 %v1621, %v2005
  %v2007 = vpop.f32.mrb[0].mxu0
  %2008 = vmatprep.mubr.f32.mxu0 %v703
  %2009 = vmatmul.mubr.f32.gmra.mrb[0].mxu0 %v702
  %v2010 = vpop.f32.mrb[0].mxu0
  %v2011 = vadd.f32 %v1626, %v2010
  %v2012 = vpop.f32.mrb[0].mxu0
  %2013 = vmatprep.mubr.f32.mxu0 %v712
  %2014 = vmatmul.mubr.f32.gmra.mrb[0].mxu0 %v711
  %v2015 = vpop.f32.mrb[0].mxu0
  %v2016 = vadd.f32 %v1631, %v2015
  %v2017 = vpop.f32.mrb[0].mxu0
  %2018 = vmatprep.mubr.f32.mxu0 %v721
  %2019 = vmatmul.mubr.f32.gmra.mrb[0].mxu0 %v720
  %v2020 = vpop.f32.mrb[0].mxu0
  %v2021 = vadd.f32 %v1636, %v2020
  %v2022 = vpop.f32.mrb[0].mxu0
  %2023 = vdwg.mxu0
  %2024 = vmatprep.subr.mxu0 0.0
  %2025 = vmatpush1.msra.mxu0 %v821
  %2026 = vmatprep.subr.mxu0 0.0
  %2027 = vmatpush1.msra.mxu0 %v822
  %2028 = vmatprep.subr.mxu0 0.0
  %2029 = vmatpush1.msra.mxu0 %v823
  %2030 = vmatprep.subr.mxu0 0.0
  %2031 = vmatpush1.msra.mxu0 %v824
  %2032 = vmatprep.subr.mxu0 0.0
  %2033 = vmatpush1.msra.mxu0 %v825
  %2034 = vmatprep.subr.mxu0 0.0
  %2035 = vmatpush1.msra.mxu0 %v826
  %2036 = vmatprep.subr.mxu0 0.0
  %2037 = vmatpush1.msra.mxu0 %v827
  %2038 = vmatprep.subr.mxu0 0.0
  %2039 = vmatpush1.msra.mxu0 %v828
  %2040 = vmatprep.subr.mxu0 0.0
  %2041 = vmatpush1.msra.mxu0 %v829
  %2042 = vmatprep.subr.mxu0 0.0
  %2043 = vmatpush1.msra.mxu0 %v830
  %2044 = vmatprep.subr.mxu0 0.0
  %2045 = vmatpush1.msra.mxu0 %v831
  %2046 = vmatprep.subr.mxu0 0.0
  %2047 = vmatpush1.msra.mxu0 %v832
  %2048 = vmatprep.subr.mxu0 0.0
  %2049 = vmatpush1.msra.mxu0 %v833
  %2050 = vmatprep.subr.mxu0 0.0
  %2051 = vmatpush1.msra.mxu0 %v834
  %2052 = vmatprep.subr.mxu0 0.0
  %2053 = vmatpush1.msra.mxu0 %v835
  %2054 = vmatprep.subr.mxu0 0.0
  %2055 = vmatpush1.msra.mxu0 %v836
  %2056 = vmatprep.subr.mxu0 0.0
  %2057 = vmatpush1.msra.mxu0 %v837
  %2058 = vmatprep.subr.mxu0 0.0
  %2059 = vmatpush1.msra.mxu0 %v838
  %2060 = vmatprep.subr.mxu0 0.0
  %2061 = vmatpush1.msra.mxu0 %v839
  %2062 = vmatprep.subr.mxu0 0.0
  %2063 = vmatpush1.msra.mxu0 %v840
  %2064 = vmatprep.subr.mxu0 0.0
  %2065 = vmatpush1.msra.mxu0 %v841
  %2066 = vmatprep.subr.mxu0 0.0
  %2067 = vmatpush1.msra.mxu0 %v842
  %2068 = vmatprep.subr.mxu0 0.0
  %2069 = vmatpush1.msra.mxu0 %v843
  %2070 = vmatprep.subr.mxu0 0.0
  %2071 = vmatpush1.msra.mxu0 %v844
  %2072 = vmatprep.subr.mxu0 0.0
  %2073 = vmatpush1.msra.mxu0 %v845
  %2074 = vmatprep.subr.mxu0 0.0
  %2075 = vmatpush1.msra.mxu0 %v846
  %2076 = vmatprep.subr.mxu0 0.0
  %2077 = vmatpush1.msra.mxu0 %v847
  %2078 = vmatprep.subr.mxu0 0.0
  %2079 = vmatpush1.msra.mxu0 %v848
  %2080 = vmatprep.subr.mxu0 0.0
  %2081 = vmatpush1.msra.mxu0 %v849
  %2082 = vmatprep.subr.mxu0 0.0
  %2083 = vmatpush1.msra.mxu0 %v850
  %2084 = vmatprep.subr.mxu0 0.0
  %2085 = vmatpush1.msra.mxu0 %v851
  %2086 = vmatprep.subr.mxu0 0.0
  %2087 = vmatpush1.msra.mxu0 %v852
  %2088 = vmatprep.mubr.f32.mxu0 %v156
  %2089 = vmatmul.mubr.f32.gmra.mrb[0].mxu0 %v155
  %v2090 = vpop.f32.mrb[0].mxu0
  %v2091 = vadd.f32 %v1706, %v2090
  %v2092 = vpop.f32.mrb[0].mxu0
  %2093 = vmatprep.mubr.f32.mxu0 %v165
  %2094 = vmatmul.mubr.f32.gmra.mrb[0].mxu0 %v164
  %v2095 = vpop.f32.mrb[0].mxu0
  %v2096 = vadd.f32 %v1711, %v2095
  %v2097 = vpop.f32.mrb[0].mxu0
  %2098 = vmatprep.mubr.f32.mxu0 %v174
  %2099 = vmatmul.mubr.f32.gmra.mrb[0].mxu0 %v173
  %v2100 = vpop.f32.mrb[0].mxu0
  %v2101 = vadd.f32 %v1716, %v2100
  %v2102 = vpop.f32.mrb[0].mxu0
  %2103 = vmatprep.mubr.f32.mxu0 %v183
  %2104 = vmatmul.mubr.f32.gmra.mrb[0].mxu0 %v182
  %v2105 = vpop.f32.mrb[0].mxu0
  %v2106 = vadd.f32 %v1721, %v2105
  %v2107 = vpop.f32.mrb[0].mxu0
  %2108 = vmatprep.mubr.f32.mxu0 %v192
  %2109 = vmatmul.mubr.f32.gmra.mrb[0].mxu0 %v191
  %v2110 = vpop.f32.mrb[0].mxu0
  %v2111 = vadd.f32 %v1726, %v2110
  %v2112 = vpop.f32.mrb[0].mxu0
  %2113 = vmatprep.mubr.f32.mxu0 %v201
  %2114 = vmatmul.mubr.f32.gmra.mrb[0].mxu0 %v200
  %v2115 = vpop.f32.mrb[0].mxu0
  %v2116 = vadd.f32 %v1731, %v2115
  %v2117 = vpop.f32.mrb[0].mxu0
  %2118 = vmatprep.mubr.f32.mxu0 %v210
  %2119 = vmatmul.mubr.f32.gmra.mrb[0].mxu0 %v209
  %v2120 = vpop.f32.mrb[0].mxu0
  %v2121 = vadd.f32 %v1736, %v2120
  %v2122 = vpop.f32.mrb[0].mxu0
  %2123 = vmatprep.mubr.f32.mxu0 %v219
  %2124 = vmatmul.mubr.f32.gmra.mrb[0].mxu0 %v218
  %v2125 = vpop.f32.mrb[0].mxu0
  %v2126 = vadd.f32 %v1741, %v2125
  %v2127 = vpop.f32.mrb[0].mxu0
  %2128 = vmatprep.mubr.f32.mxu0 %v228
  %2129 = vmatmul.mubr.f32.gmra.mrb[0].mxu0 %v227
  %v2130 = vpop.f32.mrb[0].mxu0
  %v2131 = vadd.f32 %v1746, %v2130
  %v2132 = vpop.f32.mrb[0].mxu0
  %2133 = vmatprep.mubr.f32.mxu0 %v237
  %2134 = vmatmul.mubr.f32.gmra.mrb[0].mxu0 %v236
  %v2135 = vpop.f32.mrb[0].mxu0
  %v2136 = vadd.f32 %v1751, %v2135
  %v2137 = vpop.f32.mrb[0].mxu0
  %2138 = vmatprep.mubr.f32.mxu0 %v246
  %2139 = vmatmul.mubr.f32.gmra.mrb[0].mxu0 %v245
  %v2140 = vpop.f32.mrb[0].mxu0
  %v2141 = vadd.f32 %v1756, %v2140
  %v2142 = vpop.f32.mrb[0].mxu0
  %2143 = vmatprep.mubr.f32.mxu0 %v255
  %2144 = vmatmul.mubr.f32.gmra.mrb[0].mxu0 %v254
  %v2145 = vpop.f32.mrb[0].mxu0
  %v2146 = vadd.f32 %v1761, %v2145
  %v2147 = vpop.f32.mrb[0].mxu0
  %2148 = vmatprep.mubr.f32.mxu0 %v264
  %2149 = vmatmul.mubr.f32.gmra.mrb[0].mxu0 %v263
  %v2150 = vpop.f32.mrb[0].mxu0
  %v2151 = vadd.f32 %v1766, %v2150
  %v2152 = vpop.f32.mrb[0].mxu0
  %2153 = vmatprep.mubr.f32.mxu0 %v273
  %2154 = vmatmul.mubr.f32.gmra.mrb[0].mxu0 %v272
  %v2155 = vpop.f32.mrb[0].mxu0
  %v2156 = vadd.f32 %v1771, %v2155
  %v2157 = vpop.f32.mrb[0].mxu0
  %2158 = vmatprep.mubr.f32.mxu0 %v282
  %2159 = vmatmul.mubr.f32.gmra.mrb[0].mxu0 %v281
  %v2160 = vpop.f32.mrb[0].mxu0
  %v2161 = vadd.f32 %v1776, %v2160
  %v2162 = vpop.f32.mrb[0].mxu0
  %2163 = vmatprep.mubr.f32.mxu0 %v291
  %2164 = vmatmul.mubr.f32.gmra.mrb[0].mxu0 %v290
  %v2165 = vpop.f32.mrb[0].mxu0
  %v2166 = vadd.f32 %v1781, %v2165
  %v2167 = vpop.f32.mrb[0].mxu0
  %2168 = vmatprep.mubr.f32.mxu0 %v300
  %2169 = vmatmul.mubr.f32.gmra.mrb[0].mxu0 %v299
  %v2170 = vpop.f32.mrb[0].mxu0
  %v2171 = vadd.f32 %v1786, %v2170
  %v2172 = vpop.f32.mrb[0].mxu0
  %2173 = vmatprep.mubr.f32.mxu0 %v309
  %2174 = vmatmul.mubr.f32.gmra.mrb[0].mxu0 %v308
  %v2175 = vpop.f32.mrb[0].mxu0
  %v2176 = vadd.f32 %v1791, %v2175
  %v2177 = vpop.f32.mrb[0].mxu0
  %2178 = vmatprep.mubr.f32.mxu0 %v318
  %2179 = vmatmul.mubr.f32.gmra.mrb[0].mxu0 %v317
  %v2180 = vpop.f32.mrb[0].mxu0
  %v2181 = vadd.f32 %v1796, %v2180
  %v2182 = vpop.f32.mrb[0].mxu0
  %2183 = vmatprep.mubr.f32.mxu0 %v327
  %2184 = vmatmul.mubr.f32.gmra.mrb[0].mxu0 %v326
  %v2185 = vpop.f32.mrb[0].mxu0
  %v2186 = vadd.f32 %v1801, %v2185
  %v2187 = vpop.f32.mrb[0].mxu0
  %2188 = vmatprep.mubr.f32.mxu0 %v336
  %2189 = vmatmul.mubr.f32.gmra.mrb[0].mxu0 %v335
  %v2190 = vpop.f32.mrb[0].mxu0
  %v2191 = vadd.f32 %v1806, %v2190
  %v2192 = vpop.f32.mrb[0].mxu0
  %2193 = vmatprep.mubr.f32.mxu0 %v345
  %2194 = vmatmul.mubr.f32.gmra.mrb[0].mxu0 %v344
  %v2195 = vpop.f32.mrb[0].mxu0
  %v2196 = vadd.f32 %v1811, %v2195
  %v2197 = vpop.f32.mrb[0].mxu0
  %2198 = vmatprep.mubr.f32.mxu0 %v354
  %2199 = vmatmul.mubr.f32.gmra.mrb[0].mxu0 %v353
  %v2200 = vpop.f32.mrb[0].mxu0
  %v2201 = vadd.f32 %v1816, %v2200
  %v2202 = vpop.f32.mrb[0].mxu0
  %2203 = vmatprep.mubr.f32.mxu0 %v363
  %2204 = vmatmul.mubr.f32.gmra.mrb[0].mxu0 %v362
  %v2205 = vpop.f32.mrb[0].mxu0
  %v2206 = vadd.f32 %v1821, %v2205
  %v2207 = vpop.f32.mrb[0].mxu0
  %2208 = vmatprep.mubr.f32.mxu0 %v372
  %2209 = vmatmul.mubr.f32.gmra.mrb[0].mxu0 %v371
  %v2210 = vpop.f32.mrb[0].mxu0
  %v2211 = vadd.f32 %v1826, %v2210
  %v2212 = vpop.f32.mrb[0].mxu0
  %2213 = vmatprep.mubr.f32.mxu0 %v381
  %2214 = vmatmul.mubr.f32.gmra.mrb[0].mxu0 %v380
  %v2215 = vpop.f32.mrb[0].mxu0
  %v2216 = vadd.f32 %v1831, %v2215
  %v2217 = vpop.f32.mrb[0].mxu0
  %2218 = vmatprep.mubr.f32.mxu0 %v390
  %2219 = vmatmul.mubr.f32.gmra.mrb[0].mxu0 %v389
  %v2220 = vpop.f32.mrb[0].mxu0
  %v2221 = vadd.f32 %v1836, %v2220
  %v2222 = vpop.f32.mrb[0].mxu0
  %2223 = vmatprep.mubr.f32.mxu0 %v399
  %2224 = vmatmul.mubr.f32.gmra.mrb[0].mxu0 %v398
  %v2225 = vpop.f32.mrb[0].mxu0
  %v2226 = vadd.f32 %v1841, %v2225
  %v2227 = vpop.f32.mrb[0].mxu0
  %2228 = vmatprep.mubr.f32.mxu0 %v408
  %2229 = vmatmul.mubr.f32.gmra.mrb[0].mxu0 %v407
  %v2230 = vpop.f32.mrb[0].mxu0
  %v2231 = vadd.f32 %v1846, %v2230
  %v2232 = vpop.f32.mrb[0].mxu0
  %2233 = vmatprep.mubr.f32.mxu0 %v417
  %2234 = vmatmul.mubr.f32.gmra.mrb[0].mxu0 %v416
  %v2235 = vpop.f32.mrb[0].mxu0
  %v2236 = vadd.f32 %v1851, %v2235
  %v2237 = vpop.f32.mrb[0].mxu0
  %2238 = vmatprep.mubr.f32.mxu0 %v426
  %2239 = vmatmul.mubr.f32.gmra.mrb[0].mxu0 %v425
  %v2240 = vpop.f32.mrb[0].mxu0
  %v2241 = vadd.f32 %v1856, %v2240
  %v2242 = vpop.f32.mrb[0].mxu0
  %2243 = vmatprep.mubr.f32.mxu0 %v435
  %2244 = vmatmul.mubr.f32.gmra.mrb[0].mxu0 %v434
  %v2245 = vpop.f32.mrb[0].mxu0
  %v2246 = vadd.f32 %v1861, %v2245
  %v2247 = vpop.f32.mrb[0].mxu0
  %2248 = vmatprep.mubr.f32.mxu0 %v444
  %2249 = vmatmul.mubr.f32.gmra.mrb[0].mxu0 %v443
  %v2250 = vpop.f32.mrb[0].mxu0
  %v2251 = vadd.f32 %v1866, %v2250
  %v2252 = vpop.f32.mrb[0].mxu0
  %2253 = vmatprep.mubr.f32.mxu0 %v453
  %2254 = vmatmul.mubr.f32.gmra.mrb[0].mxu0 %v452
  %v2255 = vpop.f32.mrb[0].mxu0
  %v2256 = vadd.f32 %v1871, %v2255
  %v2257 = vpop.f32.mrb[0].mxu0
  %2258 = vmatprep.mubr.f32.mxu0 %v462
  %2259 = vmatmul.mubr.f32.gmra.mrb[0].mxu0 %v461
  %v2260 = vpop.f32.mrb[0].mxu0
  %v2261 = vadd.f32 %v1876, %v2260
  %v2262 = vpop.f32.mrb[0].mxu0
  %2263 = vmatprep.mubr.f32.mxu0 %v471
  %2264 = vmatmul.mubr.f32.gmra.mrb[0].mxu0 %v470
  %v2265 = vpop.f32.mrb[0].mxu0
  %v2266 = vadd.f32 %v1881, %v2265
  %v2267 = vpop.f32.mrb[0].mxu0
  %2268 = vmatprep.mubr.f32.mxu0 %v480
  %2269 = vmatmul.mubr.f32.gmra.mrb[0].mxu0 %v479
  %v2270 = vpop.f32.mrb[0].mxu0
  %v2271 = vadd.f32 %v1886, %v2270
  %v2272 = vpop.f32.mrb[0].mxu0
  %2273 = vmatprep.mubr.f32.mxu0 %v489
  %2274 = vmatmul.mubr.f32.gmra.mrb[0].mxu0 %v488
  %v2275 = vpop.f32.mrb[0].mxu0
  %v2276 = vadd.f32 %v1891, %v2275
  %v2277 = vpop.f32.mrb[0].mxu0
  %2278 = vmatprep.mubr.f32.mxu0 %v498
  %2279 = vmatmul.mubr.f32.gmra.mrb[0].mxu0 %v497
  %v2280 = vpop.f32.mrb[0].mxu0
  %v2281 = vadd.f32 %v1896, %v2280
  %v2282 = vpop.f32.mrb[0].mxu0
  %2283 = vmatprep.mubr.f32.mxu0 %v507
  %2284 = vmatmul.mubr.f32.gmra.mrb[0].mxu0 %v506
  %v2285 = vpop.f32.mrb[0].mxu0
  %v2286 = vadd.f32 %v1901, %v2285
  %v2287 = vpop.f32.mrb[0].mxu0
  %2288 = vmatprep.mubr.f32.mxu0 %v516
  %2289 = vmatmul.mubr.f32.gmra.mrb[0].mxu0 %v515
  %v2290 = vpop.f32.mrb[0].mxu0
  %v2291 = vadd.f32 %v1906, %v2290
  %v2292 = vpop.f32.mrb[0].mxu0
  %2293 = vmatprep.mubr.f32.mxu0 %v525
  %2294 = vmatmul.mubr.f32.gmra.mrb[0].mxu0 %v524
  %v2295 = vpop.f32.mrb[0].mxu0
  %v2296 = vadd.f32 %v1911, %v2295
  %v2297 = vpop.f32.mrb[0].mxu0
  %2298 = vmatprep.mubr.f32.mxu0 %v534
  %2299 = vmatmul.mubr.f32.gmra.mrb[0].mxu0 %v533
  %v2300 = vpop.f32.mrb[0].mxu0
  %v2301 = vadd.f32 %v1916, %v2300
  %v2302 = vpop.f32.mrb[0].mxu0
  %2303 = vmatprep.mubr.f32.mxu0 %v543
  %2304 = vmatmul.mubr.f32.gmra.mrb[0].mxu0 %v542
  %v2305 = vpop.f32.mrb[0].mxu0
  %v2306 = vadd.f32 %v1921, %v2305
  %v2307 = vpop.f32.mrb[0].mxu0
  %2308 = vmatprep.mubr.f32.mxu0 %v552
  %2309 = vmatmul.mubr.f32.gmra.mrb[0].mxu0 %v551
  %v2310 = vpop.f32.mrb[0].mxu0
  %v2311 = vadd.f32 %v1926, %v2310
  %v2312 = vpop.f32.mrb[0].mxu0
  %2313 = vmatprep.mubr.f32.mxu0 %v561
  %2314 = vmatmul.mubr.f32.gmra.mrb[0].mxu0 %v560
  %v2315 = vpop.f32.mrb[0].mxu0
  %v2316 = vadd.f32 %v1931, %v2315
  %v2317 = vpop.f32.mrb[0].mxu0
  %2318 = vmatprep.mubr.f32.mxu0 %v570
  %2319 = vmatmul.mubr.f32.gmra.mrb[0].mxu0 %v569
  %v2320 = vpop.f32.mrb[0].mxu0
  %v2321 = vadd.f32 %v1936, %v2320
  %v2322 = vpop.f32.mrb[0].mxu0
  %2323 = vmatprep.mubr.f32.mxu0 %v579
  %2324 = vmatmul.mubr.f32.gmra.mrb[0].mxu0 %v578
  %v2325 = vpop.f32.mrb[0].mxu0
  %v2326 = vadd.f32 %v1941, %v2325
  %v2327 = vpop.f32.mrb[0].mxu0
  %2328 = vmatprep.mubr.f32.mxu0 %v588
  %2329 = vmatmul.mubr.f32.gmra.mrb[0].mxu0 %v587
  %v2330 = vpop.f32.mrb[0].mxu0
  %v2331 = vadd.f32 %v1946, %v2330
  %v2332 = vpop.f32.mrb[0].mxu0
  %2333 = vmatprep.mubr.f32.mxu0 %v597
  %2334 = vmatmul.mubr.f32.gmra.mrb[0].mxu0 %v596
  %v2335 = vpop.f32.mrb[0].mxu0
  %v2336 = vadd.f32 %v1951, %v2335
  %v2337 = vpop.f32.mrb[0].mxu0
  %2338 = vmatprep.mubr.f32.mxu0 %v606
  %2339 = vmatmul.mubr.f32.gmra.mrb[0].mxu0 %v605
  %v2340 = vpop.f32.mrb[0].mxu0
  %v2341 = vadd.f32 %v1956, %v2340
  %v2342 = vpop.f32.mrb[0].mxu0
  %2343 = vmatprep.mubr.f32.mxu0 %v615
  %2344 = vmatmul.mubr.f32.gmra.mrb[0].mxu0 %v614
  %v2345 = vpop.f32.mrb[0].mxu0
  %v2346 = vadd.f32 %v1961, %v2345
  %v2347 = vpop.f32.mrb[0].mxu0
  %2348 = vmatprep.mubr.f32.mxu0 %v624
  %2349 = vmatmul.mubr.f32.gmra.mrb[0].mxu0 %v623
  %v2350 = vpop.f32.mrb[0].mxu0
  %v2351 = vadd.f32 %v1966, %v2350
  %v2352 = vpop.f32.mrb[0].mxu0
  %2353 = vmatprep.mubr.f32.mxu0 %v633
  %2354 = vmatmul.mubr.f32.gmra.mrb[0].mxu0 %v632
  %v2355 = vpop.f32.mrb[0].mxu0
  %v2356 = vadd.f32 %v1971, %v2355
  %v2357 = vpop.f32.mrb[0].mxu0
  %2358 = vmatprep.mubr.f32.mxu0 %v642
  %2359 = vmatmul.mubr.f32.gmra.mrb[0].mxu0 %v641
  %v2360 = vpop.f32.mrb[0].mxu0
  %v2361 = vadd.f32 %v1976, %v2360
  %v2362 = vpop.f32.mrb[0].mxu0
  %2363 = vmatprep.mubr.f32.mxu0 %v651
  %2364 = vmatmul.mubr.f32.gmra.mrb[0].mxu0 %v650
  %v2365 = vpop.f32.mrb[0].mxu0
  %v2366 = vadd.f32 %v1981, %v2365
  %v2367 = vpop.f32.mrb[0].mxu0
  %2368 = vmatprep.mubr.f32.mxu0 %v660
  %2369 = vmatmul.mubr.f32.gmra.mrb[0].mxu0 %v659
  %v2370 = vpop.f32.mrb[0].mxu0
  %v2371 = vadd.f32 %v1986, %v2370
  %v2372 = vpop.f32.mrb[0].mxu0
  %2373 = vmatprep.mubr.f32.mxu0 %v669
  %2374 = vmatmul.mubr.f32.gmra.mrb[0].mxu0 %v668
  %v2375 = vpop.f32.mrb[0].mxu0
  %v2376 = vadd.f32 %v1991, %v2375
  %v2377 = vpop.f32.mrb[0].mxu0
  %2378 = vmatprep.mubr.f32.mxu0 %v678
  %2379 = vmatmul.mubr.f32.gmra.mrb[0].mxu0 %v677
  %v2380 = vpop.f32.mrb[0].mxu0
  %v2381 = vadd.f32 %v1996, %v2380
  %v2382 = vpop.f32.mrb[0].mxu0
  %2383 = vmatprep.mubr.f32.mxu0 %v687
  %2384 = vmatmul.mubr.f32.gmra.mrb[0].mxu0 %v686
  %v2385 = vpop.f32.mrb[0].mxu0
  %v2386 = vadd.f32 %v2001, %v2385
  %v2387 = vpop.f32.mrb[0].mxu0
  %2388 = vmatprep.mubr.f32.mxu0 %v696
  %2389 = vmatmul.mubr.f32.gmra.mrb[0].mxu0 %v695
  %v2390 = vpop.f32.mrb[0].mxu0
  %v2391 = vadd.f32 %v2006, %v2390
  %v2392 = vpop.f32.mrb[0].mxu0
  %2393 = vmatprep.mubr.f32.mxu0 %v705
  %2394 = vmatmul.mubr.f32.gmra.mrb[0].mxu0 %v704
  %v2395 = vpop.f32.mrb[0].mxu0
  %v2396 = vadd.f32 %v2011, %v2395
  %v2397 = vpop.f32.mrb[0].mxu0
  %2398 = vmatprep.mubr.f32.mxu0 %v714
  %2399 = vmatmul.mubr.f32.gmra.mrb[0].mxu0 %v713
  %v2400 = vpop.f32.mrb[0].mxu0
  %v2401 = vadd.f32 %v2016, %v2400
  %v2402 = vpop.f32.mrb[0].mxu0
  %2403 = vmatprep.mubr.f32.mxu0 %v723
  %2404 = vmatmul.mubr.f32.gmra.mrb[0].mxu0 %v722
  %v2405 = vpop.f32.mrb[0].mxu0
  %v2406 = vadd.f32 %v2021, %v2405
  %v2407 = vpop.f32.mrb[0].mxu0
  %2408 = vdwg.mxu0
  %2409 = vmatprep.subr.mxu0 0.0
  %2410 = vmatpush1.msra.mxu0 %v853
  %2411 = vmatprep.subr.mxu0 0.0
  %2412 = vmatpush1.msra.mxu0 %v854
  %2413 = vmatprep.subr.mxu0 0.0
  %2414 = vmatpush1.msra.mxu0 %v855
  %2415 = vmatprep.subr.mxu0 0.0
  %2416 = vmatpush1.msra.mxu0 %v856
  %2417 = vmatprep.subr.mxu0 0.0
  %2418 = vmatpush1.msra.mxu0 %v857
  %2419 = vmatprep.subr.mxu0 0.0
  %2420 = vmatpush1.msra.mxu0 %v858
  %2421 = vmatprep.subr.mxu0 0.0
  %2422 = vmatpush1.msra.mxu0 %v859
  %2423 = vmatprep.subr.mxu0 0.0
  %2424 = vmatpush1.msra.mxu0 %v860
  %2425 = vmatprep.subr.mxu0 0.0
  %2426 = vmatpush1.msra.mxu0 %v861
  %2427 = vmatprep.subr.mxu0 0.0
  %2428 = vmatpush1.msra.mxu0 %v862
  %2429 = vmatprep.subr.mxu0 0.0
  %2430 = vmatpush1.msra.mxu0 %v863
  %2431 = vmatprep.subr.mxu0 0.0
  %2432 = vmatpush1.msra.mxu0 %v864
  %2433 = vmatprep.subr.mxu0 0.0
  %2434 = vmatpush1.msra.mxu0 %v865
  %2435 = vmatprep.subr.mxu0 0.0
  %2436 = vmatpush1.msra.mxu0 %v866
  %2437 = vmatprep.subr.mxu0 0.0
  %2438 = vmatpush1.msra.mxu0 %v867
  %2439 = vmatprep.subr.mxu0 0.0
  %2440 = vmatpush1.msra.mxu0 %v868
  %2441 = vmatprep.subr.mxu0 0.0
  %2442 = vmatpush1.msra.mxu0 0.0
  %2443 = vmatprep.subr.mxu0 0.0
  %2444 = vmatpush1.msra.mxu0 0.0
  %2445 = vmatprep.subr.mxu0 0.0
  %2446 = vmatpush1.msra.mxu0 0.0
  %2447 = vmatprep.subr.mxu0 0.0
  %2448 = vmatpush1.msra.mxu0 0.0
  %2449 = vmatprep.subr.mxu0 0.0
  %2450 = vmatpush1.msra.mxu0 0.0
  %2451 = vmatprep.subr.mxu0 0.0
  %2452 = vmatpush1.msra.mxu0 0.0
  %2453 = vmatprep.subr.mxu0 0.0
  %2454 = vmatpush1.msra.mxu0 0.0
  %2455 = vmatprep.subr.mxu0 0.0
  %2456 = vmatpush1.msra.mxu0 0.0
  %2457 = vmatprep.subr.mxu0 0.0
  %2458 = vmatpush1.msra.mxu0 0.0
  %2459 = vmatprep.subr.mxu0 0.0
  %2460 = vmatpush1.msra.mxu0 0.0
  %2461 = vmatprep.subr.mxu0 0.0
  %2462 = vmatpush1.msra.mxu0 0.0
  %2463 = vmatprep.subr.mxu0 0.0
  %2464 = vmatpush1.msra.mxu0 0.0
  %2465 = vmatprep.subr.mxu0 0.0
  %2466 = vmatpush1.msra.mxu0 0.0
  %2467 = vmatprep.subr.mxu0 0.0
  %2468 = vmatpush1.msra.mxu0 0.0
  %2469 = vmatprep.subr.mxu0 0.0
  %2470 = vmatpush1.msra.mxu0 0.0
  %2471 = vmatprep.subr.mxu0 0.0
  %2472 = vmatpush1.msra.mxu0 0.0
  %2473 = vmatprep.mubr.f32.mxu0 0.0
  %2474 = vmatmul.mubr.f32.gmra.mrb[0].mxu0 %v157
  %v2475 = vpop.f32.mrb[0].mxu0
  %v2476 = vadd.f32 %v2091, %v2475
  %v2477 = vpop.f32.mrb[0].mxu0
  %2478 = vmatprep.mubr.f32.mxu0 0.0
  %2479 = vmatmul.mubr.f32.gmra.mrb[0].mxu0 %v166
  %v2480 = vpop.f32.mrb[0].mxu0
  %v2481 = vadd.f32 %v2096, %v2480
  %v2482 = vpop.f32.mrb[0].mxu0
  %2483 = vmatprep.mubr.f32.mxu0 0.0
  %2484 = vmatmul.mubr.f32.gmra.mrb[0].mxu0 %v175
  %v2485 = vpop.f32.mrb[0].mxu0
  %v2486 = vadd.f32 %v2101, %v2485
  %v2487 = vpop.f32.mrb[0].mxu0
  %2488 = vmatprep.mubr.f32.mxu0 0.0
  %2489 = vmatmul.mubr.f32.gmra.mrb[0].mxu0 %v184
  %v2490 = vpop.f32.mrb[0].mxu0
  %v2491 = vadd.f32 %v2106, %v2490
  %v2492 = vpop.f32.mrb[0].mxu0
  %2493 = vmatprep.mubr.f32.mxu0 0.0
  %2494 = vmatmul.mubr.f32.gmra.mrb[0].mxu0 %v193
  %v2495 = vpop.f32.mrb[0].mxu0
  %v2496 = vadd.f32 %v2111, %v2495
  %v2497 = vpop.f32.mrb[0].mxu0
  %2498 = vmatprep.mubr.f32.mxu0 0.0
  %2499 = vmatmul.mubr.f32.gmra.mrb[0].mxu0 %v202
  %v2500 = vpop.f32.mrb[0].mxu0
  %v2501 = vadd.f32 %v2116, %v2500
  %v2502 = vpop.f32.mrb[0].mxu0
  %2503 = vmatprep.mubr.f32.mxu0 0.0
  %2504 = vmatmul.mubr.f32.gmra.mrb[0].mxu0 %v211
  %v2505 = vpop.f32.mrb[0].mxu0
  %v2506 = vadd.f32 %v2121, %v2505
  %v2507 = vpop.f32.mrb[0].mxu0
  %2508 = vmatprep.mubr.f32.mxu0 0.0
  %2509 = vmatmul.mubr.f32.gmra.mrb[0].mxu0 %v220
  %v2510 = vpop.f32.mrb[0].mxu0
  %v2511 = vadd.f32 %v2126, %v2510
  %v2512 = vpop.f32.mrb[0].mxu0
  %2513 = vmatprep.mubr.f32.mxu0 0.0
  %2514 = vmatmul.mubr.f32.gmra.mrb[0].mxu0 %v229
  %v2515 = vpop.f32.mrb[0].mxu0
  %v2516 = vadd.f32 %v2131, %v2515
  %v2517 = vpop.f32.mrb[0].mxu0
  %2518 = vmatprep.mubr.f32.mxu0 0.0
  %2519 = vmatmul.mubr.f32.gmra.mrb[0].mxu0 %v238
  %v2520 = vpop.f32.mrb[0].mxu0
  %v2521 = vadd.f32 %v2136, %v2520
  %v2522 = vpop.f32.mrb[0].mxu0
  %2523 = vmatprep.mubr.f32.mxu0 0.0
  %2524 = vmatmul.mubr.f32.gmra.mrb[0].mxu0 %v247
  %v2525 = vpop.f32.mrb[0].mxu0
  %v2526 = vadd.f32 %v2141, %v2525
  %v2527 = vpop.f32.mrb[0].mxu0
  %2528 = vmatprep.mubr.f32.mxu0 0.0
  %2529 = vmatmul.mubr.f32.gmra.mrb[0].mxu0 %v256
  %v2530 = vpop.f32.mrb[0].mxu0
  %v2531 = vadd.f32 %v2146, %v2530
  %v2532 = vpop.f32.mrb[0].mxu0
  %2533 = vmatprep.mubr.f32.mxu0 0.0
  %2534 = vmatmul.mubr.f32.gmra.mrb[0].mxu0 %v265
  %v2535 = vpop.f32.mrb[0].mxu0
  %v2536 = vadd.f32 %v2151, %v2535
  %v2537 = vpop.f32.mrb[0].mxu0
  %2538 = vmatprep.mubr.f32.mxu0 0.0
  %2539 = vmatmul.mubr.f32.gmra.mrb[0].mxu0 %v274
  %v2540 = vpop.f32.mrb[0].mxu0
  %v2541 = vadd.f32 %v2156, %v2540
  %v2542 = vpop.f32.mrb[0].mxu0
  %2543 = vmatprep.mubr.f32.mxu0 0.0
  %2544 = vmatmul.mubr.f32.gmra.mrb[0].mxu0 %v283
  %v2545 = vpop.f32.mrb[0].mxu0
  %v2546 = vadd.f32 %v2161, %v2545
  %v2547 = vpop.f32.mrb[0].mxu0
  %2548 = vmatprep.mubr.f32.mxu0 0.0
  %2549 = vmatmul.mubr.f32.gmra.mrb[0].mxu0 %v292
  %v2550 = vpop.f32.mrb[0].mxu0
  %v2551 = vadd.f32 %v2166, %v2550
  %v2552 = vpop.f32.mrb[0].mxu0
  %2553 = vmatprep.mubr.f32.mxu0 0.0
  %2554 = vmatmul.mubr.f32.gmra.mrb[0].mxu0 %v301
  %v2555 = vpop.f32.mrb[0].mxu0
  %v2556 = vadd.f32 %v2171, %v2555
  %v2557 = vpop.f32.mrb[0].mxu0
  %2558 = vmatprep.mubr.f32.mxu0 0.0
  %2559 = vmatmul.mubr.f32.gmra.mrb[0].mxu0 %v310
  %v2560 = vpop.f32.mrb[0].mxu0
  %v2561 = vadd.f32 %v2176, %v2560
  %v2562 = vpop.f32.mrb[0].mxu0
  %2563 = vmatprep.mubr.f32.mxu0 0.0
  %2564 = vmatmul.mubr.f32.gmra.mrb[0].mxu0 %v319
  %v2565 = vpop.f32.mrb[0].mxu0
  %v2566 = vadd.f32 %v2181, %v2565
  %v2567 = vpop.f32.mrb[0].mxu0
  %2568 = vmatprep.mubr.f32.mxu0 0.0
  %2569 = vmatmul.mubr.f32.gmra.mrb[0].mxu0 %v328
  %v2570 = vpop.f32.mrb[0].mxu0
  %v2571 = vadd.f32 %v2186, %v2570
  %v2572 = vpop.f32.mrb[0].mxu0
  %2573 = vmatprep.mubr.f32.mxu0 0.0
  %2574 = vmatmul.mubr.f32.gmra.mrb[0].mxu0 %v337
  %v2575 = vpop.f32.mrb[0].mxu0
  %v2576 = vadd.f32 %v2191, %v2575
  %v2577 = vpop.f32.mrb[0].mxu0
  %2578 = vmatprep.mubr.f32.mxu0 0.0
  %2579 = vmatmul.mubr.f32.gmra.mrb[0].mxu0 %v346
  %v2580 = vpop.f32.mrb[0].mxu0
  %v2581 = vadd.f32 %v2196, %v2580
  %v2582 = vpop.f32.mrb[0].mxu0
  %2583 = vmatprep.mubr.f32.mxu0 0.0
  %2584 = vmatmul.mubr.f32.gmra.mrb[0].mxu0 %v355
  %v2585 = vpop.f32.mrb[0].mxu0
  %v2586 = vadd.f32 %v2201, %v2585
  %v2587 = vpop.f32.mrb[0].mxu0
  %2588 = vmatprep.mubr.f32.mxu0 0.0
  %2589 = vmatmul.mubr.f32.gmra.mrb[0].mxu0 %v364
  %v2590 = vpop.f32.mrb[0].mxu0
  %v2591 = vadd.f32 %v2206, %v2590
  %v2592 = vpop.f32.mrb[0].mxu0
  %2593 = vmatprep.mubr.f32.mxu0 0.0
  %2594 = vmatmul.mubr.f32.gmra.mrb[0].mxu0 %v373
  %v2595 = vpop.f32.mrb[0].mxu0
  %v2596 = vadd.f32 %v2211, %v2595
  %v2597 = vpop.f32.mrb[0].mxu0
  %2598 = vmatprep.mubr.f32.mxu0 0.0
  %2599 = vmatmul.mubr.f32.gmra.mrb[0].mxu0 %v382
  %v2600 = vpop.f32.mrb[0].mxu0
  %v2601 = vadd.f32 %v2216, %v2600
  %v2602 = vpop.f32.mrb[0].mxu0
  %2603 = vmatprep.mubr.f32.mxu0 0.0
  %2604 = vmatmul.mubr.f32.gmra.mrb[0].mxu0 %v391
  %v2605 = vpop.f32.mrb[0].mxu0
  %v2606 = vadd.f32 %v2221, %v2605
  %v2607 = vpop.f32.mrb[0].mxu0
  %2608 = vmatprep.mubr.f32.mxu0 0.0
  %2609 = vmatmul.mubr.f32.gmra.mrb[0].mxu0 %v400
  %v2610 = vpop.f32.mrb[0].mxu0
  %v2611 = vadd.f32 %v2226, %v2610
  %v2612 = vpop.f32.mrb[0].mxu0
  %2613 = vmatprep.mubr.f32.mxu0 0.0
  %2614 = vmatmul.mubr.f32.gmra.mrb[0].mxu0 %v409
  %v2615 = vpop.f32.mrb[0].mxu0
  %v2616 = vadd.f32 %v2231, %v2615
  %v2617 = vpop.f32.mrb[0].mxu0
  %2618 = vmatprep.mubr.f32.mxu0 0.0
  %2619 = vmatmul.mubr.f32.gmra.mrb[0].mxu0 %v418
  %v2620 = vpop.f32.mrb[0].mxu0
  %v2621 = vadd.f32 %v2236, %v2620
  %v2622 = vpop.f32.mrb[0].mxu0
  %2623 = vmatprep.mubr.f32.mxu0 0.0
  %2624 = vmatmul.mubr.f32.gmra.mrb[0].mxu0 %v427
  %v2625 = vpop.f32.mrb[0].mxu0
  %v2626 = vadd.f32 %v2241, %v2625
  %v2627 = vpop.f32.mrb[0].mxu0
  %2628 = vmatprep.mubr.f32.mxu0 0.0
  %2629 = vmatmul.mubr.f32.gmra.mrb[0].mxu0 %v436
  %v2630 = vpop.f32.mrb[0].mxu0
  %v2631 = vadd.f32 %v2246, %v2630
  %v2632 = vpop.f32.mrb[0].mxu0
  %2633 = vmatprep.mubr.f32.mxu0 0.0
  %2634 = vmatmul.mubr.f32.gmra.mrb[0].mxu0 %v445
  %v2635 = vpop.f32.mrb[0].mxu0
  %v2636 = vadd.f32 %v2251, %v2635
  %v2637 = vpop.f32.mrb[0].mxu0
  %2638 = vmatprep.mubr.f32.mxu0 0.0
  %2639 = vmatmul.mubr.f32.gmra.mrb[0].mxu0 %v454
  %v2640 = vpop.f32.mrb[0].mxu0
  %v2641 = vadd.f32 %v2256, %v2640
  %v2642 = vpop.f32.mrb[0].mxu0
  %2643 = vmatprep.mubr.f32.mxu0 0.0
  %2644 = vmatmul.mubr.f32.gmra.mrb[0].mxu0 %v463
  %v2645 = vpop.f32.mrb[0].mxu0
  %v2646 = vadd.f32 %v2261, %v2645
  %v2647 = vpop.f32.mrb[0].mxu0
  %2648 = vmatprep.mubr.f32.mxu0 0.0
  %2649 = vmatmul.mubr.f32.gmra.mrb[0].mxu0 %v472
  %v2650 = vpop.f32.mrb[0].mxu0
  %v2651 = vadd.f32 %v2266, %v2650
  %v2652 = vpop.f32.mrb[0].mxu0
  %2653 = vmatprep.mubr.f32.mxu0 0.0
  %2654 = vmatmul.mubr.f32.gmra.mrb[0].mxu0 %v481
  %v2655 = vpop.f32.mrb[0].mxu0
  %v2656 = vadd.f32 %v2271, %v2655
  %v2657 = vpop.f32.mrb[0].mxu0
  %2658 = vmatprep.mubr.f32.mxu0 0.0
  %2659 = vmatmul.mubr.f32.gmra.mrb[0].mxu0 %v490
  %v2660 = vpop.f32.mrb[0].mxu0
  %v2661 = vadd.f32 %v2276, %v2660
  %v2662 = vpop.f32.mrb[0].mxu0
  %2663 = vmatprep.mubr.f32.mxu0 0.0
  %2664 = vmatmul.mubr.f32.gmra.mrb[0].mxu0 %v499
  %v2665 = vpop.f32.mrb[0].mxu0
  %v2666 = vadd.f32 %v2281, %v2665
  %v2667 = vpop.f32.mrb[0].mxu0
  %2668 = vmatprep.mubr.f32.mxu0 0.0
  %2669 = vmatmul.mubr.f32.gmra.mrb[0].mxu0 %v508
  %v2670 = vpop.f32.mrb[0].mxu0
  %v2671 = vadd.f32 %v2286, %v2670
  %v2672 = vpop.f32.mrb[0].mxu0
  %2673 = vmatprep.mubr.f32.mxu0 0.0
  %2674 = vmatmul.mubr.f32.gmra.mrb[0].mxu0 %v517
  %v2675 = vpop.f32.mrb[0].mxu0
  %v2676 = vadd.f32 %v2291, %v2675
  %v2677 = vpop.f32.mrb[0].mxu0
  %2678 = vmatprep.mubr.f32.mxu0 0.0
  %2679 = vmatmul.mubr.f32.gmra.mrb[0].mxu0 %v526
  %v2680 = vpop.f32.mrb[0].mxu0
  %v2681 = vadd.f32 %v2296, %v2680
  %v2682 = vpop.f32.mrb[0].mxu0
  %2683 = vmatprep.mubr.f32.mxu0 0.0
  %2684 = vmatmul.mubr.f32.gmra.mrb[0].mxu0 %v535
  %v2685 = vpop.f32.mrb[0].mxu0
  %v2686 = vadd.f32 %v2301, %v2685
  %v2687 = vpop.f32.mrb[0].mxu0
  %2688 = vmatprep.mubr.f32.mxu0 0.0
  %2689 = vmatmul.mubr.f32.gmra.mrb[0].mxu0 %v544
  %v2690 = vpop.f32.mrb[0].mxu0
  %v2691 = vadd.f32 %v2306, %v2690
  %v2692 = vpop.f32.mrb[0].mxu0
  %2693 = vmatprep.mubr.f32.mxu0 0.0
  %2694 = vmatmul.mubr.f32.gmra.mrb[0].mxu0 %v553
  %v2695 = vpop.f32.mrb[0].mxu0
  %v2696 = vadd.f32 %v2311, %v2695
  %v2697 = vpop.f32.mrb[0].mxu0
  %2698 = vmatprep.mubr.f32.mxu0 0.0
  %2699 = vmatmul.mubr.f32.gmra.mrb[0].mxu0 %v562
  %v2700 = vpop.f32.mrb[0].mxu0
  %v2701 = vadd.f32 %v2316, %v2700
  %v2702 = vpop.f32.mrb[0].mxu0
  %2703 = vmatprep.mubr.f32.mxu0 0.0
  %2704 = vmatmul.mubr.f32.gmra.mrb[0].mxu0 %v571
  %v2705 = vpop.f32.mrb[0].mxu0
  %v2706 = vadd.f32 %v2321, %v2705
  %v2707 = vpop.f32.mrb[0].mxu0
  %2708 = vmatprep.mubr.f32.mxu0 0.0
  %2709 = vmatmul.mubr.f32.gmra.mrb[0].mxu0 %v580
  %v2710 = vpop.f32.mrb[0].mxu0
  %v2711 = vadd.f32 %v2326, %v2710
  %v2712 = vpop.f32.mrb[0].mxu0
  %2713 = vmatprep.mubr.f32.mxu0 0.0
  %2714 = vmatmul.mubr.f32.gmra.mrb[0].mxu0 %v589
  %v2715 = vpop.f32.mrb[0].mxu0
  %v2716 = vadd.f32 %v2331, %v2715
  %v2717 = vpop.f32.mrb[0].mxu0
  %2718 = vmatprep.mubr.f32.mxu0 0.0
  %2719 = vmatmul.mubr.f32.gmra.mrb[0].mxu0 %v598
  %v2720 = vpop.f32.mrb[0].mxu0
  %v2721 = vadd.f32 %v2336, %v2720
  %v2722 = vpop.f32.mrb[0].mxu0
  %2723 = vmatprep.mubr.f32.mxu0 0.0
  %2724 = vmatmul.mubr.f32.gmra.mrb[0].mxu0 %v607
  %v2725 = vpop.f32.mrb[0].mxu0
  %v2726 = vadd.f32 %v2341, %v2725
  %v2727 = vpop.f32.mrb[0].mxu0
  %2728 = vmatprep.mubr.f32.mxu0 0.0
  %2729 = vmatmul.mubr.f32.gmra.mrb[0].mxu0 %v616
  %v2730 = vpop.f32.mrb[0].mxu0
  %v2731 = vadd.f32 %v2346, %v2730
  %v2732 = vpop.f32.mrb[0].mxu0
  %2733 = vmatprep.mubr.f32.mxu0 0.0
  %2734 = vmatmul.mubr.f32.gmra.mrb[0].mxu0 %v625
  %v2735 = vpop.f32.mrb[0].mxu0
  %v2736 = vadd.f32 %v2351, %v2735
  %v2737 = vpop.f32.mrb[0].mxu0
  %2738 = vmatprep.mubr.f32.mxu0 0.0
  %2739 = vmatmul.mubr.f32.gmra.mrb[0].mxu0 %v634
  %v2740 = vpop.f32.mrb[0].mxu0
  %v2741 = vadd.f32 %v2356, %v2740
  %v2742 = vpop.f32.mrb[0].mxu0
  %2743 = vmatprep.mubr.f32.mxu0 0.0
  %2744 = vmatmul.mubr.f32.gmra.mrb[0].mxu0 %v643
  %v2745 = vpop.f32.mrb[0].mxu0
  %v2746 = vadd.f32 %v2361, %v2745
  %v2747 = vpop.f32.mrb[0].mxu0
  %2748 = vmatprep.mubr.f32.mxu0 0.0
  %2749 = vmatmul.mubr.f32.gmra.mrb[0].mxu0 %v652
  %v2750 = vpop.f32.mrb[0].mxu0
  %v2751 = vadd.f32 %v2366, %v2750
  %v2752 = vpop.f32.mrb[0].mxu0
  %2753 = vmatprep.mubr.f32.mxu0 0.0
  %2754 = vmatmul.mubr.f32.gmra.mrb[0].mxu0 %v661
  %v2755 = vpop.f32.mrb[0].mxu0
  %v2756 = vadd.f32 %v2371, %v2755
  %v2757 = vpop.f32.mrb[0].mxu0
  %2758 = vmatprep.mubr.f32.mxu0 0.0
  %2759 = vmatmul.mubr.f32.gmra.mrb[0].mxu0 %v670
  %v2760 = vpop.f32.mrb[0].mxu0
  %v2761 = vadd.f32 %v2376, %v2760
  %v2762 = vpop.f32.mrb[0].mxu0
  %2763 = vmatprep.mubr.f32.mxu0 0.0
  %2764 = vmatmul.mubr.f32.gmra.mrb[0].mxu0 %v679
  %v2765 = vpop.f32.mrb[0].mxu0
  %v2766 = vadd.f32 %v2381, %v2765
  %v2767 = vpop.f32.mrb[0].mxu0
  %2768 = vmatprep.mubr.f32.mxu0 0.0
  %2769 = vmatmul.mubr.f32.gmra.mrb[0].mxu0 %v688
  %v2770 = vpop.f32.mrb[0].mxu0
  %v2771 = vadd.f32 %v2386, %v2770
  %v2772 = vpop.f32.mrb[0].mxu0
  %2773 = vmatprep.mubr.f32.mxu0 0.0
  %2774 = vmatmul.mubr.f32.gmra.mrb[0].mxu0 %v697
  %v2775 = vpop.f32.mrb[0].mxu0
  %v2776 = vadd.f32 %v2391, %v2775
  %v2777 = vpop.f32.mrb[0].mxu0
  %2778 = vmatprep.mubr.f32.mxu0 0.0
  %2779 = vmatmul.mubr.f32.gmra.mrb[0].mxu0 %v706
  %v2780 = vpop.f32.mrb[0].mxu0
  %v2781 = vadd.f32 %v2396, %v2780
  %v2782 = vpop.f32.mrb[0].mxu0
  %2783 = vmatprep.mubr.f32.mxu0 0.0
  %2784 = vmatmul.mubr.f32.gmra.mrb[0].mxu0 %v715
  %v2785 = vpop.f32.mrb[0].mxu0
  %v2786 = vadd.f32 %v2401, %v2785
  %v2787 = vpop.f32.mrb[0].mxu0
  %2788 = vmatprep.mubr.f32.mxu0 0.0
  %2789 = vmatmul.mubr.f32.gmra.mrb[0].mxu0 %v724
  %v2790 = vpop.f32.mrb[0].mxu0
  %v2791 = vadd.f32 %v2406, %v2790
  %v2792 = vpop.f32.mrb[0].mxu0
  %2793 = vdwg.mxu0
  %v2794 = vadd.f32 %v85, %v2476
  %v2795 = vadd.f32 %v86, %v2481
  %v2796 = vadd.f32 %v87, %v2486
  %v2797 = vadd.f32 %v88, %v2491
  %v2798 = vadd.f32 %v89, %v2496
  %v2799 = vadd.f32 %v90, %v2501
  %v2800 = vadd.f32 %v91, %v2506
  %v2801 = vadd.f32 %v92, %v2511
  %v2802 = vadd.f32 %v93, %v2516
  %v2803 = vadd.f32 %v94, %v2521
  %v2804 = vadd.f32 %v95, %v2526
  %v2805 = vadd.f32 %v96, %v2531
  %v2806 = vadd.f32 %v97, %v2536
  %v2807 = vadd.f32 %v98, %v2541
  %v2808 = vadd.f32 %v99, %v2546
  %v2809 = vadd.f32 %v100, %v2551
  %v2810 = vadd.f32 %v101, %v2556
  %v2811 = vadd.f32 %v102, %v2561
  %v2812 = vadd.f32 %v103, %v2566
  %v2813 = vadd.f32 %v104, %v2571
  %v2814 = vadd.f32 %v105, %v2576
  %v2815 = vadd.f32 %v106, %v2581
  %v2816 = vadd.f32 %v107, %v2586
  %v2817 = vadd.f32 %v108, %v2591
  %v2818 = vadd.f32 %v109, %v2596
  %v2819 = vadd.f32 %v110, %v2601
  %v2820 = vadd.f32 %v111, %v2606
  %v2821 = vadd.f32 %v112, %v2611
  %v2822 = vadd.f32 %v113, %v2616
  %v2823 = vadd.f32 %v114, %v2621
  %v2824 = vadd.f32 %v115, %v2626
  %v2825 = vadd.f32 %v116, %v2631
  %v2826 = vadd.f32 %v117, %v2636
  %v2827 = vadd.f32 %v118, %v2641
  %v2828 = vadd.f32 %v119, %v2646
  %v2829 = vadd.f32 %v120, %v2651
  %v2830 = vadd.f32 %v121, %v2656
  %v2831 = vadd.f32 %v122, %v2661
  %v2832 = vadd.f32 %v123, %v2666
  %v2833 = vadd.f32 %v124, %v2671
  %v2834 = vadd.f32 %v125, %v2676
  %v2835 = vadd.f32 %v126, %v2681
  %v2836 = vadd.f32 %v127, %v2686
  %v2837 = vadd.f32 %v128, %v2691
  %v2838 = vadd.f32 %v129, %v2696
  %v2839 = vadd.f32 %v130, %v2701
  %v2840 = vadd.f32 %v131, %v2706
  %v2841 = vadd.f32 %v132, %v2711
  %v2842 = vadd.f32 %v133, %v2716
  %v2843 = vadd.f32 %v134, %v2721
  %v2844 = vadd.f32 %v135, %v2726
  %v2845 = vadd.f32 %v136, %v2731
  %v2846 = vadd.f32 %v137, %v2736
  %v2847 = vadd.f32 %v138, %v2741
  %v2848 = vadd.f32 %v139, %v2746
  %v2849 = vadd.f32 %v140, %v2751
  %v2850 = vadd.f32 %v141, %v2756
  %v2851 = vadd.f32 %v142, %v2761
  %v2852 = vadd.f32 %v143, %v2766
  %v2853 = vadd.f32 %v144, %v2771
  %v2854 = vadd.f32 %v145, %v2776
  %v2855 = vadd.f32 %v146, %v2781
  %v2856 = vadd.f32 %v147, %v2786
  %v2857 = vadd.f32 %v148, %v2791
  %2858 = vst [vmem:[#allocation2] sm:$0xff] %v2794
  %2859 = vst [vmem:[#allocation2 + $0x8] sm:$0xff] %v2795
  %2860 = vst [vmem:[#allocation2 + $0x10] sm:$0xff] %v2796
  %2861 = vst [vmem:[#allocation2 + $0x18] sm:$0xff] %v2797
  %2862 = vst [vmem:[#allocation2 + $0x20] sm:$0xff] %v2798
  %2863 = vst [vmem:[#allocation2 + $0x28] sm:$0xff] %v2799
  %2864 = vst [vmem:[#allocation2 + $0x30] sm:$0xff] %v2800
  %2865 = vst [vmem:[#allocation2 + $0x38] sm:$0xff] %v2801
  %2866 = vst [vmem:[#allocation2 + $0x40] sm:$0xff] %v2802
  %2867 = vst [vmem:[#allocation2 + $0x48] sm:$0xff] %v2803
  %2868 = vst [vmem:[#allocation2 + $0x50] sm:$0xff] %v2804
  %2869 = vst [vmem:[#allocation2 + $0x58] sm:$0xff] %v2805
  %2870 = vst [vmem:[#allocation2 + $0x60] sm:$0xff] %v2806
  %2871 = vst [vmem:[#allocation2 + $0x68] sm:$0xff] %v2807
  %2872 = vst [vmem:[#allocation2 + $0x70] sm:$0xff] %v2808
  %2873 = vst [vmem:[#allocation2 + $0x78] sm:$0xff] %v2809
  %2874 = vst [vmem:[#allocation2 + $0x80] sm:$0xff] %v2810
  %2875 = vst [vmem:[#allocation2 + $0x88] sm:$0xff] %v2811
  %2876 = vst [vmem:[#allocation2 + $0x90] sm:$0xff] %v2812
  %2877 = vst [vmem:[#allocation2 + $0x98] sm:$0xff] %v2813
  %2878 = vst [vmem:[#allocation2 + $0xa0] sm:$0xff] %v2814
  %2879 = vst [vmem:[#allocation2 + $0xa8] sm:$0xff] %v2815
  %2880 = vst [vmem:[#allocation2 + $0xb0] sm:$0xff] %v2816
  %2881 = vst [vmem:[#allocation2 + $0xb8] sm:$0xff] %v2817
  %2882 = vst [vmem:[#allocation2 + $0xc0] sm:$0xff] %v2818
  %2883 = vst [vmem:[#allocation2 + $0xc8] sm:$0xff] %v2819
  %2884 = vst [vmem:[#allocation2 + $0xd0] sm:$0xff] %v2820
  %2885 = vst [vmem:[#allocation2 + $0xd8] sm:$0xff] %v2821
  %2886 = vst [vmem:[#allocation2 + $0xe0] sm:$0xff] %v2822
  %2887 = vst [vmem:[#allocation2 + $0xe8] sm:$0xff] %v2823
  %2888 = vst [vmem:[#allocation2 + $0xf0] sm:$0xff] %v2824
  %2889 = vst [vmem:[#allocation2 + $0xf8] sm:$0xff] %v2825
  %2890 = vst [vmem:[#allocation2 + $0x100] sm:$0xff] %v2826
  %2891 = vst [vmem:[#allocation2 + $0x108] sm:$0xff] %v2827
  %2892 = vst [vmem:[#allocation2 + $0x110] sm:$0xff] %v2828
  %2893 = vst [vmem:[#allocation2 + $0x118] sm:$0xff] %v2829
  %2894 = vst [vmem:[#allocation2 + $0x120] sm:$0xff] %v2830
  %2895 = vst [vmem:[#allocation2 + $0x128] sm:$0xff] %v2831
  %2896 = vst [vmem:[#allocation2 + $0x130] sm:$0xff] %v2832
  %2897 = vst [vmem:[#allocation2 + $0x138] sm:$0xff] %v2833
  %2898 = vst [vmem:[#allocation2 + $0x140] sm:$0xff] %v2834
  %2899 = vst [vmem:[#allocation2 + $0x148] sm:$0xff] %v2835
  %2900 = vst [vmem:[#allocation2 + $0x150] sm:$0xff] %v2836
  %2901 = vst [vmem:[#allocation2 + $0x158] sm:$0xff] %v2837
  %2902 = vst [vmem:[#allocation2 + $0x160] sm:$0xff] %v2838
  %2903 = vst [vmem:[#allocation2 + $0x168] sm:$0xff] %v2839
  %2904 = vst [vmem:[#allocation2 + $0x170] sm:$0xff] %v2840
  %2905 = vst [vmem:[#allocation2 + $0x178] sm:$0xff] %v2841
  %2906 = vst [vmem:[#allocation2 + $0x180] sm:$0xff] %v2842
  %2907 = vst [vmem:[#allocation2 + $0x188] sm:$0xff] %v2843
  %2908 = vst [vmem:[#allocation2 + $0x190] sm:$0xff] %v2844
  %2909 = vst [vmem:[#allocation2 + $0x198] sm:$0xff] %v2845
  %2910 = vst [vmem:[#allocation2 + $0x1a0] sm:$0xff] %v2846
  %2911 = vst [vmem:[#allocation2 + $0x1a8] sm:$0xff] %v2847
  %2912 = vst [vmem:[#allocation2 + $0x1b0] sm:$0xff] %v2848
  %2913 = vst [vmem:[#allocation2 + $0x1b8] sm:$0xff] %v2849
  %2914 = vst [vmem:[#allocation2 + $0x1c0] sm:$0xff] %v2850
  %2915 = vst [vmem:[#allocation2 + $0x1c8] sm:$0xff] %v2851
  %2916 = vst [vmem:[#allocation2 + $0x1d0] sm:$0xff] %v2852
  %2917 = vst [vmem:[#allocation2 + $0x1d8] sm:$0xff] %v2853
  %2918 = vst [vmem:[#allocation2 + $0x1e0] sm:$0xff] %v2854
  %2919 = vst [vmem:[#allocation2 + $0x1e8] sm:$0xff] %v2855
  %2920 = vst [vmem:[#allocation2 + $0x1f0] sm:$0xff] %v2856
  %2921 = vst [vmem:[#allocation2 + $0x1f8] sm:$0xff] %v2857
  // Predicated region
  $region18: #{_lambda_.6} parent=0 // pred_check
    %p2922 = pneg %p17
  $region19: #{_lambda_.6} parent=0 // pred_check_branch
    %2924 = sbr.rel (%p2922) target = $region21
  $region20: #{_lambda_.6} parent=0 // pred_region
    %v2925 = vld [vmem:[#allocation2] sm:$0xff]
    %v2926 = vld [vmem:[#allocation2 + $0x8] sm:$0xff]
    %v2927 = vld [vmem:[#allocation2 + $0x10] sm:$0xff]
    %v2928 = vld [vmem:[#allocation2 + $0x18] sm:$0xff]
    %v2929 = vld [vmem:[#allocation2 + $0x20] sm:$0xff]
    %v2930 = vld [vmem:[#allocation2 + $0x28] sm:$0xff]
    %v2931 = vld [vmem:[#allocation2 + $0x30] sm:$0xff]
    %v2932 = vld [vmem:[#allocation2 + $0x38] sm:$0xff]
    %v2933 = vld [vmem:[#allocation2 + $0x40] sm:$0xff]
    %v2934 = vld [vmem:[#allocation2 + $0x48] sm:$0xff]
    %v2935 = vld [vmem:[#allocation2 + $0x50] sm:$0xff]
    %v2936 = vld [vmem:[#allocation2 + $0x58] sm:$0xff]
    %v2937 = vld [vmem:[#allocation2 + $0x60] sm:$0xff]
    %v2938 = vld [vmem:[#allocation2 + $0x68] sm:$0xff]
    %v2939 = vld [vmem:[#allocation2 + $0x70] sm:$0xff]
    %v2940 = vld [vmem:[#allocation2 + $0x78] sm:$0xff]
    %v2941 = vld [vmem:[#allocation2 + $0x80] sm:$0xff]
    %v2942 = vld [vmem:[#allocation2 + $0x88] sm:$0xff]
    %v2943 = vld [vmem:[#allocation2 + $0x90] sm:$0xff]
    %v2944 = vld [vmem:[#allocation2 + $0x98] sm:$0xff]
    %v2945 = vld [vmem:[#allocation2 + $0xa0] sm:$0xff]
    %v2946 = vld [vmem:[#allocation2 + $0xa8] sm:$0xff]
    %v2947 = vld [vmem:[#allocation2 + $0xb0] sm:$0xff]
    %v2948 = vld [vmem:[#allocation2 + $0xb8] sm:$0xff]
    %v2949 = vld [vmem:[#allocation2 + $0xc0] sm:$0xff]
    %v2950 = vld [vmem:[#allocation2 + $0xc8] sm:$0xff]
    %v2951 = vld [vmem:[#allocation2 + $0xd0] sm:$0xff]
    %v2952 = vld [vmem:[#allocation2 + $0xd8] sm:$0xff]
    %v2953 = vld [vmem:[#allocation2 + $0xe0] sm:$0xff]
    %v2954 = vld [vmem:[#allocation2 + $0xe8] sm:$0xff]
    %v2955 = vld [vmem:[#allocation2 + $0xf0] sm:$0xff]
    %v2956 = vld [vmem:[#allocation2 + $0xf8] sm:$0xff]
    %v2957 = vld [vmem:[#allocation2 + $0x100] sm:$0xff]
    %v2958 = vld [vmem:[#allocation2 + $0x108] sm:$0xff]
    %v2959 = vld [vmem:[#allocation2 + $0x110] sm:$0xff]
    %v2960 = vld [vmem:[#allocation2 + $0x118] sm:$0xff]
    %v2961 = vld [vmem:[#allocation2 + $0x120] sm:$0xff]
    %v2962 = vld [vmem:[#allocation2 + $0x128] sm:$0xff]
    %v2963 = vld [vmem:[#allocation2 + $0x130] sm:$0xff]
    %v2964 = vld [vmem:[#allocation2 + $0x138] sm:$0xff]
    %v2965 = vld [vmem:[#allocation2 + $0x140] sm:$0xff]
    %v2966 = vld [vmem:[#allocation2 + $0x148] sm:$0xff]
    %v2967 = vld [vmem:[#allocation2 + $0x150] sm:$0xff]
    %v2968 = vld [vmem:[#allocation2 + $0x158] sm:$0xff]
    %v2969 = vld [vmem:[#allocation2 + $0x160] sm:$0xff]
    %v2970 = vld [vmem:[#allocation2 + $0x168] sm:$0xff]
    %v2971 = vld [vmem:[#allocation2 + $0x170] sm:$0xff]
    %v2972 = vld [vmem:[#allocation2 + $0x178] sm:$0xff]
    %v2973 = vld [vmem:[#allocation2 + $0x180] sm:$0xff]
    %v2974 = vld [vmem:[#allocation2 + $0x188] sm:$0xff]
    %v2975 = vld [vmem:[#allocation2 + $0x190] sm:$0xff]
    %v2976 = vld [vmem:[#allocation2 + $0x198] sm:$0xff]
    %v2977 = vld [vmem:[#allocation2 + $0x1a0] sm:$0xff]
    %v2978 = vld [vmem:[#allocation2 + $0x1a8] sm:$0xff]
    %v2979 = vld [vmem:[#allocation2 + $0x1b0] sm:$0xff]
    %v2980 = vld [vmem:[#allocation2 + $0x1b8] sm:$0xff]
    %v2981 = vld [vmem:[#allocation2 + $0x1c0] sm:$0xff]
    %v2982 = vld [vmem:[#allocation2 + $0x1c8] sm:$0xff]
    %v2983 = vld [vmem:[#allocation2 + $0x1d0] sm:$0xff]
    %v2984 = vld [vmem:[#allocation2 + $0x1d8] sm:$0xff]
    %v2985 = vld [vmem:[#allocation2 + $0x1e0] sm:$0xff]
    %v2986 = vld [vmem:[#allocation2 + $0x1e8] sm:$0xff]
    %v2987 = vld [vmem:[#allocation2 + $0x1f0] sm:$0xff]
    %v2988 = vld [vmem:[#allocation2 + $0x1f8] sm:$0xff]
    %v2989 = vld [vmem:[%s2] sm:$0x1]
    %v2991 = vlaneseq
    %v2992 = vshrl.u32 %v2991, 7
    %v2993 = vsub.s32 0, %v2992
    %v2994 = vrot.slane %v2989, %v2993
    %v2996 = vadd.f32 %v2925, %v2994
    %v2997 = vadd.f32 %v2926, %v2994
    %v2998 = vadd.f32 %v2927, %v2994
    %v2999 = vadd.f32 %v2928, %v2994
    %v3000 = vadd.f32 %v2929, %v2994
    %v3001 = vadd.f32 %v2930, %v2994
    %v3002 = vadd.f32 %v2931, %v2994
    %v3003 = vadd.f32 %v2932, %v2994
    %v3004 = vadd.f32 %v2933, %v2994
    %v3005 = vadd.f32 %v2934, %v2994
    %v3006 = vadd.f32 %v2935, %v2994
    %v3007 = vadd.f32 %v2936, %v2994
    %v3008 = vadd.f32 %v2937, %v2994
    %v3009 = vadd.f32 %v2938, %v2994
    %v3010 = vadd.f32 %v2939, %v2994
    %v3011 = vadd.f32 %v2940, %v2994
    %v3012 = vadd.f32 %v2941, %v2994
    %v3013 = vadd.f32 %v2942, %v2994
    %v3014 = vadd.f32 %v2943, %v2994
    %v3015 = vadd.f32 %v2944, %v2994
    %v3016 = vadd.f32 %v2945, %v2994
    %v3017 = vadd.f32 %v2946, %v2994
    %v3018 = vadd.f32 %v2947, %v2994
    %v3019 = vadd.f32 %v2948, %v2994
    %v3020 = vadd.f32 %v2949, %v2994
    %v3021 = vadd.f32 %v2950, %v2994
    %v3022 = vadd.f32 %v2951, %v2994
    %v3023 = vadd.f32 %v2952, %v2994
    %v3024 = vadd.f32 %v2953, %v2994
    %v3025 = vadd.f32 %v2954, %v2994
    %v3026 = vadd.f32 %v2955, %v2994
    %v3027 = vadd.f32 %v2956, %v2994
    %v3028 = vadd.f32 %v2957, %v2994
    %v3029 = vadd.f32 %v2958, %v2994
    %v3030 = vadd.f32 %v2959, %v2994
    %v3031 = vadd.f32 %v2960, %v2994
    %v3032 = vadd.f32 %v2961, %v2994
    %v3033 = vadd.f32 %v2962, %v2994
    %v3034 = vadd.f32 %v2963, %v2994
    %v3035 = vadd.f32 %v2964, %v2994
    %v3036 = vadd.f32 %v2965, %v2994
    %v3037 = vadd.f32 %v2966, %v2994
    %v3038 = vadd.f32 %v2967, %v2994
    %v3039 = vadd.f32 %v2968, %v2994
    %v3040 = vadd.f32 %v2969, %v2994
    %v3041 = vadd.f32 %v2970, %v2994
    %v3042 = vadd.f32 %v2971, %v2994
    %v3043 = vadd.f32 %v2972, %v2994
    %v3044 = vadd.f32 %v2973, %v2994
    %v3045 = vadd.f32 %v2974, %v2994
    %v3046 = vadd.f32 %v2975, %v2994
    %v3047 = vadd.f32 %v2976, %v2994
    %v3048 = vadd.f32 %v2977, %v2994
    %v3049 = vadd.f32 %v2978, %v2994
    %v3050 = vadd.f32 %v2979, %v2994
    %v3051 = vadd.f32 %v2980, %v2994
    %v3052 = vadd.f32 %v2981, %v2994
    %v3053 = vadd.f32 %v2982, %v2994
    %v3054 = vadd.f32 %v2983, %v2994
    %v3055 = vadd.f32 %v2984, %v2994
    %v3056 = vadd.f32 %v2985, %v2994
    %v3057 = vadd.f32 %v2986, %v2994
    %v3058 = vadd.f32 %v2987, %v2994
    %v3059 = vadd.f32 %v2988, %v2994
    %3060 = vst [vmem:[%s3] sm:$0xff] %v2996
    %3061 = vst [vmem:[%s3 + $0x8] sm:$0xff] %v2997
    %3062 = vst [vmem:[%s3 + $0x10] sm:$0xff] %v2998
    %3063 = vst [vmem:[%s3 + $0x18] sm:$0xff] %v2999
    %3064 = vst [vmem:[%s3 + $0x20] sm:$0xff] %v3000
    %3065 = vst [vmem:[%s3 + $0x28] sm:$0xff] %v3001
    %3066 = vst [vmem:[%s3 + $0x30] sm:$0xff] %v3002
    %3067 = vst [vmem:[%s3 + $0x38] sm:$0xff] %v3003
    %3068 = vst [vmem:[%s3 + $0x40] sm:$0xff] %v3004
    %3069 = vst [vmem:[%s3 + $0x48] sm:$0xff] %v3005
    %3070 = vst [vmem:[%s3 + $0x50] sm:$0xff] %v3006
    %3071 = vst [vmem:[%s3 + $0x58] sm:$0xff] %v3007
    %3072 = vst [vmem:[%s3 + $0x60] sm:$0xff] %v3008
    %3073 = vst [vmem:[%s3 + $0x68] sm:$0xff] %v3009
    %3074 = vst [vmem:[%s3 + $0x70] sm:$0xff] %v3010
    %3075 = vst [vmem:[%s3 + $0x78] sm:$0xff] %v3011
    %3076 = vst [vmem:[%s3 + $0x80] sm:$0xff] %v3012
    %3077 = vst [vmem:[%s3 + $0x88] sm:$0xff] %v3013
    %3078 = vst [vmem:[%s3 + $0x90] sm:$0xff] %v3014
    %3079 = vst [vmem:[%s3 + $0x98] sm:$0xff] %v3015
    %3080 = vst [vmem:[%s3 + $0xa0] sm:$0xff] %v3016
    %3081 = vst [vmem:[%s3 + $0xa8] sm:$0xff] %v3017
    %3082 = vst [vmem:[%s3 + $0xb0] sm:$0xff] %v3018
    %3083 = vst [vmem:[%s3 + $0xb8] sm:$0xff] %v3019
    %3084 = vst [vmem:[%s3 + $0xc0] sm:$0xff] %v3020
    %3085 = vst [vmem:[%s3 + $0xc8] sm:$0xff] %v3021
    %3086 = vst [vmem:[%s3 + $0xd0] sm:$0xff] %v3022
    %3087 = vst [vmem:[%s3 + $0xd8] sm:$0xff] %v3023
    %3088 = vst [vmem:[%s3 + $0xe0] sm:$0xff] %v3024
    %3089 = vst [vmem:[%s3 + $0xe8] sm:$0xff] %v3025
    %3090 = vst [vmem:[%s3 + $0xf0] sm:$0xff] %v3026
    %3091 = vst [vmem:[%s3 + $0xf8] sm:$0xff] %v3027
    %3092 = vst [vmem:[%s3 + $0x100] sm:$0xff] %v3028
    %3093 = vst [vmem:[%s3 + $0x108] sm:$0xff] %v3029
    %3094 = vst [vmem:[%s3 + $0x110] sm:$0xff] %v3030
    %3095 = vst [vmem:[%s3 + $0x118] sm:$0xff] %v3031
    %3096 = vst [vmem:[%s3 + $0x120] sm:$0xff] %v3032
    %3097 = vst [vmem:[%s3 + $0x128] sm:$0xff] %v3033
    %3098 = vst [vmem:[%s3 + $0x130] sm:$0xff] %v3034
    %3099 = vst [vmem:[%s3 + $0x138] sm:$0xff] %v3035
    %3100 = vst [vmem:[%s3 + $0x140] sm:$0xff] %v3036
    %3101 = vst [vmem:[%s3 + $0x148] sm:$0xff] %v3037
    %3102 = vst [vmem:[%s3 + $0x150] sm:$0xff] %v3038
    %3103 = vst [vmem:[%s3 + $0x158] sm:$0xff] %v3039
    %3104 = vst [vmem:[%s3 + $0x160] sm:$0xff] %v3040
    %3105 = vst [vmem:[%s3 + $0x168] sm:$0xff] %v3041
    %3106 = vst [vmem:[%s3 + $0x170] sm:$0xff] %v3042
    %3107 = vst [vmem:[%s3 + $0x178] sm:$0xff] %v3043
    %3108 = vst [vmem:[%s3 + $0x180] sm:$0xff] %v3044
    %3109 = vst [vmem:[%s3 + $0x188] sm:$0xff] %v3045
    %3110 = vst [vmem:[%s3 + $0x190] sm:$0xff] %v3046
    %3111 = vst [vmem:[%s3 + $0x198] sm:$0xff] %v3047
    %3112 = vst [vmem:[%s3 + $0x1a0] sm:$0xff] %v3048
    %3113 = vst [vmem:[%s3 + $0x1a8] sm:$0xff] %v3049
    %3114 = vst [vmem:[%s3 + $0x1b0] sm:$0xff] %v3050
    %3115 = vst [vmem:[%s3 + $0x1b8] sm:$0xff] %v3051
    %3116 = vst [vmem:[%s3 + $0x1c0] sm:$0xff] %v3052
    %3117 = vst [vmem:[%s3 + $0x1c8] sm:$0xff] %v3053
    %3118 = vst [vmem:[%s3 + $0x1d0] sm:$0xff] %v3054
    %3119 = vst [vmem:[%s3 + $0x1d8] sm:$0xff] %v3055
    %3120 = vst [vmem:[%s3 + $0x1e0] sm:$0xff] %v3056
    %3121 = vst [vmem:[%s3 + $0x1e8] sm:$0xff] %v3057
    %3122 = vst [vmem:[%s3 + $0x1f0] sm:$0xff] %v3058
    %3123 = vst [vmem:[%s3 + $0x1f8] sm:$0xff] %v3059
    %v3124 = vadd.f32 %v2996, %v2997
    %v3125 = vadd.f32 %v3124, %v2998
    %v3126 = vadd.f32 %v3125, %v2999
    %v3127 = vadd.f32 %v3126, %v3000
    %v3128 = vadd.f32 %v3127, %v3001
    %v3129 = vadd.f32 %v3128, %v3002
    %v3130 = vadd.f32 %v3129, %v3003
    %v3131 = vadd.f32 %v3130, %v3004
    %v3132 = vadd.f32 %v3131, %v3005
    %v3133 = vadd.f32 %v3132, %v3006
    %v3134 = vadd.f32 %v3133, %v3007
    %v3135 = vadd.f32 %v3134, %v3008
    %v3136 = vadd.f32 %v3135, %v3009
    %v3137 = vadd.f32 %v3136, %v3010
    %v3138 = vadd.f32 %v3137, %v3011
    %v3139 = vadd.f32 %v3138, %v3012
    %v3140 = vadd.f32 %v3139, %v3013
    %v3141 = vadd.f32 %v3140, %v3014
    %v3142 = vadd.f32 %v3141, %v3015
    %v3143 = vadd.f32 %v3142, %v3016
    %v3144 = vadd.f32 %v3143, %v3017
    %v3145 = vadd.f32 %v3144, %v3018
    %v3146 = vadd.f32 %v3145, %v3019
    %v3147 = vadd.f32 %v3146, %v3020
    %v3148 = vadd.f32 %v3147, %v3021
    %v3149 = vadd.f32 %v3148, %v3022
    %v3150 = vadd.f32 %v3149, %v3023
    %v3151 = vadd.f32 %v3150, %v3024
    %v3152 = vadd.f32 %v3151, %v3025
    %v3153 = vadd.f32 %v3152, %v3026
    %v3154 = vadd.f32 %v3153, %v3027
    %v3155 = vadd.f32 %v3154, %v3028
    %v3156 = vadd.f32 %v3155, %v3029
    %v3157 = vadd.f32 %v3156, %v3030
    %v3158 = vadd.f32 %v3157, %v3031
    %v3159 = vadd.f32 %v3158, %v3032
    %v3160 = vadd.f32 %v3159, %v3033
    %v3161 = vadd.f32 %v3160, %v3034
    %v3162 = vadd.f32 %v3161, %v3035
    %v3163 = vadd.f32 %v3162, %v3036
    %v3164 = vadd.f32 %v3163, %v3037
    %v3165 = vadd.f32 %v3164, %v3038
    %v3166 = vadd.f32 %v3165, %v3039
    %v3167 = vadd.f32 %v3166, %v3040
    %v3168 = vadd.f32 %v3167, %v3041
    %v3169 = vadd.f32 %v3168, %v3042
    %v3170 = vadd.f32 %v3169, %v3043
    %v3171 = vadd.f32 %v3170, %v3044
    %v3172 = vadd.f32 %v3171, %v3045
    %v3173 = vadd.f32 %v3172, %v3046
    %v3174 = vadd.f32 %v3173, %v3047
    %v3175 = vadd.f32 %v3174, %v3048
    %v3176 = vadd.f32 %v3175, %v3049
    %v3177 = vadd.f32 %v3176, %v3050
    %v3178 = vadd.f32 %v3177, %v3051
    %v3179 = vadd.f32 %v3178, %v3052
    %v3180 = vadd.f32 %v3179, %v3053
    %v3181 = vadd.f32 %v3180, %v3054
    %v3182 = vadd.f32 %v3181, %v3055
    %v3183 = vadd.f32 %v3182, %v3056
    %v3184 = vadd.f32 %v3183, %v3057
    %v3185 = vadd.f32 %v3184, %v3058
    %v3186 = vadd.f32 %v3185, %v3059
    %v3187 = vrot.slane %v3186, 4
    %v3188 = vadd.f32 %v3186, %v3187
    %v3189 = vrot.slane %v3188, 2
    %v3190 = vadd.f32 %v3188, %v3189
    %v3191 = vrot.slane %v3190, 1
    %v3192 = vadd.f32 %v3190, %v3191
    %v3193 = vmul.f32 %v2996, %v2996
    %v3194 = vmul.f32 %v2997, %v2997
    %v3195 = vmul.f32 %v2998, %v2998
    %v3196 = vmul.f32 %v2999, %v2999
    %v3197 = vmul.f32 %v3000, %v3000
    %v3198 = vmul.f32 %v3001, %v3001
    %v3199 = vmul.f32 %v3002, %v3002
    %v3200 = vmul.f32 %v3003, %v3003
    %v3201 = vmul.f32 %v3004, %v3004
    %v3202 = vmul.f32 %v3005, %v3005
    %v3203 = vmul.f32 %v3006, %v3006
    %v3204 = vmul.f32 %v3007, %v3007
    %v3205 = vmul.f32 %v3008, %v3008
    %v3206 = vmul.f32 %v3009, %v3009
    %v3207 = vmul.f32 %v3010, %v3010
    %v3208 = vmul.f32 %v3011, %v3011
    %v3209 = vmul.f32 %v3012, %v3012
    %v3210 = vmul.f32 %v3013, %v3013
    %v3211 = vmul.f32 %v3014, %v3014
    %v3212 = vmul.f32 %v3015, %v3015
    %v3213 = vmul.f32 %v3016, %v3016
    %v3214 = vmul.f32 %v3017, %v3017
    %v3215 = vmul.f32 %v3018, %v3018
    %v3216 = vmul.f32 %v3019, %v3019
    %v3217 = vmul.f32 %v3020, %v3020
    %v3218 = vmul.f32 %v3021, %v3021
    %v3219 = vmul.f32 %v3022, %v3022
    %v3220 = vmul.f32 %v3023, %v3023
    %v3221 = vmul.f32 %v3024, %v3024
    %v3222 = vmul.f32 %v3025, %v3025
    %v3223 = vmul.f32 %v3026, %v3026
    %v3224 = vmul.f32 %v3027, %v3027
    %v3225 = vmul.f32 %v3028, %v3028
    %v3226 = vmul.f32 %v3029, %v3029
    %v3227 = vmul.f32 %v3030, %v3030
    %v3228 = vmul.f32 %v3031, %v3031
    %v3229 = vmul.f32 %v3032, %v3032
    %v3230 = vmul.f32 %v3033, %v3033
    %v3231 = vmul.f32 %v3034, %v3034
    %v3232 = vmul.f32 %v3035, %v3035
    %v3233 = vmul.f32 %v3036, %v3036
    %v3234 = vmul.f32 %v3037, %v3037
    %v3235 = vmul.f32 %v3038, %v3038
    %v3236 = vmul.f32 %v3039, %v3039
    %v3237 = vmul.f32 %v3040, %v3040
    %v3238 = vmul.f32 %v3041, %v3041
    %v3239 = vmul.f32 %v3042, %v3042
    %v3240 = vmul.f32 %v3043, %v3043
    %v3241 = vmul.f32 %v3044, %v3044
    %v3242 = vmul.f32 %v3045, %v3045
    %v3243 = vmul.f32 %v3046, %v3046
    %v3244 = vmul.f32 %v3047, %v3047
    %v3245 = vmul.f32 %v3048, %v3048
    %v3246 = vmul.f32 %v3049, %v3049
    %v3247 = vmul.f32 %v3050, %v3050
    %v3248 = vmul.f32 %v3051, %v3051
    %v3249 = vmul.f32 %v3052, %v3052
    %v3250 = vmul.f32 %v3053, %v3053
    %v3251 = vmul.f32 %v3054, %v3054
    %v3252 = vmul.f32 %v3055, %v3055
    %v3253 = vmul.f32 %v3056, %v3056
    %v3254 = vmul.f32 %v3057, %v3057
    %v3255 = vmul.f32 %v3058, %v3058
    %v3256 = vmul.f32 %v3059, %v3059
    %v3257 = vadd.f32 %v3193, %v3194
    %v3258 = vadd.f32 %v3257, %v3195
    %v3259 = vadd.f32 %v3258, %v3196
    %v3260 = vadd.f32 %v3259, %v3197
    %v3261 = vadd.f32 %v3260, %v3198
    %v3262 = vadd.f32 %v3261, %v3199
    %v3263 = vadd.f32 %v3262, %v3200
    %v3264 = vadd.f32 %v3263, %v3201
    %v3265 = vadd.f32 %v3264, %v3202
    %v3266 = vadd.f32 %v3265, %v3203
    %v3267 = vadd.f32 %v3266, %v3204
    %v3268 = vadd.f32 %v3267, %v3205
    %v3269 = vadd.f32 %v3268, %v3206
    %v3270 = vadd.f32 %v3269, %v3207
    %v3271 = vadd.f32 %v3270, %v3208
    %v3272 = vadd.f32 %v3271, %v3209
    %v3273 = vadd.f32 %v3272, %v3210
    %v3274 = vadd.f32 %v3273, %v3211
    %v3275 = vadd.f32 %v3274, %v3212
    %v3276 = vadd.f32 %v3275, %v3213
    %v3277 = vadd.f32 %v3276, %v3214
    %v3278 = vadd.f32 %v3277, %v3215
    %v3279 = vadd.f32 %v3278, %v3216
    %v3280 = vadd.f32 %v3279, %v3217
    %v3281 = vadd.f32 %v3280, %v3218
    %v3282 = vadd.f32 %v3281, %v3219
    %v3283 = vadd.f32 %v3282, %v3220
    %v3284 = vadd.f32 %v3283, %v3221
    %v3285 = vadd.f32 %v3284, %v3222
    %v3286 = vadd.f32 %v3285, %v3223
    %v3287 = vadd.f32 %v3286, %v3224
    %v3288 = vadd.f32 %v3287, %v3225
    %v3289 = vadd.f32 %v3288, %v3226
    %v3290 = vadd.f32 %v3289, %v3227
    %v3291 = vadd.f32 %v3290, %v3228
    %v3292 = vadd.f32 %v3291, %v3229
    %v3293 = vadd.f32 %v3292, %v3230
    %v3294 = vadd.f32 %v3293, %v3231
    %v3295 = vadd.f32 %v3294, %v3232
    %v3296 = vadd.f32 %v3295, %v3233
    %v3297 = vadd.f32 %v3296, %v3234
    %v3298 = vadd.f32 %v3297, %v3235
    %v3299 = vadd.f32 %v3298, %v3236
    %v3300 = vadd.f32 %v3299, %v3237
    %v3301 = vadd.f32 %v3300, %v3238
    %v3302 = vadd.f32 %v3301, %v3239
    %v3303 = vadd.f32 %v3302, %v3240
    %v3304 = vadd.f32 %v3303, %v3241
    %v3305 = vadd.f32 %v3304, %v3242
    %v3306 = vadd.f32 %v3305, %v3243
    %v3307 = vadd.f32 %v3306, %v3244
    %v3308 = vadd.f32 %v3307, %v3245
    %v3309 = vadd.f32 %v3308, %v3246
    %v3310 = vadd.f32 %v3309, %v3247
    %v3311 = vadd.f32 %v3310, %v3248
    %v3312 = vadd.f32 %v3311, %v3249
    %v3313 = vadd.f32 %v3312, %v3250
    %v3314 = vadd.f32 %v3313, %v3251
    %v3315 = vadd.f32 %v3314, %v3252
    %v3316 = vadd.f32 %v3315, %v3253
    %v3317 = vadd.f32 %v3316, %v3254
    %v3318 = vadd.f32 %v3317, %v3255
    %v3319 = vadd.f32 %v3318, %v3256
    %v3320 = vrot.slane %v3319, 4
    %v3321 = vadd.f32 %v3319, %v3320
    %v3322 = vrot.slane %v3321, 2
    %v3323 = vadd.f32 %v3321, %v3322
    %v3324 = vrot.slane %v3323, 1
    %v3325 = vadd.f32 %v3323, %v3324
    %3326 = vst [vmem:[%s4] sm:$0xff] %v3192
    %3327 = vst [vmem:[%s5] sm:$0xff] %v3325
  $region21: #{_lambda_.6} parent=0 // pred_fallthru
    _
  // Predicated region
  $region22: #{_lambda_.6} parent=0 // pred_check
    _
  $region23: #{_lambda_.6} parent=0 // pred_check_branch
    %3329 = sbr.rel (0) target = $region25
  $region24: #{_lambda_.6} parent=0 // pred_region
    _
  $region25: #{_lambda_.6} parent=0 // pred_fallthru
    _
  // Predicated region
  $region26: #{_lambda_.6} parent=0 // pred_check
    _
  $region27: #{_lambda_.6} parent=0 // pred_check_branch
    %3331 = sbr.rel (0) target = $region29
  $region28: #{_lambda_.6} parent=0 // pred_region
    _
  $region29: #{_lambda_.6} parent=0 // pred_fallthru
    _
  // Predicated region
  $region30: #{_lambda_.6} parent=0 // pred_check
    _
  $region31: #{_lambda_.6} parent=0 // pred_check_branch
    %3333 = sbr.rel (0) target = $region33
  $region32: #{_lambda_.6} parent=0 // pred_region
    _
  $region33: #{_lambda_.6} parent=0 // pred_fallthru
    _
  // Predicated region
  $region34: #{_lambda_.6} parent=0 // pred_check
    _
  $region35: #{_lambda_.6} parent=0 // pred_check_branch
    %3335 = sbr.rel (0) target = $region37
  $region36: #{_lambda_.6} parent=0 // pred_region
    _
  $region37: #{_lambda_.6} parent=0 // pred_fallthru
    _
  // Predicated region
  $region38: #{_lambda_.6} parent=0 // pred_check
    _
  $region39: #{_lambda_.6} parent=0 // pred_check_branch
    %3337 = sbr.rel (0) target = $region41
  $region40: #{_lambda_.6} parent=0 // pred_region
    _
  $region41: #{_lambda_.6} parent=0 // pred_fallthru
    _
  // Predicated region
  $region42: #{_lambda_.6} parent=0 // pred_check
    _
  $region43: #{_lambda_.6} parent=0 // pred_check_branch
    %3339 = sbr.rel (0) target = $region45
  $region44: #{_lambda_.6} parent=0 // pred_region
    _
  $region45: #{_lambda_.6} parent=0 // pred_fallthru
    _

</llo_original>
